<compile_context>
chip_gen: v7x
topology: tpu7x:2x2x1
jax: 0.10.0
libtpu: 0.0.40
codegen_flags: <defaults>
</compile_context>

<pallas_src>
import functools

import jax
import jax.numpy as jnp
from jax.experimental import pallas as pl
from jax.experimental.pallas import tpu as pltpu

MXU_DTYPE = jnp.bfloat16     # MXU operand dtype (accumulation / epilogue stay f32)
LRELU_SLOPE = 0.2
MAX_TK = 4096                # cap on the reduction tile (layer-7 K=4000 stays single-step)


def _round_up(x, m):
    return (x + m - 1) // m * m


def _choose_tm(M):
    """Largest multiple-of-8 divisor of M that is <= 512 (no padding needed);
    fall back to a single full-M block (legal: equals the array dim) for small
    M; return None only when padding is unavoidable."""
    best = None
    for c in range(8, min(M, 512) + 1, 8):
        if M % c == 0:
            best = c
    if best is not None:
        return best
    if M <= 1024:
        return M
    return None


def _choose_tn(N):
    """Full-N block for N <= 256; 256-wide tiles (v6e/v7x MXU width) when they
    divide N; 128 otherwise (weights with awkward cout are padded at init)."""
    if N <= 256:
        return N
    if N % 256 == 0:
        return 256
    if N % 128 == 0:
        return 128
    raise ValueError(f"output width {N} should have been padded at init")


def _pack_ncols(cout):
    return cout if cout <= 256 else _round_up(cout, 128)


def _vmem_limit(block_bytes):
    """Only override the scoped-VMEM default when the double-buffered working
    set would not fit v5e's 16 MiB default; cap under v7x's 64 MiB physical."""
    ws = 2 * block_bytes
    if ws <= 12 * 1024 * 1024:
        return None
    return min(2 * ws, 48 * 1024 * 1024)


# ----------------------------------------------------------------------------- #
# Pallas kernels: fused  out = leaky_relu( (X @ W_scaled) + bn_bias )
# ----------------------------------------------------------------------------- #
def _gemm_bias_act_single(activate):
    """Single K step: no accumulator scratch, no pl.when."""
    def kernel(x_ref, w_ref, b_ref, o_ref):
        y = jnp.dot(x_ref[...], w_ref[...], preferred_element_type=jnp.float32)
        y = y + b_ref[...]
        if activate:
            y = jnp.maximum(y, LRELU_SLOPE * y)      # LeakyReLU(0.2), one VPU op
        o_ref[...] = y.astype(o_ref.dtype)
    return kernel


def _gemm_bias_act_multi(activate):
    """Multi K step fallback (K > MAX_TK): accumulate in VMEM scratch."""
    def kernel(x_ref, w_ref, b_ref, o_ref, acc_ref):
        @pl.when(pl.program_id(2) == 0)
        def _():
            # Seed the accumulator with the BN bias: saves a (tm, tn) add later.
            acc_ref[...] = jnp.broadcast_to(b_ref[...], acc_ref.shape)

        acc_ref[...] += jnp.dot(x_ref[...], w_ref[...],
                                preferred_element_type=jnp.float32)

        @pl.when(pl.program_id(2) == pl.num_programs(2) - 1)
        def _():
            y = acc_ref[...]
            if activate:
                y = jnp.maximum(y, LRELU_SLOPE * y)
            o_ref[...] = y.astype(o_ref.dtype)
    return kernel


def fused_gemm_bias_act(x, w, b, *, n_out, activate, out_dtype):
    """x: (M, K) activations (bf16).  w: (Kw, Nw) bf16 weight with BN scale
    folded in (Kw/Nw only padded at init for the rare generic cases).
    b: (1, Nw) f32 BN bias.  Returns (M, n_out) in out_dtype."""
    M, K = x.shape
    Kw, Nw = w.shape

    xp = x if x.dtype == MXU_DTYPE else x.astype(MXU_DTYPE)
    if Kw != K:                              # only hit when K > MAX_TK (not at this config)
        xp = jnp.pad(xp, ((0, 0), (0, Kw - K)))

    tm = _choose_tm(M)
    if tm is None:                           # generic fallback: pad M
        tm = 512
        Mp = _round_up(M, tm)
        xp = jnp.pad(xp, ((0, Mp - M), (0, 0)))
    else:
        Mp = M

    tn = _choose_tn(Nw)
    tk = Kw if Kw <= MAX_TK else MAX_TK
    n_k = Kw // tk

    out_bytes = jnp.dtype(out_dtype).itemsize
    blk_bytes = tm * tk * 2 + tk * tn * 2 + tn * 4 + tm * tn * out_bytes

    if n_k == 1:
        grid = (Mp // tm, Nw // tn)
        kernel = _gemm_bias_act_single(activate)
        in_specs = [
            pl.BlockSpec((tm, tk), lambda i, j: (i, 0)),
            pl.BlockSpec((tk, tn), lambda i, j: (0, j)),
            pl.BlockSpec((1, tn), lambda i, j: (0, j)),
        ]
        out_specs = pl.BlockSpec((tm, tn), lambda i, j: (i, j))
        scratch = []
        dims = ("parallel", "parallel")
    else:
        grid = (Mp // tm, Nw // tn, n_k)
        kernel = _gemm_bias_act_multi(activate)
        in_specs = [
            pl.BlockSpec((tm, tk), lambda i, j, k: (i, k)),
            pl.BlockSpec((tk, tn), lambda i, j, k: (k, j)),
            pl.BlockSpec((1, tn), lambda i, j, k: (0, j)),
        ]
        out_specs = pl.BlockSpec((tm, tn), lambda i, j, k: (i, j))
        scratch = [pltpu.VMEM((tm, tn), jnp.float32)]
        dims = ("parallel", "parallel", "arbitrary")
        blk_bytes += tm * tn * 4

    out = pl.pallas_call(
        kernel,
        out_shape=jax.ShapeDtypeStruct((Mp, Nw), out_dtype),
        grid_spec=pltpu.PrefetchScalarGridSpec(
            num_scalar_prefetch=0,
            grid=grid,
            in_specs=in_specs,
            out_specs=out_specs,
            scratch_shapes=scratch,
        ),
        compiler_params=pltpu.CompilerParams(
            dimension_semantics=dims,
            vmem_limit_bytes=_vmem_limit(blk_bytes)),
    )(xp, w, b)

    if Mp != M or Nw != n_out:
        out = out[:M, :n_out]
    return out


# ----------------------------------------------------------------------------- #
# Fused tail: Conv3d L7 (5^3 over whole volume) + centre-tap Conv3d L8/L9 +
# Conv1d x3 (L=1 => centre taps), all with BN-bias + LeakyReLU folded in.
# ----------------------------------------------------------------------------- #
def _fused_tail_kernel(x_ref, w7, b7, w8, b8, w9, b9,
                       wt1, bt1, wt2, bt2, wt3, o_ref):
    def layer(h, w_ref, b_ref):
        y = jnp.dot(h, w_ref[...], preferred_element_type=jnp.float32) + b_ref[...]
        y = jnp.maximum(y, LRELU_SLOPE * y)
        return y.astype(MXU_DTYPE)

    h = layer(x_ref[...], w7, b7)   # Conv3d(nf*2, nf*4, 5, 1, 0) + BN + LReLU
    h = layer(h, w8, b8)            # Conv3d L8 centre tap       + BN + LReLU
    h = layer(h, w9, b9)            # Conv3d L9 centre tap       + BN + LReLU
    h = layer(h, wt1, bt1)          # Conv1d 1 centre tap        + BN + LReLU
    h = layer(h, wt2, bt2)          # Conv1d 2 centre tap        + BN + LReLU
    # Final Conv1d: bias=False, no BN, no activation.
    o_ref[...] = jnp.dot(h, wt3[...], preferred_element_type=jnp.float32)


def fused_tail(feat, tail):
    """feat: (bs, nf*2 * 5^3) -- the whole post-layer-6 volume flattened.
    One Pallas call for model layers 7-9 plus the entire `out` Conv1d stack."""
    bs, K7 = feat.shape
    assert K7 == tail["w7"].shape[0], (K7, tail["w7"].shape)
    Mp = max(16, _round_up(bs, 16))          # bf16 sublane tile is 16 rows
    xp = feat.astype(MXU_DTYPE)
    if Mp != bs:
        xp = jnp.pad(xp, ((0, Mp - bs), (0, 0)))

    args = (xp, tail["w7"], tail["b7"], tail["w8"], tail["b8"],
            tail["w9"], tail["b9"], tail["wt1"], tail["bt1"],
            tail["wt2"], tail["bt2"], tail["wt3"])
    n_labels = tail["wt3"].shape[1]

    out = pl.pallas_call(
        _fused_tail_kernel,
        out_shape=jax.ShapeDtypeStruct((Mp, n_labels), jnp.float32),
        grid_spec=pltpu.PrefetchScalarGridSpec(
            num_scalar_prefetch=0,
            grid=(1,),
            in_specs=[pl.BlockSpec(a.shape, lambda i: (0, 0)) for a in args],
            out_specs=pl.BlockSpec((Mp, n_labels), lambda i: (0, 0)),
        ),
        compiler_params=pltpu.CompilerParams(dimension_semantics=("arbitrary",)),
    )(*args)
    return out[:bs]


# ----------------------------------------------------------------------------- #
# im2col glue (plain JAX, activations in bf16)
# ----------------------------------------------------------------------------- #
def im2col_3d(x, k, stride, pad):
    """x: (N, D, H, W, C) channels-last -> ((N*Do*Ho*Wo, k^3*C), (Do, Ho, Wo)).
    Patch column order (kd, kh, kw, c_in) matches the flattened weight layout."""
    if pad > 0:
        x = jnp.pad(x, ((0, 0), (pad, pad), (pad, pad), (pad, pad), (0, 0)))
    N, Dp, Hp, Wp, C = x.shape
    Do = (Dp - k) // stride + 1
    Ho = (Hp - k) // stride + 1
    Wo = (Wp - k) // stride + 1
    cols = []
    for kd in range(k):
        for kh in range(k):
            for kw in range(k):
                cols.append(
                    x[:, kd:kd + Do * stride:stride,
                         kh:kh + Ho * stride:stride,
                         kw:kw + Wo * stride:stride, :])
    patches = jnp.stack(cols, axis=4)            # (N, Do, Ho, Wo, k^3, C)
    return patches.reshape(N * Do * Ho * Wo, k * k * k * C), (Do, Ho, Wo)


# ----------------------------------------------------------------------------- #
# Parameter init (deterministic, synthetic) -- shapes follow the nn.Module.
# BN scale is folded into the weights; everything static is packed/cast here.
# ----------------------------------------------------------------------------- #
def _bn_affine(key, cout, eps=1e-5):
    k1, k2, k3, k4 = jax.random.split(key, 4)
    gamma = 1.0 + 0.1 * jax.random.normal(k1, (cout,), jnp.float32)
    beta = 0.1 * jax.random.normal(k2, (cout,), jnp.float32)
    rmean = 0.1 * jax.random.normal(k3, (cout,), jnp.float32)
    rvar = 1.0 + 0.1 * jnp.abs(jax.random.normal(k4, (cout,), jnp.float32))
    scale = gamma / jnp.sqrt(rvar + eps)
    bias = beta - rmean * scale
    return scale, bias


def _pack_gemm_weight(w_km, scale, bias):
    """Fold BN scale into a (K, cout) weight.  Pad cols only when cout > 256,
    pad K only when K > MAX_TK (neither happens at this config)."""
    K, cout = w_km.shape
    Np = _pack_ncols(cout)
    Kp = K if K <= MAX_TK else _round_up(K, MAX_TK)
    w = w_km * scale[None, :]
    if (Kp, Np) != (K, cout):
        w = jnp.pad(w, ((0, Kp - K), (0, Np - cout)))
        bias = jnp.pad(bias, (0, Np - cout))
    return w.astype(MXU_DTYPE), bias.reshape(1, -1).astype(jnp.float32)


def init_params(key, nic, nf, n_labels):
    # Layers 1-6: (cin, cout, kernel, stride, pad) -- mirrors nn.Sequential.
    specs_main = [
        (nic,    nf,     4, 2, 1),
        (nf,     nf,     3, 1, 1),
        (nf,     nf,     3, 1, 1),
        (nf,     nf * 2, 4, 2, 1),
        (nf * 2, nf * 2, 3, 1, 1),
        (nf * 2, nf * 2, 3, 1, 1),
    ]
    params = {"conv3d": [], "tail": {}}
    for (cin, cout, k, s, p) in specs_main:
        key, kw, kb = jax.random.split(key, 3)
        # PyTorch Conv3d weight layout: (Cout, Cin, kd, kh, kw), bias=False.
        w_pt = 0.05 * jax.random.normal(kw, (cout, cin, k, k, k), jnp.float32)
        w = jnp.transpose(w_pt, (2, 3, 4, 1, 0)).reshape(k * k * k * cin, cout)
        scale, bias = _bn_affine(kb, cout)
        w_p, b_p = _pack_gemm_weight(w, scale, bias)
        params["conv3d"].append(dict(w=w_p, bias=b_p, k=k, s=s, p=p, cout=cout))

    tail = {}
    # Layer 7: Conv3d(nf*2, nf*4, 5, 1, 0) consumes the whole 5^3 volume.
    key, kw, kb = jax.random.split(key, 3)
    cin, cout, k = nf * 2, nf * 4, 5
    w_pt = 0.05 * jax.random.normal(kw, (cout, cin, k, k, k), jnp.float32)
    w = jnp.transpose(w_pt, (2, 3, 4, 1, 0)).reshape(k ** 3 * cin, cout)
    scale, bias = _bn_affine(kb, cout)
    tail["w7"] = (w * scale[None, :]).astype(MXU_DTYPE)
    tail["b7"] = bias.reshape(1, -1).astype(jnp.float32)
    # Layers 8-9: Conv3d(nf*4, nf*4, 3, 1, 1) on a 1x1x1 volume -> centre tap.
    for name in ("8", "9"):
        key, kw, kb = jax.random.split(key, 3)
        w_pt = 0.05 * jax.random.normal(kw, (nf * 4, nf * 4, 3, 3, 3), jnp.float32)
        w = jnp.transpose(w_pt[:, :, 1, 1, 1], (1, 0))           # (Cin, Cout)
        scale, bias = _bn_affine(kb, nf * 4)
        tail["w" + name] = (w * scale[None, :]).astype(MXU_DTYPE)
        tail["b" + name] = bias.reshape(1, -1).astype(jnp.float32)
    # Conv1d stack: the module feeds an L=1 sequence, so only the centre tap
    # w[:, :, 1] ever touches data.
    conv1d_specs = [(nf * 4, nf * 4, True), (nf * 4, nf * 4, True),
                    (nf * 4, n_labels, False)]
    for idx, (cin, cout, has_bn) in enumerate(conv1d_specs, 1):
        key, kw, kb = jax.random.split(key, 3)
        w_pt = 0.05 * jax.random.normal(kw, (cout, cin, 3), jnp.float32)
        w = jnp.transpose(w_pt[:, :, 1], (1, 0))                 # (Cin, Cout)
        if has_bn:
            scale, bias = _bn_affine(kb, cout)
            tail[f"wt{idx}"] = (w * scale[None, :]).astype(MXU_DTYPE)
            tail[f"bt{idx}"] = bias.reshape(1, -1).astype(jnp.float32)
        else:
            tail[f"wt{idx}"] = w.astype(MXU_DTYPE)   # final Conv1d: no BN, bias=False
    params["tail"] = tail
    return params


# ----------------------------------------------------------------------------- #
# seqPred forward (eval mode)
# ----------------------------------------------------------------------------- #
def seqpred_forward(x_ncdhw, params):
    bs = x_ncdhw.shape[0]
    x = jnp.transpose(x_ncdhw, (0, 2, 3, 4, 1)).astype(MXU_DTYPE)   # NCDHW -> NDHWC
    # self.model layers 1-6: Conv3d -> BN -> LeakyReLU -> Dropout[eval = id]
    for lyr in params["conv3d"]:
        patches, (Do, Ho, Wo) = im2col_3d(x, lyr["k"], lyr["s"], lyr["p"])
        y = fused_gemm_bias_act(patches, lyr["w"], lyr["bias"],
                                n_out=lyr["cout"], activate=True,
                                out_dtype=MXU_DTYPE)
        x = y.reshape(bs, Do, Ho, Wo, lyr["cout"])
    # Layers 7-9 + self.out: layer 7 (k=5, p=0) reads the full remaining volume
    # so its im2col is just a flatten; everything downstream sees 1x1x1 / L=1.
    feat = x.reshape(bs, -1)
    return fused_tail(feat, params["tail"])


# Pure-JAX f32 reference (same folded weights) used only for a plumbing check.
def seqpred_reference(x_ncdhw, params):
    f32 = jnp.float32
    x = jnp.transpose(x_ncdhw, (0, 2, 3, 4, 1)).astype(f32)
    bs = x.shape[0]
    for lyr in params["conv3d"]:
        patches, (Do, Ho, Wo) = im2col_3d(x, lyr["k"], lyr["s"], lyr["p"])
        y = patches @ lyr["w"].astype(f32) + lyr["bias"]
        y = jnp.maximum(y, LRELU_SLOPE * y)
        x = y.reshape(bs, Do, Ho, Wo, -1)
    h = x.reshape(bs, -1)
    t = params["tail"]

    def blk(h, w, b):
        y = h @ w.astype(f32) + b
        return jnp.maximum(y, LRELU_SLOPE * y)

    h = blk(h, t["w7"], t["b7"])
    h = blk(h, t["w8"], t["b8"])
    h = blk(h, t["w9"], t["b9"])
    h = blk(h, t["wt1"], t["bt1"])
    h = blk(h, t["wt2"], t["bt2"])
    return h @ t["wt3"].astype(f32)


# ----------------------------------------------------------------------------- #
if __name__ == "__main__":
    # Geometry: the .view(bs, -1, 1) -> Conv1d(nf*4, ...) chain requires the
    # 3-D stage to end at 1x1x1 spatial, i.e. D/4 - 4 == 1  =>  D == 20.
    bs, nic, nf, D = 2, 4, 16, 20
    n_labels = 20  # len(label_res_dict) in AlphaPanda.modules.dcnn.common.atoms

    key = jax.random.PRNGKey(0)
    key, pkey, xkey = jax.random.split(key, 3)
    params = init_params(pkey, nic, nf, n_labels)
    x = jax.random.normal(xkey, (bs, nic, D, D, D), jnp.float32)

    fwd = jax.jit(functools.partial(seqpred_forward, params=params))
    out = fwd(x)
    jax.block_until_ready(out)

    assert out.shape == (bs, n_labels), out.shape
    assert bool(jnp.all(jnp.isfinite(out)))

    # Plumbing check against the pure-JAX f32 reference (same folded weights).
    # The kernel path stores activations in bf16, so allow a few percent
    # relative-to-max deviation.
    ref = seqpred_reference(x, params)
    rel = float(jnp.max(jnp.abs(out - ref)) / (jnp.max(jnp.abs(ref)) + 1e-6))
    assert rel < 0.15, f"kernel/reference mismatch: rel={rel}"

    print("KERNEL_OK")
</pallas_src>

<mosaic_0001>
module attributes {stable_mosaic.version = 11 : i64} {
  func.func @kernel(%arg0: i32, %arg1: i32, %arg2: memref<400x256xbf16, #tpu.memory_space<vmem>>, %arg3: memref<256x16xbf16, #tpu.memory_space<vmem>>, %arg4: memref<1x16xf32, #tpu.memory_space<vmem>>, %arg5: memref<400x16xbf16, #tpu.memory_space<vmem>>) attributes {dimension_semantics = [#tpu.dimension_semantics<parallel>, #tpu.dimension_semantics<parallel>], iteration_bounds = array<i64: 5, 1>, scalar_prefetch = 0 : i64, scratch_operands = 0 : i64, tpu.core_type = #tpu.core_type<tc>, window_params = [{transform_indices = @transform_0, window_bounds = array<i64: 400, 256>}, {transform_indices = @transform_1, window_bounds = array<i64: 256, 16>}, {transform_indices = @transform_2, window_bounds = array<i64: 1, 16>}, {transform_indices = @transform_3, window_bounds = array<i64: 400, 16>}]} {
    %c0 = arith.constant 0 : index
    %c0_0 = arith.constant 0 : index
    %0 = vector.load %arg2[%c0, %c0_0] : memref<400x256xbf16, #tpu.memory_space<vmem>>, vector<400x256xbf16>
    %c0_1 = arith.constant 0 : index
    %c0_2 = arith.constant 0 : index
    %1 = vector.load %arg3[%c0_1, %c0_2] : memref<256x16xbf16, #tpu.memory_space<vmem>>, vector<256x16xbf16>
    %cst = arith.constant dense<0.000000e+00> : vector<400x16xf32>
    %2 = tpu.matmul %0, %1, %cst {dimension_numbers = #tpu.dot_dimension_numbers<[1], [0], [0], [1], [0, 0, 1, 1], [], []>} : vector<400x256xbf16>, vector<256x16xbf16>, vector<400x16xf32> -> vector<400x16xf32>
    %c0_3 = arith.constant 0 : index
    %c0_4 = arith.constant 0 : index
    %3 = vector.load %arg4[%c0_3, %c0_4] : memref<1x16xf32, #tpu.memory_space<vmem>>, vector<1x16xf32>
    %4 = vector.broadcast %3 : vector<1x16xf32> to vector<400x16xf32>
    %5 = arith.addf %2, %4 : vector<400x16xf32>
    %cst_5 = arith.constant 2.000000e-01 : f32
    %6 = vector.broadcast %cst_5 : f32 to vector<400x16xf32>
    %7 = arith.mulf %6, %5 : vector<400x16xf32>
    %8 = arith.maximumf %5, %7 : vector<400x16xf32>
    %9 = arith.truncf %8 : vector<400x16xf32> to vector<400x16xbf16>
    %c0_6 = arith.constant 0 : index
    %c0_7 = arith.constant 0 : index
    %10 = vector.load %arg5[%c0_6, %c0_7] : memref<400x16xbf16, #tpu.memory_space<vmem>>, vector<400x16xbf16>
    tpu.vector_store %arg5[%c0_6, %c0_7], %9 {strides = array<i32>} : memref<400x16xbf16, #tpu.memory_space<vmem>>, vector<400x16xbf16>,
    return
  }
  func.func @transform_0(%arg0: i32, %arg1: i32) -> (i32, i32) {
    %c0_i32 = arith.constant 0 : i32
    %c0_i32_0 = arith.constant 0 : i32
    return %arg0, %c0_i32 : i32, i32
  }
  func.func @transform_1(%arg0: i32, %arg1: i32) -> (i32, i32) {
    %c0_i32 = arith.constant 0 : i32
    %c0_i32_0 = arith.constant 0 : i32
    return %c0_i32, %arg1 : i32, i32
  }
  func.func @transform_2(%arg0: i32, %arg1: i32) -> (i32, i32) {
    %c0_i32 = arith.constant 0 : i32
    %c0_i32_0 = arith.constant 0 : i32
    return %c0_i32, %arg1 : i32, i32
  }
  func.func @transform_3(%arg0: i32, %arg1: i32) -> (i32, i32) {
    %c0_i32 = arith.constant 0 : i32
    return %arg0, %arg1 : i32, i32
  }
}

module attributes {stable_mosaic.version = 11 : i64} {
  func.func @kernel(%arg0: i32, %arg1: i32, %arg2: memref<400x432xbf16, #tpu.memory_space<vmem>>, %arg3: memref<432x16xbf16, #tpu.memory_space<vmem>>, %arg4: memref<1x16xf32, #tpu.memory_space<vmem>>, %arg5: memref<400x16xbf16, #tpu.memory_space<vmem>>) attributes {dimension_semantics = [#tpu.dimension_semantics<parallel>, #tpu.dimension_semantics<parallel>], iteration_bounds = array<i64: 5, 1>, scalar_prefetch = 0 : i64, scratch_operands = 0 : i64, tpu.core_type = #tpu.core_type<tc>, window_params = [{transform_indices = @transform_0, window_bounds = array<i64: 400, 432>}, {transform_indices = @transform_1, window_bounds = array<i64: 432, 16>}, {transform_indices = @transform_2, window_bounds = array<i64: 1, 16>}, {transform_indices = @transform_3, window_bounds = array<i64: 400, 16>}]} {
    %c0 = arith.constant 0 : index
    %c0_0 = arith.constant 0 : index
    %0 = vector.load %arg2[%c0, %c0_0] : memref<400x432xbf16, #tpu.memory_space<vmem>>, vector<400x432xbf16>
    %c0_1 = arith.constant 0 : index
    %c0_2 = arith.constant 0 : index
    %1 = vector.load %arg3[%c0_1, %c0_2] : memref<432x16xbf16, #tpu.memory_space<vmem>>, vector<432x16xbf16>
    %cst = arith.constant dense<0.000000e+00> : vector<400x16xf32>
    %2 = tpu.matmul %0, %1, %cst {dimension_numbers = #tpu.dot_dimension_numbers<[1], [0], [0], [1], [0, 0, 1, 1], [], []>} : vector<400x432xbf16>, vector<432x16xbf16>, vector<400x16xf32> -> vector<400x16xf32>
    %c0_3 = arith.constant 0 : index
    %c0_4 = arith.constant 0 : index
    %3 = vector.load %arg4[%c0_3, %c0_4] : memref<1x16xf32, #tpu.memory_space<vmem>>, vector<1x16xf32>
    %4 = vector.broadcast %3 : vector<1x16xf32> to vector<400x16xf32>
    %5 = arith.addf %2, %4 : vector<400x16xf32>
    %cst_5 = arith.constant 2.000000e-01 : f32
    %6 = vector.broadcast %cst_5 : f32 to vector<400x16xf32>
    %7 = arith.mulf %6, %5 : vector<400x16xf32>
    %8 = arith.maximumf %5, %7 : vector<400x16xf32>
    %9 = arith.truncf %8 : vector<400x16xf32> to vector<400x16xbf16>
    %c0_6 = arith.constant 0 : index
    %c0_7 = arith.constant 0 : index
    %10 = vector.load %arg5[%c0_6, %c0_7] : memref<400x16xbf16, #tpu.memory_space<vmem>>, vector<400x16xbf16>
    tpu.vector_store %arg5[%c0_6, %c0_7], %9 {strides = array<i32>} : memref<400x16xbf16, #tpu.memory_space<vmem>>, vector<400x16xbf16>,
    return
  }
  func.func @transform_0(%arg0: i32, %arg1: i32) -> (i32, i32) {
    %c0_i32 = arith.constant 0 : i32
    %c0_i32_0 = arith.constant 0 : i32
    return %arg0, %c0_i32 : i32, i32
  }
  func.func @transform_1(%arg0: i32, %arg1: i32) -> (i32, i32) {
    %c0_i32 = arith.constant 0 : i32
    %c0_i32_0 = arith.constant 0 : i32
    return %c0_i32, %arg1 : i32, i32
  }
  func.func @transform_2(%arg0: i32, %arg1: i32) -> (i32, i32) {
    %c0_i32 = arith.constant 0 : i32
    %c0_i32_0 = arith.constant 0 : i32
    return %c0_i32, %arg1 : i32, i32
  }
  func.func @transform_3(%arg0: i32, %arg1: i32) -> (i32, i32) {
    %c0_i32 = arith.constant 0 : i32
    return %arg0, %arg1 : i32, i32
  }
}

module attributes {stable_mosaic.version = 11 : i64} {
  func.func @kernel(%arg0: i32, %arg1: i32, %arg2: memref<250x1024xbf16, #tpu.memory_space<vmem>>, %arg3: memref<1024x32xbf16, #tpu.memory_space<vmem>>, %arg4: memref<1x32xf32, #tpu.memory_space<vmem>>, %arg5: memref<250x32xbf16, #tpu.memory_space<vmem>>) attributes {dimension_semantics = [#tpu.dimension_semantics<parallel>, #tpu.dimension_semantics<parallel>], iteration_bounds = array<i64: 1, 1>, scalar_prefetch = 0 : i64, scratch_operands = 0 : i64, tpu.core_type = #tpu.core_type<tc>, window_params = [{transform_indices = @transform_0, window_bounds = array<i64: 250, 1024>}, {transform_indices = @transform_1, window_bounds = array<i64: 1024, 32>}, {transform_indices = @transform_2, window_bounds = array<i64: 1, 32>}, {transform_indices = @transform_3, window_bounds = array<i64: 250, 32>}]} {
    %c0 = arith.constant 0 : index
    %c0_0 = arith.constant 0 : index
    %0 = vector.load %arg2[%c0, %c0_0] : memref<250x1024xbf16, #tpu.memory_space<vmem>>, vector<250x1024xbf16>
    %c0_1 = arith.constant 0 : index
    %c0_2 = arith.constant 0 : index
    %1 = vector.load %arg3[%c0_1, %c0_2] : memref<1024x32xbf16, #tpu.memory_space<vmem>>, vector<1024x32xbf16>
    %cst = arith.constant dense<0.000000e+00> : vector<250x32xf32>
    %2 = tpu.matmul %0, %1, %cst {dimension_numbers = #tpu.dot_dimension_numbers<[1], [0], [0], [1], [0, 0, 1, 1], [], []>} : vector<250x1024xbf16>, vector<1024x32xbf16>, vector<250x32xf32> -> vector<250x32xf32>
    %c0_3 = arith.constant 0 : index
    %c0_4 = arith.constant 0 : index
    %3 = vector.load %arg4[%c0_3, %c0_4] : memref<1x32xf32, #tpu.memory_space<vmem>>, vector<1x32xf32>
    %4 = vector.broadcast %3 : vector<1x32xf32> to vector<250x32xf32>
    %5 = arith.addf %2, %4 : vector<250x32xf32>
    %cst_5 = arith.constant 2.000000e-01 : f32
    %6 = vector.broadcast %cst_5 : f32 to vector<250x32xf32>
    %7 = arith.mulf %6, %5 : vector<250x32xf32>
    %8 = arith.maximumf %5, %7 : vector<250x32xf32>
    %9 = arith.truncf %8 : vector<250x32xf32> to vector<250x32xbf16>
    %c0_6 = arith.constant 0 : index
    %c0_7 = arith.constant 0 : index
    %10 = vector.load %arg5[%c0_6, %c0_7] : memref<250x32xbf16, #tpu.memory_space<vmem>>, vector<250x32xbf16>
    tpu.vector_store %arg5[%c0_6, %c0_7], %9 {strides = array<i32>} : memref<250x32xbf16, #tpu.memory_space<vmem>>, vector<250x32xbf16>,
    return
  }
  func.func @transform_0(%arg0: i32, %arg1: i32) -> (i32, i32) {
    %c0_i32 = arith.constant 0 : i32
    %c0_i32_0 = arith.constant 0 : i32
    return %arg0, %c0_i32 : i32, i32
  }
  func.func @transform_1(%arg0: i32, %arg1: i32) -> (i32, i32) {
    %c0_i32 = arith.constant 0 : i32
    %c0_i32_0 = arith.constant 0 : i32
    return %c0_i32, %arg1 : i32, i32
  }
  func.func @transform_2(%arg0: i32, %arg1: i32) -> (i32, i32) {
    %c0_i32 = arith.constant 0 : i32
    %c0_i32_0 = arith.constant 0 : i32
    return %c0_i32, %arg1 : i32, i32
  }
  func.func @transform_3(%arg0: i32, %arg1: i32) -> (i32, i32) {
    %c0_i32 = arith.constant 0 : i32
    return %arg0, %arg1 : i32, i32
  }
}

module attributes {stable_mosaic.version = 11 : i64} {
  func.func @kernel(%arg0: i32, %arg1: i32, %arg2: memref<250x864xbf16, #tpu.memory_space<vmem>>, %arg3: memref<864x32xbf16, #tpu.memory_space<vmem>>, %arg4: memref<1x32xf32, #tpu.memory_space<vmem>>, %arg5: memref<250x32xbf16, #tpu.memory_space<vmem>>) attributes {dimension_semantics = [#tpu.dimension_semantics<parallel>, #tpu.dimension_semantics<parallel>], iteration_bounds = array<i64: 1, 1>, scalar_prefetch = 0 : i64, scratch_operands = 0 : i64, tpu.core_type = #tpu.core_type<tc>, window_params = [{transform_indices = @transform_0, window_bounds = array<i64: 250, 864>}, {transform_indices = @transform_1, window_bounds = array<i64: 864, 32>}, {transform_indices = @transform_2, window_bounds = array<i64: 1, 32>}, {transform_indices = @transform_3, window_bounds = array<i64: 250, 32>}]} {
    %c0 = arith.constant 0 : index
    %c0_0 = arith.constant 0 : index
    %0 = vector.load %arg2[%c0, %c0_0] : memref<250x864xbf16, #tpu.memory_space<vmem>>, vector<250x864xbf16>
    %c0_1 = arith.constant 0 : index
    %c0_2 = arith.constant 0 : index
    %1 = vector.load %arg3[%c0_1, %c0_2] : memref<864x32xbf16, #tpu.memory_space<vmem>>, vector<864x32xbf16>
    %cst = arith.constant dense<0.000000e+00> : vector<250x32xf32>
    %2 = tpu.matmul %0, %1, %cst {dimension_numbers = #tpu.dot_dimension_numbers<[1], [0], [0], [1], [0, 0, 1, 1], [], []>} : vector<250x864xbf16>, vector<864x32xbf16>, vector<250x32xf32> -> vector<250x32xf32>
    %c0_3 = arith.constant 0 : index
    %c0_4 = arith.constant 0 : index
    %3 = vector.load %arg4[%c0_3, %c0_4] : memref<1x32xf32, #tpu.memory_space<vmem>>, vector<1x32xf32>
    %4 = vector.broadcast %3 : vector<1x32xf32> to vector<250x32xf32>
    %5 = arith.addf %2, %4 : vector<250x32xf32>
    %cst_5 = arith.constant 2.000000e-01 : f32
    %6 = vector.broadcast %cst_5 : f32 to vector<250x32xf32>
    %7 = arith.mulf %6, %5 : vector<250x32xf32>
    %8 = arith.maximumf %5, %7 : vector<250x32xf32>
    %9 = arith.truncf %8 : vector<250x32xf32> to vector<250x32xbf16>
    %c0_6 = arith.constant 0 : index
    %c0_7 = arith.constant 0 : index
    %10 = vector.load %arg5[%c0_6, %c0_7] : memref<250x32xbf16, #tpu.memory_space<vmem>>, vector<250x32xbf16>
    tpu.vector_store %arg5[%c0_6, %c0_7], %9 {strides = array<i32>} : memref<250x32xbf16, #tpu.memory_space<vmem>>, vector<250x32xbf16>,
    return
  }
  func.func @transform_0(%arg0: i32, %arg1: i32) -> (i32, i32) {
    %c0_i32 = arith.constant 0 : i32
    %c0_i32_0 = arith.constant 0 : i32
    return %arg0, %c0_i32 : i32, i32
  }
  func.func @transform_1(%arg0: i32, %arg1: i32) -> (i32, i32) {
    %c0_i32 = arith.constant 0 : i32
    %c0_i32_0 = arith.constant 0 : i32
    return %c0_i32, %arg1 : i32, i32
  }
  func.func @transform_2(%arg0: i32, %arg1: i32) -> (i32, i32) {
    %c0_i32 = arith.constant 0 : i32
    %c0_i32_0 = arith.constant 0 : i32
    return %c0_i32, %arg1 : i32, i32
  }
  func.func @transform_3(%arg0: i32, %arg1: i32) -> (i32, i32) {
    %c0_i32 = arith.constant 0 : i32
    return %arg0, %arg1 : i32, i32
  }
}

module attributes {stable_mosaic.version = 11 : i64} {
  func.func @_fused_tail_kernel(%arg0: i32, %arg1: memref<16x4000xbf16, #tpu.memory_space<vmem>>, %arg2: memref<4000x64xbf16, #tpu.memory_space<vmem>>, %arg3: memref<1x64xf32, #tpu.memory_space<vmem>>, %arg4: memref<64x64xbf16, #tpu.memory_space<vmem>>, %arg5: memref<1x64xf32, #tpu.memory_space<vmem>>, %arg6: memref<64x64xbf16, #tpu.memory_space<vmem>>, %arg7: memref<1x64xf32, #tpu.memory_space<vmem>>, %arg8: memref<64x64xbf16, #tpu.memory_space<vmem>>, %arg9: memref<1x64xf32, #tpu.memory_space<vmem>>, %arg10: memref<64x64xbf16, #tpu.memory_space<vmem>>, %arg11: memref<1x64xf32, #tpu.memory_space<vmem>>, %arg12: memref<64x20xbf16, #tpu.memory_space<vmem>>, %arg13: memref<16x20xf32, #tpu.memory_space<vmem>>) attributes {dimension_semantics = [#tpu.dimension_semantics<arbitrary>], iteration_bounds = array<i64: 1>, scalar_prefetch = 0 : i64, scratch_operands = 0 : i64, tpu.core_type = #tpu.core_type<tc>, window_params = [{pipeline_mode = #tpu.pipeline_mode<synchronous>, transform_indices = @transform_0, window_bounds = array<i64: 16, 4000>}, {pipeline_mode = #tpu.pipeline_mode<synchronous>, transform_indices = @transform_1, window_bounds = array<i64: 4000, 64>}, {pipeline_mode = #tpu.pipeline_mode<synchronous>, transform_indices = @transform_2, window_bounds = array<i64: 1, 64>}, {pipeline_mode = #tpu.pipeline_mode<synchronous>, transform_indices = @transform_3, window_bounds = array<i64: 64, 64>}, {pipeline_mode = #tpu.pipeline_mode<synchronous>, transform_indices = @transform_4, window_bounds = array<i64: 1, 64>}, {pipeline_mode = #tpu.pipeline_mode<synchronous>, transform_indices = @transform_5, window_bounds = array<i64: 64, 64>}, {pipeline_mode = #tpu.pipeline_mode<synchronous>, transform_indices = @transform_6, window_bounds = array<i64: 1, 64>}, {pipeline_mode = #tpu.pipeline_mode<synchronous>, transform_indices = @transform_7, window_bounds = array<i64: 64, 64>}, {pipeline_mode = #tpu.pipeline_mode<synchronous>, transform_indices = @transform_8, window_bounds = array<i64: 1, 64>}, {pipeline_mode = #tpu.pipeline_mode<synchronous>, transform_indices = @transform_9, window_bounds = array<i64: 64, 64>}, {pipeline_mode = #tpu.pipeline_mode<synchronous>, transform_indices = @transform_10, window_bounds = array<i64: 1, 64>}, {pipeline_mode = #tpu.pipeline_mode<synchronous>, transform_indices = @transform_11, window_bounds = array<i64: 64, 20>}, {pipeline_mode = #tpu.pipeline_mode<synchronous>, transform_indices = @transform_12, window_bounds = array<i64: 16, 20>}]} {
    %c0 = arith.constant 0 : index
    %c0_0 = arith.constant 0 : index
    %0 = vector.load %arg1[%c0, %c0_0] : memref<16x4000xbf16, #tpu.memory_space<vmem>>, vector<16x4000xbf16>
    %c0_1 = arith.constant 0 : index
    %c0_2 = arith.constant 0 : index
    %1 = vector.load %arg2[%c0_1, %c0_2] : memref<4000x64xbf16, #tpu.memory_space<vmem>>, vector<4000x64xbf16>
    %cst = arith.constant dense<0.000000e+00> : vector<16x64xf32>
    %2 = tpu.matmul %0, %1, %cst {dimension_numbers = #tpu.dot_dimension_numbers<[1], [0], [0], [1], [0, 0, 1, 1], [], []>} : vector<16x4000xbf16>, vector<4000x64xbf16>, vector<16x64xf32> -> vector<16x64xf32>
    %c0_3 = arith.constant 0 : index
    %c0_4 = arith.constant 0 : index
    %3 = vector.load %arg3[%c0_3, %c0_4] : memref<1x64xf32, #tpu.memory_space<vmem>>, vector<1x64xf32>
    %4 = vector.broadcast %3 : vector<1x64xf32> to vector<16x64xf32>
    %5 = arith.addf %2, %4 : vector<16x64xf32>
    %cst_5 = arith.constant 2.000000e-01 : f32
    %6 = vector.broadcast %cst_5 : f32 to vector<16x64xf32>
    %7 = arith.mulf %6, %5 : vector<16x64xf32>
    %8 = arith.maximumf %5, %7 : vector<16x64xf32>
    %9 = arith.truncf %8 : vector<16x64xf32> to vector<16x64xbf16>
    %c0_6 = arith.constant 0 : index
    %c0_7 = arith.constant 0 : index
    %10 = vector.load %arg4[%c0_6, %c0_7] : memref<64x64xbf16, #tpu.memory_space<vmem>>, vector<64x64xbf16>
    %cst_8 = arith.constant dense<0.000000e+00> : vector<16x64xf32>
    %11 = tpu.matmul %9, %10, %cst_8 {dimension_numbers = #tpu.dot_dimension_numbers<[1], [0], [0], [1], [0, 0, 1, 1], [], []>} : vector<16x64xbf16>, vector<64x64xbf16>, vector<16x64xf32> -> vector<16x64xf32>
    %c0_9 = arith.constant 0 : index
    %c0_10 = arith.constant 0 : index
    %12 = vector.load %arg5[%c0_9, %c0_10] : memref<1x64xf32, #tpu.memory_space<vmem>>, vector<1x64xf32>
    %13 = vector.broadcast %12 : vector<1x64xf32> to vector<16x64xf32>
    %14 = arith.addf %11, %13 : vector<16x64xf32>
    %cst_11 = arith.constant 2.000000e-01 : f32
    %15 = vector.broadcast %cst_11 : f32 to vector<16x64xf32>
    %16 = arith.mulf %15, %14 : vector<16x64xf32>
    %17 = arith.maximumf %14, %16 : vector<16x64xf32>
    %18 = arith.truncf %17 : vector<16x64xf32> to vector<16x64xbf16>
    %c0_12 = arith.constant 0 : index
    %c0_13 = arith.constant 0 : index
    %19 = vector.load %arg6[%c0_12, %c0_13] : memref<64x64xbf16, #tpu.memory_space<vmem>>, vector<64x64xbf16>
    %cst_14 = arith.constant dense<0.000000e+00> : vector<16x64xf32>
    %20 = tpu.matmul %18, %19, %cst_14 {dimension_numbers = #tpu.dot_dimension_numbers<[1], [0], [0], [1], [0, 0, 1, 1], [], []>} : vector<16x64xbf16>, vector<64x64xbf16>, vector<16x64xf32> -> vector<16x64xf32>
    %c0_15 = arith.constant 0 : index
    %c0_16 = arith.constant 0 : index
    %21 = vector.load %arg7[%c0_15, %c0_16] : memref<1x64xf32, #tpu.memory_space<vmem>>, vector<1x64xf32>
    %22 = vector.broadcast %21 : vector<1x64xf32> to vector<16x64xf32>
    %23 = arith.addf %20, %22 : vector<16x64xf32>
    %cst_17 = arith.constant 2.000000e-01 : f32
    %24 = vector.broadcast %cst_17 : f32 to vector<16x64xf32>
    %25 = arith.mulf %24, %23 : vector<16x64xf32>
    %26 = arith.maximumf %23, %25 : vector<16x64xf32>
    %27 = arith.truncf %26 : vector<16x64xf32> to vector<16x64xbf16>
    %c0_18 = arith.constant 0 : index
    %c0_19 = arith.constant 0 : index
    %28 = vector.load %arg8[%c0_18, %c0_19] : memref<64x64xbf16, #tpu.memory_space<vmem>>, vector<64x64xbf16>
    %cst_20 = arith.constant dense<0.000000e+00> : vector<16x64xf32>
    %29 = tpu.matmul %27, %28, %cst_20 {dimension_numbers = #tpu.dot_dimension_numbers<[1], [0], [0], [1], [0, 0, 1, 1], [], []>} : vector<16x64xbf16>, vector<64x64xbf16>, vector<16x64xf32> -> vector<16x64xf32>
    %c0_21 = arith.constant 0 : index
    %c0_22 = arith.constant 0 : index
    %30 = vector.load %arg9[%c0_21, %c0_22] : memref<1x64xf32, #tpu.memory_space<vmem>>, vector<1x64xf32>
    %31 = vector.broadcast %30 : vector<1x64xf32> to vector<16x64xf32>
    %32 = arith.addf %29, %31 : vector<16x64xf32>
    %cst_23 = arith.constant 2.000000e-01 : f32
    %33 = vector.broadcast %cst_23 : f32 to vector<16x64xf32>
    %34 = arith.mulf %33, %32 : vector<16x64xf32>
    %35 = arith.maximumf %32, %34 : vector<16x64xf32>
    %36 = arith.truncf %35 : vector<16x64xf32> to vector<16x64xbf16>
    %c0_24 = arith.constant 0 : index
    %c0_25 = arith.constant 0 : index
    %37 = vector.load %arg10[%c0_24, %c0_25] : memref<64x64xbf16, #tpu.memory_space<vmem>>, vector<64x64xbf16>
    %cst_26 = arith.constant dense<0.000000e+00> : vector<16x64xf32>
    %38 = tpu.matmul %36, %37, %cst_26 {dimension_numbers = #tpu.dot_dimension_numbers<[1], [0], [0], [1], [0, 0, 1, 1], [], []>} : vector<16x64xbf16>, vector<64x64xbf16>, vector<16x64xf32> -> vector<16x64xf32>
    %c0_27 = arith.constant 0 : index
    %c0_28 = arith.constant 0 : index
    %39 = vector.load %arg11[%c0_27, %c0_28] : memref<1x64xf32, #tpu.memory_space<vmem>>, vector<1x64xf32>
    %40 = vector.broadcast %39 : vector<1x64xf32> to vector<16x64xf32>
    %41 = arith.addf %38, %40 : vector<16x64xf32>
    %cst_29 = arith.constant 2.000000e-01 : f32
    %42 = vector.broadcast %cst_29 : f32 to vector<16x64xf32>
    %43 = arith.mulf %42, %41 : vector<16x64xf32>
    %44 = arith.maximumf %41, %43 : vector<16x64xf32>
    %45 = arith.truncf %44 : vector<16x64xf32> to vector<16x64xbf16>
    %c0_30 = arith.constant 0 : index
    %c0_31 = arith.constant 0 : index
    %46 = vector.load %arg12[%c0_30, %c0_31] : memref<64x20xbf16, #tpu.memory_space<vmem>>, vector<64x20xbf16>
    %cst_32 = arith.constant dense<0.000000e+00> : vector<16x20xf32>
    %47 = tpu.matmul %45, %46, %cst_32 {dimension_numbers = #tpu.dot_dimension_numbers<[1], [0], [0], [1], [0, 0, 1, 1], [], []>} : vector<16x64xbf16>, vector<64x20xbf16>, vector<16x20xf32> -> vector<16x20xf32>
    %c0_33 = arith.constant 0 : index
    %c0_34 = arith.constant 0 : index
    %48 = vector.load %arg13[%c0_33, %c0_34] : memref<16x20xf32, #tpu.memory_space<vmem>>, vector<16x20xf32>
    tpu.vector_store %arg13[%c0_33, %c0_34], %47 {strides = array<i32>} : memref<16x20xf32, #tpu.memory_space<vmem>>, vector<16x20xf32>,
    return
  }
  func.func @transform_0(%arg0: i32) -> (i32, i32) {
    %c0_i32 = arith.constant 0 : i32
    %c0_i32_0 = arith.constant 0 : i32
    %c0_i32_1 = arith.constant 0 : i32
    return %c0_i32, %c0_i32_0 : i32, i32
  }
  func.func @transform_1(%arg0: i32) -> (i32, i32) {
    %c0_i32 = arith.constant 0 : i32
    %c0_i32_0 = arith.constant 0 : i32
    %c0_i32_1 = arith.constant 0 : i32
    return %c0_i32, %c0_i32_0 : i32, i32
  }
  func.func @transform_2(%arg0: i32) -> (i32, i32) {
    %c0_i32 = arith.constant 0 : i32
    %c0_i32_0 = arith.constant 0 : i32
    %c0_i32_1 = arith.constant 0 : i32
    return %c0_i32, %c0_i32_0 : i32, i32
  }
  func.func @transform_3(%arg0: i32) -> (i32, i32) {
    %c0_i32 = arith.constant 0 : i32
    %c0_i32_0 = arith.constant 0 : i32
    %c0_i32_1 = arith.constant 0 : i32
    return %c0_i32, %c0_i32_0 : i32, i32
  }
  func.func @transform_4(%arg0: i32) -> (i32, i32) {
    %c0_i32 = arith.constant 0 : i32
    %c0_i32_0 = arith.constant 0 : i32
    %c0_i32_1 = arith.constant 0 : i32
    return %c0_i32, %c0_i32_0 : i32, i32
  }
  func.func @transform_5(%arg0: i32) -> (i32, i32) {
    %c0_i32 = arith.constant 0 : i32
    %c0_i32_0 = arith.constant 0 : i32
    %c0_i32_1 = arith.constant 0 : i32
    return %c0_i32, %c0_i32_0 : i32, i32
  }
  func.func @transform_6(%arg0: i32) -> (i32, i32) {
    %c0_i32 = arith.constant 0 : i32
    %c0_i32_0 = arith.constant 0 : i32
    %c0_i32_1 = arith.constant 0 : i32
    return %c0_i32, %c0_i32_0 : i32, i32
  }
  func.func @transform_7(%arg0: i32) -> (i32, i32) {
    %c0_i32 = arith.constant 0 : i32
    %c0_i32_0 = arith.constant 0 : i32
    %c0_i32_1 = arith.constant 0 : i32
    return %c0_i32, %c0_i32_0 : i32, i32
  }
  func.func @transform_8(%arg0: i32) -> (i32, i32) {
    %c0_i32 = arith.constant 0 : i32
    %c0_i32_0 = arith.constant 0 : i32
    %c0_i32_1 = arith.constant 0 : i32
    return %c0_i32, %c0_i32_0 : i32, i32
  }
  func.func @transform_9(%arg0: i32) -> (i32, i32) {
    %c0_i32 = arith.constant 0 : i32
    %c0_i32_0 = arith.constant 0 : i32
    %c0_i32_1 = arith.constant 0 : i32
    return %c0_i32, %c0_i32_0 : i32, i32
  }
  func.func @transform_10(%arg0: i32) -> (i32, i32) {
    %c0_i32 = arith.constant 0 : i32
    %c0_i32_0 = arith.constant 0 : i32
    %c0_i32_1 = arith.constant 0 : i32
    return %c0_i32, %c0_i32_0 : i32, i32
  }
  func.func @transform_11(%arg0: i32) -> (i32, i32) {
    %c0_i32 = arith.constant 0 : i32
    %c0_i32_0 = arith.constant 0 : i32
    %c0_i32_1 = arith.constant 0 : i32
    return %c0_i32, %c0_i32_0 : i32, i32
  }
  func.func @transform_12(%arg0: i32) -> (i32, i32) {
    %c0_i32 = arith.constant 0 : i32
    %c0_i32_0 = arith.constant 0 : i32
    %c0_i32_1 = arith.constant 0 : i32
    return %c0_i32, %c0_i32_0 : i32, i32
  }
}

</mosaic_0001>

<llo_original>
// kernel: seqpred_forward.7
$region0: #{seqpred_forward.7}
  #allocation0 [shape = 'u32[]', space=smem, size = 0x4, offset = 0x4, fixed_abs, tag = 'smem constant byte address 0x4 - core index']
  #allocation1 [shape = 'u32[144,128]{1,0:T(1,128)}', space=vmem, size = 0x12000, scoped, tag = 'internal scratch']
  %s0 = inlined_call_operand.vmem [shape: bf16[2000,256], index: 0, kind: input, shape index: {}]
  %s1 = inlined_call_operand.vmem [shape: bf16[256,16], index: 1, kind: input, shape index: {}]
  %s2 = inlined_call_operand.vmem [shape: f32[1,16], index: 2, kind: input, shape index: {}]
  %s3 = inlined_call_operand.vmem [shape: bf16[2000,16], index: 3, kind: output, shape index: {}]
  %s4 = sld [smem:[#allocation0]]
  $region45: #{seqpred_forward.7} parent=0
    _
  %s6 = ssub.s32 1, %s4
  %s7 = scalar_select 0, %s6, %s4
  loop: start=0, step=1, limit=7
  $region2: #{seqpred_forward.7} parent=0 // loop_pre_header
    _
  $region3: #{seqpred_forward.7} parent=0 // loop_header
    %s9 = sphi 0, %s13
    %p10 = scmp.ge.s32.totalorder %s9, 7
    %s16 = sphi 0, %s28
    %s17 = sphi 0, %s24
    %s18 = sphi 0, %s16
    %s19 = sphi 0, %s17
    %s20 = sphi 0, %s18
    %s21 = sphi 0, %s19
    %s31 = sphi 0, %s33
    %s34 = sphi 0, %s31
    %s35 = sphi 0, %s34
    %s51 = sphi 0, %s35
    %s57 = sphi 0, %s59
    %s60 = sphi 0, %s57
    %s61 = sphi 0, %s60
    %s77 = sphi 0, %s61
    %s83 = sphi 0, %s85
    %s86 = sphi 0, %s83
    %s87 = sphi 0, %s86
    %s103 = sphi 0, %s87
    %s111 = sphi 0, %s113
    %s114 = sphi 0, %s111
    %s115 = sphi 0, %s114
    %s131 = sphi 0, %s115
  $region4: #{seqpred_forward.7} parent=0 // loop_header_branch
    %12 = sbr.rel (%p10) target = $region8
  $region5: #{seqpred_forward.7} parent=0 // loop_body
    %s14 = ssub.s32 %s9, 1
    %s15 = ssub.s32 %s9, 2
    %s22 = sadd.s32 1, %s17
    %p23 = scmp.ge.s32.totalorder %s22, 1
    %s24 = scalar_select %p23, 0, %s22
    %s25 = sadd.s32 1, %s16
    %s26 = scalar_select %p23, %s25, %s16
    %p27 = scmp.ge.s32.totalorder %s26, 5
    %s28 = scalar_select %p27, 0, %s26
    %s29 = ssub.s32 %s16, %s28
    %p30 = scmp.eq.s32.totalorder %s29, 0
    %s32 = sadd.s32 %s31, 1
    %s33 = scalar_select %p30, %s31, %s32
    %p36 = pneg %p30
    %p37 = scmp.eq.s32.totalorder %s9, 4
    %p38 = por %p36, %p37
    %p39 = scmp.ne.s32.totalorder %s31, %s34
    %p40 = scmp.eq.s32.totalorder %s9, 0
    %p41 = por %p39, %p40
    %p42 = scmp.ne.s32.totalorder %s31, %s34
    %p43 = scmp.eq.s32.totalorder %s14, 4
    %p44 = por %p42, %p43
    %p45 = scmp.ne.s32.totalorder %s34, %s35
    %p46 = scmp.eq.s32.totalorder %s14, 0
    %p47 = por %p45, %p46
    %p48 = scmp.ne.s32.totalorder %s34, %s35
    %p49 = scmp.eq.s32.totalorder %s15, 4
    %p50 = por %p48, %p49
    %p52 = scmp.ne.s32.totalorder %s35, %s51
    %p53 = scmp.eq.s32.totalorder %s15, 0
    %p54 = por %p52, %p53
    %s55 = ssub.s32 %s17, %s24
    %p56 = scmp.eq.s32.totalorder %s55, 0
    %s58 = sadd.s32 %s57, 1
    %s59 = scalar_select %p56, %s57, %s58
    %p62 = pneg %p56
    %p63 = scmp.eq.s32.totalorder %s9, 4
    %p64 = por %p62, %p63
    %p65 = scmp.ne.s32.totalorder %s57, %s60
    %p66 = scmp.eq.s32.totalorder %s9, 0
    %p67 = por %p65, %p66
    %p68 = scmp.ne.s32.totalorder %s57, %s60
    %p69 = scmp.eq.s32.totalorder %s14, 4
    %p70 = por %p68, %p69
    %p71 = scmp.ne.s32.totalorder %s60, %s61
    %p72 = scmp.eq.s32.totalorder %s14, 0
    %p73 = por %p71, %p72
    %p74 = scmp.ne.s32.totalorder %s60, %s61
    %p75 = scmp.eq.s32.totalorder %s15, 4
    %p76 = por %p74, %p75
    %p78 = scmp.ne.s32.totalorder %s61, %s77
    %p79 = scmp.eq.s32.totalorder %s15, 0
    %p80 = por %p78, %p79
    %s81 = ssub.s32 %s17, %s24
    %p82 = scmp.eq.s32.totalorder %s81, 0
    %s84 = sadd.s32 %s83, 1
    %s85 = scalar_select %p82, %s83, %s84
    %p88 = pneg %p82
    %p89 = scmp.eq.s32.totalorder %s9, 4
    %p90 = por %p88, %p89
    %p91 = scmp.ne.s32.totalorder %s83, %s86
    %p92 = scmp.eq.s32.totalorder %s9, 0
    %p93 = por %p91, %p92
    %p94 = scmp.ne.s32.totalorder %s83, %s86
    %p95 = scmp.eq.s32.totalorder %s14, 4
    %p96 = por %p94, %p95
    %p97 = scmp.ne.s32.totalorder %s86, %s87
    %p98 = scmp.eq.s32.totalorder %s14, 0
    %p99 = por %p97, %p98
    %p100 = scmp.ne.s32.totalorder %s86, %s87
    %p101 = scmp.eq.s32.totalorder %s15, 4
    %p102 = por %p100, %p101
    %p104 = scmp.ne.s32.totalorder %s87, %s103
    %p105 = scmp.eq.s32.totalorder %s15, 0
    %p106 = por %p104, %p105
    %s107 = ssub.s32 %s16, %s28
    %s108 = ssub.s32 %s17, %s24
    %s109 = sor.u32 %s107, %s108
    %p110 = scmp.eq.s32.totalorder %s109, 0
    %s112 = sadd.s32 %s111, 1
    %s113 = scalar_select %p110, %s111, %s112
    %p116 = pneg %p110
    %p117 = scmp.eq.s32.totalorder %s9, 4
    %p118 = por %p116, %p117
    %p119 = scmp.ne.s32.totalorder %s111, %s114
    %p120 = scmp.eq.s32.totalorder %s9, 0
    %p121 = por %p119, %p120
    %p122 = scmp.ne.s32.totalorder %s111, %s114
    %p123 = scmp.eq.s32.totalorder %s14, 4
    %p124 = por %p122, %p123
    %p125 = scmp.ne.s32.totalorder %s114, %s115
    %p126 = scmp.eq.s32.totalorder %s14, 0
    %p127 = por %p125, %p126
    %p128 = scmp.ne.s32.totalorder %s114, %s115
    %p129 = scmp.eq.s32.totalorder %s15, 4
    %p130 = por %p128, %p129
    %p132 = scmp.ne.s32.totalorder %s115, %s131
    %p133 = scmp.eq.s32.totalorder %s15, 0
    %p134 = por %p132, %p133
    %p135 = scmp.le.s32.totalorder 1, %s9
    %p136 = scmp.lt.s32.totalorder %s9, 6
    %p137 = pnand %p135, %p136
    %p138 = pneg %p137
    // Predicated region
    $region9: #{seqpred_forward.7} parent=5 // pred_check
      _
    $region10: #{seqpred_forward.7} parent=5 // pred_check_branch
      %140 = sbr.rel (%p137) target = $region12
    $region11: #{seqpred_forward.7} parent=5 // pred_region
      %s141 = ssub.s32 %s9, 1
      // Predicated region
      $region13: #{seqpred_forward.7} parent=11 // pred_check
        %p142 = pneg %p73
      $region14: #{seqpred_forward.7} parent=11 // pred_check_branch
        %144 = sbr.rel (%p142) target = $region16
      $region15: #{seqpred_forward.7} parent=11 // pred_region
        %p145 = scmp.lt.s32.totalorder %s19, 0
        %s146 = scalar_select %p145, %s19, 0
        %s147 = smul.addr %s146, 4
        %s148 = scalar_lea.vmem %s1, %s147
      $region16: #{seqpred_forward.7} parent=11 // pred_fallthru
        _
      // Predicated region
      $region17: #{seqpred_forward.7} parent=11 // pred_check
        %p149 = pneg %p99
      $region18: #{seqpred_forward.7} parent=11 // pred_check_branch
        %151 = sbr.rel (%p149) target = $region20
      $region19: #{seqpred_forward.7} parent=11 // pred_region
        %p152 = scmp.lt.s32.totalorder %s19, 0
        %s153 = scalar_select %p152, %s19, 0
        %s154 = scalar_lea.vmem %s2, %s153
      $region20: #{seqpred_forward.7} parent=11 // pred_fallthru
        _
    $region12: #{seqpred_forward.7} parent=5 // pred_fallthru
      _
    %p155 = scmp.lt.s32.totalorder %s9, 5
    // Predicated region
    $region21: #{seqpred_forward.7} parent=5 // pred_check
      %p156 = pneg %p155
    $region22: #{seqpred_forward.7} parent=5 // pred_check_branch
      %158 = sbr.rel (%p156) target = $region24
    $region23: #{seqpred_forward.7} parent=5 // pred_region
      // Predicated region
      $region25: #{seqpred_forward.7} parent=23 // pred_check
        %p159 = pneg %p41
      $region26: #{seqpred_forward.7} parent=23 // pred_check_branch
        %161 = sbr.rel (%p159) target = $region28
      $region27: #{seqpred_forward.7} parent=23 // pred_region
        %s162 = smul.u32 50, %s16
        %p163 = scmp.lt.s32.totalorder %s162, 249
        %s164 = scalar_select %p163, %s162, 249
        %s165 = smul.addr %s164, 2
        %s166 = smul.addr %s165, 4
        %s167 = scalar_lea.vmem %s0, %s166
        %s168 = smul.u32 50, %s16
      $region28: #{seqpred_forward.7} parent=23 // pred_fallthru
        _
    $region24: #{seqpred_forward.7} parent=5 // pred_fallthru
      _
    %p169 = scmp.le.s32.totalorder 1, %s9
    %p170 = scmp.lt.s32.totalorder %s9, 6
    %p171 = pnand %p169, %p170
    %p172 = pneg %p171
    // Predicated region
    $region29: #{seqpred_forward.7} parent=5 // pred_check
      _
    $region30: #{seqpred_forward.7} parent=5 // pred_check_branch
      %174 = sbr.rel (%p171) target = $region32
    $region31: #{seqpred_forward.7} parent=5 // pred_region
      %s175 = ssub.s32 %s9, 1
      %s176 = smul.u32 50, %s18
      %p177 = scmp.lt.s32.totalorder %s176, 249
      %s178 = scalar_select %p177, %s176, 249
      %s179 = smul.addr %s178, 2
      %s180 = smul.addr %s179, 4
      %s181 = scalar_lea.vmem %s0, %s180
      %p182 = pneg %p47
      %p183 = pneg %p44
      %p184 = scmp.lt.s32.totalorder %s19, 0
      %s185 = scalar_select %p184, %s19, 0
      %s186 = smul.addr %s185, 4
      %s187 = scalar_lea.vmem %s1, %s186
      %p188 = pneg %p73
      %p189 = pneg %p70
      %p190 = scmp.lt.s32.totalorder %s19, 0
      %s191 = scalar_select %p190, %s19, 0
      %s192 = scalar_lea.vmem %s2, %s191
      %p193 = pneg %p99
      %p194 = pneg %p96
      %p195 = pneg %p127
      %p196 = pneg %p124
      %s197 = smul.u32 50, %s18
      %p198 = scmp.lt.s32.totalorder %s197, 249
      %s199 = scalar_select %p198, %s197, 249
      %p200 = scmp.lt.s32.totalorder %s19, 0
      %s201 = scalar_select %p200, %s19, 0
      %s202 = sadd.s32 %s201, %s199
      %s203 = smul.addr %s202, 4
      %s204 = scalar_lea.vmem %s3, %s203
      %s205 = smul.u32 50, %s18
      %p206 = scmp.lt.s32.totalorder %s205, 249
      %s207 = scalar_select %p206, %s205, 249
      %s208 = smul.addr %s207, 2
      %s209 = smul.addr %s208, 4
      %s210 = scalar_lea.vmem %s0, %s209
      %s211 = smul.u32 50, %s18
      %p212 = scmp.lt.s32.totalorder %s19, 0
      %s213 = scalar_select %p212, %s19, 0
      %s214 = smul.addr %s213, 4
      %s215 = scalar_lea.vmem %s1, %s214
      %p216 = scmp.lt.s32.totalorder %s19, 0
      %s217 = scalar_select %p216, %s19, 0
      %s218 = scalar_lea.vmem %s2, %s217
      %s219 = smul.u32 50, %s18
      %p220 = scmp.lt.s32.totalorder %s219, 249
      %s221 = scalar_select %p220, %s219, 249
      %p222 = scmp.lt.s32.totalorder %s19, 0
      %s223 = scalar_select %p222, %s19, 0
      %s224 = sadd.s32 %s223, %s221
      %s225 = smul.addr %s224, 4
      %s226 = scalar_lea.vmem %s3, %s225
      %s227 = smul.u32 50, %s18
      %v229 = vld [vmem:[%s210] sm:$0xff]
      %v230 = vld [vmem:[%s210 + $0x8] sm:$0xff]
      %v231 = vld [vmem:[%s210 + $0x10] sm:$0xff]
      %v232 = vld [vmem:[%s210 + $0x18] sm:$0xff]
      %v233 = vld [vmem:[%s210 + $0x20] sm:$0xff]
      %v234 = vld [vmem:[%s210 + $0x28] sm:$0xff]
      %v235 = vld [vmem:[%s210 + $0x30] sm:$0xff]
      %v236 = vld [vmem:[%s210 + $0x38] sm:$0xff]
      %v237 = vld [vmem:[%s210 + $0x40] sm:$0xff]
      %v238 = vld [vmem:[%s210 + $0x48] sm:$0xff]
      %v239 = vld [vmem:[%s210 + $0x50] sm:$0xff]
      %v240 = vld [vmem:[%s210 + $0x58] sm:$0xff]
      %v241 = vld [vmem:[%s210 + $0x60] sm:$0xff]
      %v242 = vld [vmem:[%s210 + $0x68] sm:$0xff]
      %v243 = vld [vmem:[%s210 + $0x70] sm:$0xff]
      %v244 = vld [vmem:[%s210 + $0x78] sm:$0xff]
      %v245 = vld [vmem:[%s210 + $0x80] sm:$0xff]
      %v246 = vld [vmem:[%s210 + $0x88] sm:$0xff]
      %v247 = vld [vmem:[%s210 + $0x90] sm:$0xff]
      %v248 = vld [vmem:[%s210 + $0x98] sm:$0xff]
      %v249 = vld [vmem:[%s210 + $0xa0] sm:$0xff]
      %v250 = vld [vmem:[%s210 + $0xa8] sm:$0xff]
      %v251 = vld [vmem:[%s210 + $0xb0] sm:$0xff]
      %v252 = vld [vmem:[%s210 + $0xb8] sm:$0xff]
      %v253 = vld [vmem:[%s210 + $0xc0] sm:$0xff]
      %v254 = vld [vmem:[%s210 + $0xc8] sm:$0xff]
      %v255 = vld [vmem:[%s210 + $0xd0] sm:$0xff]
      %v256 = vld [vmem:[%s210 + $0xd8] sm:$0xff]
      %v257 = vld [vmem:[%s210 + $0xe0] sm:$0xff]
      %v258 = vld [vmem:[%s210 + $0xe8] sm:$0xff]
      %v259 = vld [vmem:[%s210 + $0xf0] sm:$0xff]
      %v260 = vld [vmem:[%s210 + $0xf8] sm:$0xff]
      %v261 = vld [vmem:[%s210 + $0x100] sm:$0xff]
      %v262 = vld [vmem:[%s210 + $0x108] sm:$0xff]
      %v263 = vld [vmem:[%s210 + $0x110] sm:$0xff]
      %v264 = vld [vmem:[%s210 + $0x118] sm:$0xff]
      %v265 = vld [vmem:[%s210 + $0x120] sm:$0xff]
      %v266 = vld [vmem:[%s210 + $0x128] sm:$0xff]
      %v267 = vld [vmem:[%s210 + $0x130] sm:$0xff]
      %v268 = vld [vmem:[%s210 + $0x138] sm:$0xff]
      %v269 = vld [vmem:[%s210 + $0x140] sm:$0xff]
      %v270 = vld [vmem:[%s210 + $0x148] sm:$0xff]
      %v271 = vld [vmem:[%s210 + $0x150] sm:$0xff]
      %v272 = vld [vmem:[%s210 + $0x158] sm:$0xff]
      %v273 = vld [vmem:[%s210 + $0x160] sm:$0xff]
      %v274 = vld [vmem:[%s210 + $0x168] sm:$0xff]
      %v275 = vld [vmem:[%s210 + $0x170] sm:$0xff]
      %v276 = vld [vmem:[%s210 + $0x178] sm:$0xff]
      %v277 = vld [vmem:[%s210 + $0x180] sm:$0xff]
      %v278 = vld [vmem:[%s210 + $0x188] sm:$0xff]
      %v279 = vld [vmem:[%s215] sm:$0xf]
      %v280 = vld [vmem:[%s215 + $0x4] sm:$0xf]
      %v281 = vld [vmem:[%s215 + $0x8] sm:$0xf]
      %v282 = vld [vmem:[%s215 + $0xc] sm:$0xf]
      %v283 = vld [vmem:[%s215 + $0x10] sm:$0xf]
      %v284 = vld [vmem:[%s215 + $0x14] sm:$0xf]
      %v285 = vld [vmem:[%s215 + $0x18] sm:$0xf]
      %v286 = vld [vmem:[%s215 + $0x1c] sm:$0xf]
      %v287 = vld [vmem:[%s215 + $0x20] sm:$0xf]
      %v288 = vld [vmem:[%s215 + $0x24] sm:$0xf]
      %v289 = vld [vmem:[%s215 + $0x28] sm:$0xf]
      %v290 = vld [vmem:[%s215 + $0x2c] sm:$0xf]
      %v291 = vld [vmem:[%s215 + $0x30] sm:$0xf]
      %v292 = vld [vmem:[%s215 + $0x34] sm:$0xf]
      %v293 = vld [vmem:[%s215 + $0x38] sm:$0xf]
      %v294 = vld [vmem:[%s215 + $0x3c] sm:$0xf]
      %v295 = vld [vmem:[%s215 + $0x40] sm:$0xf]
      %v296 = vld [vmem:[%s215 + $0x44] sm:$0xf]
      %v297 = vld [vmem:[%s215 + $0x48] sm:$0xf]
      %v298 = vld [vmem:[%s215 + $0x4c] sm:$0xf]
      %v299 = vld [vmem:[%s215 + $0x50] sm:$0xf]
      %v300 = vld [vmem:[%s215 + $0x54] sm:$0xf]
      %v301 = vld [vmem:[%s215 + $0x58] sm:$0xf]
      %v302 = vld [vmem:[%s215 + $0x5c] sm:$0xf]
      %v303 = vld [vmem:[%s215 + $0x60] sm:$0xf]
      %v304 = vld [vmem:[%s215 + $0x64] sm:$0xf]
      %v305 = vld [vmem:[%s215 + $0x68] sm:$0xf]
      %v306 = vld [vmem:[%s215 + $0x6c] sm:$0xf]
      %v307 = vld [vmem:[%s215 + $0x70] sm:$0xf]
      %v308 = vld [vmem:[%s215 + $0x74] sm:$0xf]
      %v309 = vld [vmem:[%s215 + $0x78] sm:$0xf]
      %v310 = vld [vmem:[%s215 + $0x7c] sm:$0xf]
      %v311 = vld [vmem:[%s218] sm:$0x1]
      %v313 = vlaneseq
      %v314 = vshrl.u32 %v313, 7
      %v315 = vsub.s32 0, %v314
      %v316 = vrot.slane %v311, %v315
      %v368 = vunpack.c.l.b16 %v229
      %v369 = vunpack.c.h.b16 %v229
      %v370 = vunpack.c.l.b16 %v230
      %v371 = vunpack.c.h.b16 %v230
      %v372 = vunpack.c.l.b16 %v231
      %v373 = vunpack.c.h.b16 %v231
      %v374 = vunpack.c.l.b16 %v232
      %v375 = vunpack.c.h.b16 %v232
      %v376 = vunpack.c.l.b16 %v233
      %v377 = vunpack.c.h.b16 %v233
      %v378 = vunpack.c.l.b16 %v234
      %v379 = vunpack.c.h.b16 %v234
      %v380 = vunpack.c.l.b16 %v235
      %v381 = vunpack.c.h.b16 %v235
      %v382 = vunpack.c.l.b16 %v236
      %v383 = vunpack.c.h.b16 %v236
      %v384 = vunpack.c.l.b16 %v237
      %v385 = vunpack.c.h.b16 %v237
      %v386 = vunpack.c.l.b16 %v238
      %v387 = vunpack.c.h.b16 %v238
      %v388 = vunpack.c.l.b16 %v239
      %v389 = vunpack.c.h.b16 %v239
      %v390 = vunpack.c.l.b16 %v240
      %v391 = vunpack.c.h.b16 %v240
      %v392 = vunpack.c.l.b16 %v241
      %v393 = vunpack.c.h.b16 %v241
      %v394 = vunpack.c.l.b16 %v242
      %v395 = vunpack.c.h.b16 %v242
      %v396 = vunpack.c.l.b16 %v243
      %v397 = vunpack.c.h.b16 %v243
      %v398 = vunpack.c.l.b16 %v244
      %v399 = vunpack.c.h.b16 %v244
      %v400 = vunpack.c.l.b16 %v245
      %v401 = vunpack.c.h.b16 %v245
      %v402 = vunpack.c.l.b16 %v246
      %v403 = vunpack.c.h.b16 %v246
      %v404 = vunpack.c.l.b16 %v247
      %v405 = vunpack.c.h.b16 %v247
      %v406 = vunpack.c.l.b16 %v248
      %v407 = vunpack.c.h.b16 %v248
      %v408 = vunpack.c.l.b16 %v249
      %v409 = vunpack.c.h.b16 %v249
      %v410 = vunpack.c.l.b16 %v250
      %v411 = vunpack.c.h.b16 %v250
      %v412 = vunpack.c.l.b16 %v251
      %v413 = vunpack.c.h.b16 %v251
      %v414 = vunpack.c.l.b16 %v252
      %v415 = vunpack.c.h.b16 %v252
      %v416 = vunpack.c.l.b16 %v253
      %v417 = vunpack.c.h.b16 %v253
      %v418 = vunpack.c.l.b16 %v254
      %v419 = vunpack.c.h.b16 %v254
      %v420 = vunpack.c.l.b16 %v255
      %v421 = vunpack.c.h.b16 %v255
      %v422 = vunpack.c.l.b16 %v256
      %v423 = vunpack.c.h.b16 %v256
      %v424 = vunpack.c.l.b16 %v257
      %v425 = vunpack.c.h.b16 %v257
      %v426 = vunpack.c.l.b16 %v258
      %v427 = vunpack.c.h.b16 %v258
      %v428 = vunpack.c.l.b16 %v259
      %v429 = vunpack.c.h.b16 %v259
      %v430 = vunpack.c.l.b16 %v260
      %v431 = vunpack.c.h.b16 %v260
      %v432 = vunpack.c.l.b16 %v261
      %v433 = vunpack.c.h.b16 %v261
      %v434 = vunpack.c.l.b16 %v262
      %v435 = vunpack.c.h.b16 %v262
      %v436 = vunpack.c.l.b16 %v263
      %v437 = vunpack.c.h.b16 %v263
      %v438 = vunpack.c.l.b16 %v264
      %v439 = vunpack.c.h.b16 %v264
      %v440 = vunpack.c.l.b16 %v265
      %v441 = vunpack.c.h.b16 %v265
      %v442 = vunpack.c.l.b16 %v266
      %v443 = vunpack.c.h.b16 %v266
      %v444 = vunpack.c.l.b16 %v267
      %v445 = vunpack.c.h.b16 %v267
      %v446 = vunpack.c.l.b16 %v268
      %v447 = vunpack.c.h.b16 %v268
      %v448 = vunpack.c.l.b16 %v269
      %v449 = vunpack.c.h.b16 %v269
      %v450 = vunpack.c.l.b16 %v270
      %v451 = vunpack.c.h.b16 %v270
      %v452 = vunpack.c.l.b16 %v271
      %v453 = vunpack.c.h.b16 %v271
      %v454 = vunpack.c.l.b16 %v272
      %v455 = vunpack.c.h.b16 %v272
      %v456 = vunpack.c.l.b16 %v273
      %v457 = vunpack.c.h.b16 %v273
      %v458 = vunpack.c.l.b16 %v274
      %v459 = vunpack.c.h.b16 %v274
      %v460 = vunpack.c.l.b16 %v275
      %v461 = vunpack.c.h.b16 %v275
      %v462 = vunpack.c.l.b16 %v276
      %v463 = vunpack.c.h.b16 %v276
      %v464 = vunpack.c.l.b16 %v277
      %v465 = vunpack.c.h.b16 %v277
      %v466 = vunpack.c.l.b16 %v278
      %v467 = vunpack.c.h.b16 %v278
      %v468 = vpack.c.b16 %v370, %v368
      %v469 = vpack.c.b16 %v371, %v369
      %v470 = vpack.c.b16 %v374, %v372
      %v471 = vpack.c.b16 %v375, %v373
      %v472 = vpack.c.b16 %v378, %v376
      %v473 = vpack.c.b16 %v379, %v377
      %v474 = vpack.c.b16 %v382, %v380
      %v475 = vpack.c.b16 %v383, %v381
      %v476 = vpack.c.b16 %v386, %v384
      %v477 = vpack.c.b16 %v387, %v385
      %v478 = vpack.c.b16 %v390, %v388
      %v479 = vpack.c.b16 %v391, %v389
      %v480 = vpack.c.b16 %v394, %v392
      %v481 = vpack.c.b16 %v395, %v393
      %v482 = vpack.c.b16 %v398, %v396
      %v483 = vpack.c.b16 %v399, %v397
      %v484 = vpack.c.b16 %v402, %v400
      %v485 = vpack.c.b16 %v403, %v401
      %v486 = vpack.c.b16 %v406, %v404
      %v487 = vpack.c.b16 %v407, %v405
      %v488 = vpack.c.b16 %v410, %v408
      %v489 = vpack.c.b16 %v411, %v409
      %v490 = vpack.c.b16 %v414, %v412
      %v491 = vpack.c.b16 %v415, %v413
      %v492 = vpack.c.b16 %v418, %v416
      %v493 = vpack.c.b16 %v419, %v417
      %v494 = vpack.c.b16 %v422, %v420
      %v495 = vpack.c.b16 %v423, %v421
      %v496 = vpack.c.b16 %v426, %v424
      %v497 = vpack.c.b16 %v427, %v425
      %v498 = vpack.c.b16 %v430, %v428
      %v499 = vpack.c.b16 %v431, %v429
      %v500 = vpack.c.b16 %v434, %v432
      %v501 = vpack.c.b16 %v435, %v433
      %v502 = vpack.c.b16 %v438, %v436
      %v503 = vpack.c.b16 %v439, %v437
      %v504 = vpack.c.b16 %v442, %v440
      %v505 = vpack.c.b16 %v443, %v441
      %v506 = vpack.c.b16 %v446, %v444
      %v507 = vpack.c.b16 %v447, %v445
      %v508 = vpack.c.b16 %v450, %v448
      %v509 = vpack.c.b16 %v451, %v449
      %v510 = vpack.c.b16 %v454, %v452
      %v511 = vpack.c.b16 %v455, %v453
      %v512 = vpack.c.b16 %v458, %v456
      %v513 = vpack.c.b16 %v459, %v457
      %v514 = vpack.c.b16 %v462, %v460
      %v515 = vpack.c.b16 %v463, %v461
      %v516 = vpack.c.b16 %v466, %v464
      %v517 = vpack.c.b16 %v467, %v465
      %v600 = vunpack.c.l.b16 %v279
      %v601 = vunpack.c.l.b16 %v280
      %v602 = vunpack.c.l.b16 %v281
      %v603 = vunpack.c.l.b16 %v282
      %v604 = vunpack.c.l.b16 %v283
      %v605 = vunpack.c.l.b16 %v284
      %v606 = vunpack.c.l.b16 %v285
      %v607 = vunpack.c.l.b16 %v286
      %v608 = vunpack.c.l.b16 %v287
      %v609 = vunpack.c.l.b16 %v288
      %v610 = vunpack.c.l.b16 %v289
      %v611 = vunpack.c.l.b16 %v290
      %v612 = vunpack.c.l.b16 %v291
      %v613 = vunpack.c.l.b16 %v292
      %v614 = vunpack.c.l.b16 %v293
      %v615 = vunpack.c.l.b16 %v294
      %v616 = vunpack.c.l.b16 %v295
      %v617 = vunpack.c.l.b16 %v296
      %v618 = vunpack.c.l.b16 %v297
      %v619 = vunpack.c.l.b16 %v298
      %v620 = vunpack.c.l.b16 %v299
      %v621 = vunpack.c.l.b16 %v300
      %v622 = vunpack.c.l.b16 %v301
      %v623 = vunpack.c.l.b16 %v302
      %v624 = vunpack.c.l.b16 %v303
      %v625 = vunpack.c.l.b16 %v304
      %v626 = vunpack.c.l.b16 %v305
      %v627 = vunpack.c.l.b16 %v306
      %v628 = vunpack.c.l.b16 %v307
      %v629 = vunpack.c.l.b16 %v308
      %v630 = vunpack.c.l.b16 %v309
      %v631 = vunpack.c.l.b16 %v310
      %v632 = vpack.c.b16 %v601, %v600
      %v633 = vpack.c.b16 %v603, %v602
      %v634 = vpack.c.b16 %v605, %v604
      %v635 = vpack.c.b16 %v607, %v606
      %v636 = vpack.c.b16 %v609, %v608
      %v637 = vpack.c.b16 %v611, %v610
      %v638 = vpack.c.b16 %v613, %v612
      %v639 = vpack.c.b16 %v615, %v614
      %v640 = vpack.c.b16 %v617, %v616
      %v641 = vpack.c.b16 %v619, %v618
      %v642 = vpack.c.b16 %v621, %v620
      %v643 = vpack.c.b16 %v623, %v622
      %v644 = vpack.c.b16 %v625, %v624
      %v645 = vpack.c.b16 %v627, %v626
      %v646 = vpack.c.b16 %v629, %v628
      %v647 = vpack.c.b16 %v631, %v630
      %664 = vmatprep.subr.bf16.mxu0 0
      %665 = vmatpush1.bf16.msra.mxu0 %v632
      %666 = vmatprep.subr.bf16.mxu0 0
      %667 = vmatpush1.bf16.msra.mxu0 %v633
      %668 = vmatprep.subr.bf16.mxu0 0
      %669 = vmatpush1.bf16.msra.mxu0 %v634
      %670 = vmatprep.subr.bf16.mxu0 0
      %671 = vmatpush1.bf16.msra.mxu0 %v635
      %672 = vmatprep.subr.bf16.mxu0 0
      %673 = vmatpush1.bf16.msra.mxu0 %v636
      %674 = vmatprep.subr.bf16.mxu0 0
      %675 = vmatpush1.bf16.msra.mxu0 %v637
      %676 = vmatprep.subr.bf16.mxu0 0
      %677 = vmatpush1.bf16.msra.mxu0 %v638
      %678 = vmatprep.subr.bf16.mxu0 0
      %679 = vmatpush1.bf16.msra.mxu0 %v639
      %680 = vmatprep.subr.bf16.mxu0 0
      %681 = vmatpush1.bf16.msra.mxu0 %v640
      %682 = vmatprep.subr.bf16.mxu0 0
      %683 = vmatpush1.bf16.msra.mxu0 %v641
      %684 = vmatprep.subr.bf16.mxu0 0
      %685 = vmatpush1.bf16.msra.mxu0 %v642
      %686 = vmatprep.subr.bf16.mxu0 0
      %687 = vmatpush1.bf16.msra.mxu0 %v643
      %688 = vmatprep.subr.bf16.mxu0 0
      %689 = vmatpush1.bf16.msra.mxu0 %v644
      %690 = vmatprep.subr.bf16.mxu0 0
      %691 = vmatpush1.bf16.msra.mxu0 %v645
      %692 = vmatprep.subr.bf16.mxu0 0
      %693 = vmatpush1.bf16.msra.mxu0 %v646
      %694 = vmatprep.subr.bf16.mxu0 0
      %695 = vmatpush1.bf16.msra.mxu0 %v647
      %696 = vmatprep.mubr.bf16.mxu0 %v469
      %697 = vmatmul.mubr.bf16.gmra.mrb[0].mxu0 %v468
      %v698 = vpop.f32.mrb[0].mxu0
      %v699 = vadd.f32 %v316, %v698
      %v700 = vpop.f32.mrb[0].mxu0
      %v701 = vpop.f32.mrb[0].mxu0
      %v702 = vadd.f32 %v316, %v701
      %v703 = vpop.f32.mrb[0].mxu0
      %704 = vmatprep.mubr.bf16.mxu0 %v471
      %705 = vmatmul.mubr.bf16.gmra.mrb[0].mxu0 %v470
      %v706 = vpop.f32.mrb[0].mxu0
      %v707 = vadd.f32 %v316, %v706
      %v708 = vpop.f32.mrb[0].mxu0
      %v709 = vpop.f32.mrb[0].mxu0
      %v710 = vadd.f32 %v316, %v709
      %v711 = vpop.f32.mrb[0].mxu0
      %712 = vmatprep.mubr.bf16.mxu0 %v473
      %713 = vmatmul.mubr.bf16.gmra.mrb[0].mxu0 %v472
      %v714 = vpop.f32.mrb[0].mxu0
      %v715 = vadd.f32 %v316, %v714
      %v716 = vpop.f32.mrb[0].mxu0
      %v717 = vpop.f32.mrb[0].mxu0
      %v718 = vadd.f32 %v316, %v717
      %v719 = vpop.f32.mrb[0].mxu0
      %720 = vmatprep.mubr.bf16.mxu0 %v475
      %721 = vmatmul.mubr.bf16.gmra.mrb[0].mxu0 %v474
      %v722 = vpop.f32.mrb[0].mxu0
      %v723 = vadd.f32 %v316, %v722
      %v724 = vpop.f32.mrb[0].mxu0
      %v725 = vpop.f32.mrb[0].mxu0
      %v726 = vadd.f32 %v316, %v725
      %v727 = vpop.f32.mrb[0].mxu0
      %728 = vmatprep.mubr.bf16.mxu0 %v477
      %729 = vmatmul.mubr.bf16.gmra.mrb[0].mxu0 %v476
      %v730 = vpop.f32.mrb[0].mxu0
      %v731 = vadd.f32 %v316, %v730
      %v732 = vpop.f32.mrb[0].mxu0
      %v733 = vpop.f32.mrb[0].mxu0
      %v734 = vadd.f32 %v316, %v733
      %v735 = vpop.f32.mrb[0].mxu0
      %736 = vmatprep.mubr.bf16.mxu0 %v479
      %737 = vmatmul.mubr.bf16.gmra.mrb[0].mxu0 %v478
      %v738 = vpop.f32.mrb[0].mxu0
      %v739 = vadd.f32 %v316, %v738
      %v740 = vpop.f32.mrb[0].mxu0
      %v741 = vpop.f32.mrb[0].mxu0
      %v742 = vadd.f32 %v316, %v741
      %v743 = vpop.f32.mrb[0].mxu0
      %744 = vmatprep.mubr.bf16.mxu0 %v481
      %745 = vmatmul.mubr.bf16.gmra.mrb[0].mxu0 %v480
      %v746 = vpop.f32.mrb[0].mxu0
      %v747 = vadd.f32 %v316, %v746
      %v748 = vpop.f32.mrb[0].mxu0
      %v749 = vpop.f32.mrb[0].mxu0
      %v750 = vadd.f32 %v316, %v749
      %v751 = vpop.f32.mrb[0].mxu0
      %752 = vmatprep.mubr.bf16.mxu0 %v483
      %753 = vmatmul.mubr.bf16.gmra.mrb[0].mxu0 %v482
      %v754 = vpop.f32.mrb[0].mxu0
      %v755 = vadd.f32 %v316, %v754
      %v756 = vpop.f32.mrb[0].mxu0
      %v757 = vpop.f32.mrb[0].mxu0
      %v758 = vadd.f32 %v316, %v757
      %v759 = vpop.f32.mrb[0].mxu0
      %760 = vmatprep.mubr.bf16.mxu0 %v485
      %761 = vmatmul.mubr.bf16.gmra.mrb[0].mxu0 %v484
      %v762 = vpop.f32.mrb[0].mxu0
      %v763 = vadd.f32 %v316, %v762
      %v764 = vpop.f32.mrb[0].mxu0
      %v765 = vpop.f32.mrb[0].mxu0
      %v766 = vadd.f32 %v316, %v765
      %v767 = vpop.f32.mrb[0].mxu0
      %768 = vmatprep.mubr.bf16.mxu0 %v487
      %769 = vmatmul.mubr.bf16.gmra.mrb[0].mxu0 %v486
      %v770 = vpop.f32.mrb[0].mxu0
      %v771 = vadd.f32 %v316, %v770
      %v772 = vpop.f32.mrb[0].mxu0
      %v773 = vpop.f32.mrb[0].mxu0
      %v774 = vadd.f32 %v316, %v773
      %v775 = vpop.f32.mrb[0].mxu0
      %776 = vmatprep.mubr.bf16.mxu0 %v489
      %777 = vmatmul.mubr.bf16.gmra.mrb[0].mxu0 %v488
      %v778 = vpop.f32.mrb[0].mxu0
      %v779 = vadd.f32 %v316, %v778
      %v780 = vpop.f32.mrb[0].mxu0
      %v781 = vpop.f32.mrb[0].mxu0
      %v782 = vadd.f32 %v316, %v781
      %v783 = vpop.f32.mrb[0].mxu0
      %784 = vmatprep.mubr.bf16.mxu0 %v491
      %785 = vmatmul.mubr.bf16.gmra.mrb[0].mxu0 %v490
      %v786 = vpop.f32.mrb[0].mxu0
      %v787 = vadd.f32 %v316, %v786
      %v788 = vpop.f32.mrb[0].mxu0
      %v789 = vpop.f32.mrb[0].mxu0
      %v790 = vadd.f32 %v316, %v789
      %v791 = vpop.f32.mrb[0].mxu0
      %792 = vmatprep.mubr.bf16.mxu0 %v493
      %793 = vmatmul.mubr.bf16.gmra.mrb[0].mxu0 %v492
      %v794 = vpop.f32.mrb[0].mxu0
      %v795 = vadd.f32 %v316, %v794
      %v796 = vpop.f32.mrb[0].mxu0
      %v797 = vpop.f32.mrb[0].mxu0
      %v798 = vadd.f32 %v316, %v797
      %v799 = vpop.f32.mrb[0].mxu0
      %800 = vmatprep.mubr.bf16.mxu0 %v495
      %801 = vmatmul.mubr.bf16.gmra.mrb[0].mxu0 %v494
      %v802 = vpop.f32.mrb[0].mxu0
      %v803 = vadd.f32 %v316, %v802
      %v804 = vpop.f32.mrb[0].mxu0
      %v805 = vpop.f32.mrb[0].mxu0
      %v806 = vadd.f32 %v316, %v805
      %v807 = vpop.f32.mrb[0].mxu0
      %808 = vmatprep.mubr.bf16.mxu0 %v497
      %809 = vmatmul.mubr.bf16.gmra.mrb[0].mxu0 %v496
      %v810 = vpop.f32.mrb[0].mxu0
      %v811 = vadd.f32 %v316, %v810
      %v812 = vpop.f32.mrb[0].mxu0
      %v813 = vpop.f32.mrb[0].mxu0
      %v814 = vadd.f32 %v316, %v813
      %v815 = vpop.f32.mrb[0].mxu0
      %816 = vmatprep.mubr.bf16.mxu0 %v499
      %817 = vmatmul.mubr.bf16.gmra.mrb[0].mxu0 %v498
      %v818 = vpop.f32.mrb[0].mxu0
      %v819 = vadd.f32 %v316, %v818
      %v820 = vpop.f32.mrb[0].mxu0
      %v821 = vpop.f32.mrb[0].mxu0
      %v822 = vadd.f32 %v316, %v821
      %v823 = vpop.f32.mrb[0].mxu0
      %824 = vmatprep.mubr.bf16.mxu0 %v501
      %825 = vmatmul.mubr.bf16.gmra.mrb[0].mxu0 %v500
      %v826 = vpop.f32.mrb[0].mxu0
      %v827 = vadd.f32 %v316, %v826
      %v828 = vpop.f32.mrb[0].mxu0
      %v829 = vpop.f32.mrb[0].mxu0
      %v830 = vadd.f32 %v316, %v829
      %v831 = vpop.f32.mrb[0].mxu0
      %832 = vmatprep.mubr.bf16.mxu0 %v503
      %833 = vmatmul.mubr.bf16.gmra.mrb[0].mxu0 %v502
      %v834 = vpop.f32.mrb[0].mxu0
      %v835 = vadd.f32 %v316, %v834
      %v836 = vpop.f32.mrb[0].mxu0
      %v837 = vpop.f32.mrb[0].mxu0
      %v838 = vadd.f32 %v316, %v837
      %v839 = vpop.f32.mrb[0].mxu0
      %840 = vmatprep.mubr.bf16.mxu0 %v505
      %841 = vmatmul.mubr.bf16.gmra.mrb[0].mxu0 %v504
      %v842 = vpop.f32.mrb[0].mxu0
      %v843 = vadd.f32 %v316, %v842
      %v844 = vpop.f32.mrb[0].mxu0
      %v845 = vpop.f32.mrb[0].mxu0
      %v846 = vadd.f32 %v316, %v845
      %v847 = vpop.f32.mrb[0].mxu0
      %848 = vmatprep.mubr.bf16.mxu0 %v507
      %849 = vmatmul.mubr.bf16.gmra.mrb[0].mxu0 %v506
      %v850 = vpop.f32.mrb[0].mxu0
      %v851 = vadd.f32 %v316, %v850
      %v852 = vpop.f32.mrb[0].mxu0
      %v853 = vpop.f32.mrb[0].mxu0
      %v854 = vadd.f32 %v316, %v853
      %v855 = vpop.f32.mrb[0].mxu0
      %856 = vmatprep.mubr.bf16.mxu0 %v509
      %857 = vmatmul.mubr.bf16.gmra.mrb[0].mxu0 %v508
      %v858 = vpop.f32.mrb[0].mxu0
      %v859 = vadd.f32 %v316, %v858
      %v860 = vpop.f32.mrb[0].mxu0
      %v861 = vpop.f32.mrb[0].mxu0
      %v862 = vadd.f32 %v316, %v861
      %v863 = vpop.f32.mrb[0].mxu0
      %864 = vmatprep.mubr.bf16.mxu0 %v511
      %865 = vmatmul.mubr.bf16.gmra.mrb[0].mxu0 %v510
      %v866 = vpop.f32.mrb[0].mxu0
      %v867 = vadd.f32 %v316, %v866
      %v868 = vpop.f32.mrb[0].mxu0
      %v869 = vpop.f32.mrb[0].mxu0
      %v870 = vadd.f32 %v316, %v869
      %v871 = vpop.f32.mrb[0].mxu0
      %872 = vmatprep.mubr.bf16.mxu0 %v513
      %873 = vmatmul.mubr.bf16.gmra.mrb[0].mxu0 %v512
      %v874 = vpop.f32.mrb[0].mxu0
      %v875 = vadd.f32 %v316, %v874
      %v876 = vpop.f32.mrb[0].mxu0
      %v877 = vpop.f32.mrb[0].mxu0
      %v878 = vadd.f32 %v316, %v877
      %v879 = vpop.f32.mrb[0].mxu0
      %880 = vmatprep.mubr.bf16.mxu0 %v515
      %881 = vmatmul.mubr.bf16.gmra.mrb[0].mxu0 %v514
      %v882 = vpop.f32.mrb[0].mxu0
      %v883 = vadd.f32 %v316, %v882
      %v884 = vpop.f32.mrb[0].mxu0
      %v885 = vpop.f32.mrb[0].mxu0
      %v886 = vadd.f32 %v316, %v885
      %v887 = vpop.f32.mrb[0].mxu0
      %888 = vmatprep.mubr.bf16.mxu0 %v517
      %889 = vmatmul.mubr.bf16.gmra.mrb[0].mxu0 %v516
      %v890 = vpop.f32.mrb[0].mxu0
      %v891 = vadd.f32 %v316, %v890
      %v892 = vpop.f32.mrb[0].mxu0
      %v893 = vpop.f32.mrb[0].mxu0
      %v894 = vadd.f32 %v316, %v893
      %v895 = vpop.f32.mrb[0].mxu0
      %896 = vdwg.mxu0
      %v897 = vmul.f32 %v699, 0.2
      %v898 = vmul.f32 %v702, 0.2
      %v899 = vmul.f32 %v707, 0.2
      %v900 = vmul.f32 %v710, 0.2
      %v901 = vmul.f32 %v715, 0.2
      %v902 = vmul.f32 %v718, 0.2
      %v903 = vmul.f32 %v723, 0.2
      %v904 = vmul.f32 %v726, 0.2
      %v905 = vmul.f32 %v731, 0.2
      %v906 = vmul.f32 %v734, 0.2
      %v907 = vmul.f32 %v739, 0.2
      %v908 = vmul.f32 %v742, 0.2
      %v909 = vmul.f32 %v747, 0.2
      %v910 = vmul.f32 %v750, 0.2
      %v911 = vmul.f32 %v755, 0.2
      %v912 = vmul.f32 %v758, 0.2
      %v913 = vmul.f32 %v763, 0.2
      %v914 = vmul.f32 %v766, 0.2
      %v915 = vmul.f32 %v771, 0.2
      %v916 = vmul.f32 %v774, 0.2
      %v917 = vmul.f32 %v779, 0.2
      %v918 = vmul.f32 %v782, 0.2
      %v919 = vmul.f32 %v787, 0.2
      %v920 = vmul.f32 %v790, 0.2
      %v921 = vmul.f32 %v795, 0.2
      %v922 = vmul.f32 %v798, 0.2
      %v923 = vmul.f32 %v803, 0.2
      %v924 = vmul.f32 %v806, 0.2
      %v925 = vmul.f32 %v811, 0.2
      %v926 = vmul.f32 %v814, 0.2
      %v927 = vmul.f32 %v819, 0.2
      %v928 = vmul.f32 %v822, 0.2
      %v929 = vmul.f32 %v827, 0.2
      %v930 = vmul.f32 %v830, 0.2
      %v931 = vmul.f32 %v835, 0.2
      %v932 = vmul.f32 %v838, 0.2
      %v933 = vmul.f32 %v843, 0.2
      %v934 = vmul.f32 %v846, 0.2
      %v935 = vmul.f32 %v851, 0.2
      %v936 = vmul.f32 %v854, 0.2
      %v937 = vmul.f32 %v859, 0.2
      %v938 = vmul.f32 %v862, 0.2
      %v939 = vmul.f32 %v867, 0.2
      %v940 = vmul.f32 %v870, 0.2
      %v941 = vmul.f32 %v875, 0.2
      %v942 = vmul.f32 %v878, 0.2
      %v943 = vmul.f32 %v883, 0.2
      %v944 = vmul.f32 %v886, 0.2
      %v945 = vmul.f32 %v891, 0.2
      %v946 = vmul.f32 %v894, 0.2
      %v947 = vmax.f32 %v699, %v897
      %v948 = vmax.f32 %v702, %v898
      %v949 = vmax.f32 %v707, %v899
      %v950 = vmax.f32 %v710, %v900
      %v951 = vmax.f32 %v715, %v901
      %v952 = vmax.f32 %v718, %v902
      %v953 = vmax.f32 %v723, %v903
      %v954 = vmax.f32 %v726, %v904
      %v955 = vmax.f32 %v731, %v905
      %v956 = vmax.f32 %v734, %v906
      %v957 = vmax.f32 %v739, %v907
      %v958 = vmax.f32 %v742, %v908
      %v959 = vmax.f32 %v747, %v909
      %v960 = vmax.f32 %v750, %v910
      %v961 = vmax.f32 %v755, %v911
      %v962 = vmax.f32 %v758, %v912
      %v963 = vmax.f32 %v763, %v913
      %v964 = vmax.f32 %v766, %v914
      %v965 = vmax.f32 %v771, %v915
      %v966 = vmax.f32 %v774, %v916
      %v967 = vmax.f32 %v779, %v917
      %v968 = vmax.f32 %v782, %v918
      %v969 = vmax.f32 %v787, %v919
      %v970 = vmax.f32 %v790, %v920
      %v971 = vmax.f32 %v795, %v921
      %v972 = vmax.f32 %v798, %v922
      %v973 = vmax.f32 %v803, %v923
      %v974 = vmax.f32 %v806, %v924
      %v975 = vmax.f32 %v811, %v925
      %v976 = vmax.f32 %v814, %v926
      %v977 = vmax.f32 %v819, %v927
      %v978 = vmax.f32 %v822, %v928
      %v979 = vmax.f32 %v827, %v929
      %v980 = vmax.f32 %v830, %v930
      %v981 = vmax.f32 %v835, %v931
      %v982 = vmax.f32 %v838, %v932
      %v983 = vmax.f32 %v843, %v933
      %v984 = vmax.f32 %v846, %v934
      %v985 = vmax.f32 %v851, %v935
      %v986 = vmax.f32 %v854, %v936
      %v987 = vmax.f32 %v859, %v937
      %v988 = vmax.f32 %v862, %v938
      %v989 = vmax.f32 %v867, %v939
      %v990 = vmax.f32 %v870, %v940
      %v991 = vmax.f32 %v875, %v941
      %v992 = vmax.f32 %v878, %v942
      %v993 = vmax.f32 %v883, %v943
      %v994 = vmax.f32 %v886, %v944
      %v995 = vmax.f32 %v891, %v945
      %v996 = vmax.f32 %v894, %v946
      %v997 = vpack.c.bf16 %v948, %v947
      %v998 = vpack.c.bf16 %v950, %v949
      %v999 = vpack.c.bf16 %v952, %v951
      %v1000 = vpack.c.bf16 %v954, %v953
      %v1001 = vpack.c.bf16 %v956, %v955
      %v1002 = vpack.c.bf16 %v958, %v957
      %v1003 = vpack.c.bf16 %v960, %v959
      %v1004 = vpack.c.bf16 %v962, %v961
      %v1005 = vpack.c.bf16 %v964, %v963
      %v1006 = vpack.c.bf16 %v966, %v965
      %v1007 = vpack.c.bf16 %v968, %v967
      %v1008 = vpack.c.bf16 %v970, %v969
      %v1009 = vpack.c.bf16 %v972, %v971
      %v1010 = vpack.c.bf16 %v974, %v973
      %v1011 = vpack.c.bf16 %v976, %v975
      %v1012 = vpack.c.bf16 %v978, %v977
      %v1013 = vpack.c.bf16 %v980, %v979
      %v1014 = vpack.c.bf16 %v982, %v981
      %v1015 = vpack.c.bf16 %v984, %v983
      %v1016 = vpack.c.bf16 %v986, %v985
      %v1017 = vpack.c.bf16 %v988, %v987
      %v1018 = vpack.c.bf16 %v990, %v989
      %v1019 = vpack.c.bf16 %v992, %v991
      %v1020 = vpack.c.bf16 %v994, %v993
      %v1021 = vpack.c.bf16 %v996, %v995
      %v1047 = vunpack.c.l.b16 %v997
      %v1048 = vunpack.c.h.b16 %v997
      %v1049 = vunpack.c.l.b16 %v998
      %v1050 = vunpack.c.h.b16 %v998
      %v1051 = vunpack.c.l.b16 %v999
      %v1052 = vunpack.c.h.b16 %v999
      %v1053 = vunpack.c.l.b16 %v1000
      %v1054 = vunpack.c.h.b16 %v1000
      %v1055 = vunpack.c.l.b16 %v1001
      %v1056 = vunpack.c.h.b16 %v1001
      %v1057 = vunpack.c.l.b16 %v1002
      %v1058 = vunpack.c.h.b16 %v1002
      %v1059 = vunpack.c.l.b16 %v1003
      %v1060 = vunpack.c.h.b16 %v1003
      %v1061 = vunpack.c.l.b16 %v1004
      %v1062 = vunpack.c.h.b16 %v1004
      %v1063 = vunpack.c.l.b16 %v1005
      %v1064 = vunpack.c.h.b16 %v1005
      %v1065 = vunpack.c.l.b16 %v1006
      %v1066 = vunpack.c.h.b16 %v1006
      %v1067 = vunpack.c.l.b16 %v1007
      %v1068 = vunpack.c.h.b16 %v1007
      %v1069 = vunpack.c.l.b16 %v1008
      %v1070 = vunpack.c.h.b16 %v1008
      %v1071 = vunpack.c.l.b16 %v1009
      %v1072 = vunpack.c.h.b16 %v1009
      %v1073 = vunpack.c.l.b16 %v1010
      %v1074 = vunpack.c.h.b16 %v1010
      %v1075 = vunpack.c.l.b16 %v1011
      %v1076 = vunpack.c.h.b16 %v1011
      %v1077 = vunpack.c.l.b16 %v1012
      %v1078 = vunpack.c.h.b16 %v1012
      %v1079 = vunpack.c.l.b16 %v1013
      %v1080 = vunpack.c.h.b16 %v1013
      %v1081 = vunpack.c.l.b16 %v1014
      %v1082 = vunpack.c.h.b16 %v1014
      %v1083 = vunpack.c.l.b16 %v1015
      %v1084 = vunpack.c.h.b16 %v1015
      %v1085 = vunpack.c.l.b16 %v1016
      %v1086 = vunpack.c.h.b16 %v1016
      %v1087 = vunpack.c.l.b16 %v1017
      %v1088 = vunpack.c.h.b16 %v1017
      %v1089 = vunpack.c.l.b16 %v1018
      %v1090 = vunpack.c.h.b16 %v1018
      %v1091 = vunpack.c.l.b16 %v1019
      %v1092 = vunpack.c.h.b16 %v1019
      %v1093 = vunpack.c.l.b16 %v1020
      %v1094 = vunpack.c.h.b16 %v1020
      %v1095 = vunpack.c.l.b16 %v1021
      %v1096 = vunpack.c.h.b16 %v1021
      %v1097 = vpack.c.b16 %v1047, %v1047
      %v1098 = vpack.c.b16 %v1048, %v1048
      %v1099 = vpack.c.b16 %v1049, %v1049
      %v1100 = vpack.c.b16 %v1050, %v1050
      %v1101 = vpack.c.b16 %v1051, %v1051
      %v1102 = vpack.c.b16 %v1052, %v1052
      %v1103 = vpack.c.b16 %v1053, %v1053
      %v1104 = vpack.c.b16 %v1054, %v1054
      %v1105 = vpack.c.b16 %v1055, %v1055
      %v1106 = vpack.c.b16 %v1056, %v1056
      %v1107 = vpack.c.b16 %v1057, %v1057
      %v1108 = vpack.c.b16 %v1058, %v1058
      %v1109 = vpack.c.b16 %v1059, %v1059
      %v1110 = vpack.c.b16 %v1060, %v1060
      %v1111 = vpack.c.b16 %v1061, %v1061
      %v1112 = vpack.c.b16 %v1062, %v1062
      %v1113 = vpack.c.b16 %v1063, %v1063
      %v1114 = vpack.c.b16 %v1064, %v1064
      %v1115 = vpack.c.b16 %v1065, %v1065
      %v1116 = vpack.c.b16 %v1066, %v1066
      %v1117 = vpack.c.b16 %v1067, %v1067
      %v1118 = vpack.c.b16 %v1068, %v1068
      %v1119 = vpack.c.b16 %v1069, %v1069
      %v1120 = vpack.c.b16 %v1070, %v1070
      %v1121 = vpack.c.b16 %v1071, %v1071
      %v1122 = vpack.c.b16 %v1072, %v1072
      %v1123 = vpack.c.b16 %v1073, %v1073
      %v1124 = vpack.c.b16 %v1074, %v1074
      %v1125 = vpack.c.b16 %v1075, %v1075
      %v1126 = vpack.c.b16 %v1076, %v1076
      %v1127 = vpack.c.b16 %v1077, %v1077
      %v1128 = vpack.c.b16 %v1078, %v1078
      %v1129 = vpack.c.b16 %v1079, %v1079
      %v1130 = vpack.c.b16 %v1080, %v1080
      %v1131 = vpack.c.b16 %v1081, %v1081
      %v1132 = vpack.c.b16 %v1082, %v1082
      %v1133 = vpack.c.b16 %v1083, %v1083
      %v1134 = vpack.c.b16 %v1084, %v1084
      %v1135 = vpack.c.b16 %v1085, %v1085
      %v1136 = vpack.c.b16 %v1086, %v1086
      %v1137 = vpack.c.b16 %v1087, %v1087
      %v1138 = vpack.c.b16 %v1088, %v1088
      %v1139 = vpack.c.b16 %v1089, %v1089
      %v1140 = vpack.c.b16 %v1090, %v1090
      %v1141 = vpack.c.b16 %v1091, %v1091
      %v1142 = vpack.c.b16 %v1092, %v1092
      %v1143 = vpack.c.b16 %v1093, %v1093
      %v1144 = vpack.c.b16 %v1094, %v1094
      %v1145 = vpack.c.b16 %v1095, %v1095
      %v1146 = vpack.c.b16 %v1096, %v1096
      %vm1197 = vcmask 125952
      %1198 = vst.msk [vmem:[%s226] sm:$0xf] %vm1197, %v1097
      %1199 = vst.msk [vmem:[%s226 + $0x4] sm:$0xf] %vm1197, %v1098
      %1200 = vst.msk [vmem:[%s226 + $0x8] sm:$0xf] %vm1197, %v1099
      %1201 = vst.msk [vmem:[%s226 + $0xc] sm:$0xf] %vm1197, %v1100
      %1202 = vst.msk [vmem:[%s226 + $0x10] sm:$0xf] %vm1197, %v1101
      %1203 = vst.msk [vmem:[%s226 + $0x14] sm:$0xf] %vm1197, %v1102
      %1204 = vst.msk [vmem:[%s226 + $0x18] sm:$0xf] %vm1197, %v1103
      %1205 = vst.msk [vmem:[%s226 + $0x1c] sm:$0xf] %vm1197, %v1104
      %1206 = vst.msk [vmem:[%s226 + $0x20] sm:$0xf] %vm1197, %v1105
      %1207 = vst.msk [vmem:[%s226 + $0x24] sm:$0xf] %vm1197, %v1106
      %1208 = vst.msk [vmem:[%s226 + $0x28] sm:$0xf] %vm1197, %v1107
      %1209 = vst.msk [vmem:[%s226 + $0x2c] sm:$0xf] %vm1197, %v1108
      %1210 = vst.msk [vmem:[%s226 + $0x30] sm:$0xf] %vm1197, %v1109
      %1211 = vst.msk [vmem:[%s226 + $0x34] sm:$0xf] %vm1197, %v1110
      %1212 = vst.msk [vmem:[%s226 + $0x38] sm:$0xf] %vm1197, %v1111
      %1213 = vst.msk [vmem:[%s226 + $0x3c] sm:$0xf] %vm1197, %v1112
      %1214 = vst.msk [vmem:[%s226 + $0x40] sm:$0xf] %vm1197, %v1113
      %1215 = vst.msk [vmem:[%s226 + $0x44] sm:$0xf] %vm1197, %v1114
      %1216 = vst.msk [vmem:[%s226 + $0x48] sm:$0xf] %vm1197, %v1115
      %1217 = vst.msk [vmem:[%s226 + $0x4c] sm:$0xf] %vm1197, %v1116
      %1218 = vst.msk [vmem:[%s226 + $0x50] sm:$0xf] %vm1197, %v1117
      %1219 = vst.msk [vmem:[%s226 + $0x54] sm:$0xf] %vm1197, %v1118
      %1220 = vst.msk [vmem:[%s226 + $0x58] sm:$0xf] %vm1197, %v1119
      %1221 = vst.msk [vmem:[%s226 + $0x5c] sm:$0xf] %vm1197, %v1120
      %1222 = vst.msk [vmem:[%s226 + $0x60] sm:$0xf] %vm1197, %v1121
      %1223 = vst.msk [vmem:[%s226 + $0x64] sm:$0xf] %vm1197, %v1122
      %1224 = vst.msk [vmem:[%s226 + $0x68] sm:$0xf] %vm1197, %v1123
      %1225 = vst.msk [vmem:[%s226 + $0x6c] sm:$0xf] %vm1197, %v1124
      %1226 = vst.msk [vmem:[%s226 + $0x70] sm:$0xf] %vm1197, %v1125
      %1227 = vst.msk [vmem:[%s226 + $0x74] sm:$0xf] %vm1197, %v1126
      %1228 = vst.msk [vmem:[%s226 + $0x78] sm:$0xf] %vm1197, %v1127
      %1229 = vst.msk [vmem:[%s226 + $0x7c] sm:$0xf] %vm1197, %v1128
      %1230 = vst.msk [vmem:[%s226 + $0x80] sm:$0xf] %vm1197, %v1129
      %1231 = vst.msk [vmem:[%s226 + $0x84] sm:$0xf] %vm1197, %v1130
      %1232 = vst.msk [vmem:[%s226 + $0x88] sm:$0xf] %vm1197, %v1131
      %1233 = vst.msk [vmem:[%s226 + $0x8c] sm:$0xf] %vm1197, %v1132
      %1234 = vst.msk [vmem:[%s226 + $0x90] sm:$0xf] %vm1197, %v1133
      %1235 = vst.msk [vmem:[%s226 + $0x94] sm:$0xf] %vm1197, %v1134
      %1236 = vst.msk [vmem:[%s226 + $0x98] sm:$0xf] %vm1197, %v1135
      %1237 = vst.msk [vmem:[%s226 + $0x9c] sm:$0xf] %vm1197, %v1136
      %1238 = vst.msk [vmem:[%s226 + $0xa0] sm:$0xf] %vm1197, %v1137
      %1239 = vst.msk [vmem:[%s226 + $0xa4] sm:$0xf] %vm1197, %v1138
      %1240 = vst.msk [vmem:[%s226 + $0xa8] sm:$0xf] %vm1197, %v1139
      %1241 = vst.msk [vmem:[%s226 + $0xac] sm:$0xf] %vm1197, %v1140
      %1242 = vst.msk [vmem:[%s226 + $0xb0] sm:$0xf] %vm1197, %v1141
      %1243 = vst.msk [vmem:[%s226 + $0xb4] sm:$0xf] %vm1197, %v1142
      %1244 = vst.msk [vmem:[%s226 + $0xb8] sm:$0xf] %vm1197, %v1143
      %1245 = vst.msk [vmem:[%s226 + $0xbc] sm:$0xf] %vm1197, %v1144
      %1246 = vst.msk [vmem:[%s226 + $0xc0] sm:$0xf] %vm1197, %v1145
      %1247 = vst.msk [vmem:[%s226 + $0xc4] sm:$0xf] %vm1197, %v1146
      %s1248 = smul.u32 50, %s18
      %p1249 = scmp.lt.s32.totalorder %s1248, 249
      %s1250 = scalar_select %p1249, %s1248, 249
      %p1251 = scmp.lt.s32.totalorder %s19, 0
      %s1252 = scalar_select %p1251, %s19, 0
      %s1253 = sadd.s32 %s1252, %s1250
      %s1254 = smul.addr %s1253, 4
      %s1255 = scalar_lea.vmem %s3, %s1254
      // Predicated region
      $region33: #{seqpred_forward.7} parent=31 // pred_check
        %p1256 = pneg %p124
      $region34: #{seqpred_forward.7} parent=31 // pred_check_branch
        %1258 = sbr.rel (%p1256) target = $region36
      $region35: #{seqpred_forward.7} parent=31 // pred_region
        %s1259 = smul.u32 50, %s18
      $region36: #{seqpred_forward.7} parent=31 // pred_fallthru
        _
    $region32: #{seqpred_forward.7} parent=5 // pred_fallthru
      _
    %p1260 = scmp.le.s32.totalorder 2, %s9
    // Predicated region
    $region37: #{seqpred_forward.7} parent=5 // pred_check
      %p1261 = pneg %p1260
    $region38: #{seqpred_forward.7} parent=5 // pred_check_branch
      %1263 = sbr.rel (%p1261) target = $region40
    $region39: #{seqpred_forward.7} parent=5 // pred_region
      %s1264 = ssub.s32 %s9, 2
      // Predicated region
      $region41: #{seqpred_forward.7} parent=39 // pred_check
        %p1265 = pneg %p130
      $region42: #{seqpred_forward.7} parent=39 // pred_check_branch
        %1267 = sbr.rel (%p1265) target = $region44
      $region43: #{seqpred_forward.7} parent=39 // pred_region
        %s1268 = smul.u32 50, %s20
        %p1269 = scmp.lt.s32.totalorder %s1268, 249
        %s1270 = scalar_select %p1269, %s1268, 249
        %p1271 = scmp.lt.s32.totalorder %s21, 0
        %s1272 = scalar_select %p1271, %s21, 0
        %s1273 = sadd.s32 %s1272, %s1270
        %s1274 = smul.addr %s1273, 4
        %s1275 = scalar_lea.vmem %s3, %s1274
      $region44: #{seqpred_forward.7} parent=39 // pred_fallthru
        _
    $region40: #{seqpred_forward.7} parent=5 // pred_fallthru
      _
  $region6: #{seqpred_forward.7} parent=0 // loop_footer
    %s13 = sadd.s32 1, %s9
  $region7: #{seqpred_forward.7} parent=0 // loop_footer_branch
    %8 = sbr.rel target = $region3
  $region8: #{seqpred_forward.7} parent=0 // loop_exit
    _

// kernel: seqpred_forward.8
$region0: #{seqpred_forward.8}
  #allocation0 [shape = 'u32[]', space=smem, size = 0x4, offset = 0x4, fixed_abs, tag = 'smem constant byte address 0x4 - core index']
  #allocation1 [shape = 'u32[144,128]{1,0:T(1,128)}', space=vmem, size = 0x12000, scoped, tag = 'internal scratch']
  %s0 = inlined_call_operand.vmem [shape: bf16[2000,432], index: 0, kind: input, shape index: {}]
  %s1 = inlined_call_operand.vmem [shape: bf16[432,16], index: 1, kind: input, shape index: {}]
  %s2 = inlined_call_operand.vmem [shape: f32[1,16], index: 2, kind: input, shape index: {}]
  %s3 = inlined_call_operand.vmem [shape: bf16[2000,16], index: 3, kind: output, shape index: {}]
  %s4 = sld [smem:[#allocation0]]
  $region45: #{seqpred_forward.8} parent=0
    _
  %s6 = ssub.s32 1, %s4
  %s7 = scalar_select 0, %s6, %s4
  loop: start=0, step=1, limit=7
  $region2: #{seqpred_forward.8} parent=0 // loop_pre_header
    _
  $region3: #{seqpred_forward.8} parent=0 // loop_header
    %s9 = sphi 0, %s13
    %p10 = scmp.ge.s32.totalorder %s9, 7
    %s16 = sphi 0, %s28
    %s17 = sphi 0, %s24
    %s18 = sphi 0, %s16
    %s19 = sphi 0, %s17
    %s20 = sphi 0, %s18
    %s21 = sphi 0, %s19
    %s31 = sphi 0, %s33
    %s34 = sphi 0, %s31
    %s35 = sphi 0, %s34
    %s51 = sphi 0, %s35
    %s57 = sphi 0, %s59
    %s60 = sphi 0, %s57
    %s61 = sphi 0, %s60
    %s77 = sphi 0, %s61
    %s83 = sphi 0, %s85
    %s86 = sphi 0, %s83
    %s87 = sphi 0, %s86
    %s103 = sphi 0, %s87
    %s111 = sphi 0, %s113
    %s114 = sphi 0, %s111
    %s115 = sphi 0, %s114
    %s131 = sphi 0, %s115
  $region4: #{seqpred_forward.8} parent=0 // loop_header_branch
    %12 = sbr.rel (%p10) target = $region8
  $region5: #{seqpred_forward.8} parent=0 // loop_body
    %s14 = ssub.s32 %s9, 1
    %s15 = ssub.s32 %s9, 2
    %s22 = sadd.s32 1, %s17
    %p23 = scmp.ge.s32.totalorder %s22, 1
    %s24 = scalar_select %p23, 0, %s22
    %s25 = sadd.s32 1, %s16
    %s26 = scalar_select %p23, %s25, %s16
    %p27 = scmp.ge.s32.totalorder %s26, 5
    %s28 = scalar_select %p27, 0, %s26
    %s29 = ssub.s32 %s16, %s28
    %p30 = scmp.eq.s32.totalorder %s29, 0
    %s32 = sadd.s32 %s31, 1
    %s33 = scalar_select %p30, %s31, %s32
    %p36 = pneg %p30
    %p37 = scmp.eq.s32.totalorder %s9, 4
    %p38 = por %p36, %p37
    %p39 = scmp.ne.s32.totalorder %s31, %s34
    %p40 = scmp.eq.s32.totalorder %s9, 0
    %p41 = por %p39, %p40
    %p42 = scmp.ne.s32.totalorder %s31, %s34
    %p43 = scmp.eq.s32.totalorder %s14, 4
    %p44 = por %p42, %p43
    %p45 = scmp.ne.s32.totalorder %s34, %s35
    %p46 = scmp.eq.s32.totalorder %s14, 0
    %p47 = por %p45, %p46
    %p48 = scmp.ne.s32.totalorder %s34, %s35
    %p49 = scmp.eq.s32.totalorder %s15, 4
    %p50 = por %p48, %p49
    %p52 = scmp.ne.s32.totalorder %s35, %s51
    %p53 = scmp.eq.s32.totalorder %s15, 0
    %p54 = por %p52, %p53
    %s55 = ssub.s32 %s17, %s24
    %p56 = scmp.eq.s32.totalorder %s55, 0
    %s58 = sadd.s32 %s57, 1
    %s59 = scalar_select %p56, %s57, %s58
    %p62 = pneg %p56
    %p63 = scmp.eq.s32.totalorder %s9, 4
    %p64 = por %p62, %p63
    %p65 = scmp.ne.s32.totalorder %s57, %s60
    %p66 = scmp.eq.s32.totalorder %s9, 0
    %p67 = por %p65, %p66
    %p68 = scmp.ne.s32.totalorder %s57, %s60
    %p69 = scmp.eq.s32.totalorder %s14, 4
    %p70 = por %p68, %p69
    %p71 = scmp.ne.s32.totalorder %s60, %s61
    %p72 = scmp.eq.s32.totalorder %s14, 0
    %p73 = por %p71, %p72
    %p74 = scmp.ne.s32.totalorder %s60, %s61
    %p75 = scmp.eq.s32.totalorder %s15, 4
    %p76 = por %p74, %p75
    %p78 = scmp.ne.s32.totalorder %s61, %s77
    %p79 = scmp.eq.s32.totalorder %s15, 0
    %p80 = por %p78, %p79
    %s81 = ssub.s32 %s17, %s24
    %p82 = scmp.eq.s32.totalorder %s81, 0
    %s84 = sadd.s32 %s83, 1
    %s85 = scalar_select %p82, %s83, %s84
    %p88 = pneg %p82
    %p89 = scmp.eq.s32.totalorder %s9, 4
    %p90 = por %p88, %p89
    %p91 = scmp.ne.s32.totalorder %s83, %s86
    %p92 = scmp.eq.s32.totalorder %s9, 0
    %p93 = por %p91, %p92
    %p94 = scmp.ne.s32.totalorder %s83, %s86
    %p95 = scmp.eq.s32.totalorder %s14, 4
    %p96 = por %p94, %p95
    %p97 = scmp.ne.s32.totalorder %s86, %s87
    %p98 = scmp.eq.s32.totalorder %s14, 0
    %p99 = por %p97, %p98
    %p100 = scmp.ne.s32.totalorder %s86, %s87
    %p101 = scmp.eq.s32.totalorder %s15, 4
    %p102 = por %p100, %p101
    %p104 = scmp.ne.s32.totalorder %s87, %s103
    %p105 = scmp.eq.s32.totalorder %s15, 0
    %p106 = por %p104, %p105
    %s107 = ssub.s32 %s16, %s28
    %s108 = ssub.s32 %s17, %s24
    %s109 = sor.u32 %s107, %s108
    %p110 = scmp.eq.s32.totalorder %s109, 0
    %s112 = sadd.s32 %s111, 1
    %s113 = scalar_select %p110, %s111, %s112
    %p116 = pneg %p110
    %p117 = scmp.eq.s32.totalorder %s9, 4
    %p118 = por %p116, %p117
    %p119 = scmp.ne.s32.totalorder %s111, %s114
    %p120 = scmp.eq.s32.totalorder %s9, 0
    %p121 = por %p119, %p120
    %p122 = scmp.ne.s32.totalorder %s111, %s114
    %p123 = scmp.eq.s32.totalorder %s14, 4
    %p124 = por %p122, %p123
    %p125 = scmp.ne.s32.totalorder %s114, %s115
    %p126 = scmp.eq.s32.totalorder %s14, 0
    %p127 = por %p125, %p126
    %p128 = scmp.ne.s32.totalorder %s114, %s115
    %p129 = scmp.eq.s32.totalorder %s15, 4
    %p130 = por %p128, %p129
    %p132 = scmp.ne.s32.totalorder %s115, %s131
    %p133 = scmp.eq.s32.totalorder %s15, 0
    %p134 = por %p132, %p133
    %p135 = scmp.le.s32.totalorder 1, %s9
    %p136 = scmp.lt.s32.totalorder %s9, 6
    %p137 = pnand %p135, %p136
    %p138 = pneg %p137
    // Predicated region
    $region9: #{seqpred_forward.8} parent=5 // pred_check
      _
    $region10: #{seqpred_forward.8} parent=5 // pred_check_branch
      %140 = sbr.rel (%p137) target = $region12
    $region11: #{seqpred_forward.8} parent=5 // pred_region
      %s141 = ssub.s32 %s9, 1
      // Predicated region
      $region13: #{seqpred_forward.8} parent=11 // pred_check
        %p142 = pneg %p73
      $region14: #{seqpred_forward.8} parent=11 // pred_check_branch
        %144 = sbr.rel (%p142) target = $region16
      $region15: #{seqpred_forward.8} parent=11 // pred_region
        %p145 = scmp.lt.s32.totalorder %s19, 0
        %s146 = scalar_select %p145, %s19, 0
        %s147 = smul.addr %s146, 4
        %s148 = scalar_lea.vmem %s1, %s147
      $region16: #{seqpred_forward.8} parent=11 // pred_fallthru
        _
      // Predicated region
      $region17: #{seqpred_forward.8} parent=11 // pred_check
        %p149 = pneg %p99
      $region18: #{seqpred_forward.8} parent=11 // pred_check_branch
        %151 = sbr.rel (%p149) target = $region20
      $region19: #{seqpred_forward.8} parent=11 // pred_region
        %p152 = scmp.lt.s32.totalorder %s19, 0
        %s153 = scalar_select %p152, %s19, 0
        %s154 = scalar_lea.vmem %s2, %s153
      $region20: #{seqpred_forward.8} parent=11 // pred_fallthru
        _
    $region12: #{seqpred_forward.8} parent=5 // pred_fallthru
      _
    %p155 = scmp.lt.s32.totalorder %s9, 5
    // Predicated region
    $region21: #{seqpred_forward.8} parent=5 // pred_check
      %p156 = pneg %p155
    $region22: #{seqpred_forward.8} parent=5 // pred_check_branch
      %158 = sbr.rel (%p156) target = $region24
    $region23: #{seqpred_forward.8} parent=5 // pred_region
      // Predicated region
      $region25: #{seqpred_forward.8} parent=23 // pred_check
        %p159 = pneg %p41
      $region26: #{seqpred_forward.8} parent=23 // pred_check_branch
        %161 = sbr.rel (%p159) target = $region28
      $region27: #{seqpred_forward.8} parent=23 // pred_region
        %s162 = smul.u32 50, %s16
        %p163 = scmp.lt.s32.totalorder %s162, 249
        %s164 = scalar_select %p163, %s162, 249
        %s165 = smul.addr %s164, 4
        %s166 = smul.addr %s165, 4
        %s167 = scalar_lea.vmem %s0, %s166
        %s168 = smul.u32 50, %s16
      $region28: #{seqpred_forward.8} parent=23 // pred_fallthru
        _
    $region24: #{seqpred_forward.8} parent=5 // pred_fallthru
      _
    %p169 = scmp.le.s32.totalorder 1, %s9
    %p170 = scmp.lt.s32.totalorder %s9, 6
    %p171 = pnand %p169, %p170
    %p172 = pneg %p171
    // Predicated region
    $region29: #{seqpred_forward.8} parent=5 // pred_check
      _
    $region30: #{seqpred_forward.8} parent=5 // pred_check_branch
      %174 = sbr.rel (%p171) target = $region32
    $region31: #{seqpred_forward.8} parent=5 // pred_region
      %s175 = ssub.s32 %s9, 1
      %s176 = smul.u32 50, %s18
      %p177 = scmp.lt.s32.totalorder %s176, 249
      %s178 = scalar_select %p177, %s176, 249
      %s179 = smul.addr %s178, 4
      %s180 = smul.addr %s179, 4
      %s181 = scalar_lea.vmem %s0, %s180
      %p182 = pneg %p47
      %p183 = pneg %p44
      %p184 = scmp.lt.s32.totalorder %s19, 0
      %s185 = scalar_select %p184, %s19, 0
      %s186 = smul.addr %s185, 4
      %s187 = scalar_lea.vmem %s1, %s186
      %p188 = pneg %p73
      %p189 = pneg %p70
      %p190 = scmp.lt.s32.totalorder %s19, 0
      %s191 = scalar_select %p190, %s19, 0
      %s192 = scalar_lea.vmem %s2, %s191
      %p193 = pneg %p99
      %p194 = pneg %p96
      %p195 = pneg %p127
      %p196 = pneg %p124
      %s197 = smul.u32 50, %s18
      %p198 = scmp.lt.s32.totalorder %s197, 249
      %s199 = scalar_select %p198, %s197, 249
      %p200 = scmp.lt.s32.totalorder %s19, 0
      %s201 = scalar_select %p200, %s19, 0
      %s202 = sadd.s32 %s201, %s199
      %s203 = smul.addr %s202, 4
      %s204 = scalar_lea.vmem %s3, %s203
      %s205 = smul.u32 50, %s18
      %p206 = scmp.lt.s32.totalorder %s205, 249
      %s207 = scalar_select %p206, %s205, 249
      %s208 = smul.addr %s207, 4
      %s209 = smul.addr %s208, 4
      %s210 = scalar_lea.vmem %s0, %s209
      %s211 = smul.u32 50, %s18
      %p212 = scmp.lt.s32.totalorder %s19, 0
      %s213 = scalar_select %p212, %s19, 0
      %s214 = smul.addr %s213, 4
      %s215 = scalar_lea.vmem %s1, %s214
      %p216 = scmp.lt.s32.totalorder %s19, 0
      %s217 = scalar_select %p216, %s19, 0
      %s218 = scalar_lea.vmem %s2, %s217
      %s219 = smul.u32 50, %s18
      %p220 = scmp.lt.s32.totalorder %s219, 249
      %s221 = scalar_select %p220, %s219, 249
      %p222 = scmp.lt.s32.totalorder %s19, 0
      %s223 = scalar_select %p222, %s19, 0
      %s224 = sadd.s32 %s223, %s221
      %s225 = smul.addr %s224, 4
      %s226 = scalar_lea.vmem %s3, %s225
      %s227 = smul.u32 50, %s18
      %v229 = vld [vmem:[%s210] sm:$0xff]
      %v230 = vld [vmem:[%s210 + $0x8] sm:$0xff]
      %v231 = vld [vmem:[%s210 + $0x10] sm:$0xff]
      %v232 = vld [vmem:[%s210 + $0x18] sm:$0xff]
      %v233 = vld [vmem:[%s210 + $0x20] sm:$0xff]
      %v234 = vld [vmem:[%s210 + $0x28] sm:$0xff]
      %v235 = vld [vmem:[%s210 + $0x30] sm:$0xff]
      %v236 = vld [vmem:[%s210 + $0x38] sm:$0xff]
      %v237 = vld [vmem:[%s210 + $0x40] sm:$0xff]
      %v238 = vld [vmem:[%s210 + $0x48] sm:$0xff]
      %v239 = vld [vmem:[%s210 + $0x50] sm:$0xff]
      %v240 = vld [vmem:[%s210 + $0x58] sm:$0xff]
      %v241 = vld [vmem:[%s210 + $0x60] sm:$0xff]
      %v242 = vld [vmem:[%s210 + $0x68] sm:$0xff]
      %v243 = vld [vmem:[%s210 + $0x70] sm:$0xff]
      %v244 = vld [vmem:[%s210 + $0x78] sm:$0xff]
      %v245 = vld [vmem:[%s210 + $0x80] sm:$0xff]
      %v246 = vld [vmem:[%s210 + $0x88] sm:$0xff]
      %v247 = vld [vmem:[%s210 + $0x90] sm:$0xff]
      %v248 = vld [vmem:[%s210 + $0x98] sm:$0xff]
      %v249 = vld [vmem:[%s210 + $0xa0] sm:$0xff]
      %v250 = vld [vmem:[%s210 + $0xa8] sm:$0xff]
      %v251 = vld [vmem:[%s210 + $0xb0] sm:$0xff]
      %v252 = vld [vmem:[%s210 + $0xb8] sm:$0xff]
      %v253 = vld [vmem:[%s210 + $0xc0] sm:$0xff]
      %v254 = vld [vmem:[%s210 + $0xc8] sm:$0xff]
      %v255 = vld [vmem:[%s210 + $0xd0] sm:$0xff]
      %v256 = vld [vmem:[%s210 + $0xd8] sm:$0xff]
      %v257 = vld [vmem:[%s210 + $0xe0] sm:$0xff]
      %v258 = vld [vmem:[%s210 + $0xe8] sm:$0xff]
      %v259 = vld [vmem:[%s210 + $0xf0] sm:$0xff]
      %v260 = vld [vmem:[%s210 + $0xf8] sm:$0xff]
      %v261 = vld [vmem:[%s210 + $0x100] sm:$0xff]
      %v262 = vld [vmem:[%s210 + $0x108] sm:$0xff]
      %v263 = vld [vmem:[%s210 + $0x110] sm:$0xff]
      %v264 = vld [vmem:[%s210 + $0x118] sm:$0xff]
      %v265 = vld [vmem:[%s210 + $0x120] sm:$0xff]
      %v266 = vld [vmem:[%s210 + $0x128] sm:$0xff]
      %v267 = vld [vmem:[%s210 + $0x130] sm:$0xff]
      %v268 = vld [vmem:[%s210 + $0x138] sm:$0xff]
      %v269 = vld [vmem:[%s210 + $0x140] sm:$0xff]
      %v270 = vld [vmem:[%s210 + $0x148] sm:$0xff]
      %v271 = vld [vmem:[%s210 + $0x150] sm:$0xff]
      %v272 = vld [vmem:[%s210 + $0x158] sm:$0xff]
      %v273 = vld [vmem:[%s210 + $0x160] sm:$0xff]
      %v274 = vld [vmem:[%s210 + $0x168] sm:$0xff]
      %v275 = vld [vmem:[%s210 + $0x170] sm:$0xff]
      %v276 = vld [vmem:[%s210 + $0x178] sm:$0xff]
      %v277 = vld [vmem:[%s210 + $0x180] sm:$0xff]
      %v278 = vld [vmem:[%s210 + $0x188] sm:$0xff]
      %v279 = vld [vmem:[%s210 + $0x190] sm:$0xff]
      %v280 = vld [vmem:[%s210 + $0x198] sm:$0xff]
      %v281 = vld [vmem:[%s210 + $0x1a0] sm:$0xff]
      %v282 = vld [vmem:[%s210 + $0x1a8] sm:$0xff]
      %v283 = vld [vmem:[%s210 + $0x1b0] sm:$0xff]
      %v284 = vld [vmem:[%s210 + $0x1b8] sm:$0xff]
      %v285 = vld [vmem:[%s210 + $0x1c0] sm:$0xff]
      %v286 = vld [vmem:[%s210 + $0x1c8] sm:$0xff]
      %v287 = vld [vmem:[%s210 + $0x1d0] sm:$0xff]
      %v288 = vld [vmem:[%s210 + $0x1d8] sm:$0xff]
      %v289 = vld [vmem:[%s210 + $0x1e0] sm:$0xff]
      %v290 = vld [vmem:[%s210 + $0x1e8] sm:$0xff]
      %v291 = vld [vmem:[%s210 + $0x1f0] sm:$0xff]
      %v292 = vld [vmem:[%s210 + $0x1f8] sm:$0xff]
      %v293 = vld [vmem:[%s210 + $0x200] sm:$0xff]
      %v294 = vld [vmem:[%s210 + $0x208] sm:$0xff]
      %v295 = vld [vmem:[%s210 + $0x210] sm:$0xff]
      %v296 = vld [vmem:[%s210 + $0x218] sm:$0xff]
      %v297 = vld [vmem:[%s210 + $0x220] sm:$0xff]
      %v298 = vld [vmem:[%s210 + $0x228] sm:$0xff]
      %v299 = vld [vmem:[%s210 + $0x230] sm:$0xff]
      %v300 = vld [vmem:[%s210 + $0x238] sm:$0xff]
      %v301 = vld [vmem:[%s210 + $0x240] sm:$0xff]
      %v302 = vld [vmem:[%s210 + $0x248] sm:$0xff]
      %v303 = vld [vmem:[%s210 + $0x250] sm:$0xff]
      %v304 = vld [vmem:[%s210 + $0x258] sm:$0xff]
      %v305 = vld [vmem:[%s210 + $0x260] sm:$0xff]
      %v306 = vld [vmem:[%s210 + $0x268] sm:$0xff]
      %v307 = vld [vmem:[%s210 + $0x270] sm:$0xff]
      %v308 = vld [vmem:[%s210 + $0x278] sm:$0xff]
      %v309 = vld [vmem:[%s210 + $0x280] sm:$0xff]
      %v310 = vld [vmem:[%s210 + $0x288] sm:$0xff]
      %v311 = vld [vmem:[%s210 + $0x290] sm:$0xff]
      %v312 = vld [vmem:[%s210 + $0x298] sm:$0xff]
      %v313 = vld [vmem:[%s210 + $0x2a0] sm:$0xff]
      %v314 = vld [vmem:[%s210 + $0x2a8] sm:$0xff]
      %v315 = vld [vmem:[%s210 + $0x2b0] sm:$0xff]
      %v316 = vld [vmem:[%s210 + $0x2b8] sm:$0xff]
      %v317 = vld [vmem:[%s210 + $0x2c0] sm:$0xff]
      %v318 = vld [vmem:[%s210 + $0x2c8] sm:$0xff]
      %v319 = vld [vmem:[%s210 + $0x2d0] sm:$0xff]
      %v320 = vld [vmem:[%s210 + $0x2d8] sm:$0xff]
      %v321 = vld [vmem:[%s210 + $0x2e0] sm:$0xff]
      %v322 = vld [vmem:[%s210 + $0x2e8] sm:$0xff]
      %v323 = vld [vmem:[%s210 + $0x2f0] sm:$0xff]
      %v324 = vld [vmem:[%s210 + $0x2f8] sm:$0xff]
      %v325 = vld [vmem:[%s210 + $0x300] sm:$0xff]
      %v326 = vld [vmem:[%s210 + $0x308] sm:$0xff]
      %v327 = vld [vmem:[%s210 + $0x310] sm:$0xff]
      %v328 = vld [vmem:[%s210 + $0x318] sm:$0xff]
      %v329 = vld [vmem:[%s215] sm:$0xf]
      %v330 = vld [vmem:[%s215 + $0x4] sm:$0xf]
      %v331 = vld [vmem:[%s215 + $0x8] sm:$0xf]
      %v332 = vld [vmem:[%s215 + $0xc] sm:$0xf]
      %v333 = vld [vmem:[%s215 + $0x10] sm:$0xf]
      %v334 = vld [vmem:[%s215 + $0x14] sm:$0xf]
      %v335 = vld [vmem:[%s215 + $0x18] sm:$0xf]
      %v336 = vld [vmem:[%s215 + $0x1c] sm:$0xf]
      %v337 = vld [vmem:[%s215 + $0x20] sm:$0xf]
      %v338 = vld [vmem:[%s215 + $0x24] sm:$0xf]
      %v339 = vld [vmem:[%s215 + $0x28] sm:$0xf]
      %v340 = vld [vmem:[%s215 + $0x2c] sm:$0xf]
      %v341 = vld [vmem:[%s215 + $0x30] sm:$0xf]
      %v342 = vld [vmem:[%s215 + $0x34] sm:$0xf]
      %v343 = vld [vmem:[%s215 + $0x38] sm:$0xf]
      %v344 = vld [vmem:[%s215 + $0x3c] sm:$0xf]
      %v345 = vld [vmem:[%s215 + $0x40] sm:$0xf]
      %v346 = vld [vmem:[%s215 + $0x44] sm:$0xf]
      %v347 = vld [vmem:[%s215 + $0x48] sm:$0xf]
      %v348 = vld [vmem:[%s215 + $0x4c] sm:$0xf]
      %v349 = vld [vmem:[%s215 + $0x50] sm:$0xf]
      %v350 = vld [vmem:[%s215 + $0x54] sm:$0xf]
      %v351 = vld [vmem:[%s215 + $0x58] sm:$0xf]
      %v352 = vld [vmem:[%s215 + $0x5c] sm:$0xf]
      %v353 = vld [vmem:[%s215 + $0x60] sm:$0xf]
      %v354 = vld [vmem:[%s215 + $0x64] sm:$0xf]
      %v355 = vld [vmem:[%s215 + $0x68] sm:$0xf]
      %v356 = vld [vmem:[%s215 + $0x6c] sm:$0xf]
      %v357 = vld [vmem:[%s215 + $0x70] sm:$0xf]
      %v358 = vld [vmem:[%s215 + $0x74] sm:$0xf]
      %v359 = vld [vmem:[%s215 + $0x78] sm:$0xf]
      %v360 = vld [vmem:[%s215 + $0x7c] sm:$0xf]
      %v361 = vld [vmem:[%s215 + $0x80] sm:$0xf]
      %v362 = vld [vmem:[%s215 + $0x84] sm:$0xf]
      %v363 = vld [vmem:[%s215 + $0x88] sm:$0xf]
      %v364 = vld [vmem:[%s215 + $0x8c] sm:$0xf]
      %v365 = vld [vmem:[%s215 + $0x90] sm:$0xf]
      %v366 = vld [vmem:[%s215 + $0x94] sm:$0xf]
      %v367 = vld [vmem:[%s215 + $0x98] sm:$0xf]
      %v368 = vld [vmem:[%s215 + $0x9c] sm:$0xf]
      %v369 = vld [vmem:[%s215 + $0xa0] sm:$0xf]
      %v370 = vld [vmem:[%s215 + $0xa4] sm:$0xf]
      %v371 = vld [vmem:[%s215 + $0xa8] sm:$0xf]
      %v372 = vld [vmem:[%s215 + $0xac] sm:$0xf]
      %v373 = vld [vmem:[%s215 + $0xb0] sm:$0xf]
      %v374 = vld [vmem:[%s215 + $0xb4] sm:$0xf]
      %v375 = vld [vmem:[%s215 + $0xb8] sm:$0xf]
      %v376 = vld [vmem:[%s215 + $0xbc] sm:$0xf]
      %v377 = vld [vmem:[%s215 + $0xc0] sm:$0xf]
      %v378 = vld [vmem:[%s215 + $0xc4] sm:$0xf]
      %v379 = vld [vmem:[%s215 + $0xc8] sm:$0xf]
      %v380 = vld [vmem:[%s215 + $0xcc] sm:$0xf]
      %v381 = vld [vmem:[%s215 + $0xd0] sm:$0xf]
      %v382 = vld [vmem:[%s215 + $0xd4] sm:$0xf]
      %v383 = vld [vmem:[%s218] sm:$0x1]
      %v385 = vlaneseq
      %v386 = vshrl.u32 %v385, 7
      %v387 = vsub.s32 0, %v386
      %v388 = vrot.slane %v383, %v387
      %v490 = vunpack.c.l.b16 %v229
      %v491 = vunpack.c.h.b16 %v229
      %v492 = vunpack.c.l.b16 %v230
      %v493 = vunpack.c.h.b16 %v230
      %v494 = vunpack.c.l.b16 %v231
      %v495 = vunpack.c.h.b16 %v231
      %v496 = vunpack.c.l.b16 %v232
      %v497 = vunpack.c.h.b16 %v232
      %v498 = vunpack.c.l.b16 %v233
      %v499 = vunpack.c.h.b16 %v233
      %v500 = vunpack.c.l.b16 %v234
      %v501 = vunpack.c.h.b16 %v234
      %v502 = vunpack.c.l.b16 %v235
      %v503 = vunpack.c.h.b16 %v235
      %v504 = vunpack.c.l.b16 %v236
      %v505 = vunpack.c.h.b16 %v236
      %v506 = vunpack.c.l.b16 %v237
      %v507 = vunpack.c.h.b16 %v237
      %v508 = vunpack.c.l.b16 %v238
      %v509 = vunpack.c.h.b16 %v238
      %v510 = vunpack.c.l.b16 %v239
      %v511 = vunpack.c.h.b16 %v239
      %v512 = vunpack.c.l.b16 %v240
      %v513 = vunpack.c.h.b16 %v240
      %v514 = vunpack.c.l.b16 %v241
      %v515 = vunpack.c.h.b16 %v241
      %v516 = vunpack.c.l.b16 %v242
      %v517 = vunpack.c.h.b16 %v242
      %v518 = vunpack.c.l.b16 %v243
      %v519 = vunpack.c.h.b16 %v243
      %v520 = vunpack.c.l.b16 %v244
      %v521 = vunpack.c.h.b16 %v244
      %v522 = vunpack.c.l.b16 %v245
      %v523 = vunpack.c.h.b16 %v245
      %v524 = vunpack.c.l.b16 %v246
      %v525 = vunpack.c.h.b16 %v246
      %v526 = vunpack.c.l.b16 %v247
      %v527 = vunpack.c.h.b16 %v247
      %v528 = vunpack.c.l.b16 %v248
      %v529 = vunpack.c.h.b16 %v248
      %v530 = vunpack.c.l.b16 %v249
      %v531 = vunpack.c.h.b16 %v249
      %v532 = vunpack.c.l.b16 %v250
      %v533 = vunpack.c.h.b16 %v250
      %v534 = vunpack.c.l.b16 %v251
      %v535 = vunpack.c.h.b16 %v251
      %v536 = vunpack.c.l.b16 %v252
      %v537 = vunpack.c.h.b16 %v252
      %v538 = vunpack.c.l.b16 %v253
      %v539 = vunpack.c.h.b16 %v253
      %v540 = vunpack.c.l.b16 %v254
      %v541 = vunpack.c.h.b16 %v254
      %v542 = vunpack.c.l.b16 %v255
      %v543 = vunpack.c.h.b16 %v255
      %v544 = vunpack.c.l.b16 %v256
      %v545 = vunpack.c.h.b16 %v256
      %v546 = vunpack.c.l.b16 %v257
      %v547 = vunpack.c.h.b16 %v257
      %v548 = vunpack.c.l.b16 %v258
      %v549 = vunpack.c.h.b16 %v258
      %v550 = vunpack.c.l.b16 %v259
      %v551 = vunpack.c.h.b16 %v259
      %v552 = vunpack.c.l.b16 %v260
      %v553 = vunpack.c.h.b16 %v260
      %v554 = vunpack.c.l.b16 %v261
      %v555 = vunpack.c.h.b16 %v261
      %v556 = vunpack.c.l.b16 %v262
      %v557 = vunpack.c.h.b16 %v262
      %v558 = vunpack.c.l.b16 %v263
      %v559 = vunpack.c.h.b16 %v263
      %v560 = vunpack.c.l.b16 %v264
      %v561 = vunpack.c.h.b16 %v264
      %v562 = vunpack.c.l.b16 %v265
      %v563 = vunpack.c.h.b16 %v265
      %v564 = vunpack.c.l.b16 %v266
      %v565 = vunpack.c.h.b16 %v266
      %v566 = vunpack.c.l.b16 %v267
      %v567 = vunpack.c.h.b16 %v267
      %v568 = vunpack.c.l.b16 %v268
      %v569 = vunpack.c.h.b16 %v268
      %v570 = vunpack.c.l.b16 %v269
      %v571 = vunpack.c.h.b16 %v269
      %v572 = vunpack.c.l.b16 %v270
      %v573 = vunpack.c.h.b16 %v270
      %v574 = vunpack.c.l.b16 %v271
      %v575 = vunpack.c.h.b16 %v271
      %v576 = vunpack.c.l.b16 %v272
      %v577 = vunpack.c.h.b16 %v272
      %v578 = vunpack.c.l.b16 %v273
      %v579 = vunpack.c.h.b16 %v273
      %v580 = vunpack.c.l.b16 %v274
      %v581 = vunpack.c.h.b16 %v274
      %v582 = vunpack.c.l.b16 %v275
      %v583 = vunpack.c.h.b16 %v275
      %v584 = vunpack.c.l.b16 %v276
      %v585 = vunpack.c.h.b16 %v276
      %v586 = vunpack.c.l.b16 %v277
      %v587 = vunpack.c.h.b16 %v277
      %v588 = vunpack.c.l.b16 %v278
      %v589 = vunpack.c.h.b16 %v278
      %v590 = vunpack.c.l.b16 %v279
      %v591 = vunpack.c.h.b16 %v279
      %v592 = vunpack.c.l.b16 %v280
      %v593 = vunpack.c.h.b16 %v280
      %v594 = vunpack.c.l.b16 %v281
      %v595 = vunpack.c.h.b16 %v281
      %v596 = vunpack.c.l.b16 %v282
      %v597 = vunpack.c.h.b16 %v282
      %v598 = vunpack.c.l.b16 %v283
      %v599 = vunpack.c.h.b16 %v283
      %v600 = vunpack.c.l.b16 %v284
      %v601 = vunpack.c.h.b16 %v284
      %v602 = vunpack.c.l.b16 %v285
      %v603 = vunpack.c.h.b16 %v285
      %v604 = vunpack.c.l.b16 %v286
      %v605 = vunpack.c.h.b16 %v286
      %v606 = vunpack.c.l.b16 %v287
      %v607 = vunpack.c.h.b16 %v287
      %v608 = vunpack.c.l.b16 %v288
      %v609 = vunpack.c.h.b16 %v288
      %v610 = vunpack.c.l.b16 %v289
      %v611 = vunpack.c.h.b16 %v289
      %v612 = vunpack.c.l.b16 %v290
      %v613 = vunpack.c.h.b16 %v290
      %v614 = vunpack.c.l.b16 %v291
      %v615 = vunpack.c.h.b16 %v291
      %v616 = vunpack.c.l.b16 %v292
      %v617 = vunpack.c.h.b16 %v292
      %v618 = vunpack.c.l.b16 %v293
      %v619 = vunpack.c.h.b16 %v293
      %v620 = vunpack.c.l.b16 %v294
      %v621 = vunpack.c.h.b16 %v294
      %v622 = vunpack.c.l.b16 %v295
      %v623 = vunpack.c.h.b16 %v295
      %v624 = vunpack.c.l.b16 %v296
      %v625 = vunpack.c.h.b16 %v296
      %v626 = vunpack.c.l.b16 %v297
      %v627 = vunpack.c.h.b16 %v297
      %v628 = vunpack.c.l.b16 %v298
      %v629 = vunpack.c.h.b16 %v298
      %v630 = vunpack.c.l.b16 %v299
      %v631 = vunpack.c.h.b16 %v299
      %v632 = vunpack.c.l.b16 %v300
      %v633 = vunpack.c.h.b16 %v300
      %v634 = vunpack.c.l.b16 %v301
      %v635 = vunpack.c.h.b16 %v301
      %v636 = vunpack.c.l.b16 %v302
      %v637 = vunpack.c.h.b16 %v302
      %v638 = vunpack.c.l.b16 %v303
      %v639 = vunpack.c.h.b16 %v303
      %v640 = vunpack.c.l.b16 %v304
      %v641 = vunpack.c.h.b16 %v304
      %v642 = vunpack.c.l.b16 %v305
      %v643 = vunpack.c.h.b16 %v305
      %v644 = vunpack.c.l.b16 %v306
      %v645 = vunpack.c.h.b16 %v306
      %v646 = vunpack.c.l.b16 %v307
      %v647 = vunpack.c.h.b16 %v307
      %v648 = vunpack.c.l.b16 %v308
      %v649 = vunpack.c.h.b16 %v308
      %v650 = vunpack.c.l.b16 %v309
      %v651 = vunpack.c.h.b16 %v309
      %v652 = vunpack.c.l.b16 %v310
      %v653 = vunpack.c.h.b16 %v310
      %v654 = vunpack.c.l.b16 %v311
      %v655 = vunpack.c.h.b16 %v311
      %v656 = vunpack.c.l.b16 %v312
      %v657 = vunpack.c.h.b16 %v312
      %v658 = vunpack.c.l.b16 %v313
      %v659 = vunpack.c.h.b16 %v313
      %v660 = vunpack.c.l.b16 %v314
      %v661 = vunpack.c.h.b16 %v314
      %v662 = vunpack.c.l.b16 %v315
      %v663 = vunpack.c.h.b16 %v315
      %v664 = vunpack.c.l.b16 %v316
      %v665 = vunpack.c.h.b16 %v316
      %v666 = vunpack.c.l.b16 %v317
      %v667 = vunpack.c.h.b16 %v317
      %v668 = vunpack.c.l.b16 %v318
      %v669 = vunpack.c.h.b16 %v318
      %v670 = vunpack.c.l.b16 %v319
      %v671 = vunpack.c.h.b16 %v319
      %v672 = vunpack.c.l.b16 %v320
      %v673 = vunpack.c.h.b16 %v320
      %v674 = vunpack.c.l.b16 %v321
      %v675 = vunpack.c.h.b16 %v321
      %v676 = vunpack.c.l.b16 %v322
      %v677 = vunpack.c.h.b16 %v322
      %v678 = vunpack.c.l.b16 %v323
      %v679 = vunpack.c.h.b16 %v323
      %v680 = vunpack.c.l.b16 %v324
      %v681 = vunpack.c.h.b16 %v324
      %v682 = vunpack.c.l.b16 %v325
      %v683 = vunpack.c.h.b16 %v325
      %v684 = vunpack.c.l.b16 %v326
      %v685 = vunpack.c.h.b16 %v326
      %v686 = vunpack.c.l.b16 %v327
      %v687 = vunpack.c.h.b16 %v327
      %v688 = vunpack.c.l.b16 %v328
      %v689 = vunpack.c.h.b16 %v328
      %v690 = vpack.c.b16 %v494, %v490
      %v691 = vpack.c.b16 %v495, %v491
      %v692 = vpack.c.b16 %v496, %v492
      %v693 = vpack.c.b16 %v497, %v493
      %v694 = vpack.c.b16 %v502, %v498
      %v695 = vpack.c.b16 %v503, %v499
      %v696 = vpack.c.b16 %v504, %v500
      %v697 = vpack.c.b16 %v505, %v501
      %v698 = vpack.c.b16 %v510, %v506
      %v699 = vpack.c.b16 %v511, %v507
      %v700 = vpack.c.b16 %v512, %v508
      %v701 = vpack.c.b16 %v513, %v509
      %v702 = vpack.c.b16 %v518, %v514
      %v703 = vpack.c.b16 %v519, %v515
      %v704 = vpack.c.b16 %v520, %v516
      %v705 = vpack.c.b16 %v521, %v517
      %v706 = vpack.c.b16 %v526, %v522
      %v707 = vpack.c.b16 %v527, %v523
      %v708 = vpack.c.b16 %v528, %v524
      %v709 = vpack.c.b16 %v529, %v525
      %v710 = vpack.c.b16 %v534, %v530
      %v711 = vpack.c.b16 %v535, %v531
      %v712 = vpack.c.b16 %v536, %v532
      %v713 = vpack.c.b16 %v537, %v533
      %v714 = vpack.c.b16 %v542, %v538
      %v715 = vpack.c.b16 %v543, %v539
      %v716 = vpack.c.b16 %v544, %v540
      %v717 = vpack.c.b16 %v545, %v541
      %v718 = vpack.c.b16 %v550, %v546
      %v719 = vpack.c.b16 %v551, %v547
      %v720 = vpack.c.b16 %v552, %v548
      %v721 = vpack.c.b16 %v553, %v549
      %v722 = vpack.c.b16 %v558, %v554
      %v723 = vpack.c.b16 %v559, %v555
      %v724 = vpack.c.b16 %v560, %v556
      %v725 = vpack.c.b16 %v561, %v557
      %v726 = vpack.c.b16 %v566, %v562
      %v727 = vpack.c.b16 %v567, %v563
      %v728 = vpack.c.b16 %v568, %v564
      %v729 = vpack.c.b16 %v569, %v565
      %v730 = vpack.c.b16 %v574, %v570
      %v731 = vpack.c.b16 %v575, %v571
      %v732 = vpack.c.b16 %v576, %v572
      %v733 = vpack.c.b16 %v577, %v573
      %v734 = vpack.c.b16 %v582, %v578
      %v735 = vpack.c.b16 %v583, %v579
      %v736 = vpack.c.b16 %v584, %v580
      %v737 = vpack.c.b16 %v585, %v581
      %v738 = vpack.c.b16 %v590, %v586
      %v739 = vpack.c.b16 %v591, %v587
      %v740 = vpack.c.b16 %v592, %v588
      %v741 = vpack.c.b16 %v593, %v589
      %v742 = vpack.c.b16 %v598, %v594
      %v743 = vpack.c.b16 %v599, %v595
      %v744 = vpack.c.b16 %v600, %v596
      %v745 = vpack.c.b16 %v601, %v597
      %v746 = vpack.c.b16 %v606, %v602
      %v747 = vpack.c.b16 %v607, %v603
      %v748 = vpack.c.b16 %v608, %v604
      %v749 = vpack.c.b16 %v609, %v605
      %v750 = vpack.c.b16 %v614, %v610
      %v751 = vpack.c.b16 %v615, %v611
      %v752 = vpack.c.b16 %v616, %v612
      %v753 = vpack.c.b16 %v617, %v613
      %v754 = vpack.c.b16 %v622, %v618
      %v755 = vpack.c.b16 %v623, %v619
      %v756 = vpack.c.b16 %v624, %v620
      %v757 = vpack.c.b16 %v625, %v621
      %v758 = vpack.c.b16 %v630, %v626
      %v759 = vpack.c.b16 %v631, %v627
      %v760 = vpack.c.b16 %v632, %v628
      %v761 = vpack.c.b16 %v633, %v629
      %v762 = vpack.c.b16 %v638, %v634
      %v763 = vpack.c.b16 %v639, %v635
      %v764 = vpack.c.b16 %v640, %v636
      %v765 = vpack.c.b16 %v641, %v637
      %v766 = vpack.c.b16 %v646, %v642
      %v767 = vpack.c.b16 %v647, %v643
      %v768 = vpack.c.b16 %v648, %v644
      %v769 = vpack.c.b16 %v649, %v645
      %v770 = vpack.c.b16 %v654, %v650
      %v771 = vpack.c.b16 %v655, %v651
      %v772 = vpack.c.b16 %v656, %v652
      %v773 = vpack.c.b16 %v657, %v653
      %v774 = vpack.c.b16 %v662, %v658
      %v775 = vpack.c.b16 %v663, %v659
      %v776 = vpack.c.b16 %v664, %v660
      %v777 = vpack.c.b16 %v665, %v661
      %v778 = vpack.c.b16 %v670, %v666
      %v779 = vpack.c.b16 %v671, %v667
      %v780 = vpack.c.b16 %v672, %v668
      %v781 = vpack.c.b16 %v673, %v669
      %v782 = vpack.c.b16 %v678, %v674
      %v783 = vpack.c.b16 %v679, %v675
      %v784 = vpack.c.b16 %v680, %v676
      %v785 = vpack.c.b16 %v681, %v677
      %v786 = vpack.c.b16 %v686, %v682
      %v787 = vpack.c.b16 %v687, %v683
      %v788 = vpack.c.b16 %v688, %v684
      %v789 = vpack.c.b16 %v689, %v685
      %v919 = vunpack.c.l.b16 %v329
      %v920 = vunpack.c.l.b16 %v330
      %v921 = vunpack.c.l.b16 %v331
      %v922 = vunpack.c.l.b16 %v332
      %v923 = vunpack.c.l.b16 %v333
      %v924 = vunpack.c.l.b16 %v334
      %v925 = vunpack.c.l.b16 %v335
      %v926 = vunpack.c.l.b16 %v336
      %v927 = vunpack.c.l.b16 %v337
      %v928 = vunpack.c.l.b16 %v338
      %v929 = vunpack.c.l.b16 %v339
      %v930 = vunpack.c.l.b16 %v340
      %v931 = vunpack.c.l.b16 %v341
      %v932 = vunpack.c.l.b16 %v342
      %v933 = vunpack.c.l.b16 %v343
      %v934 = vunpack.c.l.b16 %v344
      %v935 = vunpack.c.l.b16 %v345
      %v936 = vunpack.c.l.b16 %v346
      %v937 = vunpack.c.l.b16 %v347
      %v938 = vunpack.c.l.b16 %v348
      %v939 = vunpack.c.l.b16 %v349
      %v940 = vunpack.c.l.b16 %v350
      %v941 = vunpack.c.l.b16 %v351
      %v942 = vunpack.c.l.b16 %v352
      %v943 = vunpack.c.l.b16 %v353
      %v944 = vunpack.c.l.b16 %v354
      %v945 = vunpack.c.l.b16 %v355
      %v946 = vunpack.c.l.b16 %v356
      %v947 = vunpack.c.l.b16 %v357
      %v948 = vunpack.c.l.b16 %v358
      %v949 = vunpack.c.l.b16 %v359
      %v950 = vunpack.c.l.b16 %v360
      %v951 = vunpack.c.l.b16 %v361
      %v952 = vunpack.c.l.b16 %v362
      %v953 = vunpack.c.l.b16 %v363
      %v954 = vunpack.c.l.b16 %v364
      %v955 = vunpack.c.l.b16 %v365
      %v956 = vunpack.c.l.b16 %v366
      %v957 = vunpack.c.l.b16 %v367
      %v958 = vunpack.c.l.b16 %v368
      %v959 = vunpack.c.l.b16 %v369
      %v960 = vunpack.c.l.b16 %v370
      %v961 = vunpack.c.l.b16 %v371
      %v962 = vunpack.c.l.b16 %v372
      %v963 = vunpack.c.l.b16 %v373
      %v964 = vunpack.c.l.b16 %v374
      %v965 = vunpack.c.l.b16 %v375
      %v966 = vunpack.c.l.b16 %v376
      %v967 = vunpack.c.l.b16 %v377
      %v968 = vunpack.c.l.b16 %v378
      %v969 = vunpack.c.l.b16 %v379
      %v970 = vunpack.c.l.b16 %v380
      %v971 = vunpack.c.l.b16 %v381
      %v972 = vunpack.c.l.b16 %v382
      %v973 = vpack.c.b16 %v920, %v919
      %v974 = vpack.c.b16 %v922, %v921
      %v975 = vpack.c.b16 %v924, %v923
      %v976 = vpack.c.b16 %v926, %v925
      %v977 = vpack.c.b16 %v928, %v927
      %v978 = vpack.c.b16 %v930, %v929
      %v979 = vpack.c.b16 %v932, %v931
      %v980 = vpack.c.b16 %v934, %v933
      %v981 = vpack.c.b16 %v936, %v935
      %v982 = vpack.c.b16 %v938, %v937
      %v983 = vpack.c.b16 %v940, %v939
      %v984 = vpack.c.b16 %v942, %v941
      %v985 = vpack.c.b16 %v944, %v943
      %v986 = vpack.c.b16 %v946, %v945
      %v987 = vpack.c.b16 %v948, %v947
      %v988 = vpack.c.b16 %v950, %v949
      %v989 = vpack.c.b16 %v952, %v951
      %v990 = vpack.c.b16 %v954, %v953
      %v991 = vpack.c.b16 %v956, %v955
      %v992 = vpack.c.b16 %v958, %v957
      %v993 = vpack.c.b16 %v960, %v959
      %v994 = vpack.c.b16 %v962, %v961
      %v995 = vpack.c.b16 %v964, %v963
      %v996 = vpack.c.b16 %v966, %v965
      %v997 = vpack.c.b16 %v968, %v967
      %v998 = vpack.c.b16 %v970, %v969
      %v999 = vpack.c.b16 %v972, %v971
      %vm1027 = vcmask 392192
      %v1029 = vsel %vm1027, %v693, 0
      %v1032 = vsel %vm1027, %v697, 0
      %v1035 = vsel %vm1027, %v701, 0
      %v1038 = vsel %vm1027, %v705, 0
      %v1041 = vsel %vm1027, %v709, 0
      %v1044 = vsel %vm1027, %v713, 0
      %v1047 = vsel %vm1027, %v717, 0
      %v1050 = vsel %vm1027, %v721, 0
      %v1053 = vsel %vm1027, %v725, 0
      %v1056 = vsel %vm1027, %v729, 0
      %v1059 = vsel %vm1027, %v733, 0
      %v1062 = vsel %vm1027, %v737, 0
      %v1065 = vsel %vm1027, %v741, 0
      %v1068 = vsel %vm1027, %v745, 0
      %v1071 = vsel %vm1027, %v749, 0
      %v1074 = vsel %vm1027, %v753, 0
      %v1077 = vsel %vm1027, %v757, 0
      %v1080 = vsel %vm1027, %v761, 0
      %v1083 = vsel %vm1027, %v765, 0
      %v1086 = vsel %vm1027, %v769, 0
      %v1089 = vsel %vm1027, %v773, 0
      %v1092 = vsel %vm1027, %v777, 0
      %v1095 = vsel %vm1027, %v781, 0
      %v1098 = vsel %vm1027, %v785, 0
      %v1101 = vsel %vm1027, %v789, 0
      %1103 = vmatprep.subr.bf16.mxu0 0
      %1104 = vmatpush1.bf16.msra.mxu0 %v973
      %1105 = vmatprep.subr.bf16.mxu0 0
      %1106 = vmatpush1.bf16.msra.mxu0 %v974
      %1107 = vmatprep.subr.bf16.mxu0 0
      %1108 = vmatpush1.bf16.msra.mxu0 %v975
      %1109 = vmatprep.subr.bf16.mxu0 0
      %1110 = vmatpush1.bf16.msra.mxu0 %v976
      %1111 = vmatprep.subr.bf16.mxu0 0
      %1112 = vmatpush1.bf16.msra.mxu0 %v977
      %1113 = vmatprep.subr.bf16.mxu0 0
      %1114 = vmatpush1.bf16.msra.mxu0 %v978
      %1115 = vmatprep.subr.bf16.mxu0 0
      %1116 = vmatpush1.bf16.msra.mxu0 %v979
      %1117 = vmatprep.subr.bf16.mxu0 0
      %1118 = vmatpush1.bf16.msra.mxu0 %v980
      %1119 = vmatprep.subr.bf16.mxu0 0
      %1120 = vmatpush1.bf16.msra.mxu0 %v981
      %1121 = vmatprep.subr.bf16.mxu0 0
      %1122 = vmatpush1.bf16.msra.mxu0 %v982
      %1123 = vmatprep.subr.bf16.mxu0 0
      %1124 = vmatpush1.bf16.msra.mxu0 %v983
      %1125 = vmatprep.subr.bf16.mxu0 0
      %1126 = vmatpush1.bf16.msra.mxu0 %v984
      %1127 = vmatprep.subr.bf16.mxu0 0
      %1128 = vmatpush1.bf16.msra.mxu0 %v985
      %1129 = vmatprep.subr.bf16.mxu0 0
      %1130 = vmatpush1.bf16.msra.mxu0 %v986
      %1131 = vmatprep.subr.bf16.mxu0 0
      %1132 = vmatpush1.bf16.msra.mxu0 %v987
      %1133 = vmatprep.subr.bf16.mxu0 0
      %1134 = vmatpush1.bf16.msra.mxu0 %v988
      %1135 = vmatprep.mubr.bf16.mxu0 %v691
      %1136 = vmatmul.mubr.bf16.gmra.mrb[0].mxu0 %v690
      %v1137 = vpop.f32.mrb[0].mxu0
      %v1138 = vadd.f32 %v388, %v1137
      %v1139 = vpop.f32.mrb[0].mxu0
      %v1140 = vpop.f32.mrb[0].mxu0
      %v1141 = vadd.f32 %v388, %v1140
      %v1142 = vpop.f32.mrb[0].mxu0
      %1143 = vmatprep.mubr.bf16.mxu0 %v695
      %1144 = vmatmul.mubr.bf16.gmra.mrb[0].mxu0 %v694
      %v1145 = vpop.f32.mrb[0].mxu0
      %v1146 = vadd.f32 %v388, %v1145
      %v1147 = vpop.f32.mrb[0].mxu0
      %v1148 = vpop.f32.mrb[0].mxu0
      %v1149 = vadd.f32 %v388, %v1148
      %v1150 = vpop.f32.mrb[0].mxu0
      %1151 = vmatprep.mubr.bf16.mxu0 %v699
      %1152 = vmatmul.mubr.bf16.gmra.mrb[0].mxu0 %v698
      %v1153 = vpop.f32.mrb[0].mxu0
      %v1154 = vadd.f32 %v388, %v1153
      %v1155 = vpop.f32.mrb[0].mxu0
      %v1156 = vpop.f32.mrb[0].mxu0
      %v1157 = vadd.f32 %v388, %v1156
      %v1158 = vpop.f32.mrb[0].mxu0
      %1159 = vmatprep.mubr.bf16.mxu0 %v703
      %1160 = vmatmul.mubr.bf16.gmra.mrb[0].mxu0 %v702
      %v1161 = vpop.f32.mrb[0].mxu0
      %v1162 = vadd.f32 %v388, %v1161
      %v1163 = vpop.f32.mrb[0].mxu0
      %v1164 = vpop.f32.mrb[0].mxu0
      %v1165 = vadd.f32 %v388, %v1164
      %v1166 = vpop.f32.mrb[0].mxu0
      %1167 = vmatprep.mubr.bf16.mxu0 %v707
      %1168 = vmatmul.mubr.bf16.gmra.mrb[0].mxu0 %v706
      %v1169 = vpop.f32.mrb[0].mxu0
      %v1170 = vadd.f32 %v388, %v1169
      %v1171 = vpop.f32.mrb[0].mxu0
      %v1172 = vpop.f32.mrb[0].mxu0
      %v1173 = vadd.f32 %v388, %v1172
      %v1174 = vpop.f32.mrb[0].mxu0
      %1175 = vmatprep.mubr.bf16.mxu0 %v711
      %1176 = vmatmul.mubr.bf16.gmra.mrb[0].mxu0 %v710
      %v1177 = vpop.f32.mrb[0].mxu0
      %v1178 = vadd.f32 %v388, %v1177
      %v1179 = vpop.f32.mrb[0].mxu0
      %v1180 = vpop.f32.mrb[0].mxu0
      %v1181 = vadd.f32 %v388, %v1180
      %v1182 = vpop.f32.mrb[0].mxu0
      %1183 = vmatprep.mubr.bf16.mxu0 %v715
      %1184 = vmatmul.mubr.bf16.gmra.mrb[0].mxu0 %v714
      %v1185 = vpop.f32.mrb[0].mxu0
      %v1186 = vadd.f32 %v388, %v1185
      %v1187 = vpop.f32.mrb[0].mxu0
      %v1188 = vpop.f32.mrb[0].mxu0
      %v1189 = vadd.f32 %v388, %v1188
      %v1190 = vpop.f32.mrb[0].mxu0
      %1191 = vmatprep.mubr.bf16.mxu0 %v719
      %1192 = vmatmul.mubr.bf16.gmra.mrb[0].mxu0 %v718
      %v1193 = vpop.f32.mrb[0].mxu0
      %v1194 = vadd.f32 %v388, %v1193
      %v1195 = vpop.f32.mrb[0].mxu0
      %v1196 = vpop.f32.mrb[0].mxu0
      %v1197 = vadd.f32 %v388, %v1196
      %v1198 = vpop.f32.mrb[0].mxu0
      %1199 = vmatprep.mubr.bf16.mxu0 %v723
      %1200 = vmatmul.mubr.bf16.gmra.mrb[0].mxu0 %v722
      %v1201 = vpop.f32.mrb[0].mxu0
      %v1202 = vadd.f32 %v388, %v1201
      %v1203 = vpop.f32.mrb[0].mxu0
      %v1204 = vpop.f32.mrb[0].mxu0
      %v1205 = vadd.f32 %v388, %v1204
      %v1206 = vpop.f32.mrb[0].mxu0
      %1207 = vmatprep.mubr.bf16.mxu0 %v727
      %1208 = vmatmul.mubr.bf16.gmra.mrb[0].mxu0 %v726
      %v1209 = vpop.f32.mrb[0].mxu0
      %v1210 = vadd.f32 %v388, %v1209
      %v1211 = vpop.f32.mrb[0].mxu0
      %v1212 = vpop.f32.mrb[0].mxu0
      %v1213 = vadd.f32 %v388, %v1212
      %v1214 = vpop.f32.mrb[0].mxu0
      %1215 = vmatprep.mubr.bf16.mxu0 %v731
      %1216 = vmatmul.mubr.bf16.gmra.mrb[0].mxu0 %v730
      %v1217 = vpop.f32.mrb[0].mxu0
      %v1218 = vadd.f32 %v388, %v1217
      %v1219 = vpop.f32.mrb[0].mxu0
      %v1220 = vpop.f32.mrb[0].mxu0
      %v1221 = vadd.f32 %v388, %v1220
      %v1222 = vpop.f32.mrb[0].mxu0
      %1223 = vmatprep.mubr.bf16.mxu0 %v735
      %1224 = vmatmul.mubr.bf16.gmra.mrb[0].mxu0 %v734
      %v1225 = vpop.f32.mrb[0].mxu0
      %v1226 = vadd.f32 %v388, %v1225
      %v1227 = vpop.f32.mrb[0].mxu0
      %v1228 = vpop.f32.mrb[0].mxu0
      %v1229 = vadd.f32 %v388, %v1228
      %v1230 = vpop.f32.mrb[0].mxu0
      %1231 = vmatprep.mubr.bf16.mxu0 %v739
      %1232 = vmatmul.mubr.bf16.gmra.mrb[0].mxu0 %v738
      %v1233 = vpop.f32.mrb[0].mxu0
      %v1234 = vadd.f32 %v388, %v1233
      %v1235 = vpop.f32.mrb[0].mxu0
      %v1236 = vpop.f32.mrb[0].mxu0
      %v1237 = vadd.f32 %v388, %v1236
      %v1238 = vpop.f32.mrb[0].mxu0
      %1239 = vmatprep.mubr.bf16.mxu0 %v743
      %1240 = vmatmul.mubr.bf16.gmra.mrb[0].mxu0 %v742
      %v1241 = vpop.f32.mrb[0].mxu0
      %v1242 = vadd.f32 %v388, %v1241
      %v1243 = vpop.f32.mrb[0].mxu0
      %v1244 = vpop.f32.mrb[0].mxu0
      %v1245 = vadd.f32 %v388, %v1244
      %v1246 = vpop.f32.mrb[0].mxu0
      %1247 = vmatprep.mubr.bf16.mxu0 %v747
      %1248 = vmatmul.mubr.bf16.gmra.mrb[0].mxu0 %v746
      %v1249 = vpop.f32.mrb[0].mxu0
      %v1250 = vadd.f32 %v388, %v1249
      %v1251 = vpop.f32.mrb[0].mxu0
      %v1252 = vpop.f32.mrb[0].mxu0
      %v1253 = vadd.f32 %v388, %v1252
      %v1254 = vpop.f32.mrb[0].mxu0
      %1255 = vmatprep.mubr.bf16.mxu0 %v751
      %1256 = vmatmul.mubr.bf16.gmra.mrb[0].mxu0 %v750
      %v1257 = vpop.f32.mrb[0].mxu0
      %v1258 = vadd.f32 %v388, %v1257
      %v1259 = vpop.f32.mrb[0].mxu0
      %v1260 = vpop.f32.mrb[0].mxu0
      %v1261 = vadd.f32 %v388, %v1260
      %v1262 = vpop.f32.mrb[0].mxu0
      %1263 = vmatprep.mubr.bf16.mxu0 %v755
      %1264 = vmatmul.mubr.bf16.gmra.mrb[0].mxu0 %v754
      %v1265 = vpop.f32.mrb[0].mxu0
      %v1266 = vadd.f32 %v388, %v1265
      %v1267 = vpop.f32.mrb[0].mxu0
      %v1268 = vpop.f32.mrb[0].mxu0
      %v1269 = vadd.f32 %v388, %v1268
      %v1270 = vpop.f32.mrb[0].mxu0
      %1271 = vmatprep.mubr.bf16.mxu0 %v759
      %1272 = vmatmul.mubr.bf16.gmra.mrb[0].mxu0 %v758
      %v1273 = vpop.f32.mrb[0].mxu0
      %v1274 = vadd.f32 %v388, %v1273
      %v1275 = vpop.f32.mrb[0].mxu0
      %v1276 = vpop.f32.mrb[0].mxu0
      %v1277 = vadd.f32 %v388, %v1276
      %v1278 = vpop.f32.mrb[0].mxu0
      %1279 = vmatprep.mubr.bf16.mxu0 %v763
      %1280 = vmatmul.mubr.bf16.gmra.mrb[0].mxu0 %v762
      %v1281 = vpop.f32.mrb[0].mxu0
      %v1282 = vadd.f32 %v388, %v1281
      %v1283 = vpop.f32.mrb[0].mxu0
      %v1284 = vpop.f32.mrb[0].mxu0
      %v1285 = vadd.f32 %v388, %v1284
      %v1286 = vpop.f32.mrb[0].mxu0
      %1287 = vmatprep.mubr.bf16.mxu0 %v767
      %1288 = vmatmul.mubr.bf16.gmra.mrb[0].mxu0 %v766
      %v1289 = vpop.f32.mrb[0].mxu0
      %v1290 = vadd.f32 %v388, %v1289
      %v1291 = vpop.f32.mrb[0].mxu0
      %v1292 = vpop.f32.mrb[0].mxu0
      %v1293 = vadd.f32 %v388, %v1292
      %v1294 = vpop.f32.mrb[0].mxu0
      %1295 = vmatprep.mubr.bf16.mxu0 %v771
      %1296 = vmatmul.mubr.bf16.gmra.mrb[0].mxu0 %v770
      %v1297 = vpop.f32.mrb[0].mxu0
      %v1298 = vadd.f32 %v388, %v1297
      %v1299 = vpop.f32.mrb[0].mxu0
      %v1300 = vpop.f32.mrb[0].mxu0
      %v1301 = vadd.f32 %v388, %v1300
      %v1302 = vpop.f32.mrb[0].mxu0
      %1303 = vmatprep.mubr.bf16.mxu0 %v775
      %1304 = vmatmul.mubr.bf16.gmra.mrb[0].mxu0 %v774
      %v1305 = vpop.f32.mrb[0].mxu0
      %v1306 = vadd.f32 %v388, %v1305
      %v1307 = vpop.f32.mrb[0].mxu0
      %v1308 = vpop.f32.mrb[0].mxu0
      %v1309 = vadd.f32 %v388, %v1308
      %v1310 = vpop.f32.mrb[0].mxu0
      %1311 = vmatprep.mubr.bf16.mxu0 %v779
      %1312 = vmatmul.mubr.bf16.gmra.mrb[0].mxu0 %v778
      %v1313 = vpop.f32.mrb[0].mxu0
      %v1314 = vadd.f32 %v388, %v1313
      %v1315 = vpop.f32.mrb[0].mxu0
      %v1316 = vpop.f32.mrb[0].mxu0
      %v1317 = vadd.f32 %v388, %v1316
      %v1318 = vpop.f32.mrb[0].mxu0
      %1319 = vmatprep.mubr.bf16.mxu0 %v783
      %1320 = vmatmul.mubr.bf16.gmra.mrb[0].mxu0 %v782
      %v1321 = vpop.f32.mrb[0].mxu0
      %v1322 = vadd.f32 %v388, %v1321
      %v1323 = vpop.f32.mrb[0].mxu0
      %v1324 = vpop.f32.mrb[0].mxu0
      %v1325 = vadd.f32 %v388, %v1324
      %v1326 = vpop.f32.mrb[0].mxu0
      %1327 = vmatprep.mubr.bf16.mxu0 %v787
      %1328 = vmatmul.mubr.bf16.gmra.mrb[0].mxu0 %v786
      %v1329 = vpop.f32.mrb[0].mxu0
      %v1330 = vadd.f32 %v388, %v1329
      %v1331 = vpop.f32.mrb[0].mxu0
      %v1332 = vpop.f32.mrb[0].mxu0
      %v1333 = vadd.f32 %v388, %v1332
      %v1334 = vpop.f32.mrb[0].mxu0
      %1335 = vdwg.mxu0
      %1336 = vmatprep.subr.bf16.mxu0 0
      %1337 = vmatpush1.bf16.msra.mxu0 %v989
      %1338 = vmatprep.subr.bf16.mxu0 0
      %1339 = vmatpush1.bf16.msra.mxu0 %v990
      %1340 = vmatprep.subr.bf16.mxu0 0
      %1341 = vmatpush1.bf16.msra.mxu0 %v991
      %1342 = vmatprep.subr.bf16.mxu0 0
      %1343 = vmatpush1.bf16.msra.mxu0 %v992
      %1344 = vmatprep.subr.bf16.mxu0 0
      %1345 = vmatpush1.bf16.msra.mxu0 %v993
      %1346 = vmatprep.subr.bf16.mxu0 0
      %1347 = vmatpush1.bf16.msra.mxu0 %v994
      %1348 = vmatprep.subr.bf16.mxu0 0
      %1349 = vmatpush1.bf16.msra.mxu0 %v995
      %1350 = vmatprep.subr.bf16.mxu0 0
      %1351 = vmatpush1.bf16.msra.mxu0 %v996
      %1352 = vmatprep.subr.bf16.mxu0 0
      %1353 = vmatpush1.bf16.msra.mxu0 %v997
      %1354 = vmatprep.subr.bf16.mxu0 0
      %1355 = vmatpush1.bf16.msra.mxu0 %v998
      %1356 = vmatprep.subr.bf16.mxu0 0
      %1357 = vmatpush1.bf16.msra.mxu0 %v999
      %1358 = vmatprep.subr.bf16.mxu0 0
      %1359 = vmatpush1.bf16.msra.mxu0 0
      %1360 = vmatprep.subr.bf16.mxu0 0
      %1361 = vmatpush1.bf16.msra.mxu0 0
      %1362 = vmatprep.subr.bf16.mxu0 0
      %1363 = vmatpush1.bf16.msra.mxu0 0
      %1364 = vmatprep.subr.bf16.mxu0 0
      %1365 = vmatpush1.bf16.msra.mxu0 0
      %1366 = vmatprep.subr.bf16.mxu0 0
      %1367 = vmatpush1.bf16.msra.mxu0 0
      %1368 = vmatprep.mubr.bf16.mxu0 %v1029
      %1369 = vmatmul.mubr.bf16.gmra.mrb[0].mxu0 %v692
      %v1370 = vpop.f32.mrb[0].mxu0
      %v1371 = vadd.f32 %v1138, %v1370
      %v1372 = vpop.f32.mrb[0].mxu0
      %v1373 = vpop.f32.mrb[0].mxu0
      %v1374 = vadd.f32 %v1141, %v1373
      %v1375 = vpop.f32.mrb[0].mxu0
      %1376 = vmatprep.mubr.bf16.mxu0 %v1032
      %1377 = vmatmul.mubr.bf16.gmra.mrb[0].mxu0 %v696
      %v1378 = vpop.f32.mrb[0].mxu0
      %v1379 = vadd.f32 %v1146, %v1378
      %v1380 = vpop.f32.mrb[0].mxu0
      %v1381 = vpop.f32.mrb[0].mxu0
      %v1382 = vadd.f32 %v1149, %v1381
      %v1383 = vpop.f32.mrb[0].mxu0
      %1384 = vmatprep.mubr.bf16.mxu0 %v1035
      %1385 = vmatmul.mubr.bf16.gmra.mrb[0].mxu0 %v700
      %v1386 = vpop.f32.mrb[0].mxu0
      %v1387 = vadd.f32 %v1154, %v1386
      %v1388 = vpop.f32.mrb[0].mxu0
      %v1389 = vpop.f32.mrb[0].mxu0
      %v1390 = vadd.f32 %v1157, %v1389
      %v1391 = vpop.f32.mrb[0].mxu0
      %1392 = vmatprep.mubr.bf16.mxu0 %v1038
      %1393 = vmatmul.mubr.bf16.gmra.mrb[0].mxu0 %v704
      %v1394 = vpop.f32.mrb[0].mxu0
      %v1395 = vadd.f32 %v1162, %v1394
      %v1396 = vpop.f32.mrb[0].mxu0
      %v1397 = vpop.f32.mrb[0].mxu0
      %v1398 = vadd.f32 %v1165, %v1397
      %v1399 = vpop.f32.mrb[0].mxu0
      %1400 = vmatprep.mubr.bf16.mxu0 %v1041
      %1401 = vmatmul.mubr.bf16.gmra.mrb[0].mxu0 %v708
      %v1402 = vpop.f32.mrb[0].mxu0
      %v1403 = vadd.f32 %v1170, %v1402
      %v1404 = vpop.f32.mrb[0].mxu0
      %v1405 = vpop.f32.mrb[0].mxu0
      %v1406 = vadd.f32 %v1173, %v1405
      %v1407 = vpop.f32.mrb[0].mxu0
      %1408 = vmatprep.mubr.bf16.mxu0 %v1044
      %1409 = vmatmul.mubr.bf16.gmra.mrb[0].mxu0 %v712
      %v1410 = vpop.f32.mrb[0].mxu0
      %v1411 = vadd.f32 %v1178, %v1410
      %v1412 = vpop.f32.mrb[0].mxu0
      %v1413 = vpop.f32.mrb[0].mxu0
      %v1414 = vadd.f32 %v1181, %v1413
      %v1415 = vpop.f32.mrb[0].mxu0
      %1416 = vmatprep.mubr.bf16.mxu0 %v1047
      %1417 = vmatmul.mubr.bf16.gmra.mrb[0].mxu0 %v716
      %v1418 = vpop.f32.mrb[0].mxu0
      %v1419 = vadd.f32 %v1186, %v1418
      %v1420 = vpop.f32.mrb[0].mxu0
      %v1421 = vpop.f32.mrb[0].mxu0
      %v1422 = vadd.f32 %v1189, %v1421
      %v1423 = vpop.f32.mrb[0].mxu0
      %1424 = vmatprep.mubr.bf16.mxu0 %v1050
      %1425 = vmatmul.mubr.bf16.gmra.mrb[0].mxu0 %v720
      %v1426 = vpop.f32.mrb[0].mxu0
      %v1427 = vadd.f32 %v1194, %v1426
      %v1428 = vpop.f32.mrb[0].mxu0
      %v1429 = vpop.f32.mrb[0].mxu0
      %v1430 = vadd.f32 %v1197, %v1429
      %v1431 = vpop.f32.mrb[0].mxu0
      %1432 = vmatprep.mubr.bf16.mxu0 %v1053
      %1433 = vmatmul.mubr.bf16.gmra.mrb[0].mxu0 %v724
      %v1434 = vpop.f32.mrb[0].mxu0
      %v1435 = vadd.f32 %v1202, %v1434
      %v1436 = vpop.f32.mrb[0].mxu0
      %v1437 = vpop.f32.mrb[0].mxu0
      %v1438 = vadd.f32 %v1205, %v1437
      %v1439 = vpop.f32.mrb[0].mxu0
      %1440 = vmatprep.mubr.bf16.mxu0 %v1056
      %1441 = vmatmul.mubr.bf16.gmra.mrb[0].mxu0 %v728
      %v1442 = vpop.f32.mrb[0].mxu0
      %v1443 = vadd.f32 %v1210, %v1442
      %v1444 = vpop.f32.mrb[0].mxu0
      %v1445 = vpop.f32.mrb[0].mxu0
      %v1446 = vadd.f32 %v1213, %v1445
      %v1447 = vpop.f32.mrb[0].mxu0
      %1448 = vmatprep.mubr.bf16.mxu0 %v1059
      %1449 = vmatmul.mubr.bf16.gmra.mrb[0].mxu0 %v732
      %v1450 = vpop.f32.mrb[0].mxu0
      %v1451 = vadd.f32 %v1218, %v1450
      %v1452 = vpop.f32.mrb[0].mxu0
      %v1453 = vpop.f32.mrb[0].mxu0
      %v1454 = vadd.f32 %v1221, %v1453
      %v1455 = vpop.f32.mrb[0].mxu0
      %1456 = vmatprep.mubr.bf16.mxu0 %v1062
      %1457 = vmatmul.mubr.bf16.gmra.mrb[0].mxu0 %v736
      %v1458 = vpop.f32.mrb[0].mxu0
      %v1459 = vadd.f32 %v1226, %v1458
      %v1460 = vpop.f32.mrb[0].mxu0
      %v1461 = vpop.f32.mrb[0].mxu0
      %v1462 = vadd.f32 %v1229, %v1461
      %v1463 = vpop.f32.mrb[0].mxu0
      %1464 = vmatprep.mubr.bf16.mxu0 %v1065
      %1465 = vmatmul.mubr.bf16.gmra.mrb[0].mxu0 %v740
      %v1466 = vpop.f32.mrb[0].mxu0
      %v1467 = vadd.f32 %v1234, %v1466
      %v1468 = vpop.f32.mrb[0].mxu0
      %v1469 = vpop.f32.mrb[0].mxu0
      %v1470 = vadd.f32 %v1237, %v1469
      %v1471 = vpop.f32.mrb[0].mxu0
      %1472 = vmatprep.mubr.bf16.mxu0 %v1068
      %1473 = vmatmul.mubr.bf16.gmra.mrb[0].mxu0 %v744
      %v1474 = vpop.f32.mrb[0].mxu0
      %v1475 = vadd.f32 %v1242, %v1474
      %v1476 = vpop.f32.mrb[0].mxu0
      %v1477 = vpop.f32.mrb[0].mxu0
      %v1478 = vadd.f32 %v1245, %v1477
      %v1479 = vpop.f32.mrb[0].mxu0
      %1480 = vmatprep.mubr.bf16.mxu0 %v1071
      %1481 = vmatmul.mubr.bf16.gmra.mrb[0].mxu0 %v748
      %v1482 = vpop.f32.mrb[0].mxu0
      %v1483 = vadd.f32 %v1250, %v1482
      %v1484 = vpop.f32.mrb[0].mxu0
      %v1485 = vpop.f32.mrb[0].mxu0
      %v1486 = vadd.f32 %v1253, %v1485
      %v1487 = vpop.f32.mrb[0].mxu0
      %1488 = vmatprep.mubr.bf16.mxu0 %v1074
      %1489 = vmatmul.mubr.bf16.gmra.mrb[0].mxu0 %v752
      %v1490 = vpop.f32.mrb[0].mxu0
      %v1491 = vadd.f32 %v1258, %v1490
      %v1492 = vpop.f32.mrb[0].mxu0
      %v1493 = vpop.f32.mrb[0].mxu0
      %v1494 = vadd.f32 %v1261, %v1493
      %v1495 = vpop.f32.mrb[0].mxu0
      %1496 = vmatprep.mubr.bf16.mxu0 %v1077
      %1497 = vmatmul.mubr.bf16.gmra.mrb[0].mxu0 %v756
      %v1498 = vpop.f32.mrb[0].mxu0
      %v1499 = vadd.f32 %v1266, %v1498
      %v1500 = vpop.f32.mrb[0].mxu0
      %v1501 = vpop.f32.mrb[0].mxu0
      %v1502 = vadd.f32 %v1269, %v1501
      %v1503 = vpop.f32.mrb[0].mxu0
      %1504 = vmatprep.mubr.bf16.mxu0 %v1080
      %1505 = vmatmul.mubr.bf16.gmra.mrb[0].mxu0 %v760
      %v1506 = vpop.f32.mrb[0].mxu0
      %v1507 = vadd.f32 %v1274, %v1506
      %v1508 = vpop.f32.mrb[0].mxu0
      %v1509 = vpop.f32.mrb[0].mxu0
      %v1510 = vadd.f32 %v1277, %v1509
      %v1511 = vpop.f32.mrb[0].mxu0
      %1512 = vmatprep.mubr.bf16.mxu0 %v1083
      %1513 = vmatmul.mubr.bf16.gmra.mrb[0].mxu0 %v764
      %v1514 = vpop.f32.mrb[0].mxu0
      %v1515 = vadd.f32 %v1282, %v1514
      %v1516 = vpop.f32.mrb[0].mxu0
      %v1517 = vpop.f32.mrb[0].mxu0
      %v1518 = vadd.f32 %v1285, %v1517
      %v1519 = vpop.f32.mrb[0].mxu0
      %1520 = vmatprep.mubr.bf16.mxu0 %v1086
      %1521 = vmatmul.mubr.bf16.gmra.mrb[0].mxu0 %v768
      %v1522 = vpop.f32.mrb[0].mxu0
      %v1523 = vadd.f32 %v1290, %v1522
      %v1524 = vpop.f32.mrb[0].mxu0
      %v1525 = vpop.f32.mrb[0].mxu0
      %v1526 = vadd.f32 %v1293, %v1525
      %v1527 = vpop.f32.mrb[0].mxu0
      %1528 = vmatprep.mubr.bf16.mxu0 %v1089
      %1529 = vmatmul.mubr.bf16.gmra.mrb[0].mxu0 %v772
      %v1530 = vpop.f32.mrb[0].mxu0
      %v1531 = vadd.f32 %v1298, %v1530
      %v1532 = vpop.f32.mrb[0].mxu0
      %v1533 = vpop.f32.mrb[0].mxu0
      %v1534 = vadd.f32 %v1301, %v1533
      %v1535 = vpop.f32.mrb[0].mxu0
      %1536 = vmatprep.mubr.bf16.mxu0 %v1092
      %1537 = vmatmul.mubr.bf16.gmra.mrb[0].mxu0 %v776
      %v1538 = vpop.f32.mrb[0].mxu0
      %v1539 = vadd.f32 %v1306, %v1538
      %v1540 = vpop.f32.mrb[0].mxu0
      %v1541 = vpop.f32.mrb[0].mxu0
      %v1542 = vadd.f32 %v1309, %v1541
      %v1543 = vpop.f32.mrb[0].mxu0
      %1544 = vmatprep.mubr.bf16.mxu0 %v1095
      %1545 = vmatmul.mubr.bf16.gmra.mrb[0].mxu0 %v780
      %v1546 = vpop.f32.mrb[0].mxu0
      %v1547 = vadd.f32 %v1314, %v1546
      %v1548 = vpop.f32.mrb[0].mxu0
      %v1549 = vpop.f32.mrb[0].mxu0
      %v1550 = vadd.f32 %v1317, %v1549
      %v1551 = vpop.f32.mrb[0].mxu0
      %1552 = vmatprep.mubr.bf16.mxu0 %v1098
      %1553 = vmatmul.mubr.bf16.gmra.mrb[0].mxu0 %v784
      %v1554 = vpop.f32.mrb[0].mxu0
      %v1555 = vadd.f32 %v1322, %v1554
      %v1556 = vpop.f32.mrb[0].mxu0
      %v1557 = vpop.f32.mrb[0].mxu0
      %v1558 = vadd.f32 %v1325, %v1557
      %v1559 = vpop.f32.mrb[0].mxu0
      %1560 = vmatprep.mubr.bf16.mxu0 %v1101
      %1561 = vmatmul.mubr.bf16.gmra.mrb[0].mxu0 %v788
      %v1562 = vpop.f32.mrb[0].mxu0
      %v1563 = vadd.f32 %v1330, %v1562
      %v1564 = vpop.f32.mrb[0].mxu0
      %v1565 = vpop.f32.mrb[0].mxu0
      %v1566 = vadd.f32 %v1333, %v1565
      %v1567 = vpop.f32.mrb[0].mxu0
      %1568 = vdwg.mxu0
      %v1569 = vmul.f32 %v1371, 0.2
      %v1570 = vmul.f32 %v1374, 0.2
      %v1571 = vmul.f32 %v1379, 0.2
      %v1572 = vmul.f32 %v1382, 0.2
      %v1573 = vmul.f32 %v1387, 0.2
      %v1574 = vmul.f32 %v1390, 0.2
      %v1575 = vmul.f32 %v1395, 0.2
      %v1576 = vmul.f32 %v1398, 0.2
      %v1577 = vmul.f32 %v1403, 0.2
      %v1578 = vmul.f32 %v1406, 0.2
      %v1579 = vmul.f32 %v1411, 0.2
      %v1580 = vmul.f32 %v1414, 0.2
      %v1581 = vmul.f32 %v1419, 0.2
      %v1582 = vmul.f32 %v1422, 0.2
      %v1583 = vmul.f32 %v1427, 0.2
      %v1584 = vmul.f32 %v1430, 0.2
      %v1585 = vmul.f32 %v1435, 0.2
      %v1586 = vmul.f32 %v1438, 0.2
      %v1587 = vmul.f32 %v1443, 0.2
      %v1588 = vmul.f32 %v1446, 0.2
      %v1589 = vmul.f32 %v1451, 0.2
      %v1590 = vmul.f32 %v1454, 0.2
      %v1591 = vmul.f32 %v1459, 0.2
      %v1592 = vmul.f32 %v1462, 0.2
      %v1593 = vmul.f32 %v1467, 0.2
      %v1594 = vmul.f32 %v1470, 0.2
      %v1595 = vmul.f32 %v1475, 0.2
      %v1596 = vmul.f32 %v1478, 0.2
      %v1597 = vmul.f32 %v1483, 0.2
      %v1598 = vmul.f32 %v1486, 0.2
      %v1599 = vmul.f32 %v1491, 0.2
      %v1600 = vmul.f32 %v1494, 0.2
      %v1601 = vmul.f32 %v1499, 0.2
      %v1602 = vmul.f32 %v1502, 0.2
      %v1603 = vmul.f32 %v1507, 0.2
      %v1604 = vmul.f32 %v1510, 0.2
      %v1605 = vmul.f32 %v1515, 0.2
      %v1606 = vmul.f32 %v1518, 0.2
      %v1607 = vmul.f32 %v1523, 0.2
      %v1608 = vmul.f32 %v1526, 0.2
      %v1609 = vmul.f32 %v1531, 0.2
      %v1610 = vmul.f32 %v1534, 0.2
      %v1611 = vmul.f32 %v1539, 0.2
      %v1612 = vmul.f32 %v1542, 0.2
      %v1613 = vmul.f32 %v1547, 0.2
      %v1614 = vmul.f32 %v1550, 0.2
      %v1615 = vmul.f32 %v1555, 0.2
      %v1616 = vmul.f32 %v1558, 0.2
      %v1617 = vmul.f32 %v1563, 0.2
      %v1618 = vmul.f32 %v1566, 0.2
      %v1619 = vmax.f32 %v1371, %v1569
      %v1620 = vmax.f32 %v1374, %v1570
      %v1621 = vmax.f32 %v1379, %v1571
      %v1622 = vmax.f32 %v1382, %v1572
      %v1623 = vmax.f32 %v1387, %v1573
      %v1624 = vmax.f32 %v1390, %v1574
      %v1625 = vmax.f32 %v1395, %v1575
      %v1626 = vmax.f32 %v1398, %v1576
      %v1627 = vmax.f32 %v1403, %v1577
      %v1628 = vmax.f32 %v1406, %v1578
      %v1629 = vmax.f32 %v1411, %v1579
      %v1630 = vmax.f32 %v1414, %v1580
      %v1631 = vmax.f32 %v1419, %v1581
      %v1632 = vmax.f32 %v1422, %v1582
      %v1633 = vmax.f32 %v1427, %v1583
      %v1634 = vmax.f32 %v1430, %v1584
      %v1635 = vmax.f32 %v1435, %v1585
      %v1636 = vmax.f32 %v1438, %v1586
      %v1637 = vmax.f32 %v1443, %v1587
      %v1638 = vmax.f32 %v1446, %v1588
      %v1639 = vmax.f32 %v1451, %v1589
      %v1640 = vmax.f32 %v1454, %v1590
      %v1641 = vmax.f32 %v1459, %v1591
      %v1642 = vmax.f32 %v1462, %v1592
      %v1643 = vmax.f32 %v1467, %v1593
      %v1644 = vmax.f32 %v1470, %v1594
      %v1645 = vmax.f32 %v1475, %v1595
      %v1646 = vmax.f32 %v1478, %v1596
      %v1647 = vmax.f32 %v1483, %v1597
      %v1648 = vmax.f32 %v1486, %v1598
      %v1649 = vmax.f32 %v1491, %v1599
      %v1650 = vmax.f32 %v1494, %v1600
      %v1651 = vmax.f32 %v1499, %v1601
      %v1652 = vmax.f32 %v1502, %v1602
      %v1653 = vmax.f32 %v1507, %v1603
      %v1654 = vmax.f32 %v1510, %v1604
      %v1655 = vmax.f32 %v1515, %v1605
      %v1656 = vmax.f32 %v1518, %v1606
      %v1657 = vmax.f32 %v1523, %v1607
      %v1658 = vmax.f32 %v1526, %v1608
      %v1659 = vmax.f32 %v1531, %v1609
      %v1660 = vmax.f32 %v1534, %v1610
      %v1661 = vmax.f32 %v1539, %v1611
      %v1662 = vmax.f32 %v1542, %v1612
      %v1663 = vmax.f32 %v1547, %v1613
      %v1664 = vmax.f32 %v1550, %v1614
      %v1665 = vmax.f32 %v1555, %v1615
      %v1666 = vmax.f32 %v1558, %v1616
      %v1667 = vmax.f32 %v1563, %v1617
      %v1668 = vmax.f32 %v1566, %v1618
      %v1669 = vpack.c.bf16 %v1620, %v1619
      %v1670 = vpack.c.bf16 %v1622, %v1621
      %v1671 = vpack.c.bf16 %v1624, %v1623
      %v1672 = vpack.c.bf16 %v1626, %v1625
      %v1673 = vpack.c.bf16 %v1628, %v1627
      %v1674 = vpack.c.bf16 %v1630, %v1629
      %v1675 = vpack.c.bf16 %v1632, %v1631
      %v1676 = vpack.c.bf16 %v1634, %v1633
      %v1677 = vpack.c.bf16 %v1636, %v1635
      %v1678 = vpack.c.bf16 %v1638, %v1637
      %v1679 = vpack.c.bf16 %v1640, %v1639
      %v1680 = vpack.c.bf16 %v1642, %v1641
      %v1681 = vpack.c.bf16 %v1644, %v1643
      %v1682 = vpack.c.bf16 %v1646, %v1645
      %v1683 = vpack.c.bf16 %v1648, %v1647
      %v1684 = vpack.c.bf16 %v1650, %v1649
      %v1685 = vpack.c.bf16 %v1652, %v1651
      %v1686 = vpack.c.bf16 %v1654, %v1653
      %v1687 = vpack.c.bf16 %v1656, %v1655
      %v1688 = vpack.c.bf16 %v1658, %v1657
      %v1689 = vpack.c.bf16 %v1660, %v1659
      %v1690 = vpack.c.bf16 %v1662, %v1661
      %v1691 = vpack.c.bf16 %v1664, %v1663
      %v1692 = vpack.c.bf16 %v1666, %v1665
      %v1693 = vpack.c.bf16 %v1668, %v1667
      %v1719 = vunpack.c.l.b16 %v1669
      %v1720 = vunpack.c.h.b16 %v1669
      %v1721 = vunpack.c.l.b16 %v1670
      %v1722 = vunpack.c.h.b16 %v1670
      %v1723 = vunpack.c.l.b16 %v1671
      %v1724 = vunpack.c.h.b16 %v1671
      %v1725 = vunpack.c.l.b16 %v1672
      %v1726 = vunpack.c.h.b16 %v1672
      %v1727 = vunpack.c.l.b16 %v1673
      %v1728 = vunpack.c.h.b16 %v1673
      %v1729 = vunpack.c.l.b16 %v1674
      %v1730 = vunpack.c.h.b16 %v1674
      %v1731 = vunpack.c.l.b16 %v1675
      %v1732 = vunpack.c.h.b16 %v1675
      %v1733 = vunpack.c.l.b16 %v1676
      %v1734 = vunpack.c.h.b16 %v1676
      %v1735 = vunpack.c.l.b16 %v1677
      %v1736 = vunpack.c.h.b16 %v1677
      %v1737 = vunpack.c.l.b16 %v1678
      %v1738 = vunpack.c.h.b16 %v1678
      %v1739 = vunpack.c.l.b16 %v1679
      %v1740 = vunpack.c.h.b16 %v1679
      %v1741 = vunpack.c.l.b16 %v1680
      %v1742 = vunpack.c.h.b16 %v1680
      %v1743 = vunpack.c.l.b16 %v1681
      %v1744 = vunpack.c.h.b16 %v1681
      %v1745 = vunpack.c.l.b16 %v1682
      %v1746 = vunpack.c.h.b16 %v1682
      %v1747 = vunpack.c.l.b16 %v1683
      %v1748 = vunpack.c.h.b16 %v1683
      %v1749 = vunpack.c.l.b16 %v1684
      %v1750 = vunpack.c.h.b16 %v1684
      %v1751 = vunpack.c.l.b16 %v1685
      %v1752 = vunpack.c.h.b16 %v1685
      %v1753 = vunpack.c.l.b16 %v1686
      %v1754 = vunpack.c.h.b16 %v1686
      %v1755 = vunpack.c.l.b16 %v1687
      %v1756 = vunpack.c.h.b16 %v1687
      %v1757 = vunpack.c.l.b16 %v1688
      %v1758 = vunpack.c.h.b16 %v1688
      %v1759 = vunpack.c.l.b16 %v1689
      %v1760 = vunpack.c.h.b16 %v1689
      %v1761 = vunpack.c.l.b16 %v1690
      %v1762 = vunpack.c.h.b16 %v1690
      %v1763 = vunpack.c.l.b16 %v1691
      %v1764 = vunpack.c.h.b16 %v1691
      %v1765 = vunpack.c.l.b16 %v1692
      %v1766 = vunpack.c.h.b16 %v1692
      %v1767 = vunpack.c.l.b16 %v1693
      %v1768 = vunpack.c.h.b16 %v1693
      %v1769 = vpack.c.b16 %v1719, %v1719
      %v1770 = vpack.c.b16 %v1720, %v1720
      %v1771 = vpack.c.b16 %v1721, %v1721
      %v1772 = vpack.c.b16 %v1722, %v1722
      %v1773 = vpack.c.b16 %v1723, %v1723
      %v1774 = vpack.c.b16 %v1724, %v1724
      %v1775 = vpack.c.b16 %v1725, %v1725
      %v1776 = vpack.c.b16 %v1726, %v1726
      %v1777 = vpack.c.b16 %v1727, %v1727
      %v1778 = vpack.c.b16 %v1728, %v1728
      %v1779 = vpack.c.b16 %v1729, %v1729
      %v1780 = vpack.c.b16 %v1730, %v1730
      %v1781 = vpack.c.b16 %v1731, %v1731
      %v1782 = vpack.c.b16 %v1732, %v1732
      %v1783 = vpack.c.b16 %v1733, %v1733
      %v1784 = vpack.c.b16 %v1734, %v1734
      %v1785 = vpack.c.b16 %v1735, %v1735
      %v1786 = vpack.c.b16 %v1736, %v1736
      %v1787 = vpack.c.b16 %v1737, %v1737
      %v1788 = vpack.c.b16 %v1738, %v1738
      %v1789 = vpack.c.b16 %v1739, %v1739
      %v1790 = vpack.c.b16 %v1740, %v1740
      %v1791 = vpack.c.b16 %v1741, %v1741
      %v1792 = vpack.c.b16 %v1742, %v1742
      %v1793 = vpack.c.b16 %v1743, %v1743
      %v1794 = vpack.c.b16 %v1744, %v1744
      %v1795 = vpack.c.b16 %v1745, %v1745
      %v1796 = vpack.c.b16 %v1746, %v1746
      %v1797 = vpack.c.b16 %v1747, %v1747
      %v1798 = vpack.c.b16 %v1748, %v1748
      %v1799 = vpack.c.b16 %v1749, %v1749
      %v1800 = vpack.c.b16 %v1750, %v1750
      %v1801 = vpack.c.b16 %v1751, %v1751
      %v1802 = vpack.c.b16 %v1752, %v1752
      %v1803 = vpack.c.b16 %v1753, %v1753
      %v1804 = vpack.c.b16 %v1754, %v1754
      %v1805 = vpack.c.b16 %v1755, %v1755
      %v1806 = vpack.c.b16 %v1756, %v1756
      %v1807 = vpack.c.b16 %v1757, %v1757
      %v1808 = vpack.c.b16 %v1758, %v1758
      %v1809 = vpack.c.b16 %v1759, %v1759
      %v1810 = vpack.c.b16 %v1760, %v1760
      %v1811 = vpack.c.b16 %v1761, %v1761
      %v1812 = vpack.c.b16 %v1762, %v1762
      %v1813 = vpack.c.b16 %v1763, %v1763
      %v1814 = vpack.c.b16 %v1764, %v1764
      %v1815 = vpack.c.b16 %v1765, %v1765
      %v1816 = vpack.c.b16 %v1766, %v1766
      %v1817 = vpack.c.b16 %v1767, %v1767
      %v1818 = vpack.c.b16 %v1768, %v1768
      %vm1869 = vcmask 125952
      %1870 = vst.msk [vmem:[%s226] sm:$0xf] %vm1869, %v1769
      %1871 = vst.msk [vmem:[%s226 + $0x4] sm:$0xf] %vm1869, %v1770
      %1872 = vst.msk [vmem:[%s226 + $0x8] sm:$0xf] %vm1869, %v1771
      %1873 = vst.msk [vmem:[%s226 + $0xc] sm:$0xf] %vm1869, %v1772
      %1874 = vst.msk [vmem:[%s226 + $0x10] sm:$0xf] %vm1869, %v1773
      %1875 = vst.msk [vmem:[%s226 + $0x14] sm:$0xf] %vm1869, %v1774
      %1876 = vst.msk [vmem:[%s226 + $0x18] sm:$0xf] %vm1869, %v1775
      %1877 = vst.msk [vmem:[%s226 + $0x1c] sm:$0xf] %vm1869, %v1776
      %1878 = vst.msk [vmem:[%s226 + $0x20] sm:$0xf] %vm1869, %v1777
      %1879 = vst.msk [vmem:[%s226 + $0x24] sm:$0xf] %vm1869, %v1778
      %1880 = vst.msk [vmem:[%s226 + $0x28] sm:$0xf] %vm1869, %v1779
      %1881 = vst.msk [vmem:[%s226 + $0x2c] sm:$0xf] %vm1869, %v1780
      %1882 = vst.msk [vmem:[%s226 + $0x30] sm:$0xf] %vm1869, %v1781
      %1883 = vst.msk [vmem:[%s226 + $0x34] sm:$0xf] %vm1869, %v1782
      %1884 = vst.msk [vmem:[%s226 + $0x38] sm:$0xf] %vm1869, %v1783
      %1885 = vst.msk [vmem:[%s226 + $0x3c] sm:$0xf] %vm1869, %v1784
      %1886 = vst.msk [vmem:[%s226 + $0x40] sm:$0xf] %vm1869, %v1785
      %1887 = vst.msk [vmem:[%s226 + $0x44] sm:$0xf] %vm1869, %v1786
      %1888 = vst.msk [vmem:[%s226 + $0x48] sm:$0xf] %vm1869, %v1787
      %1889 = vst.msk [vmem:[%s226 + $0x4c] sm:$0xf] %vm1869, %v1788
      %1890 = vst.msk [vmem:[%s226 + $0x50] sm:$0xf] %vm1869, %v1789
      %1891 = vst.msk [vmem:[%s226 + $0x54] sm:$0xf] %vm1869, %v1790
      %1892 = vst.msk [vmem:[%s226 + $0x58] sm:$0xf] %vm1869, %v1791
      %1893 = vst.msk [vmem:[%s226 + $0x5c] sm:$0xf] %vm1869, %v1792
      %1894 = vst.msk [vmem:[%s226 + $0x60] sm:$0xf] %vm1869, %v1793
      %1895 = vst.msk [vmem:[%s226 + $0x64] sm:$0xf] %vm1869, %v1794
      %1896 = vst.msk [vmem:[%s226 + $0x68] sm:$0xf] %vm1869, %v1795
      %1897 = vst.msk [vmem:[%s226 + $0x6c] sm:$0xf] %vm1869, %v1796
      %1898 = vst.msk [vmem:[%s226 + $0x70] sm:$0xf] %vm1869, %v1797
      %1899 = vst.msk [vmem:[%s226 + $0x74] sm:$0xf] %vm1869, %v1798
      %1900 = vst.msk [vmem:[%s226 + $0x78] sm:$0xf] %vm1869, %v1799
      %1901 = vst.msk [vmem:[%s226 + $0x7c] sm:$0xf] %vm1869, %v1800
      %1902 = vst.msk [vmem:[%s226 + $0x80] sm:$0xf] %vm1869, %v1801
      %1903 = vst.msk [vmem:[%s226 + $0x84] sm:$0xf] %vm1869, %v1802
      %1904 = vst.msk [vmem:[%s226 + $0x88] sm:$0xf] %vm1869, %v1803
      %1905 = vst.msk [vmem:[%s226 + $0x8c] sm:$0xf] %vm1869, %v1804
      %1906 = vst.msk [vmem:[%s226 + $0x90] sm:$0xf] %vm1869, %v1805
      %1907 = vst.msk [vmem:[%s226 + $0x94] sm:$0xf] %vm1869, %v1806
      %1908 = vst.msk [vmem:[%s226 + $0x98] sm:$0xf] %vm1869, %v1807
      %1909 = vst.msk [vmem:[%s226 + $0x9c] sm:$0xf] %vm1869, %v1808
      %1910 = vst.msk [vmem:[%s226 + $0xa0] sm:$0xf] %vm1869, %v1809
      %1911 = vst.msk [vmem:[%s226 + $0xa4] sm:$0xf] %vm1869, %v1810
      %1912 = vst.msk [vmem:[%s226 + $0xa8] sm:$0xf] %vm1869, %v1811
      %1913 = vst.msk [vmem:[%s226 + $0xac] sm:$0xf] %vm1869, %v1812
      %1914 = vst.msk [vmem:[%s226 + $0xb0] sm:$0xf] %vm1869, %v1813
      %1915 = vst.msk [vmem:[%s226 + $0xb4] sm:$0xf] %vm1869, %v1814
      %1916 = vst.msk [vmem:[%s226 + $0xb8] sm:$0xf] %vm1869, %v1815
      %1917 = vst.msk [vmem:[%s226 + $0xbc] sm:$0xf] %vm1869, %v1816
      %1918 = vst.msk [vmem:[%s226 + $0xc0] sm:$0xf] %vm1869, %v1817
      %1919 = vst.msk [vmem:[%s226 + $0xc4] sm:$0xf] %vm1869, %v1818
      %s1920 = smul.u32 50, %s18
      %p1921 = scmp.lt.s32.totalorder %s1920, 249
      %s1922 = scalar_select %p1921, %s1920, 249
      %p1923 = scmp.lt.s32.totalorder %s19, 0
      %s1924 = scalar_select %p1923, %s19, 0
      %s1925 = sadd.s32 %s1924, %s1922
      %s1926 = smul.addr %s1925, 4
      %s1927 = scalar_lea.vmem %s3, %s1926
      // Predicated region
      $region33: #{seqpred_forward.8} parent=31 // pred_check
        %p1928 = pneg %p124
      $region34: #{seqpred_forward.8} parent=31 // pred_check_branch
        %1930 = sbr.rel (%p1928) target = $region36
      $region35: #{seqpred_forward.8} parent=31 // pred_region
        %s1931 = smul.u32 50, %s18
      $region36: #{seqpred_forward.8} parent=31 // pred_fallthru
        _
    $region32: #{seqpred_forward.8} parent=5 // pred_fallthru
      _
    %p1932 = scmp.le.s32.totalorder 2, %s9
    // Predicated region
    $region37: #{seqpred_forward.8} parent=5 // pred_check
      %p1933 = pneg %p1932
    $region38: #{seqpred_forward.8} parent=5 // pred_check_branch
      %1935 = sbr.rel (%p1933) target = $region40
    $region39: #{seqpred_forward.8} parent=5 // pred_region
      %s1936 = ssub.s32 %s9, 2
      // Predicated region
      $region41: #{seqpred_forward.8} parent=39 // pred_check
        %p1937 = pneg %p130
      $region42: #{seqpred_forward.8} parent=39 // pred_check_branch
        %1939 = sbr.rel (%p1937) target = $region44
      $region43: #{seqpred_forward.8} parent=39 // pred_region
        %s1940 = smul.u32 50, %s20
        %p1941 = scmp.lt.s32.totalorder %s1940, 249
        %s1942 = scalar_select %p1941, %s1940, 249
        %p1943 = scmp.lt.s32.totalorder %s21, 0
        %s1944 = scalar_select %p1943, %s21, 0
        %s1945 = sadd.s32 %s1944, %s1942
        %s1946 = smul.addr %s1945, 4
        %s1947 = scalar_lea.vmem %s3, %s1946
      $region44: #{seqpred_forward.8} parent=39 // pred_fallthru
        _
    $region40: #{seqpred_forward.8} parent=5 // pred_fallthru
      _
  $region6: #{seqpred_forward.8} parent=0 // loop_footer
    %s13 = sadd.s32 1, %s9
  $region7: #{seqpred_forward.8} parent=0 // loop_footer_branch
    %8 = sbr.rel target = $region3
  $region8: #{seqpred_forward.8} parent=0 // loop_exit
    _

// kernel: seqpred_forward.10
$region0: #{seqpred_forward.10}
  #allocation0 [shape = 'u32[]', space=smem, size = 0x4, offset = 0x4, fixed_abs, tag = 'smem constant byte address 0x4 - core index']
  #allocation1 [shape = 'u32[144,128]{1,0:T(1,128)}', space=vmem, size = 0x12000, scoped, tag = 'internal scratch']
  %s0 = inlined_call_operand.vmem [shape: bf16[250,1024], index: 0, kind: input, shape index: {}]
  %s1 = inlined_call_operand.vmem [shape: bf16[1024,32], index: 1, kind: input, shape index: {}]
  %s2 = inlined_call_operand.vmem [shape: f32[1,32], index: 2, kind: input, shape index: {}]
  %s3 = inlined_call_operand.vmem [shape: bf16[250,32], index: 3, kind: output, shape index: {}]
  %s4 = sld [smem:[#allocation0]]
  $region22: #{seqpred_forward.10} parent=0
    _
  %s6 = ssub.s32 1, %s4
  %s7 = scalar_select 0, %s6, %s4
  // Predicated region
  $region2: #{seqpred_forward.10} parent=0 // pred_check
    _
  $region3: #{seqpred_forward.10} parent=0 // pred_check_branch
    %9 = sbr.rel (0) target = $region5
  $region4: #{seqpred_forward.10} parent=0 // pred_region
    _
  $region5: #{seqpred_forward.10} parent=0 // pred_fallthru
    _
  // Predicated region
  $region6: #{seqpred_forward.10} parent=0 // pred_check
    _
  $region7: #{seqpred_forward.10} parent=0 // pred_check_branch
    %11 = sbr.rel (0) target = $region9
  $region8: #{seqpred_forward.10} parent=0 // pred_region
    _
  $region9: #{seqpred_forward.10} parent=0 // pred_fallthru
    _
  // Predicated region
  $region10: #{seqpred_forward.10} parent=0 // pred_check
    _
  $region11: #{seqpred_forward.10} parent=0 // pred_check_branch
    %13 = sbr.rel (0) target = $region13
  $region12: #{seqpred_forward.10} parent=0 // pred_region
    _
  $region13: #{seqpred_forward.10} parent=0 // pred_fallthru
    _
  %v15 = vld [vmem:[%s0] sm:$0xff]
  %v16 = vld [vmem:[%s0 + $0x8] sm:$0xff]
  %v17 = vld [vmem:[%s0 + $0x10] sm:$0xff]
  %v18 = vld [vmem:[%s0 + $0x18] sm:$0xff]
  %v19 = vld [vmem:[%s0 + $0x20] sm:$0xff]
  %v20 = vld [vmem:[%s0 + $0x28] sm:$0xff]
  %v21 = vld [vmem:[%s0 + $0x30] sm:$0xff]
  %v22 = vld [vmem:[%s0 + $0x38] sm:$0xff]
  %v23 = vld [vmem:[%s0 + $0x40] sm:$0xff]
  %v24 = vld [vmem:[%s0 + $0x48] sm:$0xff]
  %v25 = vld [vmem:[%s0 + $0x50] sm:$0xff]
  %v26 = vld [vmem:[%s0 + $0x58] sm:$0xff]
  %v27 = vld [vmem:[%s0 + $0x60] sm:$0xff]
  %v28 = vld [vmem:[%s0 + $0x68] sm:$0xff]
  %v29 = vld [vmem:[%s0 + $0x70] sm:$0xff]
  %v30 = vld [vmem:[%s0 + $0x78] sm:$0xff]
  %v31 = vld [vmem:[%s0 + $0x80] sm:$0xff]
  %v32 = vld [vmem:[%s0 + $0x88] sm:$0xff]
  %v33 = vld [vmem:[%s0 + $0x90] sm:$0xff]
  %v34 = vld [vmem:[%s0 + $0x98] sm:$0xff]
  %v35 = vld [vmem:[%s0 + $0xa0] sm:$0xff]
  %v36 = vld [vmem:[%s0 + $0xa8] sm:$0xff]
  %v37 = vld [vmem:[%s0 + $0xb0] sm:$0xff]
  %v38 = vld [vmem:[%s0 + $0xb8] sm:$0xff]
  %v39 = vld [vmem:[%s0 + $0xc0] sm:$0xff]
  %v40 = vld [vmem:[%s0 + $0xc8] sm:$0xff]
  %v41 = vld [vmem:[%s0 + $0xd0] sm:$0xff]
  %v42 = vld [vmem:[%s0 + $0xd8] sm:$0xff]
  %v43 = vld [vmem:[%s0 + $0xe0] sm:$0xff]
  %v44 = vld [vmem:[%s0 + $0xe8] sm:$0xff]
  %v45 = vld [vmem:[%s0 + $0xf0] sm:$0xff]
  %v46 = vld [vmem:[%s0 + $0xf8] sm:$0xff]
  %v47 = vld [vmem:[%s0 + $0x100] sm:$0xff]
  %v48 = vld [vmem:[%s0 + $0x108] sm:$0xff]
  %v49 = vld [vmem:[%s0 + $0x110] sm:$0xff]
  %v50 = vld [vmem:[%s0 + $0x118] sm:$0xff]
  %v51 = vld [vmem:[%s0 + $0x120] sm:$0xff]
  %v52 = vld [vmem:[%s0 + $0x128] sm:$0xff]
  %v53 = vld [vmem:[%s0 + $0x130] sm:$0xff]
  %v54 = vld [vmem:[%s0 + $0x138] sm:$0xff]
  %v55 = vld [vmem:[%s0 + $0x140] sm:$0xff]
  %v56 = vld [vmem:[%s0 + $0x148] sm:$0xff]
  %v57 = vld [vmem:[%s0 + $0x150] sm:$0xff]
  %v58 = vld [vmem:[%s0 + $0x158] sm:$0xff]
  %v59 = vld [vmem:[%s0 + $0x160] sm:$0xff]
  %v60 = vld [vmem:[%s0 + $0x168] sm:$0xff]
  %v61 = vld [vmem:[%s0 + $0x170] sm:$0xff]
  %v62 = vld [vmem:[%s0 + $0x178] sm:$0xff]
  %v63 = vld [vmem:[%s0 + $0x180] sm:$0xff]
  %v64 = vld [vmem:[%s0 + $0x188] sm:$0xff]
  %v65 = vld [vmem:[%s0 + $0x190] sm:$0xff]
  %v66 = vld [vmem:[%s0 + $0x198] sm:$0xff]
  %v67 = vld [vmem:[%s0 + $0x1a0] sm:$0xff]
  %v68 = vld [vmem:[%s0 + $0x1a8] sm:$0xff]
  %v69 = vld [vmem:[%s0 + $0x1b0] sm:$0xff]
  %v70 = vld [vmem:[%s0 + $0x1b8] sm:$0xff]
  %v71 = vld [vmem:[%s0 + $0x1c0] sm:$0xff]
  %v72 = vld [vmem:[%s0 + $0x1c8] sm:$0xff]
  %v73 = vld [vmem:[%s0 + $0x1d0] sm:$0xff]
  %v74 = vld [vmem:[%s0 + $0x1d8] sm:$0xff]
  %v75 = vld [vmem:[%s0 + $0x1e0] sm:$0xff]
  %v76 = vld [vmem:[%s0 + $0x1e8] sm:$0xff]
  %v77 = vld [vmem:[%s0 + $0x1f0] sm:$0xff]
  %v78 = vld [vmem:[%s0 + $0x1f8] sm:$0xff]
  %v79 = vld [vmem:[%s0 + $0x200] sm:$0xff]
  %v80 = vld [vmem:[%s0 + $0x208] sm:$0xff]
  %v81 = vld [vmem:[%s0 + $0x210] sm:$0xff]
  %v82 = vld [vmem:[%s0 + $0x218] sm:$0xff]
  %v83 = vld [vmem:[%s0 + $0x220] sm:$0xff]
  %v84 = vld [vmem:[%s0 + $0x228] sm:$0xff]
  %v85 = vld [vmem:[%s0 + $0x230] sm:$0xff]
  %v86 = vld [vmem:[%s0 + $0x238] sm:$0xff]
  %v87 = vld [vmem:[%s0 + $0x240] sm:$0xff]
  %v88 = vld [vmem:[%s0 + $0x248] sm:$0xff]
  %v89 = vld [vmem:[%s0 + $0x250] sm:$0xff]
  %v90 = vld [vmem:[%s0 + $0x258] sm:$0xff]
  %v91 = vld [vmem:[%s0 + $0x260] sm:$0xff]
  %v92 = vld [vmem:[%s0 + $0x268] sm:$0xff]
  %v93 = vld [vmem:[%s0 + $0x270] sm:$0xff]
  %v94 = vld [vmem:[%s0 + $0x278] sm:$0xff]
  %v95 = vld [vmem:[%s0 + $0x280] sm:$0xff]
  %v96 = vld [vmem:[%s0 + $0x288] sm:$0xff]
  %v97 = vld [vmem:[%s0 + $0x290] sm:$0xff]
  %v98 = vld [vmem:[%s0 + $0x298] sm:$0xff]
  %v99 = vld [vmem:[%s0 + $0x2a0] sm:$0xff]
  %v100 = vld [vmem:[%s0 + $0x2a8] sm:$0xff]
  %v101 = vld [vmem:[%s0 + $0x2b0] sm:$0xff]
  %v102 = vld [vmem:[%s0 + $0x2b8] sm:$0xff]
  %v103 = vld [vmem:[%s0 + $0x2c0] sm:$0xff]
  %v104 = vld [vmem:[%s0 + $0x2c8] sm:$0xff]
  %v105 = vld [vmem:[%s0 + $0x2d0] sm:$0xff]
  %v106 = vld [vmem:[%s0 + $0x2d8] sm:$0xff]
  %v107 = vld [vmem:[%s0 + $0x2e0] sm:$0xff]
  %v108 = vld [vmem:[%s0 + $0x2e8] sm:$0xff]
  %v109 = vld [vmem:[%s0 + $0x2f0] sm:$0xff]
  %v110 = vld [vmem:[%s0 + $0x2f8] sm:$0xff]
  %v111 = vld [vmem:[%s0 + $0x300] sm:$0xff]
  %v112 = vld [vmem:[%s0 + $0x308] sm:$0xff]
  %v113 = vld [vmem:[%s0 + $0x310] sm:$0xff]
  %v114 = vld [vmem:[%s0 + $0x318] sm:$0xff]
  %v115 = vld [vmem:[%s0 + $0x320] sm:$0xff]
  %v116 = vld [vmem:[%s0 + $0x328] sm:$0xff]
  %v117 = vld [vmem:[%s0 + $0x330] sm:$0xff]
  %v118 = vld [vmem:[%s0 + $0x338] sm:$0xff]
  %v119 = vld [vmem:[%s0 + $0x340] sm:$0xff]
  %v120 = vld [vmem:[%s0 + $0x348] sm:$0xff]
  %v121 = vld [vmem:[%s0 + $0x350] sm:$0xff]
  %v122 = vld [vmem:[%s0 + $0x358] sm:$0xff]
  %v123 = vld [vmem:[%s0 + $0x360] sm:$0xff]
  %v124 = vld [vmem:[%s0 + $0x368] sm:$0xff]
  %v125 = vld [vmem:[%s0 + $0x370] sm:$0xff]
  %v126 = vld [vmem:[%s0 + $0x378] sm:$0xff]
  %v127 = vld [vmem:[%s0 + $0x380] sm:$0xff]
  %v128 = vld [vmem:[%s0 + $0x388] sm:$0xff]
  %v129 = vld [vmem:[%s0 + $0x390] sm:$0xff]
  %v130 = vld [vmem:[%s0 + $0x398] sm:$0xff]
  %v131 = vld [vmem:[%s0 + $0x3a0] sm:$0xff]
  %v132 = vld [vmem:[%s0 + $0x3a8] sm:$0xff]
  %v133 = vld [vmem:[%s0 + $0x3b0] sm:$0xff]
  %v134 = vld [vmem:[%s0 + $0x3b8] sm:$0xff]
  %v135 = vld [vmem:[%s0 + $0x3c0] sm:$0xff]
  %v136 = vld [vmem:[%s0 + $0x3c8] sm:$0xff]
  %v137 = vld [vmem:[%s0 + $0x3d0] sm:$0xff]
  %v138 = vld [vmem:[%s0 + $0x3d8] sm:$0xff]
  %v139 = vld [vmem:[%s0 + $0x3e0] sm:$0x11]
  %v140 = vld [vmem:[%s0 + $0x3e8] sm:$0x11]
  %v141 = vld [vmem:[%s0 + $0x3f0] sm:$0x11]
  %v142 = vld [vmem:[%s0 + $0x3f8] sm:$0x11]
  %v143 = vld [vmem:[%s1] sm:$0xf]
  %v144 = vld [vmem:[%s1 + $0x4] sm:$0xf]
  %v145 = vld [vmem:[%s1 + $0x8] sm:$0xf]
  %v146 = vld [vmem:[%s1 + $0xc] sm:$0xf]
  %v147 = vld [vmem:[%s1 + $0x10] sm:$0xf]
  %v148 = vld [vmem:[%s1 + $0x14] sm:$0xf]
  %v149 = vld [vmem:[%s1 + $0x18] sm:$0xf]
  %v150 = vld [vmem:[%s1 + $0x1c] sm:$0xf]
  %v151 = vld [vmem:[%s1 + $0x20] sm:$0xf]
  %v152 = vld [vmem:[%s1 + $0x24] sm:$0xf]
  %v153 = vld [vmem:[%s1 + $0x28] sm:$0xf]
  %v154 = vld [vmem:[%s1 + $0x2c] sm:$0xf]
  %v155 = vld [vmem:[%s1 + $0x30] sm:$0xf]
  %v156 = vld [vmem:[%s1 + $0x34] sm:$0xf]
  %v157 = vld [vmem:[%s1 + $0x38] sm:$0xf]
  %v158 = vld [vmem:[%s1 + $0x3c] sm:$0xf]
  %v159 = vld [vmem:[%s1 + $0x40] sm:$0xf]
  %v160 = vld [vmem:[%s1 + $0x44] sm:$0xf]
  %v161 = vld [vmem:[%s1 + $0x48] sm:$0xf]
  %v162 = vld [vmem:[%s1 + $0x4c] sm:$0xf]
  %v163 = vld [vmem:[%s1 + $0x50] sm:$0xf]
  %v164 = vld [vmem:[%s1 + $0x54] sm:$0xf]
  %v165 = vld [vmem:[%s1 + $0x58] sm:$0xf]
  %v166 = vld [vmem:[%s1 + $0x5c] sm:$0xf]
  %v167 = vld [vmem:[%s1 + $0x60] sm:$0xf]
  %v168 = vld [vmem:[%s1 + $0x64] sm:$0xf]
  %v169 = vld [vmem:[%s1 + $0x68] sm:$0xf]
  %v170 = vld [vmem:[%s1 + $0x6c] sm:$0xf]
  %v171 = vld [vmem:[%s1 + $0x70] sm:$0xf]
  %v172 = vld [vmem:[%s1 + $0x74] sm:$0xf]
  %v173 = vld [vmem:[%s1 + $0x78] sm:$0xf]
  %v174 = vld [vmem:[%s1 + $0x7c] sm:$0xf]
  %v175 = vld [vmem:[%s1 + $0x80] sm:$0xf]
  %v176 = vld [vmem:[%s1 + $0x84] sm:$0xf]
  %v177 = vld [vmem:[%s1 + $0x88] sm:$0xf]
  %v178 = vld [vmem:[%s1 + $0x8c] sm:$0xf]
  %v179 = vld [vmem:[%s1 + $0x90] sm:$0xf]
  %v180 = vld [vmem:[%s1 + $0x94] sm:$0xf]
  %v181 = vld [vmem:[%s1 + $0x98] sm:$0xf]
  %v182 = vld [vmem:[%s1 + $0x9c] sm:$0xf]
  %v183 = vld [vmem:[%s1 + $0xa0] sm:$0xf]
  %v184 = vld [vmem:[%s1 + $0xa4] sm:$0xf]
  %v185 = vld [vmem:[%s1 + $0xa8] sm:$0xf]
  %v186 = vld [vmem:[%s1 + $0xac] sm:$0xf]
  %v187 = vld [vmem:[%s1 + $0xb0] sm:$0xf]
  %v188 = vld [vmem:[%s1 + $0xb4] sm:$0xf]
  %v189 = vld [vmem:[%s1 + $0xb8] sm:$0xf]
  %v190 = vld [vmem:[%s1 + $0xbc] sm:$0xf]
  %v191 = vld [vmem:[%s1 + $0xc0] sm:$0xf]
  %v192 = vld [vmem:[%s1 + $0xc4] sm:$0xf]
  %v193 = vld [vmem:[%s1 + $0xc8] sm:$0xf]
  %v194 = vld [vmem:[%s1 + $0xcc] sm:$0xf]
  %v195 = vld [vmem:[%s1 + $0xd0] sm:$0xf]
  %v196 = vld [vmem:[%s1 + $0xd4] sm:$0xf]
  %v197 = vld [vmem:[%s1 + $0xd8] sm:$0xf]
  %v198 = vld [vmem:[%s1 + $0xdc] sm:$0xf]
  %v199 = vld [vmem:[%s1 + $0xe0] sm:$0xf]
  %v200 = vld [vmem:[%s1 + $0xe4] sm:$0xf]
  %v201 = vld [vmem:[%s1 + $0xe8] sm:$0xf]
  %v202 = vld [vmem:[%s1 + $0xec] sm:$0xf]
  %v203 = vld [vmem:[%s1 + $0xf0] sm:$0xf]
  %v204 = vld [vmem:[%s1 + $0xf4] sm:$0xf]
  %v205 = vld [vmem:[%s1 + $0xf8] sm:$0xf]
  %v206 = vld [vmem:[%s1 + $0xfc] sm:$0xf]
  %v207 = vld [vmem:[%s1 + $0x100] sm:$0xf]
  %v208 = vld [vmem:[%s1 + $0x104] sm:$0xf]
  %v209 = vld [vmem:[%s1 + $0x108] sm:$0xf]
  %v210 = vld [vmem:[%s1 + $0x10c] sm:$0xf]
  %v211 = vld [vmem:[%s1 + $0x110] sm:$0xf]
  %v212 = vld [vmem:[%s1 + $0x114] sm:$0xf]
  %v213 = vld [vmem:[%s1 + $0x118] sm:$0xf]
  %v214 = vld [vmem:[%s1 + $0x11c] sm:$0xf]
  %v215 = vld [vmem:[%s1 + $0x120] sm:$0xf]
  %v216 = vld [vmem:[%s1 + $0x124] sm:$0xf]
  %v217 = vld [vmem:[%s1 + $0x128] sm:$0xf]
  %v218 = vld [vmem:[%s1 + $0x12c] sm:$0xf]
  %v219 = vld [vmem:[%s1 + $0x130] sm:$0xf]
  %v220 = vld [vmem:[%s1 + $0x134] sm:$0xf]
  %v221 = vld [vmem:[%s1 + $0x138] sm:$0xf]
  %v222 = vld [vmem:[%s1 + $0x13c] sm:$0xf]
  %v223 = vld [vmem:[%s1 + $0x140] sm:$0xf]
  %v224 = vld [vmem:[%s1 + $0x144] sm:$0xf]
  %v225 = vld [vmem:[%s1 + $0x148] sm:$0xf]
  %v226 = vld [vmem:[%s1 + $0x14c] sm:$0xf]
  %v227 = vld [vmem:[%s1 + $0x150] sm:$0xf]
  %v228 = vld [vmem:[%s1 + $0x154] sm:$0xf]
  %v229 = vld [vmem:[%s1 + $0x158] sm:$0xf]
  %v230 = vld [vmem:[%s1 + $0x15c] sm:$0xf]
  %v231 = vld [vmem:[%s1 + $0x160] sm:$0xf]
  %v232 = vld [vmem:[%s1 + $0x164] sm:$0xf]
  %v233 = vld [vmem:[%s1 + $0x168] sm:$0xf]
  %v234 = vld [vmem:[%s1 + $0x16c] sm:$0xf]
  %v235 = vld [vmem:[%s1 + $0x170] sm:$0xf]
  %v236 = vld [vmem:[%s1 + $0x174] sm:$0xf]
  %v237 = vld [vmem:[%s1 + $0x178] sm:$0xf]
  %v238 = vld [vmem:[%s1 + $0x17c] sm:$0xf]
  %v239 = vld [vmem:[%s1 + $0x180] sm:$0xf]
  %v240 = vld [vmem:[%s1 + $0x184] sm:$0xf]
  %v241 = vld [vmem:[%s1 + $0x188] sm:$0xf]
  %v242 = vld [vmem:[%s1 + $0x18c] sm:$0xf]
  %v243 = vld [vmem:[%s1 + $0x190] sm:$0xf]
  %v244 = vld [vmem:[%s1 + $0x194] sm:$0xf]
  %v245 = vld [vmem:[%s1 + $0x198] sm:$0xf]
  %v246 = vld [vmem:[%s1 + $0x19c] sm:$0xf]
  %v247 = vld [vmem:[%s1 + $0x1a0] sm:$0xf]
  %v248 = vld [vmem:[%s1 + $0x1a4] sm:$0xf]
  %v249 = vld [vmem:[%s1 + $0x1a8] sm:$0xf]
  %v250 = vld [vmem:[%s1 + $0x1ac] sm:$0xf]
  %v251 = vld [vmem:[%s1 + $0x1b0] sm:$0xf]
  %v252 = vld [vmem:[%s1 + $0x1b4] sm:$0xf]
  %v253 = vld [vmem:[%s1 + $0x1b8] sm:$0xf]
  %v254 = vld [vmem:[%s1 + $0x1bc] sm:$0xf]
  %v255 = vld [vmem:[%s1 + $0x1c0] sm:$0xf]
  %v256 = vld [vmem:[%s1 + $0x1c4] sm:$0xf]
  %v257 = vld [vmem:[%s1 + $0x1c8] sm:$0xf]
  %v258 = vld [vmem:[%s1 + $0x1cc] sm:$0xf]
  %v259 = vld [vmem:[%s1 + $0x1d0] sm:$0xf]
  %v260 = vld [vmem:[%s1 + $0x1d4] sm:$0xf]
  %v261 = vld [vmem:[%s1 + $0x1d8] sm:$0xf]
  %v262 = vld [vmem:[%s1 + $0x1dc] sm:$0xf]
  %v263 = vld [vmem:[%s1 + $0x1e0] sm:$0xf]
  %v264 = vld [vmem:[%s1 + $0x1e4] sm:$0xf]
  %v265 = vld [vmem:[%s1 + $0x1e8] sm:$0xf]
  %v266 = vld [vmem:[%s1 + $0x1ec] sm:$0xf]
  %v267 = vld [vmem:[%s1 + $0x1f0] sm:$0xf]
  %v268 = vld [vmem:[%s1 + $0x1f4] sm:$0xf]
  %v269 = vld [vmem:[%s1 + $0x1f8] sm:$0xf]
  %v270 = vld [vmem:[%s1 + $0x1fc] sm:$0xf]
  %v271 = vld [vmem:[%s2] sm:$0x1]
  %v273 = vlaneseq
  %v274 = vshrl.u32 %v273, 7
  %v275 = vsub.s32 0, %v274
  %v276 = vrot.slane %v271, %v275
  %v406 = vunpack.c.l.b16 %v15
  %v407 = vunpack.c.h.b16 %v15
  %v408 = vunpack.c.l.b16 %v16
  %v409 = vunpack.c.h.b16 %v16
  %v410 = vunpack.c.l.b16 %v17
  %v411 = vunpack.c.h.b16 %v17
  %v412 = vunpack.c.l.b16 %v18
  %v413 = vunpack.c.h.b16 %v18
  %v414 = vunpack.c.l.b16 %v19
  %v415 = vunpack.c.h.b16 %v19
  %v416 = vunpack.c.l.b16 %v20
  %v417 = vunpack.c.h.b16 %v20
  %v418 = vunpack.c.l.b16 %v21
  %v419 = vunpack.c.h.b16 %v21
  %v420 = vunpack.c.l.b16 %v22
  %v421 = vunpack.c.h.b16 %v22
  %v422 = vunpack.c.l.b16 %v23
  %v423 = vunpack.c.h.b16 %v23
  %v424 = vunpack.c.l.b16 %v24
  %v425 = vunpack.c.h.b16 %v24
  %v426 = vunpack.c.l.b16 %v25
  %v427 = vunpack.c.h.b16 %v25
  %v428 = vunpack.c.l.b16 %v26
  %v429 = vunpack.c.h.b16 %v26
  %v430 = vunpack.c.l.b16 %v27
  %v431 = vunpack.c.h.b16 %v27
  %v432 = vunpack.c.l.b16 %v28
  %v433 = vunpack.c.h.b16 %v28
  %v434 = vunpack.c.l.b16 %v29
  %v435 = vunpack.c.h.b16 %v29
  %v436 = vunpack.c.l.b16 %v30
  %v437 = vunpack.c.h.b16 %v30
  %v438 = vunpack.c.l.b16 %v31
  %v439 = vunpack.c.h.b16 %v31
  %v440 = vunpack.c.l.b16 %v32
  %v441 = vunpack.c.h.b16 %v32
  %v442 = vunpack.c.l.b16 %v33
  %v443 = vunpack.c.h.b16 %v33
  %v444 = vunpack.c.l.b16 %v34
  %v445 = vunpack.c.h.b16 %v34
  %v446 = vunpack.c.l.b16 %v35
  %v447 = vunpack.c.h.b16 %v35
  %v448 = vunpack.c.l.b16 %v36
  %v449 = vunpack.c.h.b16 %v36
  %v450 = vunpack.c.l.b16 %v37
  %v451 = vunpack.c.h.b16 %v37
  %v452 = vunpack.c.l.b16 %v38
  %v453 = vunpack.c.h.b16 %v38
  %v454 = vunpack.c.l.b16 %v39
  %v455 = vunpack.c.h.b16 %v39
  %v456 = vunpack.c.l.b16 %v40
  %v457 = vunpack.c.h.b16 %v40
  %v458 = vunpack.c.l.b16 %v41
  %v459 = vunpack.c.h.b16 %v41
  %v460 = vunpack.c.l.b16 %v42
  %v461 = vunpack.c.h.b16 %v42
  %v462 = vunpack.c.l.b16 %v43
  %v463 = vunpack.c.h.b16 %v43
  %v464 = vunpack.c.l.b16 %v44
  %v465 = vunpack.c.h.b16 %v44
  %v466 = vunpack.c.l.b16 %v45
  %v467 = vunpack.c.h.b16 %v45
  %v468 = vunpack.c.l.b16 %v46
  %v469 = vunpack.c.h.b16 %v46
  %v470 = vunpack.c.l.b16 %v47
  %v471 = vunpack.c.h.b16 %v47
  %v472 = vunpack.c.l.b16 %v48
  %v473 = vunpack.c.h.b16 %v48
  %v474 = vunpack.c.l.b16 %v49
  %v475 = vunpack.c.h.b16 %v49
  %v476 = vunpack.c.l.b16 %v50
  %v477 = vunpack.c.h.b16 %v50
  %v478 = vunpack.c.l.b16 %v51
  %v479 = vunpack.c.h.b16 %v51
  %v480 = vunpack.c.l.b16 %v52
  %v481 = vunpack.c.h.b16 %v52
  %v482 = vunpack.c.l.b16 %v53
  %v483 = vunpack.c.h.b16 %v53
  %v484 = vunpack.c.l.b16 %v54
  %v485 = vunpack.c.h.b16 %v54
  %v486 = vunpack.c.l.b16 %v55
  %v487 = vunpack.c.h.b16 %v55
  %v488 = vunpack.c.l.b16 %v56
  %v489 = vunpack.c.h.b16 %v56
  %v490 = vunpack.c.l.b16 %v57
  %v491 = vunpack.c.h.b16 %v57
  %v492 = vunpack.c.l.b16 %v58
  %v493 = vunpack.c.h.b16 %v58
  %v494 = vunpack.c.l.b16 %v59
  %v495 = vunpack.c.h.b16 %v59
  %v496 = vunpack.c.l.b16 %v60
  %v497 = vunpack.c.h.b16 %v60
  %v498 = vunpack.c.l.b16 %v61
  %v499 = vunpack.c.h.b16 %v61
  %v500 = vunpack.c.l.b16 %v62
  %v501 = vunpack.c.h.b16 %v62
  %v502 = vunpack.c.l.b16 %v63
  %v503 = vunpack.c.h.b16 %v63
  %v504 = vunpack.c.l.b16 %v64
  %v505 = vunpack.c.h.b16 %v64
  %v506 = vunpack.c.l.b16 %v65
  %v507 = vunpack.c.h.b16 %v65
  %v508 = vunpack.c.l.b16 %v66
  %v509 = vunpack.c.h.b16 %v66
  %v510 = vunpack.c.l.b16 %v67
  %v511 = vunpack.c.h.b16 %v67
  %v512 = vunpack.c.l.b16 %v68
  %v513 = vunpack.c.h.b16 %v68
  %v514 = vunpack.c.l.b16 %v69
  %v515 = vunpack.c.h.b16 %v69
  %v516 = vunpack.c.l.b16 %v70
  %v517 = vunpack.c.h.b16 %v70
  %v518 = vunpack.c.l.b16 %v71
  %v519 = vunpack.c.h.b16 %v71
  %v520 = vunpack.c.l.b16 %v72
  %v521 = vunpack.c.h.b16 %v72
  %v522 = vunpack.c.l.b16 %v73
  %v523 = vunpack.c.h.b16 %v73
  %v524 = vunpack.c.l.b16 %v74
  %v525 = vunpack.c.h.b16 %v74
  %v526 = vunpack.c.l.b16 %v75
  %v527 = vunpack.c.h.b16 %v75
  %v528 = vunpack.c.l.b16 %v76
  %v529 = vunpack.c.h.b16 %v76
  %v530 = vunpack.c.l.b16 %v77
  %v531 = vunpack.c.h.b16 %v77
  %v532 = vunpack.c.l.b16 %v78
  %v533 = vunpack.c.h.b16 %v78
  %v534 = vunpack.c.l.b16 %v79
  %v535 = vunpack.c.h.b16 %v79
  %v536 = vunpack.c.l.b16 %v80
  %v537 = vunpack.c.h.b16 %v80
  %v538 = vunpack.c.l.b16 %v81
  %v539 = vunpack.c.h.b16 %v81
  %v540 = vunpack.c.l.b16 %v82
  %v541 = vunpack.c.h.b16 %v82
  %v542 = vunpack.c.l.b16 %v83
  %v543 = vunpack.c.h.b16 %v83
  %v544 = vunpack.c.l.b16 %v84
  %v545 = vunpack.c.h.b16 %v84
  %v546 = vunpack.c.l.b16 %v85
  %v547 = vunpack.c.h.b16 %v85
  %v548 = vunpack.c.l.b16 %v86
  %v549 = vunpack.c.h.b16 %v86
  %v550 = vunpack.c.l.b16 %v87
  %v551 = vunpack.c.h.b16 %v87
  %v552 = vunpack.c.l.b16 %v88
  %v553 = vunpack.c.h.b16 %v88
  %v554 = vunpack.c.l.b16 %v89
  %v555 = vunpack.c.h.b16 %v89
  %v556 = vunpack.c.l.b16 %v90
  %v557 = vunpack.c.h.b16 %v90
  %v558 = vunpack.c.l.b16 %v91
  %v559 = vunpack.c.h.b16 %v91
  %v560 = vunpack.c.l.b16 %v92
  %v561 = vunpack.c.h.b16 %v92
  %v562 = vunpack.c.l.b16 %v93
  %v563 = vunpack.c.h.b16 %v93
  %v564 = vunpack.c.l.b16 %v94
  %v565 = vunpack.c.h.b16 %v94
  %v566 = vunpack.c.l.b16 %v95
  %v567 = vunpack.c.h.b16 %v95
  %v568 = vunpack.c.l.b16 %v96
  %v569 = vunpack.c.h.b16 %v96
  %v570 = vunpack.c.l.b16 %v97
  %v571 = vunpack.c.h.b16 %v97
  %v572 = vunpack.c.l.b16 %v98
  %v573 = vunpack.c.h.b16 %v98
  %v574 = vunpack.c.l.b16 %v99
  %v575 = vunpack.c.h.b16 %v99
  %v576 = vunpack.c.l.b16 %v100
  %v577 = vunpack.c.h.b16 %v100
  %v578 = vunpack.c.l.b16 %v101
  %v579 = vunpack.c.h.b16 %v101
  %v580 = vunpack.c.l.b16 %v102
  %v581 = vunpack.c.h.b16 %v102
  %v582 = vunpack.c.l.b16 %v103
  %v583 = vunpack.c.h.b16 %v103
  %v584 = vunpack.c.l.b16 %v104
  %v585 = vunpack.c.h.b16 %v104
  %v586 = vunpack.c.l.b16 %v105
  %v587 = vunpack.c.h.b16 %v105
  %v588 = vunpack.c.l.b16 %v106
  %v589 = vunpack.c.h.b16 %v106
  %v590 = vunpack.c.l.b16 %v107
  %v591 = vunpack.c.h.b16 %v107
  %v592 = vunpack.c.l.b16 %v108
  %v593 = vunpack.c.h.b16 %v108
  %v594 = vunpack.c.l.b16 %v109
  %v595 = vunpack.c.h.b16 %v109
  %v596 = vunpack.c.l.b16 %v110
  %v597 = vunpack.c.h.b16 %v110
  %v598 = vunpack.c.l.b16 %v111
  %v599 = vunpack.c.h.b16 %v111
  %v600 = vunpack.c.l.b16 %v112
  %v601 = vunpack.c.h.b16 %v112
  %v602 = vunpack.c.l.b16 %v113
  %v603 = vunpack.c.h.b16 %v113
  %v604 = vunpack.c.l.b16 %v114
  %v605 = vunpack.c.h.b16 %v114
  %v606 = vunpack.c.l.b16 %v115
  %v607 = vunpack.c.h.b16 %v115
  %v608 = vunpack.c.l.b16 %v116
  %v609 = vunpack.c.h.b16 %v116
  %v610 = vunpack.c.l.b16 %v117
  %v611 = vunpack.c.h.b16 %v117
  %v612 = vunpack.c.l.b16 %v118
  %v613 = vunpack.c.h.b16 %v118
  %v614 = vunpack.c.l.b16 %v119
  %v615 = vunpack.c.h.b16 %v119
  %v616 = vunpack.c.l.b16 %v120
  %v617 = vunpack.c.h.b16 %v120
  %v618 = vunpack.c.l.b16 %v121
  %v619 = vunpack.c.h.b16 %v121
  %v620 = vunpack.c.l.b16 %v122
  %v621 = vunpack.c.h.b16 %v122
  %v622 = vunpack.c.l.b16 %v123
  %v623 = vunpack.c.h.b16 %v123
  %v624 = vunpack.c.l.b16 %v124
  %v625 = vunpack.c.h.b16 %v124
  %v626 = vunpack.c.l.b16 %v125
  %v627 = vunpack.c.h.b16 %v125
  %v628 = vunpack.c.l.b16 %v126
  %v629 = vunpack.c.h.b16 %v126
  %v630 = vunpack.c.l.b16 %v127
  %v631 = vunpack.c.h.b16 %v127
  %v632 = vunpack.c.l.b16 %v128
  %v633 = vunpack.c.h.b16 %v128
  %v634 = vunpack.c.l.b16 %v129
  %v635 = vunpack.c.h.b16 %v129
  %v636 = vunpack.c.l.b16 %v130
  %v637 = vunpack.c.h.b16 %v130
  %v638 = vunpack.c.l.b16 %v131
  %v639 = vunpack.c.h.b16 %v131
  %v640 = vunpack.c.l.b16 %v132
  %v641 = vunpack.c.h.b16 %v132
  %v642 = vunpack.c.l.b16 %v133
  %v643 = vunpack.c.h.b16 %v133
  %v644 = vunpack.c.l.b16 %v134
  %v645 = vunpack.c.h.b16 %v134
  %v646 = vunpack.c.l.b16 %v135
  %v647 = vunpack.c.h.b16 %v135
  %v648 = vunpack.c.l.b16 %v136
  %v649 = vunpack.c.h.b16 %v136
  %v650 = vunpack.c.l.b16 %v137
  %v651 = vunpack.c.h.b16 %v137
  %v652 = vunpack.c.l.b16 %v138
  %v653 = vunpack.c.h.b16 %v138
  %v654 = vunpack.c.l.b16 %v139
  %v655 = vunpack.c.h.b16 %v139
  %v656 = vunpack.c.l.b16 %v140
  %v657 = vunpack.c.h.b16 %v140
  %v658 = vunpack.c.l.b16 %v141
  %v659 = vunpack.c.h.b16 %v141
  %v660 = vunpack.c.l.b16 %v142
  %v661 = vunpack.c.h.b16 %v142
  %v662 = vpack.c.b16 %v414, %v406
  %v663 = vpack.c.b16 %v415, %v407
  %v664 = vpack.c.b16 %v416, %v408
  %v665 = vpack.c.b16 %v417, %v409
  %v666 = vpack.c.b16 %v418, %v410
  %v667 = vpack.c.b16 %v419, %v411
  %v668 = vpack.c.b16 %v420, %v412
  %v669 = vpack.c.b16 %v421, %v413
  %v670 = vpack.c.b16 %v430, %v422
  %v671 = vpack.c.b16 %v431, %v423
  %v672 = vpack.c.b16 %v432, %v424
  %v673 = vpack.c.b16 %v433, %v425
  %v674 = vpack.c.b16 %v434, %v426
  %v675 = vpack.c.b16 %v435, %v427
  %v676 = vpack.c.b16 %v436, %v428
  %v677 = vpack.c.b16 %v437, %v429
  %v678 = vpack.c.b16 %v446, %v438
  %v679 = vpack.c.b16 %v447, %v439
  %v680 = vpack.c.b16 %v448, %v440
  %v681 = vpack.c.b16 %v449, %v441
  %v682 = vpack.c.b16 %v450, %v442
  %v683 = vpack.c.b16 %v451, %v443
  %v684 = vpack.c.b16 %v452, %v444
  %v685 = vpack.c.b16 %v453, %v445
  %v686 = vpack.c.b16 %v462, %v454
  %v687 = vpack.c.b16 %v463, %v455
  %v688 = vpack.c.b16 %v464, %v456
  %v689 = vpack.c.b16 %v465, %v457
  %v690 = vpack.c.b16 %v466, %v458
  %v691 = vpack.c.b16 %v467, %v459
  %v692 = vpack.c.b16 %v468, %v460
  %v693 = vpack.c.b16 %v469, %v461
  %v694 = vpack.c.b16 %v478, %v470
  %v695 = vpack.c.b16 %v479, %v471
  %v696 = vpack.c.b16 %v480, %v472
  %v697 = vpack.c.b16 %v481, %v473
  %v698 = vpack.c.b16 %v482, %v474
  %v699 = vpack.c.b16 %v483, %v475
  %v700 = vpack.c.b16 %v484, %v476
  %v701 = vpack.c.b16 %v485, %v477
  %v702 = vpack.c.b16 %v494, %v486
  %v703 = vpack.c.b16 %v495, %v487
  %v704 = vpack.c.b16 %v496, %v488
  %v705 = vpack.c.b16 %v497, %v489
  %v706 = vpack.c.b16 %v498, %v490
  %v707 = vpack.c.b16 %v499, %v491
  %v708 = vpack.c.b16 %v500, %v492
  %v709 = vpack.c.b16 %v501, %v493
  %v710 = vpack.c.b16 %v510, %v502
  %v711 = vpack.c.b16 %v511, %v503
  %v712 = vpack.c.b16 %v512, %v504
  %v713 = vpack.c.b16 %v513, %v505
  %v714 = vpack.c.b16 %v514, %v506
  %v715 = vpack.c.b16 %v515, %v507
  %v716 = vpack.c.b16 %v516, %v508
  %v717 = vpack.c.b16 %v517, %v509
  %v718 = vpack.c.b16 %v526, %v518
  %v719 = vpack.c.b16 %v527, %v519
  %v720 = vpack.c.b16 %v528, %v520
  %v721 = vpack.c.b16 %v529, %v521
  %v722 = vpack.c.b16 %v530, %v522
  %v723 = vpack.c.b16 %v531, %v523
  %v724 = vpack.c.b16 %v532, %v524
  %v725 = vpack.c.b16 %v533, %v525
  %v726 = vpack.c.b16 %v542, %v534
  %v727 = vpack.c.b16 %v543, %v535
  %v728 = vpack.c.b16 %v544, %v536
  %v729 = vpack.c.b16 %v545, %v537
  %v730 = vpack.c.b16 %v546, %v538
  %v731 = vpack.c.b16 %v547, %v539
  %v732 = vpack.c.b16 %v548, %v540
  %v733 = vpack.c.b16 %v549, %v541
  %v734 = vpack.c.b16 %v558, %v550
  %v735 = vpack.c.b16 %v559, %v551
  %v736 = vpack.c.b16 %v560, %v552
  %v737 = vpack.c.b16 %v561, %v553
  %v738 = vpack.c.b16 %v562, %v554
  %v739 = vpack.c.b16 %v563, %v555
  %v740 = vpack.c.b16 %v564, %v556
  %v741 = vpack.c.b16 %v565, %v557
  %v742 = vpack.c.b16 %v574, %v566
  %v743 = vpack.c.b16 %v575, %v567
  %v744 = vpack.c.b16 %v576, %v568
  %v745 = vpack.c.b16 %v577, %v569
  %v746 = vpack.c.b16 %v578, %v570
  %v747 = vpack.c.b16 %v579, %v571
  %v748 = vpack.c.b16 %v580, %v572
  %v749 = vpack.c.b16 %v581, %v573
  %v750 = vpack.c.b16 %v590, %v582
  %v751 = vpack.c.b16 %v591, %v583
  %v752 = vpack.c.b16 %v592, %v584
  %v753 = vpack.c.b16 %v593, %v585
  %v754 = vpack.c.b16 %v594, %v586
  %v755 = vpack.c.b16 %v595, %v587
  %v756 = vpack.c.b16 %v596, %v588
  %v757 = vpack.c.b16 %v597, %v589
  %v758 = vpack.c.b16 %v606, %v598
  %v759 = vpack.c.b16 %v607, %v599
  %v760 = vpack.c.b16 %v608, %v600
  %v761 = vpack.c.b16 %v609, %v601
  %v762 = vpack.c.b16 %v610, %v602
  %v763 = vpack.c.b16 %v611, %v603
  %v764 = vpack.c.b16 %v612, %v604
  %v765 = vpack.c.b16 %v613, %v605
  %v766 = vpack.c.b16 %v622, %v614
  %v767 = vpack.c.b16 %v623, %v615
  %v768 = vpack.c.b16 %v624, %v616
  %v769 = vpack.c.b16 %v625, %v617
  %v770 = vpack.c.b16 %v626, %v618
  %v771 = vpack.c.b16 %v627, %v619
  %v772 = vpack.c.b16 %v628, %v620
  %v773 = vpack.c.b16 %v629, %v621
  %v774 = vpack.c.b16 %v638, %v630
  %v775 = vpack.c.b16 %v639, %v631
  %v776 = vpack.c.b16 %v640, %v632
  %v777 = vpack.c.b16 %v641, %v633
  %v778 = vpack.c.b16 %v642, %v634
  %v779 = vpack.c.b16 %v643, %v635
  %v780 = vpack.c.b16 %v644, %v636
  %v781 = vpack.c.b16 %v645, %v637
  %v782 = vpack.c.b16 %v654, %v646
  %v783 = vpack.c.b16 %v655, %v647
  %v784 = vpack.c.b16 %v656, %v648
  %v785 = vpack.c.b16 %v657, %v649
  %v786 = vpack.c.b16 %v658, %v650
  %v787 = vpack.c.b16 %v659, %v651
  %v788 = vpack.c.b16 %v660, %v652
  %v789 = vpack.c.b16 %v661, %v653
  %v1046 = vunpack.c.l.b16 %v143
  %v1047 = vunpack.c.l.b16 %v144
  %v1048 = vunpack.c.l.b16 %v145
  %v1049 = vunpack.c.l.b16 %v146
  %v1050 = vunpack.c.l.b16 %v147
  %v1051 = vunpack.c.l.b16 %v148
  %v1052 = vunpack.c.l.b16 %v149
  %v1053 = vunpack.c.l.b16 %v150
  %v1054 = vunpack.c.l.b16 %v151
  %v1055 = vunpack.c.l.b16 %v152
  %v1056 = vunpack.c.l.b16 %v153
  %v1057 = vunpack.c.l.b16 %v154
  %v1058 = vunpack.c.l.b16 %v155
  %v1059 = vunpack.c.l.b16 %v156
  %v1060 = vunpack.c.l.b16 %v157
  %v1061 = vunpack.c.l.b16 %v158
  %v1062 = vunpack.c.l.b16 %v159
  %v1063 = vunpack.c.l.b16 %v160
  %v1064 = vunpack.c.l.b16 %v161
  %v1065 = vunpack.c.l.b16 %v162
  %v1066 = vunpack.c.l.b16 %v163
  %v1067 = vunpack.c.l.b16 %v164
  %v1068 = vunpack.c.l.b16 %v165
  %v1069 = vunpack.c.l.b16 %v166
  %v1070 = vunpack.c.l.b16 %v167
  %v1071 = vunpack.c.l.b16 %v168
  %v1072 = vunpack.c.l.b16 %v169
  %v1073 = vunpack.c.l.b16 %v170
  %v1074 = vunpack.c.l.b16 %v171
  %v1075 = vunpack.c.l.b16 %v172
  %v1076 = vunpack.c.l.b16 %v173
  %v1077 = vunpack.c.l.b16 %v174
  %v1078 = vunpack.c.l.b16 %v175
  %v1079 = vunpack.c.l.b16 %v176
  %v1080 = vunpack.c.l.b16 %v177
  %v1081 = vunpack.c.l.b16 %v178
  %v1082 = vunpack.c.l.b16 %v179
  %v1083 = vunpack.c.l.b16 %v180
  %v1084 = vunpack.c.l.b16 %v181
  %v1085 = vunpack.c.l.b16 %v182
  %v1086 = vunpack.c.l.b16 %v183
  %v1087 = vunpack.c.l.b16 %v184
  %v1088 = vunpack.c.l.b16 %v185
  %v1089 = vunpack.c.l.b16 %v186
  %v1090 = vunpack.c.l.b16 %v187
  %v1091 = vunpack.c.l.b16 %v188
  %v1092 = vunpack.c.l.b16 %v189
  %v1093 = vunpack.c.l.b16 %v190
  %v1094 = vunpack.c.l.b16 %v191
  %v1095 = vunpack.c.l.b16 %v192
  %v1096 = vunpack.c.l.b16 %v193
  %v1097 = vunpack.c.l.b16 %v194
  %v1098 = vunpack.c.l.b16 %v195
  %v1099 = vunpack.c.l.b16 %v196
  %v1100 = vunpack.c.l.b16 %v197
  %v1101 = vunpack.c.l.b16 %v198
  %v1102 = vunpack.c.l.b16 %v199
  %v1103 = vunpack.c.l.b16 %v200
  %v1104 = vunpack.c.l.b16 %v201
  %v1105 = vunpack.c.l.b16 %v202
  %v1106 = vunpack.c.l.b16 %v203
  %v1107 = vunpack.c.l.b16 %v204
  %v1108 = vunpack.c.l.b16 %v205
  %v1109 = vunpack.c.l.b16 %v206
  %v1110 = vunpack.c.l.b16 %v207
  %v1111 = vunpack.c.l.b16 %v208
  %v1112 = vunpack.c.l.b16 %v209
  %v1113 = vunpack.c.l.b16 %v210
  %v1114 = vunpack.c.l.b16 %v211
  %v1115 = vunpack.c.l.b16 %v212
  %v1116 = vunpack.c.l.b16 %v213
  %v1117 = vunpack.c.l.b16 %v214
  %v1118 = vunpack.c.l.b16 %v215
  %v1119 = vunpack.c.l.b16 %v216
  %v1120 = vunpack.c.l.b16 %v217
  %v1121 = vunpack.c.l.b16 %v218
  %v1122 = vunpack.c.l.b16 %v219
  %v1123 = vunpack.c.l.b16 %v220
  %v1124 = vunpack.c.l.b16 %v221
  %v1125 = vunpack.c.l.b16 %v222
  %v1126 = vunpack.c.l.b16 %v223
  %v1127 = vunpack.c.l.b16 %v224
  %v1128 = vunpack.c.l.b16 %v225
  %v1129 = vunpack.c.l.b16 %v226
  %v1130 = vunpack.c.l.b16 %v227
  %v1131 = vunpack.c.l.b16 %v228
  %v1132 = vunpack.c.l.b16 %v229
  %v1133 = vunpack.c.l.b16 %v230
  %v1134 = vunpack.c.l.b16 %v231
  %v1135 = vunpack.c.l.b16 %v232
  %v1136 = vunpack.c.l.b16 %v233
  %v1137 = vunpack.c.l.b16 %v234
  %v1138 = vunpack.c.l.b16 %v235
  %v1139 = vunpack.c.l.b16 %v236
  %v1140 = vunpack.c.l.b16 %v237
  %v1141 = vunpack.c.l.b16 %v238
  %v1142 = vunpack.c.l.b16 %v239
  %v1143 = vunpack.c.l.b16 %v240
  %v1144 = vunpack.c.l.b16 %v241
  %v1145 = vunpack.c.l.b16 %v242
  %v1146 = vunpack.c.l.b16 %v243
  %v1147 = vunpack.c.l.b16 %v244
  %v1148 = vunpack.c.l.b16 %v245
  %v1149 = vunpack.c.l.b16 %v246
  %v1150 = vunpack.c.l.b16 %v247
  %v1151 = vunpack.c.l.b16 %v248
  %v1152 = vunpack.c.l.b16 %v249
  %v1153 = vunpack.c.l.b16 %v250
  %v1154 = vunpack.c.l.b16 %v251
  %v1155 = vunpack.c.l.b16 %v252
  %v1156 = vunpack.c.l.b16 %v253
  %v1157 = vunpack.c.l.b16 %v254
  %v1158 = vunpack.c.l.b16 %v255
  %v1159 = vunpack.c.l.b16 %v256
  %v1160 = vunpack.c.l.b16 %v257
  %v1161 = vunpack.c.l.b16 %v258
  %v1162 = vunpack.c.l.b16 %v259
  %v1163 = vunpack.c.l.b16 %v260
  %v1164 = vunpack.c.l.b16 %v261
  %v1165 = vunpack.c.l.b16 %v262
  %v1166 = vunpack.c.l.b16 %v263
  %v1167 = vunpack.c.l.b16 %v264
  %v1168 = vunpack.c.l.b16 %v265
  %v1169 = vunpack.c.l.b16 %v266
  %v1170 = vunpack.c.l.b16 %v267
  %v1171 = vunpack.c.l.b16 %v268
  %v1172 = vunpack.c.l.b16 %v269
  %v1173 = vunpack.c.l.b16 %v270
  %v1174 = vpack.c.b16 %v1047, %v1046
  %v1175 = vpack.c.b16 %v1049, %v1048
  %v1176 = vpack.c.b16 %v1051, %v1050
  %v1177 = vpack.c.b16 %v1053, %v1052
  %v1178 = vpack.c.b16 %v1055, %v1054
  %v1179 = vpack.c.b16 %v1057, %v1056
  %v1180 = vpack.c.b16 %v1059, %v1058
  %v1181 = vpack.c.b16 %v1061, %v1060
  %v1182 = vpack.c.b16 %v1063, %v1062
  %v1183 = vpack.c.b16 %v1065, %v1064
  %v1184 = vpack.c.b16 %v1067, %v1066
  %v1185 = vpack.c.b16 %v1069, %v1068
  %v1186 = vpack.c.b16 %v1071, %v1070
  %v1187 = vpack.c.b16 %v1073, %v1072
  %v1188 = vpack.c.b16 %v1075, %v1074
  %v1189 = vpack.c.b16 %v1077, %v1076
  %v1190 = vpack.c.b16 %v1079, %v1078
  %v1191 = vpack.c.b16 %v1081, %v1080
  %v1192 = vpack.c.b16 %v1083, %v1082
  %v1193 = vpack.c.b16 %v1085, %v1084
  %v1194 = vpack.c.b16 %v1087, %v1086
  %v1195 = vpack.c.b16 %v1089, %v1088
  %v1196 = vpack.c.b16 %v1091, %v1090
  %v1197 = vpack.c.b16 %v1093, %v1092
  %v1198 = vpack.c.b16 %v1095, %v1094
  %v1199 = vpack.c.b16 %v1097, %v1096
  %v1200 = vpack.c.b16 %v1099, %v1098
  %v1201 = vpack.c.b16 %v1101, %v1100
  %v1202 = vpack.c.b16 %v1103, %v1102
  %v1203 = vpack.c.b16 %v1105, %v1104
  %v1204 = vpack.c.b16 %v1107, %v1106
  %v1205 = vpack.c.b16 %v1109, %v1108
  %v1206 = vpack.c.b16 %v1111, %v1110
  %v1207 = vpack.c.b16 %v1113, %v1112
  %v1208 = vpack.c.b16 %v1115, %v1114
  %v1209 = vpack.c.b16 %v1117, %v1116
  %v1210 = vpack.c.b16 %v1119, %v1118
  %v1211 = vpack.c.b16 %v1121, %v1120
  %v1212 = vpack.c.b16 %v1123, %v1122
  %v1213 = vpack.c.b16 %v1125, %v1124
  %v1214 = vpack.c.b16 %v1127, %v1126
  %v1215 = vpack.c.b16 %v1129, %v1128
  %v1216 = vpack.c.b16 %v1131, %v1130
  %v1217 = vpack.c.b16 %v1133, %v1132
  %v1218 = vpack.c.b16 %v1135, %v1134
  %v1219 = vpack.c.b16 %v1137, %v1136
  %v1220 = vpack.c.b16 %v1139, %v1138
  %v1221 = vpack.c.b16 %v1141, %v1140
  %v1222 = vpack.c.b16 %v1143, %v1142
  %v1223 = vpack.c.b16 %v1145, %v1144
  %v1224 = vpack.c.b16 %v1147, %v1146
  %v1225 = vpack.c.b16 %v1149, %v1148
  %v1226 = vpack.c.b16 %v1151, %v1150
  %v1227 = vpack.c.b16 %v1153, %v1152
  %v1228 = vpack.c.b16 %v1155, %v1154
  %v1229 = vpack.c.b16 %v1157, %v1156
  %v1230 = vpack.c.b16 %v1159, %v1158
  %v1231 = vpack.c.b16 %v1161, %v1160
  %v1232 = vpack.c.b16 %v1163, %v1162
  %v1233 = vpack.c.b16 %v1165, %v1164
  %v1234 = vpack.c.b16 %v1167, %v1166
  %v1235 = vpack.c.b16 %v1169, %v1168
  %v1236 = vpack.c.b16 %v1171, %v1170
  %v1237 = vpack.c.b16 %v1173, %v1172
  %1302 = vmatprep.subr.bf16.mxu0 0
  %1303 = vmatpush1.bf16.msra.mxu0 %v1174
  %1304 = vmatprep.subr.bf16.mxu0 0
  %1305 = vmatpush1.bf16.msra.mxu0 %v1175
  %1306 = vmatprep.subr.bf16.mxu0 0
  %1307 = vmatpush1.bf16.msra.mxu0 %v1176
  %1308 = vmatprep.subr.bf16.mxu0 0
  %1309 = vmatpush1.bf16.msra.mxu0 %v1177
  %1310 = vmatprep.subr.bf16.mxu0 0
  %1311 = vmatpush1.bf16.msra.mxu0 %v1178
  %1312 = vmatprep.subr.bf16.mxu0 0
  %1313 = vmatpush1.bf16.msra.mxu0 %v1179
  %1314 = vmatprep.subr.bf16.mxu0 0
  %1315 = vmatpush1.bf16.msra.mxu0 %v1180
  %1316 = vmatprep.subr.bf16.mxu0 0
  %1317 = vmatpush1.bf16.msra.mxu0 %v1181
  %1318 = vmatprep.subr.bf16.mxu0 0
  %1319 = vmatpush1.bf16.msra.mxu0 %v1182
  %1320 = vmatprep.subr.bf16.mxu0 0
  %1321 = vmatpush1.bf16.msra.mxu0 %v1183
  %1322 = vmatprep.subr.bf16.mxu0 0
  %1323 = vmatpush1.bf16.msra.mxu0 %v1184
  %1324 = vmatprep.subr.bf16.mxu0 0
  %1325 = vmatpush1.bf16.msra.mxu0 %v1185
  %1326 = vmatprep.subr.bf16.mxu0 0
  %1327 = vmatpush1.bf16.msra.mxu0 %v1186
  %1328 = vmatprep.subr.bf16.mxu0 0
  %1329 = vmatpush1.bf16.msra.mxu0 %v1187
  %1330 = vmatprep.subr.bf16.mxu0 0
  %1331 = vmatpush1.bf16.msra.mxu0 %v1188
  %1332 = vmatprep.subr.bf16.mxu0 0
  %1333 = vmatpush1.bf16.msra.mxu0 %v1189
  %1334 = vmatprep.mubr.bf16.mxu0 %v663
  %1335 = vmatmul.mubr.bf16.gmra.mrb[0].mxu0 %v662
  %v1336 = vpop.f32.mrb[0].mxu0
  %v1337 = vadd.f32 %v276, %v1336
  %v1338 = vpop.f32.mrb[0].mxu0
  %v1339 = vpop.f32.mrb[0].mxu0
  %v1340 = vadd.f32 %v276, %v1339
  %v1341 = vpop.f32.mrb[0].mxu0
  %1342 = vmatprep.mubr.bf16.mxu0 %v671
  %1343 = vmatmul.mubr.bf16.gmra.mrb[0].mxu0 %v670
  %v1344 = vpop.f32.mrb[0].mxu0
  %v1345 = vadd.f32 %v276, %v1344
  %v1346 = vpop.f32.mrb[0].mxu0
  %v1347 = vpop.f32.mrb[0].mxu0
  %v1348 = vadd.f32 %v276, %v1347
  %v1349 = vpop.f32.mrb[0].mxu0
  %1350 = vmatprep.mubr.bf16.mxu0 %v679
  %1351 = vmatmul.mubr.bf16.gmra.mrb[0].mxu0 %v678
  %v1352 = vpop.f32.mrb[0].mxu0
  %v1353 = vadd.f32 %v276, %v1352
  %v1354 = vpop.f32.mrb[0].mxu0
  %v1355 = vpop.f32.mrb[0].mxu0
  %v1356 = vadd.f32 %v276, %v1355
  %v1357 = vpop.f32.mrb[0].mxu0
  %1358 = vmatprep.mubr.bf16.mxu0 %v687
  %1359 = vmatmul.mubr.bf16.gmra.mrb[0].mxu0 %v686
  %v1360 = vpop.f32.mrb[0].mxu0
  %v1361 = vadd.f32 %v276, %v1360
  %v1362 = vpop.f32.mrb[0].mxu0
  %v1363 = vpop.f32.mrb[0].mxu0
  %v1364 = vadd.f32 %v276, %v1363
  %v1365 = vpop.f32.mrb[0].mxu0
  %1366 = vmatprep.mubr.bf16.mxu0 %v695
  %1367 = vmatmul.mubr.bf16.gmra.mrb[0].mxu0 %v694
  %v1368 = vpop.f32.mrb[0].mxu0
  %v1369 = vadd.f32 %v276, %v1368
  %v1370 = vpop.f32.mrb[0].mxu0
  %v1371 = vpop.f32.mrb[0].mxu0
  %v1372 = vadd.f32 %v276, %v1371
  %v1373 = vpop.f32.mrb[0].mxu0
  %1374 = vmatprep.mubr.bf16.mxu0 %v703
  %1375 = vmatmul.mubr.bf16.gmra.mrb[0].mxu0 %v702
  %v1376 = vpop.f32.mrb[0].mxu0
  %v1377 = vadd.f32 %v276, %v1376
  %v1378 = vpop.f32.mrb[0].mxu0
  %v1379 = vpop.f32.mrb[0].mxu0
  %v1380 = vadd.f32 %v276, %v1379
  %v1381 = vpop.f32.mrb[0].mxu0
  %1382 = vmatprep.mubr.bf16.mxu0 %v711
  %1383 = vmatmul.mubr.bf16.gmra.mrb[0].mxu0 %v710
  %v1384 = vpop.f32.mrb[0].mxu0
  %v1385 = vadd.f32 %v276, %v1384
  %v1386 = vpop.f32.mrb[0].mxu0
  %v1387 = vpop.f32.mrb[0].mxu0
  %v1388 = vadd.f32 %v276, %v1387
  %v1389 = vpop.f32.mrb[0].mxu0
  %1390 = vmatprep.mubr.bf16.mxu0 %v719
  %1391 = vmatmul.mubr.bf16.gmra.mrb[0].mxu0 %v718
  %v1392 = vpop.f32.mrb[0].mxu0
  %v1393 = vadd.f32 %v276, %v1392
  %v1394 = vpop.f32.mrb[0].mxu0
  %v1395 = vpop.f32.mrb[0].mxu0
  %v1396 = vadd.f32 %v276, %v1395
  %v1397 = vpop.f32.mrb[0].mxu0
  %1398 = vmatprep.mubr.bf16.mxu0 %v727
  %1399 = vmatmul.mubr.bf16.gmra.mrb[0].mxu0 %v726
  %v1400 = vpop.f32.mrb[0].mxu0
  %v1401 = vadd.f32 %v276, %v1400
  %v1402 = vpop.f32.mrb[0].mxu0
  %v1403 = vpop.f32.mrb[0].mxu0
  %v1404 = vadd.f32 %v276, %v1403
  %v1405 = vpop.f32.mrb[0].mxu0
  %1406 = vmatprep.mubr.bf16.mxu0 %v735
  %1407 = vmatmul.mubr.bf16.gmra.mrb[0].mxu0 %v734
  %v1408 = vpop.f32.mrb[0].mxu0
  %v1409 = vadd.f32 %v276, %v1408
  %v1410 = vpop.f32.mrb[0].mxu0
  %v1411 = vpop.f32.mrb[0].mxu0
  %v1412 = vadd.f32 %v276, %v1411
  %v1413 = vpop.f32.mrb[0].mxu0
  %1414 = vmatprep.mubr.bf16.mxu0 %v743
  %1415 = vmatmul.mubr.bf16.gmra.mrb[0].mxu0 %v742
  %v1416 = vpop.f32.mrb[0].mxu0
  %v1417 = vadd.f32 %v276, %v1416
  %v1418 = vpop.f32.mrb[0].mxu0
  %v1419 = vpop.f32.mrb[0].mxu0
  %v1420 = vadd.f32 %v276, %v1419
  %v1421 = vpop.f32.mrb[0].mxu0
  %1422 = vmatprep.mubr.bf16.mxu0 %v751
  %1423 = vmatmul.mubr.bf16.gmra.mrb[0].mxu0 %v750
  %v1424 = vpop.f32.mrb[0].mxu0
  %v1425 = vadd.f32 %v276, %v1424
  %v1426 = vpop.f32.mrb[0].mxu0
  %v1427 = vpop.f32.mrb[0].mxu0
  %v1428 = vadd.f32 %v276, %v1427
  %v1429 = vpop.f32.mrb[0].mxu0
  %1430 = vmatprep.mubr.bf16.mxu0 %v759
  %1431 = vmatmul.mubr.bf16.gmra.mrb[0].mxu0 %v758
  %v1432 = vpop.f32.mrb[0].mxu0
  %v1433 = vadd.f32 %v276, %v1432
  %v1434 = vpop.f32.mrb[0].mxu0
  %v1435 = vpop.f32.mrb[0].mxu0
  %v1436 = vadd.f32 %v276, %v1435
  %v1437 = vpop.f32.mrb[0].mxu0
  %1438 = vmatprep.mubr.bf16.mxu0 %v767
  %1439 = vmatmul.mubr.bf16.gmra.mrb[0].mxu0 %v766
  %v1440 = vpop.f32.mrb[0].mxu0
  %v1441 = vadd.f32 %v276, %v1440
  %v1442 = vpop.f32.mrb[0].mxu0
  %v1443 = vpop.f32.mrb[0].mxu0
  %v1444 = vadd.f32 %v276, %v1443
  %v1445 = vpop.f32.mrb[0].mxu0
  %1446 = vmatprep.mubr.bf16.mxu0 %v775
  %1447 = vmatmul.mubr.bf16.gmra.mrb[0].mxu0 %v774
  %v1448 = vpop.f32.mrb[0].mxu0
  %v1449 = vadd.f32 %v276, %v1448
  %v1450 = vpop.f32.mrb[0].mxu0
  %v1451 = vpop.f32.mrb[0].mxu0
  %v1452 = vadd.f32 %v276, %v1451
  %v1453 = vpop.f32.mrb[0].mxu0
  %1454 = vmatprep.mubr.bf16.mxu0 %v783
  %1455 = vmatmul.mubr.bf16.gmra.mrb[0].mxu0 %v782
  %v1456 = vpop.f32.mrb[0].mxu0
  %v1457 = vadd.f32 %v276, %v1456
  %v1458 = vpop.f32.mrb[0].mxu0
  %v1459 = vpop.f32.mrb[0].mxu0
  %v1460 = vadd.f32 %v276, %v1459
  %v1461 = vpop.f32.mrb[0].mxu0
  %1462 = vdwg.mxu0
  %1463 = vmatprep.subr.bf16.mxu0 0
  %1464 = vmatpush1.bf16.msra.mxu0 %v1190
  %1465 = vmatprep.subr.bf16.mxu0 0
  %1466 = vmatpush1.bf16.msra.mxu0 %v1191
  %1467 = vmatprep.subr.bf16.mxu0 0
  %1468 = vmatpush1.bf16.msra.mxu0 %v1192
  %1469 = vmatprep.subr.bf16.mxu0 0
  %1470 = vmatpush1.bf16.msra.mxu0 %v1193
  %1471 = vmatprep.subr.bf16.mxu0 0
  %1472 = vmatpush1.bf16.msra.mxu0 %v1194
  %1473 = vmatprep.subr.bf16.mxu0 0
  %1474 = vmatpush1.bf16.msra.mxu0 %v1195
  %1475 = vmatprep.subr.bf16.mxu0 0
  %1476 = vmatpush1.bf16.msra.mxu0 %v1196
  %1477 = vmatprep.subr.bf16.mxu0 0
  %1478 = vmatpush1.bf16.msra.mxu0 %v1197
  %1479 = vmatprep.subr.bf16.mxu0 0
  %1480 = vmatpush1.bf16.msra.mxu0 %v1198
  %1481 = vmatprep.subr.bf16.mxu0 0
  %1482 = vmatpush1.bf16.msra.mxu0 %v1199
  %1483 = vmatprep.subr.bf16.mxu0 0
  %1484 = vmatpush1.bf16.msra.mxu0 %v1200
  %1485 = vmatprep.subr.bf16.mxu0 0
  %1486 = vmatpush1.bf16.msra.mxu0 %v1201
  %1487 = vmatprep.subr.bf16.mxu0 0
  %1488 = vmatpush1.bf16.msra.mxu0 %v1202
  %1489 = vmatprep.subr.bf16.mxu0 0
  %1490 = vmatpush1.bf16.msra.mxu0 %v1203
  %1491 = vmatprep.subr.bf16.mxu0 0
  %1492 = vmatpush1.bf16.msra.mxu0 %v1204
  %1493 = vmatprep.subr.bf16.mxu0 0
  %1494 = vmatpush1.bf16.msra.mxu0 %v1205
  %1495 = vmatprep.mubr.bf16.mxu0 %v665
  %1496 = vmatmul.mubr.bf16.gmra.mrb[0].mxu0 %v664
  %v1497 = vpop.f32.mrb[0].mxu0
  %v1498 = vadd.f32 %v1337, %v1497
  %v1499 = vpop.f32.mrb[0].mxu0
  %v1500 = vpop.f32.mrb[0].mxu0
  %v1501 = vadd.f32 %v1340, %v1500
  %v1502 = vpop.f32.mrb[0].mxu0
  %1503 = vmatprep.mubr.bf16.mxu0 %v673
  %1504 = vmatmul.mubr.bf16.gmra.mrb[0].mxu0 %v672
  %v1505 = vpop.f32.mrb[0].mxu0
  %v1506 = vadd.f32 %v1345, %v1505
  %v1507 = vpop.f32.mrb[0].mxu0
  %v1508 = vpop.f32.mrb[0].mxu0
  %v1509 = vadd.f32 %v1348, %v1508
  %v1510 = vpop.f32.mrb[0].mxu0
  %1511 = vmatprep.mubr.bf16.mxu0 %v681
  %1512 = vmatmul.mubr.bf16.gmra.mrb[0].mxu0 %v680
  %v1513 = vpop.f32.mrb[0].mxu0
  %v1514 = vadd.f32 %v1353, %v1513
  %v1515 = vpop.f32.mrb[0].mxu0
  %v1516 = vpop.f32.mrb[0].mxu0
  %v1517 = vadd.f32 %v1356, %v1516
  %v1518 = vpop.f32.mrb[0].mxu0
  %1519 = vmatprep.mubr.bf16.mxu0 %v689
  %1520 = vmatmul.mubr.bf16.gmra.mrb[0].mxu0 %v688
  %v1521 = vpop.f32.mrb[0].mxu0
  %v1522 = vadd.f32 %v1361, %v1521
  %v1523 = vpop.f32.mrb[0].mxu0
  %v1524 = vpop.f32.mrb[0].mxu0
  %v1525 = vadd.f32 %v1364, %v1524
  %v1526 = vpop.f32.mrb[0].mxu0
  %1527 = vmatprep.mubr.bf16.mxu0 %v697
  %1528 = vmatmul.mubr.bf16.gmra.mrb[0].mxu0 %v696
  %v1529 = vpop.f32.mrb[0].mxu0
  %v1530 = vadd.f32 %v1369, %v1529
  %v1531 = vpop.f32.mrb[0].mxu0
  %v1532 = vpop.f32.mrb[0].mxu0
  %v1533 = vadd.f32 %v1372, %v1532
  %v1534 = vpop.f32.mrb[0].mxu0
  %1535 = vmatprep.mubr.bf16.mxu0 %v705
  %1536 = vmatmul.mubr.bf16.gmra.mrb[0].mxu0 %v704
  %v1537 = vpop.f32.mrb[0].mxu0
  %v1538 = vadd.f32 %v1377, %v1537
  %v1539 = vpop.f32.mrb[0].mxu0
  %v1540 = vpop.f32.mrb[0].mxu0
  %v1541 = vadd.f32 %v1380, %v1540
  %v1542 = vpop.f32.mrb[0].mxu0
  %1543 = vmatprep.mubr.bf16.mxu0 %v713
  %1544 = vmatmul.mubr.bf16.gmra.mrb[0].mxu0 %v712
  %v1545 = vpop.f32.mrb[0].mxu0
  %v1546 = vadd.f32 %v1385, %v1545
  %v1547 = vpop.f32.mrb[0].mxu0
  %v1548 = vpop.f32.mrb[0].mxu0
  %v1549 = vadd.f32 %v1388, %v1548
  %v1550 = vpop.f32.mrb[0].mxu0
  %1551 = vmatprep.mubr.bf16.mxu0 %v721
  %1552 = vmatmul.mubr.bf16.gmra.mrb[0].mxu0 %v720
  %v1553 = vpop.f32.mrb[0].mxu0
  %v1554 = vadd.f32 %v1393, %v1553
  %v1555 = vpop.f32.mrb[0].mxu0
  %v1556 = vpop.f32.mrb[0].mxu0
  %v1557 = vadd.f32 %v1396, %v1556
  %v1558 = vpop.f32.mrb[0].mxu0
  %1559 = vmatprep.mubr.bf16.mxu0 %v729
  %1560 = vmatmul.mubr.bf16.gmra.mrb[0].mxu0 %v728
  %v1561 = vpop.f32.mrb[0].mxu0
  %v1562 = vadd.f32 %v1401, %v1561
  %v1563 = vpop.f32.mrb[0].mxu0
  %v1564 = vpop.f32.mrb[0].mxu0
  %v1565 = vadd.f32 %v1404, %v1564
  %v1566 = vpop.f32.mrb[0].mxu0
  %1567 = vmatprep.mubr.bf16.mxu0 %v737
  %1568 = vmatmul.mubr.bf16.gmra.mrb[0].mxu0 %v736
  %v1569 = vpop.f32.mrb[0].mxu0
  %v1570 = vadd.f32 %v1409, %v1569
  %v1571 = vpop.f32.mrb[0].mxu0
  %v1572 = vpop.f32.mrb[0].mxu0
  %v1573 = vadd.f32 %v1412, %v1572
  %v1574 = vpop.f32.mrb[0].mxu0
  %1575 = vmatprep.mubr.bf16.mxu0 %v745
  %1576 = vmatmul.mubr.bf16.gmra.mrb[0].mxu0 %v744
  %v1577 = vpop.f32.mrb[0].mxu0
  %v1578 = vadd.f32 %v1417, %v1577
  %v1579 = vpop.f32.mrb[0].mxu0
  %v1580 = vpop.f32.mrb[0].mxu0
  %v1581 = vadd.f32 %v1420, %v1580
  %v1582 = vpop.f32.mrb[0].mxu0
  %1583 = vmatprep.mubr.bf16.mxu0 %v753
  %1584 = vmatmul.mubr.bf16.gmra.mrb[0].mxu0 %v752
  %v1585 = vpop.f32.mrb[0].mxu0
  %v1586 = vadd.f32 %v1425, %v1585
  %v1587 = vpop.f32.mrb[0].mxu0
  %v1588 = vpop.f32.mrb[0].mxu0
  %v1589 = vadd.f32 %v1428, %v1588
  %v1590 = vpop.f32.mrb[0].mxu0
  %1591 = vmatprep.mubr.bf16.mxu0 %v761
  %1592 = vmatmul.mubr.bf16.gmra.mrb[0].mxu0 %v760
  %v1593 = vpop.f32.mrb[0].mxu0
  %v1594 = vadd.f32 %v1433, %v1593
  %v1595 = vpop.f32.mrb[0].mxu0
  %v1596 = vpop.f32.mrb[0].mxu0
  %v1597 = vadd.f32 %v1436, %v1596
  %v1598 = vpop.f32.mrb[0].mxu0
  %1599 = vmatprep.mubr.bf16.mxu0 %v769
  %1600 = vmatmul.mubr.bf16.gmra.mrb[0].mxu0 %v768
  %v1601 = vpop.f32.mrb[0].mxu0
  %v1602 = vadd.f32 %v1441, %v1601
  %v1603 = vpop.f32.mrb[0].mxu0
  %v1604 = vpop.f32.mrb[0].mxu0
  %v1605 = vadd.f32 %v1444, %v1604
  %v1606 = vpop.f32.mrb[0].mxu0
  %1607 = vmatprep.mubr.bf16.mxu0 %v777
  %1608 = vmatmul.mubr.bf16.gmra.mrb[0].mxu0 %v776
  %v1609 = vpop.f32.mrb[0].mxu0
  %v1610 = vadd.f32 %v1449, %v1609
  %v1611 = vpop.f32.mrb[0].mxu0
  %v1612 = vpop.f32.mrb[0].mxu0
  %v1613 = vadd.f32 %v1452, %v1612
  %v1614 = vpop.f32.mrb[0].mxu0
  %1615 = vmatprep.mubr.bf16.mxu0 %v785
  %1616 = vmatmul.mubr.bf16.gmra.mrb[0].mxu0 %v784
  %v1617 = vpop.f32.mrb[0].mxu0
  %v1618 = vadd.f32 %v1457, %v1617
  %v1619 = vpop.f32.mrb[0].mxu0
  %v1620 = vpop.f32.mrb[0].mxu0
  %v1621 = vadd.f32 %v1460, %v1620
  %v1622 = vpop.f32.mrb[0].mxu0
  %1623 = vdwg.mxu0
  %1624 = vmatprep.subr.bf16.mxu0 0
  %1625 = vmatpush1.bf16.msra.mxu0 %v1206
  %1626 = vmatprep.subr.bf16.mxu0 0
  %1627 = vmatpush1.bf16.msra.mxu0 %v1207
  %1628 = vmatprep.subr.bf16.mxu0 0
  %1629 = vmatpush1.bf16.msra.mxu0 %v1208
  %1630 = vmatprep.subr.bf16.mxu0 0
  %1631 = vmatpush1.bf16.msra.mxu0 %v1209
  %1632 = vmatprep.subr.bf16.mxu0 0
  %1633 = vmatpush1.bf16.msra.mxu0 %v1210
  %1634 = vmatprep.subr.bf16.mxu0 0
  %1635 = vmatpush1.bf16.msra.mxu0 %v1211
  %1636 = vmatprep.subr.bf16.mxu0 0
  %1637 = vmatpush1.bf16.msra.mxu0 %v1212
  %1638 = vmatprep.subr.bf16.mxu0 0
  %1639 = vmatpush1.bf16.msra.mxu0 %v1213
  %1640 = vmatprep.subr.bf16.mxu0 0
  %1641 = vmatpush1.bf16.msra.mxu0 %v1214
  %1642 = vmatprep.subr.bf16.mxu0 0
  %1643 = vmatpush1.bf16.msra.mxu0 %v1215
  %1644 = vmatprep.subr.bf16.mxu0 0
  %1645 = vmatpush1.bf16.msra.mxu0 %v1216
  %1646 = vmatprep.subr.bf16.mxu0 0
  %1647 = vmatpush1.bf16.msra.mxu0 %v1217
  %1648 = vmatprep.subr.bf16.mxu0 0
  %1649 = vmatpush1.bf16.msra.mxu0 %v1218
  %1650 = vmatprep.subr.bf16.mxu0 0
  %1651 = vmatpush1.bf16.msra.mxu0 %v1219
  %1652 = vmatprep.subr.bf16.mxu0 0
  %1653 = vmatpush1.bf16.msra.mxu0 %v1220
  %1654 = vmatprep.subr.bf16.mxu0 0
  %1655 = vmatpush1.bf16.msra.mxu0 %v1221
  %1656 = vmatprep.mubr.bf16.mxu0 %v667
  %1657 = vmatmul.mubr.bf16.gmra.mrb[0].mxu0 %v666
  %v1658 = vpop.f32.mrb[0].mxu0
  %v1659 = vadd.f32 %v1498, %v1658
  %v1660 = vpop.f32.mrb[0].mxu0
  %v1661 = vpop.f32.mrb[0].mxu0
  %v1662 = vadd.f32 %v1501, %v1661
  %v1663 = vpop.f32.mrb[0].mxu0
  %1664 = vmatprep.mubr.bf16.mxu0 %v675
  %1665 = vmatmul.mubr.bf16.gmra.mrb[0].mxu0 %v674
  %v1666 = vpop.f32.mrb[0].mxu0
  %v1667 = vadd.f32 %v1506, %v1666
  %v1668 = vpop.f32.mrb[0].mxu0
  %v1669 = vpop.f32.mrb[0].mxu0
  %v1670 = vadd.f32 %v1509, %v1669
  %v1671 = vpop.f32.mrb[0].mxu0
  %1672 = vmatprep.mubr.bf16.mxu0 %v683
  %1673 = vmatmul.mubr.bf16.gmra.mrb[0].mxu0 %v682
  %v1674 = vpop.f32.mrb[0].mxu0
  %v1675 = vadd.f32 %v1514, %v1674
  %v1676 = vpop.f32.mrb[0].mxu0
  %v1677 = vpop.f32.mrb[0].mxu0
  %v1678 = vadd.f32 %v1517, %v1677
  %v1679 = vpop.f32.mrb[0].mxu0
  %1680 = vmatprep.mubr.bf16.mxu0 %v691
  %1681 = vmatmul.mubr.bf16.gmra.mrb[0].mxu0 %v690
  %v1682 = vpop.f32.mrb[0].mxu0
  %v1683 = vadd.f32 %v1522, %v1682
  %v1684 = vpop.f32.mrb[0].mxu0
  %v1685 = vpop.f32.mrb[0].mxu0
  %v1686 = vadd.f32 %v1525, %v1685
  %v1687 = vpop.f32.mrb[0].mxu0
  %1688 = vmatprep.mubr.bf16.mxu0 %v699
  %1689 = vmatmul.mubr.bf16.gmra.mrb[0].mxu0 %v698
  %v1690 = vpop.f32.mrb[0].mxu0
  %v1691 = vadd.f32 %v1530, %v1690
  %v1692 = vpop.f32.mrb[0].mxu0
  %v1693 = vpop.f32.mrb[0].mxu0
  %v1694 = vadd.f32 %v1533, %v1693
  %v1695 = vpop.f32.mrb[0].mxu0
  %1696 = vmatprep.mubr.bf16.mxu0 %v707
  %1697 = vmatmul.mubr.bf16.gmra.mrb[0].mxu0 %v706
  %v1698 = vpop.f32.mrb[0].mxu0
  %v1699 = vadd.f32 %v1538, %v1698
  %v1700 = vpop.f32.mrb[0].mxu0
  %v1701 = vpop.f32.mrb[0].mxu0
  %v1702 = vadd.f32 %v1541, %v1701
  %v1703 = vpop.f32.mrb[0].mxu0
  %1704 = vmatprep.mubr.bf16.mxu0 %v715
  %1705 = vmatmul.mubr.bf16.gmra.mrb[0].mxu0 %v714
  %v1706 = vpop.f32.mrb[0].mxu0
  %v1707 = vadd.f32 %v1546, %v1706
  %v1708 = vpop.f32.mrb[0].mxu0
  %v1709 = vpop.f32.mrb[0].mxu0
  %v1710 = vadd.f32 %v1549, %v1709
  %v1711 = vpop.f32.mrb[0].mxu0
  %1712 = vmatprep.mubr.bf16.mxu0 %v723
  %1713 = vmatmul.mubr.bf16.gmra.mrb[0].mxu0 %v722
  %v1714 = vpop.f32.mrb[0].mxu0
  %v1715 = vadd.f32 %v1554, %v1714
  %v1716 = vpop.f32.mrb[0].mxu0
  %v1717 = vpop.f32.mrb[0].mxu0
  %v1718 = vadd.f32 %v1557, %v1717
  %v1719 = vpop.f32.mrb[0].mxu0
  %1720 = vmatprep.mubr.bf16.mxu0 %v731
  %1721 = vmatmul.mubr.bf16.gmra.mrb[0].mxu0 %v730
  %v1722 = vpop.f32.mrb[0].mxu0
  %v1723 = vadd.f32 %v1562, %v1722
  %v1724 = vpop.f32.mrb[0].mxu0
  %v1725 = vpop.f32.mrb[0].mxu0
  %v1726 = vadd.f32 %v1565, %v1725
  %v1727 = vpop.f32.mrb[0].mxu0
  %1728 = vmatprep.mubr.bf16.mxu0 %v739
  %1729 = vmatmul.mubr.bf16.gmra.mrb[0].mxu0 %v738
  %v1730 = vpop.f32.mrb[0].mxu0
  %v1731 = vadd.f32 %v1570, %v1730
  %v1732 = vpop.f32.mrb[0].mxu0
  %v1733 = vpop.f32.mrb[0].mxu0
  %v1734 = vadd.f32 %v1573, %v1733
  %v1735 = vpop.f32.mrb[0].mxu0
  %1736 = vmatprep.mubr.bf16.mxu0 %v747
  %1737 = vmatmul.mubr.bf16.gmra.mrb[0].mxu0 %v746
  %v1738 = vpop.f32.mrb[0].mxu0
  %v1739 = vadd.f32 %v1578, %v1738
  %v1740 = vpop.f32.mrb[0].mxu0
  %v1741 = vpop.f32.mrb[0].mxu0
  %v1742 = vadd.f32 %v1581, %v1741
  %v1743 = vpop.f32.mrb[0].mxu0
  %1744 = vmatprep.mubr.bf16.mxu0 %v755
  %1745 = vmatmul.mubr.bf16.gmra.mrb[0].mxu0 %v754
  %v1746 = vpop.f32.mrb[0].mxu0
  %v1747 = vadd.f32 %v1586, %v1746
  %v1748 = vpop.f32.mrb[0].mxu0
  %v1749 = vpop.f32.mrb[0].mxu0
  %v1750 = vadd.f32 %v1589, %v1749
  %v1751 = vpop.f32.mrb[0].mxu0
  %1752 = vmatprep.mubr.bf16.mxu0 %v763
  %1753 = vmatmul.mubr.bf16.gmra.mrb[0].mxu0 %v762
  %v1754 = vpop.f32.mrb[0].mxu0
  %v1755 = vadd.f32 %v1594, %v1754
  %v1756 = vpop.f32.mrb[0].mxu0
  %v1757 = vpop.f32.mrb[0].mxu0
  %v1758 = vadd.f32 %v1597, %v1757
  %v1759 = vpop.f32.mrb[0].mxu0
  %1760 = vmatprep.mubr.bf16.mxu0 %v771
  %1761 = vmatmul.mubr.bf16.gmra.mrb[0].mxu0 %v770
  %v1762 = vpop.f32.mrb[0].mxu0
  %v1763 = vadd.f32 %v1602, %v1762
  %v1764 = vpop.f32.mrb[0].mxu0
  %v1765 = vpop.f32.mrb[0].mxu0
  %v1766 = vadd.f32 %v1605, %v1765
  %v1767 = vpop.f32.mrb[0].mxu0
  %1768 = vmatprep.mubr.bf16.mxu0 %v779
  %1769 = vmatmul.mubr.bf16.gmra.mrb[0].mxu0 %v778
  %v1770 = vpop.f32.mrb[0].mxu0
  %v1771 = vadd.f32 %v1610, %v1770
  %v1772 = vpop.f32.mrb[0].mxu0
  %v1773 = vpop.f32.mrb[0].mxu0
  %v1774 = vadd.f32 %v1613, %v1773
  %v1775 = vpop.f32.mrb[0].mxu0
  %1776 = vmatprep.mubr.bf16.mxu0 %v787
  %1777 = vmatmul.mubr.bf16.gmra.mrb[0].mxu0 %v786
  %v1778 = vpop.f32.mrb[0].mxu0
  %v1779 = vadd.f32 %v1618, %v1778
  %v1780 = vpop.f32.mrb[0].mxu0
  %v1781 = vpop.f32.mrb[0].mxu0
  %v1782 = vadd.f32 %v1621, %v1781
  %v1783 = vpop.f32.mrb[0].mxu0
  %1784 = vdwg.mxu0
  %1785 = vmatprep.subr.bf16.mxu0 0
  %1786 = vmatpush1.bf16.msra.mxu0 %v1222
  %1787 = vmatprep.subr.bf16.mxu0 0
  %1788 = vmatpush1.bf16.msra.mxu0 %v1223
  %1789 = vmatprep.subr.bf16.mxu0 0
  %1790 = vmatpush1.bf16.msra.mxu0 %v1224
  %1791 = vmatprep.subr.bf16.mxu0 0
  %1792 = vmatpush1.bf16.msra.mxu0 %v1225
  %1793 = vmatprep.subr.bf16.mxu0 0
  %1794 = vmatpush1.bf16.msra.mxu0 %v1226
  %1795 = vmatprep.subr.bf16.mxu0 0
  %1796 = vmatpush1.bf16.msra.mxu0 %v1227
  %1797 = vmatprep.subr.bf16.mxu0 0
  %1798 = vmatpush1.bf16.msra.mxu0 %v1228
  %1799 = vmatprep.subr.bf16.mxu0 0
  %1800 = vmatpush1.bf16.msra.mxu0 %v1229
  %1801 = vmatprep.subr.bf16.mxu0 0
  %1802 = vmatpush1.bf16.msra.mxu0 %v1230
  %1803 = vmatprep.subr.bf16.mxu0 0
  %1804 = vmatpush1.bf16.msra.mxu0 %v1231
  %1805 = vmatprep.subr.bf16.mxu0 0
  %1806 = vmatpush1.bf16.msra.mxu0 %v1232
  %1807 = vmatprep.subr.bf16.mxu0 0
  %1808 = vmatpush1.bf16.msra.mxu0 %v1233
  %1809 = vmatprep.subr.bf16.mxu0 0
  %1810 = vmatpush1.bf16.msra.mxu0 %v1234
  %1811 = vmatprep.subr.bf16.mxu0 0
  %1812 = vmatpush1.bf16.msra.mxu0 %v1235
  %1813 = vmatprep.subr.bf16.mxu0 0
  %1814 = vmatpush1.bf16.msra.mxu0 %v1236
  %1815 = vmatprep.subr.bf16.mxu0 0
  %1816 = vmatpush1.bf16.msra.mxu0 %v1237
  %1817 = vmatprep.mubr.bf16.mxu0 %v669
  %1818 = vmatmul.mubr.bf16.gmra.mrb[0].mxu0 %v668
  %v1819 = vpop.f32.mrb[0].mxu0
  %v1820 = vadd.f32 %v1659, %v1819
  %v1821 = vpop.f32.mrb[0].mxu0
  %v1822 = vpop.f32.mrb[0].mxu0
  %v1823 = vadd.f32 %v1662, %v1822
  %v1824 = vpop.f32.mrb[0].mxu0
  %1825 = vmatprep.mubr.bf16.mxu0 %v677
  %1826 = vmatmul.mubr.bf16.gmra.mrb[0].mxu0 %v676
  %v1827 = vpop.f32.mrb[0].mxu0
  %v1828 = vadd.f32 %v1667, %v1827
  %v1829 = vpop.f32.mrb[0].mxu0
  %v1830 = vpop.f32.mrb[0].mxu0
  %v1831 = vadd.f32 %v1670, %v1830
  %v1832 = vpop.f32.mrb[0].mxu0
  %1833 = vmatprep.mubr.bf16.mxu0 %v685
  %1834 = vmatmul.mubr.bf16.gmra.mrb[0].mxu0 %v684
  %v1835 = vpop.f32.mrb[0].mxu0
  %v1836 = vadd.f32 %v1675, %v1835
  %v1837 = vpop.f32.mrb[0].mxu0
  %v1838 = vpop.f32.mrb[0].mxu0
  %v1839 = vadd.f32 %v1678, %v1838
  %v1840 = vpop.f32.mrb[0].mxu0
  %1841 = vmatprep.mubr.bf16.mxu0 %v693
  %1842 = vmatmul.mubr.bf16.gmra.mrb[0].mxu0 %v692
  %v1843 = vpop.f32.mrb[0].mxu0
  %v1844 = vadd.f32 %v1683, %v1843
  %v1845 = vpop.f32.mrb[0].mxu0
  %v1846 = vpop.f32.mrb[0].mxu0
  %v1847 = vadd.f32 %v1686, %v1846
  %v1848 = vpop.f32.mrb[0].mxu0
  %1849 = vmatprep.mubr.bf16.mxu0 %v701
  %1850 = vmatmul.mubr.bf16.gmra.mrb[0].mxu0 %v700
  %v1851 = vpop.f32.mrb[0].mxu0
  %v1852 = vadd.f32 %v1691, %v1851
  %v1853 = vpop.f32.mrb[0].mxu0
  %v1854 = vpop.f32.mrb[0].mxu0
  %v1855 = vadd.f32 %v1694, %v1854
  %v1856 = vpop.f32.mrb[0].mxu0
  %1857 = vmatprep.mubr.bf16.mxu0 %v709
  %1858 = vmatmul.mubr.bf16.gmra.mrb[0].mxu0 %v708
  %v1859 = vpop.f32.mrb[0].mxu0
  %v1860 = vadd.f32 %v1699, %v1859
  %v1861 = vpop.f32.mrb[0].mxu0
  %v1862 = vpop.f32.mrb[0].mxu0
  %v1863 = vadd.f32 %v1702, %v1862
  %v1864 = vpop.f32.mrb[0].mxu0
  %1865 = vmatprep.mubr.bf16.mxu0 %v717
  %1866 = vmatmul.mubr.bf16.gmra.mrb[0].mxu0 %v716
  %v1867 = vpop.f32.mrb[0].mxu0
  %v1868 = vadd.f32 %v1707, %v1867
  %v1869 = vpop.f32.mrb[0].mxu0
  %v1870 = vpop.f32.mrb[0].mxu0
  %v1871 = vadd.f32 %v1710, %v1870
  %v1872 = vpop.f32.mrb[0].mxu0
  %1873 = vmatprep.mubr.bf16.mxu0 %v725
  %1874 = vmatmul.mubr.bf16.gmra.mrb[0].mxu0 %v724
  %v1875 = vpop.f32.mrb[0].mxu0
  %v1876 = vadd.f32 %v1715, %v1875
  %v1877 = vpop.f32.mrb[0].mxu0
  %v1878 = vpop.f32.mrb[0].mxu0
  %v1879 = vadd.f32 %v1718, %v1878
  %v1880 = vpop.f32.mrb[0].mxu0
  %1881 = vmatprep.mubr.bf16.mxu0 %v733
  %1882 = vmatmul.mubr.bf16.gmra.mrb[0].mxu0 %v732
  %v1883 = vpop.f32.mrb[0].mxu0
  %v1884 = vadd.f32 %v1723, %v1883
  %v1885 = vpop.f32.mrb[0].mxu0
  %v1886 = vpop.f32.mrb[0].mxu0
  %v1887 = vadd.f32 %v1726, %v1886
  %v1888 = vpop.f32.mrb[0].mxu0
  %1889 = vmatprep.mubr.bf16.mxu0 %v741
  %1890 = vmatmul.mubr.bf16.gmra.mrb[0].mxu0 %v740
  %v1891 = vpop.f32.mrb[0].mxu0
  %v1892 = vadd.f32 %v1731, %v1891
  %v1893 = vpop.f32.mrb[0].mxu0
  %v1894 = vpop.f32.mrb[0].mxu0
  %v1895 = vadd.f32 %v1734, %v1894
  %v1896 = vpop.f32.mrb[0].mxu0
  %1897 = vmatprep.mubr.bf16.mxu0 %v749
  %1898 = vmatmul.mubr.bf16.gmra.mrb[0].mxu0 %v748
  %v1899 = vpop.f32.mrb[0].mxu0
  %v1900 = vadd.f32 %v1739, %v1899
  %v1901 = vpop.f32.mrb[0].mxu0
  %v1902 = vpop.f32.mrb[0].mxu0
  %v1903 = vadd.f32 %v1742, %v1902
  %v1904 = vpop.f32.mrb[0].mxu0
  %1905 = vmatprep.mubr.bf16.mxu0 %v757
  %1906 = vmatmul.mubr.bf16.gmra.mrb[0].mxu0 %v756
  %v1907 = vpop.f32.mrb[0].mxu0
  %v1908 = vadd.f32 %v1747, %v1907
  %v1909 = vpop.f32.mrb[0].mxu0
  %v1910 = vpop.f32.mrb[0].mxu0
  %v1911 = vadd.f32 %v1750, %v1910
  %v1912 = vpop.f32.mrb[0].mxu0
  %1913 = vmatprep.mubr.bf16.mxu0 %v765
  %1914 = vmatmul.mubr.bf16.gmra.mrb[0].mxu0 %v764
  %v1915 = vpop.f32.mrb[0].mxu0
  %v1916 = vadd.f32 %v1755, %v1915
  %v1917 = vpop.f32.mrb[0].mxu0
  %v1918 = vpop.f32.mrb[0].mxu0
  %v1919 = vadd.f32 %v1758, %v1918
  %v1920 = vpop.f32.mrb[0].mxu0
  %1921 = vmatprep.mubr.bf16.mxu0 %v773
  %1922 = vmatmul.mubr.bf16.gmra.mrb[0].mxu0 %v772
  %v1923 = vpop.f32.mrb[0].mxu0
  %v1924 = vadd.f32 %v1763, %v1923
  %v1925 = vpop.f32.mrb[0].mxu0
  %v1926 = vpop.f32.mrb[0].mxu0
  %v1927 = vadd.f32 %v1766, %v1926
  %v1928 = vpop.f32.mrb[0].mxu0
  %1929 = vmatprep.mubr.bf16.mxu0 %v781
  %1930 = vmatmul.mubr.bf16.gmra.mrb[0].mxu0 %v780
  %v1931 = vpop.f32.mrb[0].mxu0
  %v1932 = vadd.f32 %v1771, %v1931
  %v1933 = vpop.f32.mrb[0].mxu0
  %v1934 = vpop.f32.mrb[0].mxu0
  %v1935 = vadd.f32 %v1774, %v1934
  %v1936 = vpop.f32.mrb[0].mxu0
  %1937 = vmatprep.mubr.bf16.mxu0 %v789
  %1938 = vmatmul.mubr.bf16.gmra.mrb[0].mxu0 %v788
  %v1939 = vpop.f32.mrb[0].mxu0
  %v1940 = vadd.f32 %v1779, %v1939
  %v1941 = vpop.f32.mrb[0].mxu0
  %v1942 = vpop.f32.mrb[0].mxu0
  %v1943 = vadd.f32 %v1782, %v1942
  %v1944 = vpop.f32.mrb[0].mxu0
  %1945 = vdwg.mxu0
  %v1946 = vmul.f32 %v1820, 0.2
  %v1947 = vmul.f32 %v1823, 0.2
  %v1948 = vmul.f32 %v1828, 0.2
  %v1949 = vmul.f32 %v1831, 0.2
  %v1950 = vmul.f32 %v1836, 0.2
  %v1951 = vmul.f32 %v1839, 0.2
  %v1952 = vmul.f32 %v1844, 0.2
  %v1953 = vmul.f32 %v1847, 0.2
  %v1954 = vmul.f32 %v1852, 0.2
  %v1955 = vmul.f32 %v1855, 0.2
  %v1956 = vmul.f32 %v1860, 0.2
  %v1957 = vmul.f32 %v1863, 0.2
  %v1958 = vmul.f32 %v1868, 0.2
  %v1959 = vmul.f32 %v1871, 0.2
  %v1960 = vmul.f32 %v1876, 0.2
  %v1961 = vmul.f32 %v1879, 0.2
  %v1962 = vmul.f32 %v1884, 0.2
  %v1963 = vmul.f32 %v1887, 0.2
  %v1964 = vmul.f32 %v1892, 0.2
  %v1965 = vmul.f32 %v1895, 0.2
  %v1966 = vmul.f32 %v1900, 0.2
  %v1967 = vmul.f32 %v1903, 0.2
  %v1968 = vmul.f32 %v1908, 0.2
  %v1969 = vmul.f32 %v1911, 0.2
  %v1970 = vmul.f32 %v1916, 0.2
  %v1971 = vmul.f32 %v1919, 0.2
  %v1972 = vmul.f32 %v1924, 0.2
  %v1973 = vmul.f32 %v1927, 0.2
  %v1974 = vmul.f32 %v1932, 0.2
  %v1975 = vmul.f32 %v1935, 0.2
  %v1976 = vmul.f32 %v1940, 0.2
  %v1977 = vmul.f32 %v1943, 0.2
  %v1978 = vmax.f32 %v1820, %v1946
  %v1979 = vmax.f32 %v1823, %v1947
  %v1980 = vmax.f32 %v1828, %v1948
  %v1981 = vmax.f32 %v1831, %v1949
  %v1982 = vmax.f32 %v1836, %v1950
  %v1983 = vmax.f32 %v1839, %v1951
  %v1984 = vmax.f32 %v1844, %v1952
  %v1985 = vmax.f32 %v1847, %v1953
  %v1986 = vmax.f32 %v1852, %v1954
  %v1987 = vmax.f32 %v1855, %v1955
  %v1988 = vmax.f32 %v1860, %v1956
  %v1989 = vmax.f32 %v1863, %v1957
  %v1990 = vmax.f32 %v1868, %v1958
  %v1991 = vmax.f32 %v1871, %v1959
  %v1992 = vmax.f32 %v1876, %v1960
  %v1993 = vmax.f32 %v1879, %v1961
  %v1994 = vmax.f32 %v1884, %v1962
  %v1995 = vmax.f32 %v1887, %v1963
  %v1996 = vmax.f32 %v1892, %v1964
  %v1997 = vmax.f32 %v1895, %v1965
  %v1998 = vmax.f32 %v1900, %v1966
  %v1999 = vmax.f32 %v1903, %v1967
  %v2000 = vmax.f32 %v1908, %v1968
  %v2001 = vmax.f32 %v1911, %v1969
  %v2002 = vmax.f32 %v1916, %v1970
  %v2003 = vmax.f32 %v1919, %v1971
  %v2004 = vmax.f32 %v1924, %v1972
  %v2005 = vmax.f32 %v1927, %v1973
  %v2006 = vmax.f32 %v1932, %v1974
  %v2007 = vmax.f32 %v1935, %v1975
  %v2008 = vmax.f32 %v1940, %v1976
  %v2009 = vmax.f32 %v1943, %v1977
  %v2010 = vpack.c.bf16 %v1979, %v1978
  %v2011 = vpack.c.bf16 %v1981, %v1980
  %v2012 = vpack.c.bf16 %v1983, %v1982
  %v2013 = vpack.c.bf16 %v1985, %v1984
  %v2014 = vpack.c.bf16 %v1987, %v1986
  %v2015 = vpack.c.bf16 %v1989, %v1988
  %v2016 = vpack.c.bf16 %v1991, %v1990
  %v2017 = vpack.c.bf16 %v1993, %v1992
  %v2018 = vpack.c.bf16 %v1995, %v1994
  %v2019 = vpack.c.bf16 %v1997, %v1996
  %v2020 = vpack.c.bf16 %v1999, %v1998
  %v2021 = vpack.c.bf16 %v2001, %v2000
  %v2022 = vpack.c.bf16 %v2003, %v2002
  %v2023 = vpack.c.bf16 %v2005, %v2004
  %v2024 = vpack.c.bf16 %v2007, %v2006
  %v2025 = vpack.c.bf16 %v2009, %v2008
  %v2042 = vunpack.c.l.b16 %v2010
  %v2043 = vunpack.c.h.b16 %v2010
  %v2044 = vunpack.c.l.b16 %v2011
  %v2045 = vunpack.c.h.b16 %v2011
  %v2046 = vunpack.c.l.b16 %v2012
  %v2047 = vunpack.c.h.b16 %v2012
  %v2048 = vunpack.c.l.b16 %v2013
  %v2049 = vunpack.c.h.b16 %v2013
  %v2050 = vunpack.c.l.b16 %v2014
  %v2051 = vunpack.c.h.b16 %v2014
  %v2052 = vunpack.c.l.b16 %v2015
  %v2053 = vunpack.c.h.b16 %v2015
  %v2054 = vunpack.c.l.b16 %v2016
  %v2055 = vunpack.c.h.b16 %v2016
  %v2056 = vunpack.c.l.b16 %v2017
  %v2057 = vunpack.c.h.b16 %v2017
  %v2058 = vunpack.c.l.b16 %v2018
  %v2059 = vunpack.c.h.b16 %v2018
  %v2060 = vunpack.c.l.b16 %v2019
  %v2061 = vunpack.c.h.b16 %v2019
  %v2062 = vunpack.c.l.b16 %v2020
  %v2063 = vunpack.c.h.b16 %v2020
  %v2064 = vunpack.c.l.b16 %v2021
  %v2065 = vunpack.c.h.b16 %v2021
  %v2066 = vunpack.c.l.b16 %v2022
  %v2067 = vunpack.c.h.b16 %v2022
  %v2068 = vunpack.c.l.b16 %v2023
  %v2069 = vunpack.c.h.b16 %v2023
  %v2070 = vunpack.c.l.b16 %v2024
  %v2071 = vunpack.c.h.b16 %v2024
  %v2072 = vunpack.c.l.b16 %v2025
  %v2073 = vunpack.c.h.b16 %v2025
  %v2074 = vpack.c.b16 %v2042, %v2042
  %v2075 = vpack.c.b16 %v2043, %v2043
  %v2076 = vpack.c.b16 %v2044, %v2044
  %v2077 = vpack.c.b16 %v2045, %v2045
  %v2078 = vpack.c.b16 %v2046, %v2046
  %v2079 = vpack.c.b16 %v2047, %v2047
  %v2080 = vpack.c.b16 %v2048, %v2048
  %v2081 = vpack.c.b16 %v2049, %v2049
  %v2082 = vpack.c.b16 %v2050, %v2050
  %v2083 = vpack.c.b16 %v2051, %v2051
  %v2084 = vpack.c.b16 %v2052, %v2052
  %v2085 = vpack.c.b16 %v2053, %v2053
  %v2086 = vpack.c.b16 %v2054, %v2054
  %v2087 = vpack.c.b16 %v2055, %v2055
  %v2088 = vpack.c.b16 %v2056, %v2056
  %v2089 = vpack.c.b16 %v2057, %v2057
  %v2090 = vpack.c.b16 %v2058, %v2058
  %v2091 = vpack.c.b16 %v2059, %v2059
  %v2092 = vpack.c.b16 %v2060, %v2060
  %v2093 = vpack.c.b16 %v2061, %v2061
  %v2094 = vpack.c.b16 %v2062, %v2062
  %v2095 = vpack.c.b16 %v2063, %v2063
  %v2096 = vpack.c.b16 %v2064, %v2064
  %v2097 = vpack.c.b16 %v2065, %v2065
  %v2098 = vpack.c.b16 %v2066, %v2066
  %v2099 = vpack.c.b16 %v2067, %v2067
  %v2100 = vpack.c.b16 %v2068, %v2068
  %v2101 = vpack.c.b16 %v2069, %v2069
  %v2102 = vpack.c.b16 %v2070, %v2070
  %v2103 = vpack.c.b16 %v2071, %v2071
  %v2104 = vpack.c.b16 %v2072, %v2072
  %v2105 = vpack.c.b16 %v2073, %v2073
  %vm2138 = vcmask 257024
  %2139 = vst.msk [vmem:[%s3] sm:$0xf] %vm2138, %v2074
  %2140 = vst.msk [vmem:[%s3 + $0x4] sm:$0xf] %vm2138, %v2075
  %2141 = vst.msk [vmem:[%s3 + $0x8] sm:$0xf] %vm2138, %v2076
  %2142 = vst.msk [vmem:[%s3 + $0xc] sm:$0xf] %vm2138, %v2077
  %2143 = vst.msk [vmem:[%s3 + $0x10] sm:$0xf] %vm2138, %v2078
  %2144 = vst.msk [vmem:[%s3 + $0x14] sm:$0xf] %vm2138, %v2079
  %2145 = vst.msk [vmem:[%s3 + $0x18] sm:$0xf] %vm2138, %v2080
  %2146 = vst.msk [vmem:[%s3 + $0x1c] sm:$0xf] %vm2138, %v2081
  %2147 = vst.msk [vmem:[%s3 + $0x20] sm:$0xf] %vm2138, %v2082
  %2148 = vst.msk [vmem:[%s3 + $0x24] sm:$0xf] %vm2138, %v2083
  %2149 = vst.msk [vmem:[%s3 + $0x28] sm:$0xf] %vm2138, %v2084
  %2150 = vst.msk [vmem:[%s3 + $0x2c] sm:$0xf] %vm2138, %v2085
  %2151 = vst.msk [vmem:[%s3 + $0x30] sm:$0xf] %vm2138, %v2086
  %2152 = vst.msk [vmem:[%s3 + $0x34] sm:$0xf] %vm2138, %v2087
  %2153 = vst.msk [vmem:[%s3 + $0x38] sm:$0xf] %vm2138, %v2088
  %2154 = vst.msk [vmem:[%s3 + $0x3c] sm:$0xf] %vm2138, %v2089
  %2155 = vst.msk [vmem:[%s3 + $0x40] sm:$0xf] %vm2138, %v2090
  %2156 = vst.msk [vmem:[%s3 + $0x44] sm:$0xf] %vm2138, %v2091
  %2157 = vst.msk [vmem:[%s3 + $0x48] sm:$0xf] %vm2138, %v2092
  %2158 = vst.msk [vmem:[%s3 + $0x4c] sm:$0xf] %vm2138, %v2093
  %2159 = vst.msk [vmem:[%s3 + $0x50] sm:$0xf] %vm2138, %v2094
  %2160 = vst.msk [vmem:[%s3 + $0x54] sm:$0xf] %vm2138, %v2095
  %2161 = vst.msk [vmem:[%s3 + $0x58] sm:$0xf] %vm2138, %v2096
  %2162 = vst.msk [vmem:[%s3 + $0x5c] sm:$0xf] %vm2138, %v2097
  %2163 = vst.msk [vmem:[%s3 + $0x60] sm:$0xf] %vm2138, %v2098
  %2164 = vst.msk [vmem:[%s3 + $0x64] sm:$0xf] %vm2138, %v2099
  %2165 = vst.msk [vmem:[%s3 + $0x68] sm:$0xf] %vm2138, %v2100
  %2166 = vst.msk [vmem:[%s3 + $0x6c] sm:$0xf] %vm2138, %v2101
  %2167 = vst.msk [vmem:[%s3 + $0x70] sm:$0xf] %vm2138, %v2102
  %2168 = vst.msk [vmem:[%s3 + $0x74] sm:$0xf] %vm2138, %v2103
  %2169 = vst.msk [vmem:[%s3 + $0x78] sm:$0xf] %vm2138, %v2104
  %vm2170 = vcmask 253952
  %2171 = vst.msk [vmem:[%s3 + $0x7c] sm:$0x1] %vm2170, %v2105
  // Predicated region
  $region14: #{seqpred_forward.10} parent=0 // pred_check
    _
  $region15: #{seqpred_forward.10} parent=0 // pred_check_branch
    %2173 = sbr.rel (0) target = $region17
  $region16: #{seqpred_forward.10} parent=0 // pred_region
    _
  $region17: #{seqpred_forward.10} parent=0 // pred_fallthru
    _
  // Predicated region
  $region18: #{seqpred_forward.10} parent=0 // pred_check
    _
  $region19: #{seqpred_forward.10} parent=0 // pred_check_branch
    %2175 = sbr.rel (0) target = $region21
  $region20: #{seqpred_forward.10} parent=0 // pred_region
    _
  $region21: #{seqpred_forward.10} parent=0 // pred_fallthru
    _

// kernel: seqpred_forward.11
$region0: #{seqpred_forward.11}
  #allocation0 [shape = 'u32[]', space=smem, size = 0x4, offset = 0x4, fixed_abs, tag = 'smem constant byte address 0x4 - core index']
  #allocation1 [shape = 'u32[144,128]{1,0:T(1,128)}', space=vmem, size = 0x12000, scoped, tag = 'internal scratch']
  %s0 = inlined_call_operand.vmem [shape: bf16[250,864], index: 0, kind: input, shape index: {}]
  %s1 = inlined_call_operand.vmem [shape: bf16[864,32], index: 1, kind: input, shape index: {}]
  %s2 = inlined_call_operand.vmem [shape: f32[1,32], index: 2, kind: input, shape index: {}]
  %s3 = inlined_call_operand.vmem [shape: bf16[250,32], index: 3, kind: output, shape index: {}]
  %s4 = sld [smem:[#allocation0]]
  $region22: #{seqpred_forward.11} parent=0
    _
  %s6 = ssub.s32 1, %s4
  %s7 = scalar_select 0, %s6, %s4
  // Predicated region
  $region2: #{seqpred_forward.11} parent=0 // pred_check
    _
  $region3: #{seqpred_forward.11} parent=0 // pred_check_branch
    %9 = sbr.rel (0) target = $region5
  $region4: #{seqpred_forward.11} parent=0 // pred_region
    _
  $region5: #{seqpred_forward.11} parent=0 // pred_fallthru
    _
  // Predicated region
  $region6: #{seqpred_forward.11} parent=0 // pred_check
    _
  $region7: #{seqpred_forward.11} parent=0 // pred_check_branch
    %11 = sbr.rel (0) target = $region9
  $region8: #{seqpred_forward.11} parent=0 // pred_region
    _
  $region9: #{seqpred_forward.11} parent=0 // pred_fallthru
    _
  // Predicated region
  $region10: #{seqpred_forward.11} parent=0 // pred_check
    _
  $region11: #{seqpred_forward.11} parent=0 // pred_check_branch
    %13 = sbr.rel (0) target = $region13
  $region12: #{seqpred_forward.11} parent=0 // pred_region
    _
  $region13: #{seqpred_forward.11} parent=0 // pred_fallthru
    _
  %v15 = vld [vmem:[%s0] sm:$0xff]
  %v16 = vld [vmem:[%s0 + $0x8] sm:$0xff]
  %v17 = vld [vmem:[%s0 + $0x10] sm:$0xff]
  %v18 = vld [vmem:[%s0 + $0x18] sm:$0xf]
  %v19 = vld [vmem:[%s0 + $0x1c] sm:$0xff]
  %v20 = vld [vmem:[%s0 + $0x24] sm:$0xff]
  %v21 = vld [vmem:[%s0 + $0x2c] sm:$0xff]
  %v22 = vld [vmem:[%s0 + $0x34] sm:$0xf]
  %v23 = vld [vmem:[%s0 + $0x38] sm:$0xff]
  %v24 = vld [vmem:[%s0 + $0x40] sm:$0xff]
  %v25 = vld [vmem:[%s0 + $0x48] sm:$0xff]
  %v26 = vld [vmem:[%s0 + $0x50] sm:$0xf]
  %v27 = vld [vmem:[%s0 + $0x54] sm:$0xff]
  %v28 = vld [vmem:[%s0 + $0x5c] sm:$0xff]
  %v29 = vld [vmem:[%s0 + $0x64] sm:$0xff]
  %v30 = vld [vmem:[%s0 + $0x6c] sm:$0xf]
  %v31 = vld [vmem:[%s0 + $0x70] sm:$0xff]
  %v32 = vld [vmem:[%s0 + $0x78] sm:$0xff]
  %v33 = vld [vmem:[%s0 + $0x80] sm:$0xff]
  %v34 = vld [vmem:[%s0 + $0x88] sm:$0xf]
  %v35 = vld [vmem:[%s0 + $0x8c] sm:$0xff]
  %v36 = vld [vmem:[%s0 + $0x94] sm:$0xff]
  %v37 = vld [vmem:[%s0 + $0x9c] sm:$0xff]
  %v38 = vld [vmem:[%s0 + $0xa4] sm:$0xf]
  %v39 = vld [vmem:[%s0 + $0xa8] sm:$0xff]
  %v40 = vld [vmem:[%s0 + $0xb0] sm:$0xff]
  %v41 = vld [vmem:[%s0 + $0xb8] sm:$0xff]
  %v42 = vld [vmem:[%s0 + $0xc0] sm:$0xf]
  %v43 = vld [vmem:[%s0 + $0xc4] sm:$0xff]
  %v44 = vld [vmem:[%s0 + $0xcc] sm:$0xff]
  %v45 = vld [vmem:[%s0 + $0xd4] sm:$0xff]
  %v46 = vld [vmem:[%s0 + $0xdc] sm:$0xf]
  %v47 = vld [vmem:[%s0 + $0xe0] sm:$0xff]
  %v48 = vld [vmem:[%s0 + $0xe8] sm:$0xff]
  %v49 = vld [vmem:[%s0 + $0xf0] sm:$0xff]
  %v50 = vld [vmem:[%s0 + $0xf8] sm:$0xf]
  %v51 = vld [vmem:[%s0 + $0xfc] sm:$0xff]
  %v52 = vld [vmem:[%s0 + $0x104] sm:$0xff]
  %v53 = vld [vmem:[%s0 + $0x10c] sm:$0xff]
  %v54 = vld [vmem:[%s0 + $0x114] sm:$0xf]
  %v55 = vld [vmem:[%s0 + $0x118] sm:$0xff]
  %v56 = vld [vmem:[%s0 + $0x120] sm:$0xff]
  %v57 = vld [vmem:[%s0 + $0x128] sm:$0xff]
  %v58 = vld [vmem:[%s0 + $0x130] sm:$0xf]
  %v59 = vld [vmem:[%s0 + $0x134] sm:$0xff]
  %v60 = vld [vmem:[%s0 + $0x13c] sm:$0xff]
  %v61 = vld [vmem:[%s0 + $0x144] sm:$0xff]
  %v62 = vld [vmem:[%s0 + $0x14c] sm:$0xf]
  %v63 = vld [vmem:[%s0 + $0x150] sm:$0xff]
  %v64 = vld [vmem:[%s0 + $0x158] sm:$0xff]
  %v65 = vld [vmem:[%s0 + $0x160] sm:$0xff]
  %v66 = vld [vmem:[%s0 + $0x168] sm:$0xf]
  %v67 = vld [vmem:[%s0 + $0x16c] sm:$0xff]
  %v68 = vld [vmem:[%s0 + $0x174] sm:$0xff]
  %v69 = vld [vmem:[%s0 + $0x17c] sm:$0xff]
  %v70 = vld [vmem:[%s0 + $0x184] sm:$0xf]
  %v71 = vld [vmem:[%s0 + $0x188] sm:$0xff]
  %v72 = vld [vmem:[%s0 + $0x190] sm:$0xff]
  %v73 = vld [vmem:[%s0 + $0x198] sm:$0xff]
  %v74 = vld [vmem:[%s0 + $0x1a0] sm:$0xf]
  %v75 = vld [vmem:[%s0 + $0x1a4] sm:$0xff]
  %v76 = vld [vmem:[%s0 + $0x1ac] sm:$0xff]
  %v77 = vld [vmem:[%s0 + $0x1b4] sm:$0xff]
  %v78 = vld [vmem:[%s0 + $0x1bc] sm:$0xf]
  %v79 = vld [vmem:[%s0 + $0x1c0] sm:$0xff]
  %v80 = vld [vmem:[%s0 + $0x1c8] sm:$0xff]
  %v81 = vld [vmem:[%s0 + $0x1d0] sm:$0xff]
  %v82 = vld [vmem:[%s0 + $0x1d8] sm:$0xf]
  %v83 = vld [vmem:[%s0 + $0x1dc] sm:$0xff]
  %v84 = vld [vmem:[%s0 + $0x1e4] sm:$0xff]
  %v85 = vld [vmem:[%s0 + $0x1ec] sm:$0xff]
  %v86 = vld [vmem:[%s0 + $0x1f4] sm:$0xf]
  %v87 = vld [vmem:[%s0 + $0x1f8] sm:$0xff]
  %v88 = vld [vmem:[%s0 + $0x200] sm:$0xff]
  %v89 = vld [vmem:[%s0 + $0x208] sm:$0xff]
  %v90 = vld [vmem:[%s0 + $0x210] sm:$0xf]
  %v91 = vld [vmem:[%s0 + $0x214] sm:$0xff]
  %v92 = vld [vmem:[%s0 + $0x21c] sm:$0xff]
  %v93 = vld [vmem:[%s0 + $0x224] sm:$0xff]
  %v94 = vld [vmem:[%s0 + $0x22c] sm:$0xf]
  %v95 = vld [vmem:[%s0 + $0x230] sm:$0xff]
  %v96 = vld [vmem:[%s0 + $0x238] sm:$0xff]
  %v97 = vld [vmem:[%s0 + $0x240] sm:$0xff]
  %v98 = vld [vmem:[%s0 + $0x248] sm:$0xf]
  %v99 = vld [vmem:[%s0 + $0x24c] sm:$0xff]
  %v100 = vld [vmem:[%s0 + $0x254] sm:$0xff]
  %v101 = vld [vmem:[%s0 + $0x25c] sm:$0xff]
  %v102 = vld [vmem:[%s0 + $0x264] sm:$0xf]
  %v103 = vld [vmem:[%s0 + $0x268] sm:$0xff]
  %v104 = vld [vmem:[%s0 + $0x270] sm:$0xff]
  %v105 = vld [vmem:[%s0 + $0x278] sm:$0xff]
  %v106 = vld [vmem:[%s0 + $0x280] sm:$0xf]
  %v107 = vld [vmem:[%s0 + $0x284] sm:$0xff]
  %v108 = vld [vmem:[%s0 + $0x28c] sm:$0xff]
  %v109 = vld [vmem:[%s0 + $0x294] sm:$0xff]
  %v110 = vld [vmem:[%s0 + $0x29c] sm:$0xf]
  %v111 = vld [vmem:[%s0 + $0x2a0] sm:$0xff]
  %v112 = vld [vmem:[%s0 + $0x2a8] sm:$0xff]
  %v113 = vld [vmem:[%s0 + $0x2b0] sm:$0xff]
  %v114 = vld [vmem:[%s0 + $0x2b8] sm:$0xf]
  %v115 = vld [vmem:[%s0 + $0x2bc] sm:$0xff]
  %v116 = vld [vmem:[%s0 + $0x2c4] sm:$0xff]
  %v117 = vld [vmem:[%s0 + $0x2cc] sm:$0xff]
  %v118 = vld [vmem:[%s0 + $0x2d4] sm:$0xf]
  %v119 = vld [vmem:[%s0 + $0x2d8] sm:$0xff]
  %v120 = vld [vmem:[%s0 + $0x2e0] sm:$0xff]
  %v121 = vld [vmem:[%s0 + $0x2e8] sm:$0xff]
  %v122 = vld [vmem:[%s0 + $0x2f0] sm:$0xf]
  %v123 = vld [vmem:[%s0 + $0x2f4] sm:$0xff]
  %v124 = vld [vmem:[%s0 + $0x2fc] sm:$0xff]
  %v125 = vld [vmem:[%s0 + $0x304] sm:$0xff]
  %v126 = vld [vmem:[%s0 + $0x30c] sm:$0xf]
  %v127 = vld [vmem:[%s0 + $0x310] sm:$0xff]
  %v128 = vld [vmem:[%s0 + $0x318] sm:$0xff]
  %v129 = vld [vmem:[%s0 + $0x320] sm:$0xff]
  %v130 = vld [vmem:[%s0 + $0x328] sm:$0xf]
  %v131 = vld [vmem:[%s0 + $0x32c] sm:$0xff]
  %v132 = vld [vmem:[%s0 + $0x334] sm:$0xff]
  %v133 = vld [vmem:[%s0 + $0x33c] sm:$0xff]
  %v134 = vld [vmem:[%s0 + $0x344] sm:$0xf]
  %v135 = vld [vmem:[%s0 + $0x348] sm:$0xff]
  %v136 = vld [vmem:[%s0 + $0x350] sm:$0xff]
  %v137 = vld [vmem:[%s0 + $0x358] sm:$0xff]
  %v138 = vld [vmem:[%s0 + $0x360] sm:$0xf]
  %v139 = vld [vmem:[%s0 + $0x364] sm:$0x11]
  %v140 = vld [vmem:[%s0 + $0x36c] sm:$0x11]
  %v141 = vld [vmem:[%s0 + $0x374] sm:$0x11]
  %v142 = vld [vmem:[%s0 + $0x37c] sm:$0x1]
  %v143 = vld [vmem:[%s1] sm:$0xf]
  %v144 = vld [vmem:[%s1 + $0x4] sm:$0xf]
  %v145 = vld [vmem:[%s1 + $0x8] sm:$0xf]
  %v146 = vld [vmem:[%s1 + $0xc] sm:$0xf]
  %v147 = vld [vmem:[%s1 + $0x10] sm:$0xf]
  %v148 = vld [vmem:[%s1 + $0x14] sm:$0xf]
  %v149 = vld [vmem:[%s1 + $0x18] sm:$0xf]
  %v150 = vld [vmem:[%s1 + $0x1c] sm:$0xf]
  %v151 = vld [vmem:[%s1 + $0x20] sm:$0xf]
  %v152 = vld [vmem:[%s1 + $0x24] sm:$0xf]
  %v153 = vld [vmem:[%s1 + $0x28] sm:$0xf]
  %v154 = vld [vmem:[%s1 + $0x2c] sm:$0xf]
  %v155 = vld [vmem:[%s1 + $0x30] sm:$0xf]
  %v156 = vld [vmem:[%s1 + $0x34] sm:$0xf]
  %v157 = vld [vmem:[%s1 + $0x38] sm:$0xf]
  %v158 = vld [vmem:[%s1 + $0x3c] sm:$0xf]
  %v159 = vld [vmem:[%s1 + $0x40] sm:$0xf]
  %v160 = vld [vmem:[%s1 + $0x44] sm:$0xf]
  %v161 = vld [vmem:[%s1 + $0x48] sm:$0xf]
  %v162 = vld [vmem:[%s1 + $0x4c] sm:$0xf]
  %v163 = vld [vmem:[%s1 + $0x50] sm:$0xf]
  %v164 = vld [vmem:[%s1 + $0x54] sm:$0xf]
  %v165 = vld [vmem:[%s1 + $0x58] sm:$0xf]
  %v166 = vld [vmem:[%s1 + $0x5c] sm:$0xf]
  %v167 = vld [vmem:[%s1 + $0x60] sm:$0xf]
  %v168 = vld [vmem:[%s1 + $0x64] sm:$0xf]
  %v169 = vld [vmem:[%s1 + $0x68] sm:$0xf]
  %v170 = vld [vmem:[%s1 + $0x6c] sm:$0xf]
  %v171 = vld [vmem:[%s1 + $0x70] sm:$0xf]
  %v172 = vld [vmem:[%s1 + $0x74] sm:$0xf]
  %v173 = vld [vmem:[%s1 + $0x78] sm:$0xf]
  %v174 = vld [vmem:[%s1 + $0x7c] sm:$0xf]
  %v175 = vld [vmem:[%s1 + $0x80] sm:$0xf]
  %v176 = vld [vmem:[%s1 + $0x84] sm:$0xf]
  %v177 = vld [vmem:[%s1 + $0x88] sm:$0xf]
  %v178 = vld [vmem:[%s1 + $0x8c] sm:$0xf]
  %v179 = vld [vmem:[%s1 + $0x90] sm:$0xf]
  %v180 = vld [vmem:[%s1 + $0x94] sm:$0xf]
  %v181 = vld [vmem:[%s1 + $0x98] sm:$0xf]
  %v182 = vld [vmem:[%s1 + $0x9c] sm:$0xf]
  %v183 = vld [vmem:[%s1 + $0xa0] sm:$0xf]
  %v184 = vld [vmem:[%s1 + $0xa4] sm:$0xf]
  %v185 = vld [vmem:[%s1 + $0xa8] sm:$0xf]
  %v186 = vld [vmem:[%s1 + $0xac] sm:$0xf]
  %v187 = vld [vmem:[%s1 + $0xb0] sm:$0xf]
  %v188 = vld [vmem:[%s1 + $0xb4] sm:$0xf]
  %v189 = vld [vmem:[%s1 + $0xb8] sm:$0xf]
  %v190 = vld [vmem:[%s1 + $0xbc] sm:$0xf]
  %v191 = vld [vmem:[%s1 + $0xc0] sm:$0xf]
  %v192 = vld [vmem:[%s1 + $0xc4] sm:$0xf]
  %v193 = vld [vmem:[%s1 + $0xc8] sm:$0xf]
  %v194 = vld [vmem:[%s1 + $0xcc] sm:$0xf]
  %v195 = vld [vmem:[%s1 + $0xd0] sm:$0xf]
  %v196 = vld [vmem:[%s1 + $0xd4] sm:$0xf]
  %v197 = vld [vmem:[%s1 + $0xd8] sm:$0xf]
  %v198 = vld [vmem:[%s1 + $0xdc] sm:$0xf]
  %v199 = vld [vmem:[%s1 + $0xe0] sm:$0xf]
  %v200 = vld [vmem:[%s1 + $0xe4] sm:$0xf]
  %v201 = vld [vmem:[%s1 + $0xe8] sm:$0xf]
  %v202 = vld [vmem:[%s1 + $0xec] sm:$0xf]
  %v203 = vld [vmem:[%s1 + $0xf0] sm:$0xf]
  %v204 = vld [vmem:[%s1 + $0xf4] sm:$0xf]
  %v205 = vld [vmem:[%s1 + $0xf8] sm:$0xf]
  %v206 = vld [vmem:[%s1 + $0xfc] sm:$0xf]
  %v207 = vld [vmem:[%s1 + $0x100] sm:$0xf]
  %v208 = vld [vmem:[%s1 + $0x104] sm:$0xf]
  %v209 = vld [vmem:[%s1 + $0x108] sm:$0xf]
  %v210 = vld [vmem:[%s1 + $0x10c] sm:$0xf]
  %v211 = vld [vmem:[%s1 + $0x110] sm:$0xf]
  %v212 = vld [vmem:[%s1 + $0x114] sm:$0xf]
  %v213 = vld [vmem:[%s1 + $0x118] sm:$0xf]
  %v214 = vld [vmem:[%s1 + $0x11c] sm:$0xf]
  %v215 = vld [vmem:[%s1 + $0x120] sm:$0xf]
  %v216 = vld [vmem:[%s1 + $0x124] sm:$0xf]
  %v217 = vld [vmem:[%s1 + $0x128] sm:$0xf]
  %v218 = vld [vmem:[%s1 + $0x12c] sm:$0xf]
  %v219 = vld [vmem:[%s1 + $0x130] sm:$0xf]
  %v220 = vld [vmem:[%s1 + $0x134] sm:$0xf]
  %v221 = vld [vmem:[%s1 + $0x138] sm:$0xf]
  %v222 = vld [vmem:[%s1 + $0x13c] sm:$0xf]
  %v223 = vld [vmem:[%s1 + $0x140] sm:$0xf]
  %v224 = vld [vmem:[%s1 + $0x144] sm:$0xf]
  %v225 = vld [vmem:[%s1 + $0x148] sm:$0xf]
  %v226 = vld [vmem:[%s1 + $0x14c] sm:$0xf]
  %v227 = vld [vmem:[%s1 + $0x150] sm:$0xf]
  %v228 = vld [vmem:[%s1 + $0x154] sm:$0xf]
  %v229 = vld [vmem:[%s1 + $0x158] sm:$0xf]
  %v230 = vld [vmem:[%s1 + $0x15c] sm:$0xf]
  %v231 = vld [vmem:[%s1 + $0x160] sm:$0xf]
  %v232 = vld [vmem:[%s1 + $0x164] sm:$0xf]
  %v233 = vld [vmem:[%s1 + $0x168] sm:$0xf]
  %v234 = vld [vmem:[%s1 + $0x16c] sm:$0xf]
  %v235 = vld [vmem:[%s1 + $0x170] sm:$0xf]
  %v236 = vld [vmem:[%s1 + $0x174] sm:$0xf]
  %v237 = vld [vmem:[%s1 + $0x178] sm:$0xf]
  %v238 = vld [vmem:[%s1 + $0x17c] sm:$0xf]
  %v239 = vld [vmem:[%s1 + $0x180] sm:$0xf]
  %v240 = vld [vmem:[%s1 + $0x184] sm:$0xf]
  %v241 = vld [vmem:[%s1 + $0x188] sm:$0xf]
  %v242 = vld [vmem:[%s1 + $0x18c] sm:$0xf]
  %v243 = vld [vmem:[%s1 + $0x190] sm:$0xf]
  %v244 = vld [vmem:[%s1 + $0x194] sm:$0xf]
  %v245 = vld [vmem:[%s1 + $0x198] sm:$0xf]
  %v246 = vld [vmem:[%s1 + $0x19c] sm:$0xf]
  %v247 = vld [vmem:[%s1 + $0x1a0] sm:$0xf]
  %v248 = vld [vmem:[%s1 + $0x1a4] sm:$0xf]
  %v249 = vld [vmem:[%s1 + $0x1a8] sm:$0xf]
  %v250 = vld [vmem:[%s1 + $0x1ac] sm:$0xf]
  %v251 = vld [vmem:[%s2] sm:$0x1]
  %v253 = vlaneseq
  %v254 = vshrl.u32 %v253, 7
  %v255 = vsub.s32 0, %v254
  %v256 = vrot.slane %v251, %v255
  %v386 = vunpack.c.l.b16 %v15
  %v387 = vunpack.c.h.b16 %v15
  %v388 = vunpack.c.l.b16 %v16
  %v389 = vunpack.c.h.b16 %v16
  %v390 = vunpack.c.l.b16 %v17
  %v391 = vunpack.c.h.b16 %v17
  %v392 = vunpack.c.l.b16 %v18
  %v393 = vunpack.c.l.b16 %v19
  %v394 = vunpack.c.h.b16 %v19
  %v395 = vunpack.c.l.b16 %v20
  %v396 = vunpack.c.h.b16 %v20
  %v397 = vunpack.c.l.b16 %v21
  %v398 = vunpack.c.h.b16 %v21
  %v399 = vunpack.c.l.b16 %v22
  %v400 = vunpack.c.l.b16 %v23
  %v401 = vunpack.c.h.b16 %v23
  %v402 = vunpack.c.l.b16 %v24
  %v403 = vunpack.c.h.b16 %v24
  %v404 = vunpack.c.l.b16 %v25
  %v405 = vunpack.c.h.b16 %v25
  %v406 = vunpack.c.l.b16 %v26
  %v407 = vunpack.c.l.b16 %v27
  %v408 = vunpack.c.h.b16 %v27
  %v409 = vunpack.c.l.b16 %v28
  %v410 = vunpack.c.h.b16 %v28
  %v411 = vunpack.c.l.b16 %v29
  %v412 = vunpack.c.h.b16 %v29
  %v413 = vunpack.c.l.b16 %v30
  %v414 = vunpack.c.l.b16 %v31
  %v415 = vunpack.c.h.b16 %v31
  %v416 = vunpack.c.l.b16 %v32
  %v417 = vunpack.c.h.b16 %v32
  %v418 = vunpack.c.l.b16 %v33
  %v419 = vunpack.c.h.b16 %v33
  %v420 = vunpack.c.l.b16 %v34
  %v421 = vunpack.c.l.b16 %v35
  %v422 = vunpack.c.h.b16 %v35
  %v423 = vunpack.c.l.b16 %v36
  %v424 = vunpack.c.h.b16 %v36
  %v425 = vunpack.c.l.b16 %v37
  %v426 = vunpack.c.h.b16 %v37
  %v427 = vunpack.c.l.b16 %v38
  %v428 = vunpack.c.l.b16 %v39
  %v429 = vunpack.c.h.b16 %v39
  %v430 = vunpack.c.l.b16 %v40
  %v431 = vunpack.c.h.b16 %v40
  %v432 = vunpack.c.l.b16 %v41
  %v433 = vunpack.c.h.b16 %v41
  %v434 = vunpack.c.l.b16 %v42
  %v435 = vunpack.c.l.b16 %v43
  %v436 = vunpack.c.h.b16 %v43
  %v437 = vunpack.c.l.b16 %v44
  %v438 = vunpack.c.h.b16 %v44
  %v439 = vunpack.c.l.b16 %v45
  %v440 = vunpack.c.h.b16 %v45
  %v441 = vunpack.c.l.b16 %v46
  %v442 = vunpack.c.l.b16 %v47
  %v443 = vunpack.c.h.b16 %v47
  %v444 = vunpack.c.l.b16 %v48
  %v445 = vunpack.c.h.b16 %v48
  %v446 = vunpack.c.l.b16 %v49
  %v447 = vunpack.c.h.b16 %v49
  %v448 = vunpack.c.l.b16 %v50
  %v449 = vunpack.c.l.b16 %v51
  %v450 = vunpack.c.h.b16 %v51
  %v451 = vunpack.c.l.b16 %v52
  %v452 = vunpack.c.h.b16 %v52
  %v453 = vunpack.c.l.b16 %v53
  %v454 = vunpack.c.h.b16 %v53
  %v455 = vunpack.c.l.b16 %v54
  %v456 = vunpack.c.l.b16 %v55
  %v457 = vunpack.c.h.b16 %v55
  %v458 = vunpack.c.l.b16 %v56
  %v459 = vunpack.c.h.b16 %v56
  %v460 = vunpack.c.l.b16 %v57
  %v461 = vunpack.c.h.b16 %v57
  %v462 = vunpack.c.l.b16 %v58
  %v463 = vunpack.c.l.b16 %v59
  %v464 = vunpack.c.h.b16 %v59
  %v465 = vunpack.c.l.b16 %v60
  %v466 = vunpack.c.h.b16 %v60
  %v467 = vunpack.c.l.b16 %v61
  %v468 = vunpack.c.h.b16 %v61
  %v469 = vunpack.c.l.b16 %v62
  %v470 = vunpack.c.l.b16 %v63
  %v471 = vunpack.c.h.b16 %v63
  %v472 = vunpack.c.l.b16 %v64
  %v473 = vunpack.c.h.b16 %v64
  %v474 = vunpack.c.l.b16 %v65
  %v475 = vunpack.c.h.b16 %v65
  %v476 = vunpack.c.l.b16 %v66
  %v477 = vunpack.c.l.b16 %v67
  %v478 = vunpack.c.h.b16 %v67
  %v479 = vunpack.c.l.b16 %v68
  %v480 = vunpack.c.h.b16 %v68
  %v481 = vunpack.c.l.b16 %v69
  %v482 = vunpack.c.h.b16 %v69
  %v483 = vunpack.c.l.b16 %v70
  %v484 = vunpack.c.l.b16 %v71
  %v485 = vunpack.c.h.b16 %v71
  %v486 = vunpack.c.l.b16 %v72
  %v487 = vunpack.c.h.b16 %v72
  %v488 = vunpack.c.l.b16 %v73
  %v489 = vunpack.c.h.b16 %v73
  %v490 = vunpack.c.l.b16 %v74
  %v491 = vunpack.c.l.b16 %v75
  %v492 = vunpack.c.h.b16 %v75
  %v493 = vunpack.c.l.b16 %v76
  %v494 = vunpack.c.h.b16 %v76
  %v495 = vunpack.c.l.b16 %v77
  %v496 = vunpack.c.h.b16 %v77
  %v497 = vunpack.c.l.b16 %v78
  %v498 = vunpack.c.l.b16 %v79
  %v499 = vunpack.c.h.b16 %v79
  %v500 = vunpack.c.l.b16 %v80
  %v501 = vunpack.c.h.b16 %v80
  %v502 = vunpack.c.l.b16 %v81
  %v503 = vunpack.c.h.b16 %v81
  %v504 = vunpack.c.l.b16 %v82
  %v505 = vunpack.c.l.b16 %v83
  %v506 = vunpack.c.h.b16 %v83
  %v507 = vunpack.c.l.b16 %v84
  %v508 = vunpack.c.h.b16 %v84
  %v509 = vunpack.c.l.b16 %v85
  %v510 = vunpack.c.h.b16 %v85
  %v511 = vunpack.c.l.b16 %v86
  %v512 = vunpack.c.l.b16 %v87
  %v513 = vunpack.c.h.b16 %v87
  %v514 = vunpack.c.l.b16 %v88
  %v515 = vunpack.c.h.b16 %v88
  %v516 = vunpack.c.l.b16 %v89
  %v517 = vunpack.c.h.b16 %v89
  %v518 = vunpack.c.l.b16 %v90
  %v519 = vunpack.c.l.b16 %v91
  %v520 = vunpack.c.h.b16 %v91
  %v521 = vunpack.c.l.b16 %v92
  %v522 = vunpack.c.h.b16 %v92
  %v523 = vunpack.c.l.b16 %v93
  %v524 = vunpack.c.h.b16 %v93
  %v525 = vunpack.c.l.b16 %v94
  %v526 = vunpack.c.l.b16 %v95
  %v527 = vunpack.c.h.b16 %v95
  %v528 = vunpack.c.l.b16 %v96
  %v529 = vunpack.c.h.b16 %v96
  %v530 = vunpack.c.l.b16 %v97
  %v531 = vunpack.c.h.b16 %v97
  %v532 = vunpack.c.l.b16 %v98
  %v533 = vunpack.c.l.b16 %v99
  %v534 = vunpack.c.h.b16 %v99
  %v535 = vunpack.c.l.b16 %v100
  %v536 = vunpack.c.h.b16 %v100
  %v537 = vunpack.c.l.b16 %v101
  %v538 = vunpack.c.h.b16 %v101
  %v539 = vunpack.c.l.b16 %v102
  %v540 = vunpack.c.l.b16 %v103
  %v541 = vunpack.c.h.b16 %v103
  %v542 = vunpack.c.l.b16 %v104
  %v543 = vunpack.c.h.b16 %v104
  %v544 = vunpack.c.l.b16 %v105
  %v545 = vunpack.c.h.b16 %v105
  %v546 = vunpack.c.l.b16 %v106
  %v547 = vunpack.c.l.b16 %v107
  %v548 = vunpack.c.h.b16 %v107
  %v549 = vunpack.c.l.b16 %v108
  %v550 = vunpack.c.h.b16 %v108
  %v551 = vunpack.c.l.b16 %v109
  %v552 = vunpack.c.h.b16 %v109
  %v553 = vunpack.c.l.b16 %v110
  %v554 = vunpack.c.l.b16 %v111
  %v555 = vunpack.c.h.b16 %v111
  %v556 = vunpack.c.l.b16 %v112
  %v557 = vunpack.c.h.b16 %v112
  %v558 = vunpack.c.l.b16 %v113
  %v559 = vunpack.c.h.b16 %v113
  %v560 = vunpack.c.l.b16 %v114
  %v561 = vunpack.c.l.b16 %v115
  %v562 = vunpack.c.h.b16 %v115
  %v563 = vunpack.c.l.b16 %v116
  %v564 = vunpack.c.h.b16 %v116
  %v565 = vunpack.c.l.b16 %v117
  %v566 = vunpack.c.h.b16 %v117
  %v567 = vunpack.c.l.b16 %v118
  %v568 = vunpack.c.l.b16 %v119
  %v569 = vunpack.c.h.b16 %v119
  %v570 = vunpack.c.l.b16 %v120
  %v571 = vunpack.c.h.b16 %v120
  %v572 = vunpack.c.l.b16 %v121
  %v573 = vunpack.c.h.b16 %v121
  %v574 = vunpack.c.l.b16 %v122
  %v575 = vunpack.c.l.b16 %v123
  %v576 = vunpack.c.h.b16 %v123
  %v577 = vunpack.c.l.b16 %v124
  %v578 = vunpack.c.h.b16 %v124
  %v579 = vunpack.c.l.b16 %v125
  %v580 = vunpack.c.h.b16 %v125
  %v581 = vunpack.c.l.b16 %v126
  %v582 = vunpack.c.l.b16 %v127
  %v583 = vunpack.c.h.b16 %v127
  %v584 = vunpack.c.l.b16 %v128
  %v585 = vunpack.c.h.b16 %v128
  %v586 = vunpack.c.l.b16 %v129
  %v587 = vunpack.c.h.b16 %v129
  %v588 = vunpack.c.l.b16 %v130
  %v589 = vunpack.c.l.b16 %v131
  %v590 = vunpack.c.h.b16 %v131
  %v591 = vunpack.c.l.b16 %v132
  %v592 = vunpack.c.h.b16 %v132
  %v593 = vunpack.c.l.b16 %v133
  %v594 = vunpack.c.h.b16 %v133
  %v595 = vunpack.c.l.b16 %v134
  %v596 = vunpack.c.l.b16 %v135
  %v597 = vunpack.c.h.b16 %v135
  %v598 = vunpack.c.l.b16 %v136
  %v599 = vunpack.c.h.b16 %v136
  %v600 = vunpack.c.l.b16 %v137
  %v601 = vunpack.c.h.b16 %v137
  %v602 = vunpack.c.l.b16 %v138
  %v603 = vunpack.c.l.b16 %v139
  %v604 = vunpack.c.h.b16 %v139
  %v605 = vunpack.c.l.b16 %v140
  %v606 = vunpack.c.h.b16 %v140
  %v607 = vunpack.c.l.b16 %v141
  %v608 = vunpack.c.h.b16 %v141
  %v609 = vunpack.c.l.b16 %v142
  %v610 = vpack.c.b16 %v393, %v386
  %v611 = vpack.c.b16 %v394, %v387
  %v612 = vpack.c.b16 %v395, %v388
  %v613 = vpack.c.b16 %v396, %v389
  %v614 = vpack.c.b16 %v397, %v390
  %v615 = vpack.c.b16 %v398, %v391
  %v616 = vpack.c.b16 %v399, %v392
  %v617 = vpack.c.b16 %v407, %v400
  %v618 = vpack.c.b16 %v408, %v401
  %v619 = vpack.c.b16 %v409, %v402
  %v620 = vpack.c.b16 %v410, %v403
  %v621 = vpack.c.b16 %v411, %v404
  %v622 = vpack.c.b16 %v412, %v405
  %v623 = vpack.c.b16 %v413, %v406
  %v624 = vpack.c.b16 %v421, %v414
  %v625 = vpack.c.b16 %v422, %v415
  %v626 = vpack.c.b16 %v423, %v416
  %v627 = vpack.c.b16 %v424, %v417
  %v628 = vpack.c.b16 %v425, %v418
  %v629 = vpack.c.b16 %v426, %v419
  %v630 = vpack.c.b16 %v427, %v420
  %v631 = vpack.c.b16 %v435, %v428
  %v632 = vpack.c.b16 %v436, %v429
  %v633 = vpack.c.b16 %v437, %v430
  %v634 = vpack.c.b16 %v438, %v431
  %v635 = vpack.c.b16 %v439, %v432
  %v636 = vpack.c.b16 %v440, %v433
  %v637 = vpack.c.b16 %v441, %v434
  %v638 = vpack.c.b16 %v449, %v442
  %v639 = vpack.c.b16 %v450, %v443
  %v640 = vpack.c.b16 %v451, %v444
  %v641 = vpack.c.b16 %v452, %v445
  %v642 = vpack.c.b16 %v453, %v446
  %v643 = vpack.c.b16 %v454, %v447
  %v644 = vpack.c.b16 %v455, %v448
  %v645 = vpack.c.b16 %v463, %v456
  %v646 = vpack.c.b16 %v464, %v457
  %v647 = vpack.c.b16 %v465, %v458
  %v648 = vpack.c.b16 %v466, %v459
  %v649 = vpack.c.b16 %v467, %v460
  %v650 = vpack.c.b16 %v468, %v461
  %v651 = vpack.c.b16 %v469, %v462
  %v652 = vpack.c.b16 %v477, %v470
  %v653 = vpack.c.b16 %v478, %v471
  %v654 = vpack.c.b16 %v479, %v472
  %v655 = vpack.c.b16 %v480, %v473
  %v656 = vpack.c.b16 %v481, %v474
  %v657 = vpack.c.b16 %v482, %v475
  %v658 = vpack.c.b16 %v483, %v476
  %v659 = vpack.c.b16 %v491, %v484
  %v660 = vpack.c.b16 %v492, %v485
  %v661 = vpack.c.b16 %v493, %v486
  %v662 = vpack.c.b16 %v494, %v487
  %v663 = vpack.c.b16 %v495, %v488
  %v664 = vpack.c.b16 %v496, %v489
  %v665 = vpack.c.b16 %v497, %v490
  %v666 = vpack.c.b16 %v505, %v498
  %v667 = vpack.c.b16 %v506, %v499
  %v668 = vpack.c.b16 %v507, %v500
  %v669 = vpack.c.b16 %v508, %v501
  %v670 = vpack.c.b16 %v509, %v502
  %v671 = vpack.c.b16 %v510, %v503
  %v672 = vpack.c.b16 %v511, %v504
  %v673 = vpack.c.b16 %v519, %v512
  %v674 = vpack.c.b16 %v520, %v513
  %v675 = vpack.c.b16 %v521, %v514
  %v676 = vpack.c.b16 %v522, %v515
  %v677 = vpack.c.b16 %v523, %v516
  %v678 = vpack.c.b16 %v524, %v517
  %v679 = vpack.c.b16 %v525, %v518
  %v680 = vpack.c.b16 %v533, %v526
  %v681 = vpack.c.b16 %v534, %v527
  %v682 = vpack.c.b16 %v535, %v528
  %v683 = vpack.c.b16 %v536, %v529
  %v684 = vpack.c.b16 %v537, %v530
  %v685 = vpack.c.b16 %v538, %v531
  %v686 = vpack.c.b16 %v539, %v532
  %v687 = vpack.c.b16 %v547, %v540
  %v688 = vpack.c.b16 %v548, %v541
  %v689 = vpack.c.b16 %v549, %v542
  %v690 = vpack.c.b16 %v550, %v543
  %v691 = vpack.c.b16 %v551, %v544
  %v692 = vpack.c.b16 %v552, %v545
  %v693 = vpack.c.b16 %v553, %v546
  %v694 = vpack.c.b16 %v561, %v554
  %v695 = vpack.c.b16 %v562, %v555
  %v696 = vpack.c.b16 %v563, %v556
  %v697 = vpack.c.b16 %v564, %v557
  %v698 = vpack.c.b16 %v565, %v558
  %v699 = vpack.c.b16 %v566, %v559
  %v700 = vpack.c.b16 %v567, %v560
  %v701 = vpack.c.b16 %v575, %v568
  %v702 = vpack.c.b16 %v576, %v569
  %v703 = vpack.c.b16 %v577, %v570
  %v704 = vpack.c.b16 %v578, %v571
  %v705 = vpack.c.b16 %v579, %v572
  %v706 = vpack.c.b16 %v580, %v573
  %v707 = vpack.c.b16 %v581, %v574
  %v708 = vpack.c.b16 %v589, %v582
  %v709 = vpack.c.b16 %v590, %v583
  %v710 = vpack.c.b16 %v591, %v584
  %v711 = vpack.c.b16 %v592, %v585
  %v712 = vpack.c.b16 %v593, %v586
  %v713 = vpack.c.b16 %v594, %v587
  %v714 = vpack.c.b16 %v595, %v588
  %v715 = vpack.c.b16 %v603, %v596
  %v716 = vpack.c.b16 %v604, %v597
  %v717 = vpack.c.b16 %v605, %v598
  %v718 = vpack.c.b16 %v606, %v599
  %v719 = vpack.c.b16 %v607, %v600
  %v720 = vpack.c.b16 %v608, %v601
  %v721 = vpack.c.b16 %v609, %v602
  %v926 = vunpack.c.l.b16 %v143
  %v927 = vunpack.c.l.b16 %v144
  %v928 = vunpack.c.l.b16 %v145
  %v929 = vunpack.c.l.b16 %v146
  %v930 = vunpack.c.l.b16 %v147
  %v931 = vunpack.c.l.b16 %v148
  %v932 = vunpack.c.l.b16 %v149
  %v933 = vunpack.c.l.b16 %v150
  %v934 = vunpack.c.l.b16 %v151
  %v935 = vunpack.c.l.b16 %v152
  %v936 = vunpack.c.l.b16 %v153
  %v937 = vunpack.c.l.b16 %v154
  %v938 = vunpack.c.l.b16 %v155
  %v939 = vunpack.c.l.b16 %v156
  %v940 = vunpack.c.l.b16 %v157
  %v941 = vunpack.c.l.b16 %v158
  %v942 = vunpack.c.l.b16 %v159
  %v943 = vunpack.c.l.b16 %v160
  %v944 = vunpack.c.l.b16 %v161
  %v945 = vunpack.c.l.b16 %v162
  %v946 = vunpack.c.l.b16 %v163
  %v947 = vunpack.c.l.b16 %v164
  %v948 = vunpack.c.l.b16 %v165
  %v949 = vunpack.c.l.b16 %v166
  %v950 = vunpack.c.l.b16 %v167
  %v951 = vunpack.c.l.b16 %v168
  %v952 = vunpack.c.l.b16 %v169
  %v953 = vunpack.c.l.b16 %v170
  %v954 = vunpack.c.l.b16 %v171
  %v955 = vunpack.c.l.b16 %v172
  %v956 = vunpack.c.l.b16 %v173
  %v957 = vunpack.c.l.b16 %v174
  %v958 = vunpack.c.l.b16 %v175
  %v959 = vunpack.c.l.b16 %v176
  %v960 = vunpack.c.l.b16 %v177
  %v961 = vunpack.c.l.b16 %v178
  %v962 = vunpack.c.l.b16 %v179
  %v963 = vunpack.c.l.b16 %v180
  %v964 = vunpack.c.l.b16 %v181
  %v965 = vunpack.c.l.b16 %v182
  %v966 = vunpack.c.l.b16 %v183
  %v967 = vunpack.c.l.b16 %v184
  %v968 = vunpack.c.l.b16 %v185
  %v969 = vunpack.c.l.b16 %v186
  %v970 = vunpack.c.l.b16 %v187
  %v971 = vunpack.c.l.b16 %v188
  %v972 = vunpack.c.l.b16 %v189
  %v973 = vunpack.c.l.b16 %v190
  %v974 = vunpack.c.l.b16 %v191
  %v975 = vunpack.c.l.b16 %v192
  %v976 = vunpack.c.l.b16 %v193
  %v977 = vunpack.c.l.b16 %v194
  %v978 = vunpack.c.l.b16 %v195
  %v979 = vunpack.c.l.b16 %v196
  %v980 = vunpack.c.l.b16 %v197
  %v981 = vunpack.c.l.b16 %v198
  %v982 = vunpack.c.l.b16 %v199
  %v983 = vunpack.c.l.b16 %v200
  %v984 = vunpack.c.l.b16 %v201
  %v985 = vunpack.c.l.b16 %v202
  %v986 = vunpack.c.l.b16 %v203
  %v987 = vunpack.c.l.b16 %v204
  %v988 = vunpack.c.l.b16 %v205
  %v989 = vunpack.c.l.b16 %v206
  %v990 = vunpack.c.l.b16 %v207
  %v991 = vunpack.c.l.b16 %v208
  %v992 = vunpack.c.l.b16 %v209
  %v993 = vunpack.c.l.b16 %v210
  %v994 = vunpack.c.l.b16 %v211
  %v995 = vunpack.c.l.b16 %v212
  %v996 = vunpack.c.l.b16 %v213
  %v997 = vunpack.c.l.b16 %v214
  %v998 = vunpack.c.l.b16 %v215
  %v999 = vunpack.c.l.b16 %v216
  %v1000 = vunpack.c.l.b16 %v217
  %v1001 = vunpack.c.l.b16 %v218
  %v1002 = vunpack.c.l.b16 %v219
  %v1003 = vunpack.c.l.b16 %v220
  %v1004 = vunpack.c.l.b16 %v221
  %v1005 = vunpack.c.l.b16 %v222
  %v1006 = vunpack.c.l.b16 %v223
  %v1007 = vunpack.c.l.b16 %v224
  %v1008 = vunpack.c.l.b16 %v225
  %v1009 = vunpack.c.l.b16 %v226
  %v1010 = vunpack.c.l.b16 %v227
  %v1011 = vunpack.c.l.b16 %v228
  %v1012 = vunpack.c.l.b16 %v229
  %v1013 = vunpack.c.l.b16 %v230
  %v1014 = vunpack.c.l.b16 %v231
  %v1015 = vunpack.c.l.b16 %v232
  %v1016 = vunpack.c.l.b16 %v233
  %v1017 = vunpack.c.l.b16 %v234
  %v1018 = vunpack.c.l.b16 %v235
  %v1019 = vunpack.c.l.b16 %v236
  %v1020 = vunpack.c.l.b16 %v237
  %v1021 = vunpack.c.l.b16 %v238
  %v1022 = vunpack.c.l.b16 %v239
  %v1023 = vunpack.c.l.b16 %v240
  %v1024 = vunpack.c.l.b16 %v241
  %v1025 = vunpack.c.l.b16 %v242
  %v1026 = vunpack.c.l.b16 %v243
  %v1027 = vunpack.c.l.b16 %v244
  %v1028 = vunpack.c.l.b16 %v245
  %v1029 = vunpack.c.l.b16 %v246
  %v1030 = vunpack.c.l.b16 %v247
  %v1031 = vunpack.c.l.b16 %v248
  %v1032 = vunpack.c.l.b16 %v249
  %v1033 = vunpack.c.l.b16 %v250
  %v1034 = vpack.c.b16 %v927, %v926
  %v1035 = vpack.c.b16 %v929, %v928
  %v1036 = vpack.c.b16 %v931, %v930
  %v1037 = vpack.c.b16 %v933, %v932
  %v1038 = vpack.c.b16 %v935, %v934
  %v1039 = vpack.c.b16 %v937, %v936
  %v1040 = vpack.c.b16 %v939, %v938
  %v1041 = vpack.c.b16 %v941, %v940
  %v1042 = vpack.c.b16 %v943, %v942
  %v1043 = vpack.c.b16 %v945, %v944
  %v1044 = vpack.c.b16 %v947, %v946
  %v1045 = vpack.c.b16 %v949, %v948
  %v1046 = vpack.c.b16 %v951, %v950
  %v1047 = vpack.c.b16 %v953, %v952
  %v1048 = vpack.c.b16 %v955, %v954
  %v1049 = vpack.c.b16 %v957, %v956
  %v1050 = vpack.c.b16 %v959, %v958
  %v1051 = vpack.c.b16 %v961, %v960
  %v1052 = vpack.c.b16 %v963, %v962
  %v1053 = vpack.c.b16 %v965, %v964
  %v1054 = vpack.c.b16 %v967, %v966
  %v1055 = vpack.c.b16 %v969, %v968
  %v1056 = vpack.c.b16 %v971, %v970
  %v1057 = vpack.c.b16 %v973, %v972
  %v1058 = vpack.c.b16 %v975, %v974
  %v1059 = vpack.c.b16 %v977, %v976
  %v1060 = vpack.c.b16 %v979, %v978
  %v1061 = vpack.c.b16 %v981, %v980
  %v1062 = vpack.c.b16 %v983, %v982
  %v1063 = vpack.c.b16 %v985, %v984
  %v1064 = vpack.c.b16 %v987, %v986
  %v1065 = vpack.c.b16 %v989, %v988
  %v1066 = vpack.c.b16 %v991, %v990
  %v1067 = vpack.c.b16 %v993, %v992
  %v1068 = vpack.c.b16 %v995, %v994
  %v1069 = vpack.c.b16 %v997, %v996
  %v1070 = vpack.c.b16 %v999, %v998
  %v1071 = vpack.c.b16 %v1001, %v1000
  %v1072 = vpack.c.b16 %v1003, %v1002
  %v1073 = vpack.c.b16 %v1005, %v1004
  %v1074 = vpack.c.b16 %v1007, %v1006
  %v1075 = vpack.c.b16 %v1009, %v1008
  %v1076 = vpack.c.b16 %v1011, %v1010
  %v1077 = vpack.c.b16 %v1013, %v1012
  %v1078 = vpack.c.b16 %v1015, %v1014
  %v1079 = vpack.c.b16 %v1017, %v1016
  %v1080 = vpack.c.b16 %v1019, %v1018
  %v1081 = vpack.c.b16 %v1021, %v1020
  %v1082 = vpack.c.b16 %v1023, %v1022
  %v1083 = vpack.c.b16 %v1025, %v1024
  %v1084 = vpack.c.b16 %v1027, %v1026
  %v1085 = vpack.c.b16 %v1029, %v1028
  %v1086 = vpack.c.b16 %v1031, %v1030
  %v1087 = vpack.c.b16 %v1033, %v1032
  %vm1142 = vcmask 785408
  %v1144 = vsel %vm1142, %v616, 0
  %v1147 = vsel %vm1142, %v623, 0
  %v1150 = vsel %vm1142, %v630, 0
  %v1153 = vsel %vm1142, %v637, 0
  %v1156 = vsel %vm1142, %v644, 0
  %v1159 = vsel %vm1142, %v651, 0
  %v1162 = vsel %vm1142, %v658, 0
  %v1165 = vsel %vm1142, %v665, 0
  %v1168 = vsel %vm1142, %v672, 0
  %v1171 = vsel %vm1142, %v679, 0
  %v1174 = vsel %vm1142, %v686, 0
  %v1177 = vsel %vm1142, %v693, 0
  %v1180 = vsel %vm1142, %v700, 0
  %v1183 = vsel %vm1142, %v707, 0
  %v1186 = vsel %vm1142, %v714, 0
  %v1189 = vsel %vm1142, %v721, 0
  %1191 = vmatprep.subr.bf16.mxu0 0
  %1192 = vmatpush1.bf16.msra.mxu0 %v1034
  %1193 = vmatprep.subr.bf16.mxu0 0
  %1194 = vmatpush1.bf16.msra.mxu0 %v1035
  %1195 = vmatprep.subr.bf16.mxu0 0
  %1196 = vmatpush1.bf16.msra.mxu0 %v1036
  %1197 = vmatprep.subr.bf16.mxu0 0
  %1198 = vmatpush1.bf16.msra.mxu0 %v1037
  %1199 = vmatprep.subr.bf16.mxu0 0
  %1200 = vmatpush1.bf16.msra.mxu0 %v1038
  %1201 = vmatprep.subr.bf16.mxu0 0
  %1202 = vmatpush1.bf16.msra.mxu0 %v1039
  %1203 = vmatprep.subr.bf16.mxu0 0
  %1204 = vmatpush1.bf16.msra.mxu0 %v1040
  %1205 = vmatprep.subr.bf16.mxu0 0
  %1206 = vmatpush1.bf16.msra.mxu0 %v1041
  %1207 = vmatprep.subr.bf16.mxu0 0
  %1208 = vmatpush1.bf16.msra.mxu0 %v1042
  %1209 = vmatprep.subr.bf16.mxu0 0
  %1210 = vmatpush1.bf16.msra.mxu0 %v1043
  %1211 = vmatprep.subr.bf16.mxu0 0
  %1212 = vmatpush1.bf16.msra.mxu0 %v1044
  %1213 = vmatprep.subr.bf16.mxu0 0
  %1214 = vmatpush1.bf16.msra.mxu0 %v1045
  %1215 = vmatprep.subr.bf16.mxu0 0
  %1216 = vmatpush1.bf16.msra.mxu0 %v1046
  %1217 = vmatprep.subr.bf16.mxu0 0
  %1218 = vmatpush1.bf16.msra.mxu0 %v1047
  %1219 = vmatprep.subr.bf16.mxu0 0
  %1220 = vmatpush1.bf16.msra.mxu0 %v1048
  %1221 = vmatprep.subr.bf16.mxu0 0
  %1222 = vmatpush1.bf16.msra.mxu0 %v1049
  %1223 = vmatprep.mubr.bf16.mxu0 %v611
  %1224 = vmatmul.mubr.bf16.gmra.mrb[0].mxu0 %v610
  %v1225 = vpop.f32.mrb[0].mxu0
  %v1226 = vadd.f32 %v256, %v1225
  %v1227 = vpop.f32.mrb[0].mxu0
  %v1228 = vpop.f32.mrb[0].mxu0
  %v1229 = vadd.f32 %v256, %v1228
  %v1230 = vpop.f32.mrb[0].mxu0
  %1231 = vmatprep.mubr.bf16.mxu0 %v618
  %1232 = vmatmul.mubr.bf16.gmra.mrb[0].mxu0 %v617
  %v1233 = vpop.f32.mrb[0].mxu0
  %v1234 = vadd.f32 %v256, %v1233
  %v1235 = vpop.f32.mrb[0].mxu0
  %v1236 = vpop.f32.mrb[0].mxu0
  %v1237 = vadd.f32 %v256, %v1236
  %v1238 = vpop.f32.mrb[0].mxu0
  %1239 = vmatprep.mubr.bf16.mxu0 %v625
  %1240 = vmatmul.mubr.bf16.gmra.mrb[0].mxu0 %v624
  %v1241 = vpop.f32.mrb[0].mxu0
  %v1242 = vadd.f32 %v256, %v1241
  %v1243 = vpop.f32.mrb[0].mxu0
  %v1244 = vpop.f32.mrb[0].mxu0
  %v1245 = vadd.f32 %v256, %v1244
  %v1246 = vpop.f32.mrb[0].mxu0
  %1247 = vmatprep.mubr.bf16.mxu0 %v632
  %1248 = vmatmul.mubr.bf16.gmra.mrb[0].mxu0 %v631
  %v1249 = vpop.f32.mrb[0].mxu0
  %v1250 = vadd.f32 %v256, %v1249
  %v1251 = vpop.f32.mrb[0].mxu0
  %v1252 = vpop.f32.mrb[0].mxu0
  %v1253 = vadd.f32 %v256, %v1252
  %v1254 = vpop.f32.mrb[0].mxu0
  %1255 = vmatprep.mubr.bf16.mxu0 %v639
  %1256 = vmatmul.mubr.bf16.gmra.mrb[0].mxu0 %v638
  %v1257 = vpop.f32.mrb[0].mxu0
  %v1258 = vadd.f32 %v256, %v1257
  %v1259 = vpop.f32.mrb[0].mxu0
  %v1260 = vpop.f32.mrb[0].mxu0
  %v1261 = vadd.f32 %v256, %v1260
  %v1262 = vpop.f32.mrb[0].mxu0
  %1263 = vmatprep.mubr.bf16.mxu0 %v646
  %1264 = vmatmul.mubr.bf16.gmra.mrb[0].mxu0 %v645
  %v1265 = vpop.f32.mrb[0].mxu0
  %v1266 = vadd.f32 %v256, %v1265
  %v1267 = vpop.f32.mrb[0].mxu0
  %v1268 = vpop.f32.mrb[0].mxu0
  %v1269 = vadd.f32 %v256, %v1268
  %v1270 = vpop.f32.mrb[0].mxu0
  %1271 = vmatprep.mubr.bf16.mxu0 %v653
  %1272 = vmatmul.mubr.bf16.gmra.mrb[0].mxu0 %v652
  %v1273 = vpop.f32.mrb[0].mxu0
  %v1274 = vadd.f32 %v256, %v1273
  %v1275 = vpop.f32.mrb[0].mxu0
  %v1276 = vpop.f32.mrb[0].mxu0
  %v1277 = vadd.f32 %v256, %v1276
  %v1278 = vpop.f32.mrb[0].mxu0
  %1279 = vmatprep.mubr.bf16.mxu0 %v660
  %1280 = vmatmul.mubr.bf16.gmra.mrb[0].mxu0 %v659
  %v1281 = vpop.f32.mrb[0].mxu0
  %v1282 = vadd.f32 %v256, %v1281
  %v1283 = vpop.f32.mrb[0].mxu0
  %v1284 = vpop.f32.mrb[0].mxu0
  %v1285 = vadd.f32 %v256, %v1284
  %v1286 = vpop.f32.mrb[0].mxu0
  %1287 = vmatprep.mubr.bf16.mxu0 %v667
  %1288 = vmatmul.mubr.bf16.gmra.mrb[0].mxu0 %v666
  %v1289 = vpop.f32.mrb[0].mxu0
  %v1290 = vadd.f32 %v256, %v1289
  %v1291 = vpop.f32.mrb[0].mxu0
  %v1292 = vpop.f32.mrb[0].mxu0
  %v1293 = vadd.f32 %v256, %v1292
  %v1294 = vpop.f32.mrb[0].mxu0
  %1295 = vmatprep.mubr.bf16.mxu0 %v674
  %1296 = vmatmul.mubr.bf16.gmra.mrb[0].mxu0 %v673
  %v1297 = vpop.f32.mrb[0].mxu0
  %v1298 = vadd.f32 %v256, %v1297
  %v1299 = vpop.f32.mrb[0].mxu0
  %v1300 = vpop.f32.mrb[0].mxu0
  %v1301 = vadd.f32 %v256, %v1300
  %v1302 = vpop.f32.mrb[0].mxu0
  %1303 = vmatprep.mubr.bf16.mxu0 %v681
  %1304 = vmatmul.mubr.bf16.gmra.mrb[0].mxu0 %v680
  %v1305 = vpop.f32.mrb[0].mxu0
  %v1306 = vadd.f32 %v256, %v1305
  %v1307 = vpop.f32.mrb[0].mxu0
  %v1308 = vpop.f32.mrb[0].mxu0
  %v1309 = vadd.f32 %v256, %v1308
  %v1310 = vpop.f32.mrb[0].mxu0
  %1311 = vmatprep.mubr.bf16.mxu0 %v688
  %1312 = vmatmul.mubr.bf16.gmra.mrb[0].mxu0 %v687
  %v1313 = vpop.f32.mrb[0].mxu0
  %v1314 = vadd.f32 %v256, %v1313
  %v1315 = vpop.f32.mrb[0].mxu0
  %v1316 = vpop.f32.mrb[0].mxu0
  %v1317 = vadd.f32 %v256, %v1316
  %v1318 = vpop.f32.mrb[0].mxu0
  %1319 = vmatprep.mubr.bf16.mxu0 %v695
  %1320 = vmatmul.mubr.bf16.gmra.mrb[0].mxu0 %v694
  %v1321 = vpop.f32.mrb[0].mxu0
  %v1322 = vadd.f32 %v256, %v1321
  %v1323 = vpop.f32.mrb[0].mxu0
  %v1324 = vpop.f32.mrb[0].mxu0
  %v1325 = vadd.f32 %v256, %v1324
  %v1326 = vpop.f32.mrb[0].mxu0
  %1327 = vmatprep.mubr.bf16.mxu0 %v702
  %1328 = vmatmul.mubr.bf16.gmra.mrb[0].mxu0 %v701
  %v1329 = vpop.f32.mrb[0].mxu0
  %v1330 = vadd.f32 %v256, %v1329
  %v1331 = vpop.f32.mrb[0].mxu0
  %v1332 = vpop.f32.mrb[0].mxu0
  %v1333 = vadd.f32 %v256, %v1332
  %v1334 = vpop.f32.mrb[0].mxu0
  %1335 = vmatprep.mubr.bf16.mxu0 %v709
  %1336 = vmatmul.mubr.bf16.gmra.mrb[0].mxu0 %v708
  %v1337 = vpop.f32.mrb[0].mxu0
  %v1338 = vadd.f32 %v256, %v1337
  %v1339 = vpop.f32.mrb[0].mxu0
  %v1340 = vpop.f32.mrb[0].mxu0
  %v1341 = vadd.f32 %v256, %v1340
  %v1342 = vpop.f32.mrb[0].mxu0
  %1343 = vmatprep.mubr.bf16.mxu0 %v716
  %1344 = vmatmul.mubr.bf16.gmra.mrb[0].mxu0 %v715
  %v1345 = vpop.f32.mrb[0].mxu0
  %v1346 = vadd.f32 %v256, %v1345
  %v1347 = vpop.f32.mrb[0].mxu0
  %v1348 = vpop.f32.mrb[0].mxu0
  %v1349 = vadd.f32 %v256, %v1348
  %v1350 = vpop.f32.mrb[0].mxu0
  %1351 = vdwg.mxu0
  %1352 = vmatprep.subr.bf16.mxu0 0
  %1353 = vmatpush1.bf16.msra.mxu0 %v1050
  %1354 = vmatprep.subr.bf16.mxu0 0
  %1355 = vmatpush1.bf16.msra.mxu0 %v1051
  %1356 = vmatprep.subr.bf16.mxu0 0
  %1357 = vmatpush1.bf16.msra.mxu0 %v1052
  %1358 = vmatprep.subr.bf16.mxu0 0
  %1359 = vmatpush1.bf16.msra.mxu0 %v1053
  %1360 = vmatprep.subr.bf16.mxu0 0
  %1361 = vmatpush1.bf16.msra.mxu0 %v1054
  %1362 = vmatprep.subr.bf16.mxu0 0
  %1363 = vmatpush1.bf16.msra.mxu0 %v1055
  %1364 = vmatprep.subr.bf16.mxu0 0
  %1365 = vmatpush1.bf16.msra.mxu0 %v1056
  %1366 = vmatprep.subr.bf16.mxu0 0
  %1367 = vmatpush1.bf16.msra.mxu0 %v1057
  %1368 = vmatprep.subr.bf16.mxu0 0
  %1369 = vmatpush1.bf16.msra.mxu0 %v1058
  %1370 = vmatprep.subr.bf16.mxu0 0
  %1371 = vmatpush1.bf16.msra.mxu0 %v1059
  %1372 = vmatprep.subr.bf16.mxu0 0
  %1373 = vmatpush1.bf16.msra.mxu0 %v1060
  %1374 = vmatprep.subr.bf16.mxu0 0
  %1375 = vmatpush1.bf16.msra.mxu0 %v1061
  %1376 = vmatprep.subr.bf16.mxu0 0
  %1377 = vmatpush1.bf16.msra.mxu0 %v1062
  %1378 = vmatprep.subr.bf16.mxu0 0
  %1379 = vmatpush1.bf16.msra.mxu0 %v1063
  %1380 = vmatprep.subr.bf16.mxu0 0
  %1381 = vmatpush1.bf16.msra.mxu0 %v1064
  %1382 = vmatprep.subr.bf16.mxu0 0
  %1383 = vmatpush1.bf16.msra.mxu0 %v1065
  %1384 = vmatprep.mubr.bf16.mxu0 %v613
  %1385 = vmatmul.mubr.bf16.gmra.mrb[0].mxu0 %v612
  %v1386 = vpop.f32.mrb[0].mxu0
  %v1387 = vadd.f32 %v1226, %v1386
  %v1388 = vpop.f32.mrb[0].mxu0
  %v1389 = vpop.f32.mrb[0].mxu0
  %v1390 = vadd.f32 %v1229, %v1389
  %v1391 = vpop.f32.mrb[0].mxu0
  %1392 = vmatprep.mubr.bf16.mxu0 %v620
  %1393 = vmatmul.mubr.bf16.gmra.mrb[0].mxu0 %v619
  %v1394 = vpop.f32.mrb[0].mxu0
  %v1395 = vadd.f32 %v1234, %v1394
  %v1396 = vpop.f32.mrb[0].mxu0
  %v1397 = vpop.f32.mrb[0].mxu0
  %v1398 = vadd.f32 %v1237, %v1397
  %v1399 = vpop.f32.mrb[0].mxu0
  %1400 = vmatprep.mubr.bf16.mxu0 %v627
  %1401 = vmatmul.mubr.bf16.gmra.mrb[0].mxu0 %v626
  %v1402 = vpop.f32.mrb[0].mxu0
  %v1403 = vadd.f32 %v1242, %v1402
  %v1404 = vpop.f32.mrb[0].mxu0
  %v1405 = vpop.f32.mrb[0].mxu0
  %v1406 = vadd.f32 %v1245, %v1405
  %v1407 = vpop.f32.mrb[0].mxu0
  %1408 = vmatprep.mubr.bf16.mxu0 %v634
  %1409 = vmatmul.mubr.bf16.gmra.mrb[0].mxu0 %v633
  %v1410 = vpop.f32.mrb[0].mxu0
  %v1411 = vadd.f32 %v1250, %v1410
  %v1412 = vpop.f32.mrb[0].mxu0
  %v1413 = vpop.f32.mrb[0].mxu0
  %v1414 = vadd.f32 %v1253, %v1413
  %v1415 = vpop.f32.mrb[0].mxu0
  %1416 = vmatprep.mubr.bf16.mxu0 %v641
  %1417 = vmatmul.mubr.bf16.gmra.mrb[0].mxu0 %v640
  %v1418 = vpop.f32.mrb[0].mxu0
  %v1419 = vadd.f32 %v1258, %v1418
  %v1420 = vpop.f32.mrb[0].mxu0
  %v1421 = vpop.f32.mrb[0].mxu0
  %v1422 = vadd.f32 %v1261, %v1421
  %v1423 = vpop.f32.mrb[0].mxu0
  %1424 = vmatprep.mubr.bf16.mxu0 %v648
  %1425 = vmatmul.mubr.bf16.gmra.mrb[0].mxu0 %v647
  %v1426 = vpop.f32.mrb[0].mxu0
  %v1427 = vadd.f32 %v1266, %v1426
  %v1428 = vpop.f32.mrb[0].mxu0
  %v1429 = vpop.f32.mrb[0].mxu0
  %v1430 = vadd.f32 %v1269, %v1429
  %v1431 = vpop.f32.mrb[0].mxu0
  %1432 = vmatprep.mubr.bf16.mxu0 %v655
  %1433 = vmatmul.mubr.bf16.gmra.mrb[0].mxu0 %v654
  %v1434 = vpop.f32.mrb[0].mxu0
  %v1435 = vadd.f32 %v1274, %v1434
  %v1436 = vpop.f32.mrb[0].mxu0
  %v1437 = vpop.f32.mrb[0].mxu0
  %v1438 = vadd.f32 %v1277, %v1437
  %v1439 = vpop.f32.mrb[0].mxu0
  %1440 = vmatprep.mubr.bf16.mxu0 %v662
  %1441 = vmatmul.mubr.bf16.gmra.mrb[0].mxu0 %v661
  %v1442 = vpop.f32.mrb[0].mxu0
  %v1443 = vadd.f32 %v1282, %v1442
  %v1444 = vpop.f32.mrb[0].mxu0
  %v1445 = vpop.f32.mrb[0].mxu0
  %v1446 = vadd.f32 %v1285, %v1445
  %v1447 = vpop.f32.mrb[0].mxu0
  %1448 = vmatprep.mubr.bf16.mxu0 %v669
  %1449 = vmatmul.mubr.bf16.gmra.mrb[0].mxu0 %v668
  %v1450 = vpop.f32.mrb[0].mxu0
  %v1451 = vadd.f32 %v1290, %v1450
  %v1452 = vpop.f32.mrb[0].mxu0
  %v1453 = vpop.f32.mrb[0].mxu0
  %v1454 = vadd.f32 %v1293, %v1453
  %v1455 = vpop.f32.mrb[0].mxu0
  %1456 = vmatprep.mubr.bf16.mxu0 %v676
  %1457 = vmatmul.mubr.bf16.gmra.mrb[0].mxu0 %v675
  %v1458 = vpop.f32.mrb[0].mxu0
  %v1459 = vadd.f32 %v1298, %v1458
  %v1460 = vpop.f32.mrb[0].mxu0
  %v1461 = vpop.f32.mrb[0].mxu0
  %v1462 = vadd.f32 %v1301, %v1461
  %v1463 = vpop.f32.mrb[0].mxu0
  %1464 = vmatprep.mubr.bf16.mxu0 %v683
  %1465 = vmatmul.mubr.bf16.gmra.mrb[0].mxu0 %v682
  %v1466 = vpop.f32.mrb[0].mxu0
  %v1467 = vadd.f32 %v1306, %v1466
  %v1468 = vpop.f32.mrb[0].mxu0
  %v1469 = vpop.f32.mrb[0].mxu0
  %v1470 = vadd.f32 %v1309, %v1469
  %v1471 = vpop.f32.mrb[0].mxu0
  %1472 = vmatprep.mubr.bf16.mxu0 %v690
  %1473 = vmatmul.mubr.bf16.gmra.mrb[0].mxu0 %v689
  %v1474 = vpop.f32.mrb[0].mxu0
  %v1475 = vadd.f32 %v1314, %v1474
  %v1476 = vpop.f32.mrb[0].mxu0
  %v1477 = vpop.f32.mrb[0].mxu0
  %v1478 = vadd.f32 %v1317, %v1477
  %v1479 = vpop.f32.mrb[0].mxu0
  %1480 = vmatprep.mubr.bf16.mxu0 %v697
  %1481 = vmatmul.mubr.bf16.gmra.mrb[0].mxu0 %v696
  %v1482 = vpop.f32.mrb[0].mxu0
  %v1483 = vadd.f32 %v1322, %v1482
  %v1484 = vpop.f32.mrb[0].mxu0
  %v1485 = vpop.f32.mrb[0].mxu0
  %v1486 = vadd.f32 %v1325, %v1485
  %v1487 = vpop.f32.mrb[0].mxu0
  %1488 = vmatprep.mubr.bf16.mxu0 %v704
  %1489 = vmatmul.mubr.bf16.gmra.mrb[0].mxu0 %v703
  %v1490 = vpop.f32.mrb[0].mxu0
  %v1491 = vadd.f32 %v1330, %v1490
  %v1492 = vpop.f32.mrb[0].mxu0
  %v1493 = vpop.f32.mrb[0].mxu0
  %v1494 = vadd.f32 %v1333, %v1493
  %v1495 = vpop.f32.mrb[0].mxu0
  %1496 = vmatprep.mubr.bf16.mxu0 %v711
  %1497 = vmatmul.mubr.bf16.gmra.mrb[0].mxu0 %v710
  %v1498 = vpop.f32.mrb[0].mxu0
  %v1499 = vadd.f32 %v1338, %v1498
  %v1500 = vpop.f32.mrb[0].mxu0
  %v1501 = vpop.f32.mrb[0].mxu0
  %v1502 = vadd.f32 %v1341, %v1501
  %v1503 = vpop.f32.mrb[0].mxu0
  %1504 = vmatprep.mubr.bf16.mxu0 %v718
  %1505 = vmatmul.mubr.bf16.gmra.mrb[0].mxu0 %v717
  %v1506 = vpop.f32.mrb[0].mxu0
  %v1507 = vadd.f32 %v1346, %v1506
  %v1508 = vpop.f32.mrb[0].mxu0
  %v1509 = vpop.f32.mrb[0].mxu0
  %v1510 = vadd.f32 %v1349, %v1509
  %v1511 = vpop.f32.mrb[0].mxu0
  %1512 = vdwg.mxu0
  %1513 = vmatprep.subr.bf16.mxu0 0
  %1514 = vmatpush1.bf16.msra.mxu0 %v1066
  %1515 = vmatprep.subr.bf16.mxu0 0
  %1516 = vmatpush1.bf16.msra.mxu0 %v1067
  %1517 = vmatprep.subr.bf16.mxu0 0
  %1518 = vmatpush1.bf16.msra.mxu0 %v1068
  %1519 = vmatprep.subr.bf16.mxu0 0
  %1520 = vmatpush1.bf16.msra.mxu0 %v1069
  %1521 = vmatprep.subr.bf16.mxu0 0
  %1522 = vmatpush1.bf16.msra.mxu0 %v1070
  %1523 = vmatprep.subr.bf16.mxu0 0
  %1524 = vmatpush1.bf16.msra.mxu0 %v1071
  %1525 = vmatprep.subr.bf16.mxu0 0
  %1526 = vmatpush1.bf16.msra.mxu0 %v1072
  %1527 = vmatprep.subr.bf16.mxu0 0
  %1528 = vmatpush1.bf16.msra.mxu0 %v1073
  %1529 = vmatprep.subr.bf16.mxu0 0
  %1530 = vmatpush1.bf16.msra.mxu0 %v1074
  %1531 = vmatprep.subr.bf16.mxu0 0
  %1532 = vmatpush1.bf16.msra.mxu0 %v1075
  %1533 = vmatprep.subr.bf16.mxu0 0
  %1534 = vmatpush1.bf16.msra.mxu0 %v1076
  %1535 = vmatprep.subr.bf16.mxu0 0
  %1536 = vmatpush1.bf16.msra.mxu0 %v1077
  %1537 = vmatprep.subr.bf16.mxu0 0
  %1538 = vmatpush1.bf16.msra.mxu0 %v1078
  %1539 = vmatprep.subr.bf16.mxu0 0
  %1540 = vmatpush1.bf16.msra.mxu0 %v1079
  %1541 = vmatprep.subr.bf16.mxu0 0
  %1542 = vmatpush1.bf16.msra.mxu0 %v1080
  %1543 = vmatprep.subr.bf16.mxu0 0
  %1544 = vmatpush1.bf16.msra.mxu0 %v1081
  %1545 = vmatprep.mubr.bf16.mxu0 %v615
  %1546 = vmatmul.mubr.bf16.gmra.mrb[0].mxu0 %v614
  %v1547 = vpop.f32.mrb[0].mxu0
  %v1548 = vadd.f32 %v1387, %v1547
  %v1549 = vpop.f32.mrb[0].mxu0
  %v1550 = vpop.f32.mrb[0].mxu0
  %v1551 = vadd.f32 %v1390, %v1550
  %v1552 = vpop.f32.mrb[0].mxu0
  %1553 = vmatprep.mubr.bf16.mxu0 %v622
  %1554 = vmatmul.mubr.bf16.gmra.mrb[0].mxu0 %v621
  %v1555 = vpop.f32.mrb[0].mxu0
  %v1556 = vadd.f32 %v1395, %v1555
  %v1557 = vpop.f32.mrb[0].mxu0
  %v1558 = vpop.f32.mrb[0].mxu0
  %v1559 = vadd.f32 %v1398, %v1558
  %v1560 = vpop.f32.mrb[0].mxu0
  %1561 = vmatprep.mubr.bf16.mxu0 %v629
  %1562 = vmatmul.mubr.bf16.gmra.mrb[0].mxu0 %v628
  %v1563 = vpop.f32.mrb[0].mxu0
  %v1564 = vadd.f32 %v1403, %v1563
  %v1565 = vpop.f32.mrb[0].mxu0
  %v1566 = vpop.f32.mrb[0].mxu0
  %v1567 = vadd.f32 %v1406, %v1566
  %v1568 = vpop.f32.mrb[0].mxu0
  %1569 = vmatprep.mubr.bf16.mxu0 %v636
  %1570 = vmatmul.mubr.bf16.gmra.mrb[0].mxu0 %v635
  %v1571 = vpop.f32.mrb[0].mxu0
  %v1572 = vadd.f32 %v1411, %v1571
  %v1573 = vpop.f32.mrb[0].mxu0
  %v1574 = vpop.f32.mrb[0].mxu0
  %v1575 = vadd.f32 %v1414, %v1574
  %v1576 = vpop.f32.mrb[0].mxu0
  %1577 = vmatprep.mubr.bf16.mxu0 %v643
  %1578 = vmatmul.mubr.bf16.gmra.mrb[0].mxu0 %v642
  %v1579 = vpop.f32.mrb[0].mxu0
  %v1580 = vadd.f32 %v1419, %v1579
  %v1581 = vpop.f32.mrb[0].mxu0
  %v1582 = vpop.f32.mrb[0].mxu0
  %v1583 = vadd.f32 %v1422, %v1582
  %v1584 = vpop.f32.mrb[0].mxu0
  %1585 = vmatprep.mubr.bf16.mxu0 %v650
  %1586 = vmatmul.mubr.bf16.gmra.mrb[0].mxu0 %v649
  %v1587 = vpop.f32.mrb[0].mxu0
  %v1588 = vadd.f32 %v1427, %v1587
  %v1589 = vpop.f32.mrb[0].mxu0
  %v1590 = vpop.f32.mrb[0].mxu0
  %v1591 = vadd.f32 %v1430, %v1590
  %v1592 = vpop.f32.mrb[0].mxu0
  %1593 = vmatprep.mubr.bf16.mxu0 %v657
  %1594 = vmatmul.mubr.bf16.gmra.mrb[0].mxu0 %v656
  %v1595 = vpop.f32.mrb[0].mxu0
  %v1596 = vadd.f32 %v1435, %v1595
  %v1597 = vpop.f32.mrb[0].mxu0
  %v1598 = vpop.f32.mrb[0].mxu0
  %v1599 = vadd.f32 %v1438, %v1598
  %v1600 = vpop.f32.mrb[0].mxu0
  %1601 = vmatprep.mubr.bf16.mxu0 %v664
  %1602 = vmatmul.mubr.bf16.gmra.mrb[0].mxu0 %v663
  %v1603 = vpop.f32.mrb[0].mxu0
  %v1604 = vadd.f32 %v1443, %v1603
  %v1605 = vpop.f32.mrb[0].mxu0
  %v1606 = vpop.f32.mrb[0].mxu0
  %v1607 = vadd.f32 %v1446, %v1606
  %v1608 = vpop.f32.mrb[0].mxu0
  %1609 = vmatprep.mubr.bf16.mxu0 %v671
  %1610 = vmatmul.mubr.bf16.gmra.mrb[0].mxu0 %v670
  %v1611 = vpop.f32.mrb[0].mxu0
  %v1612 = vadd.f32 %v1451, %v1611
  %v1613 = vpop.f32.mrb[0].mxu0
  %v1614 = vpop.f32.mrb[0].mxu0
  %v1615 = vadd.f32 %v1454, %v1614
  %v1616 = vpop.f32.mrb[0].mxu0
  %1617 = vmatprep.mubr.bf16.mxu0 %v678
  %1618 = vmatmul.mubr.bf16.gmra.mrb[0].mxu0 %v677
  %v1619 = vpop.f32.mrb[0].mxu0
  %v1620 = vadd.f32 %v1459, %v1619
  %v1621 = vpop.f32.mrb[0].mxu0
  %v1622 = vpop.f32.mrb[0].mxu0
  %v1623 = vadd.f32 %v1462, %v1622
  %v1624 = vpop.f32.mrb[0].mxu0
  %1625 = vmatprep.mubr.bf16.mxu0 %v685
  %1626 = vmatmul.mubr.bf16.gmra.mrb[0].mxu0 %v684
  %v1627 = vpop.f32.mrb[0].mxu0
  %v1628 = vadd.f32 %v1467, %v1627
  %v1629 = vpop.f32.mrb[0].mxu0
  %v1630 = vpop.f32.mrb[0].mxu0
  %v1631 = vadd.f32 %v1470, %v1630
  %v1632 = vpop.f32.mrb[0].mxu0
  %1633 = vmatprep.mubr.bf16.mxu0 %v692
  %1634 = vmatmul.mubr.bf16.gmra.mrb[0].mxu0 %v691
  %v1635 = vpop.f32.mrb[0].mxu0
  %v1636 = vadd.f32 %v1475, %v1635
  %v1637 = vpop.f32.mrb[0].mxu0
  %v1638 = vpop.f32.mrb[0].mxu0
  %v1639 = vadd.f32 %v1478, %v1638
  %v1640 = vpop.f32.mrb[0].mxu0
  %1641 = vmatprep.mubr.bf16.mxu0 %v699
  %1642 = vmatmul.mubr.bf16.gmra.mrb[0].mxu0 %v698
  %v1643 = vpop.f32.mrb[0].mxu0
  %v1644 = vadd.f32 %v1483, %v1643
  %v1645 = vpop.f32.mrb[0].mxu0
  %v1646 = vpop.f32.mrb[0].mxu0
  %v1647 = vadd.f32 %v1486, %v1646
  %v1648 = vpop.f32.mrb[0].mxu0
  %1649 = vmatprep.mubr.bf16.mxu0 %v706
  %1650 = vmatmul.mubr.bf16.gmra.mrb[0].mxu0 %v705
  %v1651 = vpop.f32.mrb[0].mxu0
  %v1652 = vadd.f32 %v1491, %v1651
  %v1653 = vpop.f32.mrb[0].mxu0
  %v1654 = vpop.f32.mrb[0].mxu0
  %v1655 = vadd.f32 %v1494, %v1654
  %v1656 = vpop.f32.mrb[0].mxu0
  %1657 = vmatprep.mubr.bf16.mxu0 %v713
  %1658 = vmatmul.mubr.bf16.gmra.mrb[0].mxu0 %v712
  %v1659 = vpop.f32.mrb[0].mxu0
  %v1660 = vadd.f32 %v1499, %v1659
  %v1661 = vpop.f32.mrb[0].mxu0
  %v1662 = vpop.f32.mrb[0].mxu0
  %v1663 = vadd.f32 %v1502, %v1662
  %v1664 = vpop.f32.mrb[0].mxu0
  %1665 = vmatprep.mubr.bf16.mxu0 %v720
  %1666 = vmatmul.mubr.bf16.gmra.mrb[0].mxu0 %v719
  %v1667 = vpop.f32.mrb[0].mxu0
  %v1668 = vadd.f32 %v1507, %v1667
  %v1669 = vpop.f32.mrb[0].mxu0
  %v1670 = vpop.f32.mrb[0].mxu0
  %v1671 = vadd.f32 %v1510, %v1670
  %v1672 = vpop.f32.mrb[0].mxu0
  %1673 = vdwg.mxu0
  %1674 = vmatprep.subr.bf16.mxu0 0
  %1675 = vmatpush1.bf16.msra.mxu0 %v1082
  %1676 = vmatprep.subr.bf16.mxu0 0
  %1677 = vmatpush1.bf16.msra.mxu0 %v1083
  %1678 = vmatprep.subr.bf16.mxu0 0
  %1679 = vmatpush1.bf16.msra.mxu0 %v1084
  %1680 = vmatprep.subr.bf16.mxu0 0
  %1681 = vmatpush1.bf16.msra.mxu0 %v1085
  %1682 = vmatprep.subr.bf16.mxu0 0
  %1683 = vmatpush1.bf16.msra.mxu0 %v1086
  %1684 = vmatprep.subr.bf16.mxu0 0
  %1685 = vmatpush1.bf16.msra.mxu0 %v1087
  %1686 = vmatprep.subr.bf16.mxu0 0
  %1687 = vmatpush1.bf16.msra.mxu0 0
  %1688 = vmatprep.subr.bf16.mxu0 0
  %1689 = vmatpush1.bf16.msra.mxu0 0
  %1690 = vmatprep.subr.bf16.mxu0 0
  %1691 = vmatpush1.bf16.msra.mxu0 0
  %1692 = vmatprep.subr.bf16.mxu0 0
  %1693 = vmatpush1.bf16.msra.mxu0 0
  %1694 = vmatprep.subr.bf16.mxu0 0
  %1695 = vmatpush1.bf16.msra.mxu0 0
  %1696 = vmatprep.subr.bf16.mxu0 0
  %1697 = vmatpush1.bf16.msra.mxu0 0
  %1698 = vmatprep.subr.bf16.mxu0 0
  %1699 = vmatpush1.bf16.msra.mxu0 0
  %1700 = vmatprep.subr.bf16.mxu0 0
  %1701 = vmatpush1.bf16.msra.mxu0 0
  %1702 = vmatprep.subr.bf16.mxu0 0
  %1703 = vmatpush1.bf16.msra.mxu0 0
  %1704 = vmatprep.subr.bf16.mxu0 0
  %1705 = vmatpush1.bf16.msra.mxu0 0
  %1706 = vmatprep.mubr.bf16.mxu0 0
  %1707 = vmatmul.mubr.bf16.gmra.mrb[0].mxu0 %v1144
  %v1708 = vpop.f32.mrb[0].mxu0
  %v1709 = vadd.f32 %v1548, %v1708
  %v1710 = vpop.f32.mrb[0].mxu0
  %v1711 = vpop.f32.mrb[0].mxu0
  %v1712 = vadd.f32 %v1551, %v1711
  %v1713 = vpop.f32.mrb[0].mxu0
  %1714 = vmatprep.mubr.bf16.mxu0 0
  %1715 = vmatmul.mubr.bf16.gmra.mrb[0].mxu0 %v1147
  %v1716 = vpop.f32.mrb[0].mxu0
  %v1717 = vadd.f32 %v1556, %v1716
  %v1718 = vpop.f32.mrb[0].mxu0
  %v1719 = vpop.f32.mrb[0].mxu0
  %v1720 = vadd.f32 %v1559, %v1719
  %v1721 = vpop.f32.mrb[0].mxu0
  %1722 = vmatprep.mubr.bf16.mxu0 0
  %1723 = vmatmul.mubr.bf16.gmra.mrb[0].mxu0 %v1150
  %v1724 = vpop.f32.mrb[0].mxu0
  %v1725 = vadd.f32 %v1564, %v1724
  %v1726 = vpop.f32.mrb[0].mxu0
  %v1727 = vpop.f32.mrb[0].mxu0
  %v1728 = vadd.f32 %v1567, %v1727
  %v1729 = vpop.f32.mrb[0].mxu0
  %1730 = vmatprep.mubr.bf16.mxu0 0
  %1731 = vmatmul.mubr.bf16.gmra.mrb[0].mxu0 %v1153
  %v1732 = vpop.f32.mrb[0].mxu0
  %v1733 = vadd.f32 %v1572, %v1732
  %v1734 = vpop.f32.mrb[0].mxu0
  %v1735 = vpop.f32.mrb[0].mxu0
  %v1736 = vadd.f32 %v1575, %v1735
  %v1737 = vpop.f32.mrb[0].mxu0
  %1738 = vmatprep.mubr.bf16.mxu0 0
  %1739 = vmatmul.mubr.bf16.gmra.mrb[0].mxu0 %v1156
  %v1740 = vpop.f32.mrb[0].mxu0
  %v1741 = vadd.f32 %v1580, %v1740
  %v1742 = vpop.f32.mrb[0].mxu0
  %v1743 = vpop.f32.mrb[0].mxu0
  %v1744 = vadd.f32 %v1583, %v1743
  %v1745 = vpop.f32.mrb[0].mxu0
  %1746 = vmatprep.mubr.bf16.mxu0 0
  %1747 = vmatmul.mubr.bf16.gmra.mrb[0].mxu0 %v1159
  %v1748 = vpop.f32.mrb[0].mxu0
  %v1749 = vadd.f32 %v1588, %v1748
  %v1750 = vpop.f32.mrb[0].mxu0
  %v1751 = vpop.f32.mrb[0].mxu0
  %v1752 = vadd.f32 %v1591, %v1751
  %v1753 = vpop.f32.mrb[0].mxu0
  %1754 = vmatprep.mubr.bf16.mxu0 0
  %1755 = vmatmul.mubr.bf16.gmra.mrb[0].mxu0 %v1162
  %v1756 = vpop.f32.mrb[0].mxu0
  %v1757 = vadd.f32 %v1596, %v1756
  %v1758 = vpop.f32.mrb[0].mxu0
  %v1759 = vpop.f32.mrb[0].mxu0
  %v1760 = vadd.f32 %v1599, %v1759
  %v1761 = vpop.f32.mrb[0].mxu0
  %1762 = vmatprep.mubr.bf16.mxu0 0
  %1763 = vmatmul.mubr.bf16.gmra.mrb[0].mxu0 %v1165
  %v1764 = vpop.f32.mrb[0].mxu0
  %v1765 = vadd.f32 %v1604, %v1764
  %v1766 = vpop.f32.mrb[0].mxu0
  %v1767 = vpop.f32.mrb[0].mxu0
  %v1768 = vadd.f32 %v1607, %v1767
  %v1769 = vpop.f32.mrb[0].mxu0
  %1770 = vmatprep.mubr.bf16.mxu0 0
  %1771 = vmatmul.mubr.bf16.gmra.mrb[0].mxu0 %v1168
  %v1772 = vpop.f32.mrb[0].mxu0
  %v1773 = vadd.f32 %v1612, %v1772
  %v1774 = vpop.f32.mrb[0].mxu0
  %v1775 = vpop.f32.mrb[0].mxu0
  %v1776 = vadd.f32 %v1615, %v1775
  %v1777 = vpop.f32.mrb[0].mxu0
  %1778 = vmatprep.mubr.bf16.mxu0 0
  %1779 = vmatmul.mubr.bf16.gmra.mrb[0].mxu0 %v1171
  %v1780 = vpop.f32.mrb[0].mxu0
  %v1781 = vadd.f32 %v1620, %v1780
  %v1782 = vpop.f32.mrb[0].mxu0
  %v1783 = vpop.f32.mrb[0].mxu0
  %v1784 = vadd.f32 %v1623, %v1783
  %v1785 = vpop.f32.mrb[0].mxu0
  %1786 = vmatprep.mubr.bf16.mxu0 0
  %1787 = vmatmul.mubr.bf16.gmra.mrb[0].mxu0 %v1174
  %v1788 = vpop.f32.mrb[0].mxu0
  %v1789 = vadd.f32 %v1628, %v1788
  %v1790 = vpop.f32.mrb[0].mxu0
  %v1791 = vpop.f32.mrb[0].mxu0
  %v1792 = vadd.f32 %v1631, %v1791
  %v1793 = vpop.f32.mrb[0].mxu0
  %1794 = vmatprep.mubr.bf16.mxu0 0
  %1795 = vmatmul.mubr.bf16.gmra.mrb[0].mxu0 %v1177
  %v1796 = vpop.f32.mrb[0].mxu0
  %v1797 = vadd.f32 %v1636, %v1796
  %v1798 = vpop.f32.mrb[0].mxu0
  %v1799 = vpop.f32.mrb[0].mxu0
  %v1800 = vadd.f32 %v1639, %v1799
  %v1801 = vpop.f32.mrb[0].mxu0
  %1802 = vmatprep.mubr.bf16.mxu0 0
  %1803 = vmatmul.mubr.bf16.gmra.mrb[0].mxu0 %v1180
  %v1804 = vpop.f32.mrb[0].mxu0
  %v1805 = vadd.f32 %v1644, %v1804
  %v1806 = vpop.f32.mrb[0].mxu0
  %v1807 = vpop.f32.mrb[0].mxu0
  %v1808 = vadd.f32 %v1647, %v1807
  %v1809 = vpop.f32.mrb[0].mxu0
  %1810 = vmatprep.mubr.bf16.mxu0 0
  %1811 = vmatmul.mubr.bf16.gmra.mrb[0].mxu0 %v1183
  %v1812 = vpop.f32.mrb[0].mxu0
  %v1813 = vadd.f32 %v1652, %v1812
  %v1814 = vpop.f32.mrb[0].mxu0
  %v1815 = vpop.f32.mrb[0].mxu0
  %v1816 = vadd.f32 %v1655, %v1815
  %v1817 = vpop.f32.mrb[0].mxu0
  %1818 = vmatprep.mubr.bf16.mxu0 0
  %1819 = vmatmul.mubr.bf16.gmra.mrb[0].mxu0 %v1186
  %v1820 = vpop.f32.mrb[0].mxu0
  %v1821 = vadd.f32 %v1660, %v1820
  %v1822 = vpop.f32.mrb[0].mxu0
  %v1823 = vpop.f32.mrb[0].mxu0
  %v1824 = vadd.f32 %v1663, %v1823
  %v1825 = vpop.f32.mrb[0].mxu0
  %1826 = vmatprep.mubr.bf16.mxu0 0
  %1827 = vmatmul.mubr.bf16.gmra.mrb[0].mxu0 %v1189
  %v1828 = vpop.f32.mrb[0].mxu0
  %v1829 = vadd.f32 %v1668, %v1828
  %v1830 = vpop.f32.mrb[0].mxu0
  %v1831 = vpop.f32.mrb[0].mxu0
  %v1832 = vadd.f32 %v1671, %v1831
  %v1833 = vpop.f32.mrb[0].mxu0
  %1834 = vdwg.mxu0
  %v1835 = vmul.f32 %v1709, 0.2
  %v1836 = vmul.f32 %v1712, 0.2
  %v1837 = vmul.f32 %v1717, 0.2
  %v1838 = vmul.f32 %v1720, 0.2
  %v1839 = vmul.f32 %v1725, 0.2
  %v1840 = vmul.f32 %v1728, 0.2
  %v1841 = vmul.f32 %v1733, 0.2
  %v1842 = vmul.f32 %v1736, 0.2
  %v1843 = vmul.f32 %v1741, 0.2
  %v1844 = vmul.f32 %v1744, 0.2
  %v1845 = vmul.f32 %v1749, 0.2
  %v1846 = vmul.f32 %v1752, 0.2
  %v1847 = vmul.f32 %v1757, 0.2
  %v1848 = vmul.f32 %v1760, 0.2
  %v1849 = vmul.f32 %v1765, 0.2
  %v1850 = vmul.f32 %v1768, 0.2
  %v1851 = vmul.f32 %v1773, 0.2
  %v1852 = vmul.f32 %v1776, 0.2
  %v1853 = vmul.f32 %v1781, 0.2
  %v1854 = vmul.f32 %v1784, 0.2
  %v1855 = vmul.f32 %v1789, 0.2
  %v1856 = vmul.f32 %v1792, 0.2
  %v1857 = vmul.f32 %v1797, 0.2
  %v1858 = vmul.f32 %v1800, 0.2
  %v1859 = vmul.f32 %v1805, 0.2
  %v1860 = vmul.f32 %v1808, 0.2
  %v1861 = vmul.f32 %v1813, 0.2
  %v1862 = vmul.f32 %v1816, 0.2
  %v1863 = vmul.f32 %v1821, 0.2
  %v1864 = vmul.f32 %v1824, 0.2
  %v1865 = vmul.f32 %v1829, 0.2
  %v1866 = vmul.f32 %v1832, 0.2
  %v1867 = vmax.f32 %v1709, %v1835
  %v1868 = vmax.f32 %v1712, %v1836
  %v1869 = vmax.f32 %v1717, %v1837
  %v1870 = vmax.f32 %v1720, %v1838
  %v1871 = vmax.f32 %v1725, %v1839
  %v1872 = vmax.f32 %v1728, %v1840
  %v1873 = vmax.f32 %v1733, %v1841
  %v1874 = vmax.f32 %v1736, %v1842
  %v1875 = vmax.f32 %v1741, %v1843
  %v1876 = vmax.f32 %v1744, %v1844
  %v1877 = vmax.f32 %v1749, %v1845
  %v1878 = vmax.f32 %v1752, %v1846
  %v1879 = vmax.f32 %v1757, %v1847
  %v1880 = vmax.f32 %v1760, %v1848
  %v1881 = vmax.f32 %v1765, %v1849
  %v1882 = vmax.f32 %v1768, %v1850
  %v1883 = vmax.f32 %v1773, %v1851
  %v1884 = vmax.f32 %v1776, %v1852
  %v1885 = vmax.f32 %v1781, %v1853
  %v1886 = vmax.f32 %v1784, %v1854
  %v1887 = vmax.f32 %v1789, %v1855
  %v1888 = vmax.f32 %v1792, %v1856
  %v1889 = vmax.f32 %v1797, %v1857
  %v1890 = vmax.f32 %v1800, %v1858
  %v1891 = vmax.f32 %v1805, %v1859
  %v1892 = vmax.f32 %v1808, %v1860
  %v1893 = vmax.f32 %v1813, %v1861
  %v1894 = vmax.f32 %v1816, %v1862
  %v1895 = vmax.f32 %v1821, %v1863
  %v1896 = vmax.f32 %v1824, %v1864
  %v1897 = vmax.f32 %v1829, %v1865
  %v1898 = vmax.f32 %v1832, %v1866
  %v1899 = vpack.c.bf16 %v1868, %v1867
  %v1900 = vpack.c.bf16 %v1870, %v1869
  %v1901 = vpack.c.bf16 %v1872, %v1871
  %v1902 = vpack.c.bf16 %v1874, %v1873
  %v1903 = vpack.c.bf16 %v1876, %v1875
  %v1904 = vpack.c.bf16 %v1878, %v1877
  %v1905 = vpack.c.bf16 %v1880, %v1879
  %v1906 = vpack.c.bf16 %v1882, %v1881
  %v1907 = vpack.c.bf16 %v1884, %v1883
  %v1908 = vpack.c.bf16 %v1886, %v1885
  %v1909 = vpack.c.bf16 %v1888, %v1887
  %v1910 = vpack.c.bf16 %v1890, %v1889
  %v1911 = vpack.c.bf16 %v1892, %v1891
  %v1912 = vpack.c.bf16 %v1894, %v1893
  %v1913 = vpack.c.bf16 %v1896, %v1895
  %v1914 = vpack.c.bf16 %v1898, %v1897
  %v1931 = vunpack.c.l.b16 %v1899
  %v1932 = vunpack.c.h.b16 %v1899
  %v1933 = vunpack.c.l.b16 %v1900
  %v1934 = vunpack.c.h.b16 %v1900
  %v1935 = vunpack.c.l.b16 %v1901
  %v1936 = vunpack.c.h.b16 %v1901
  %v1937 = vunpack.c.l.b16 %v1902
  %v1938 = vunpack.c.h.b16 %v1902
  %v1939 = vunpack.c.l.b16 %v1903
  %v1940 = vunpack.c.h.b16 %v1903
  %v1941 = vunpack.c.l.b16 %v1904
  %v1942 = vunpack.c.h.b16 %v1904
  %v1943 = vunpack.c.l.b16 %v1905
  %v1944 = vunpack.c.h.b16 %v1905
  %v1945 = vunpack.c.l.b16 %v1906
  %v1946 = vunpack.c.h.b16 %v1906
  %v1947 = vunpack.c.l.b16 %v1907
  %v1948 = vunpack.c.h.b16 %v1907
  %v1949 = vunpack.c.l.b16 %v1908
  %v1950 = vunpack.c.h.b16 %v1908
  %v1951 = vunpack.c.l.b16 %v1909
  %v1952 = vunpack.c.h.b16 %v1909
  %v1953 = vunpack.c.l.b16 %v1910
  %v1954 = vunpack.c.h.b16 %v1910
  %v1955 = vunpack.c.l.b16 %v1911
  %v1956 = vunpack.c.h.b16 %v1911
  %v1957 = vunpack.c.l.b16 %v1912
  %v1958 = vunpack.c.h.b16 %v1912
  %v1959 = vunpack.c.l.b16 %v1913
  %v1960 = vunpack.c.h.b16 %v1913
  %v1961 = vunpack.c.l.b16 %v1914
  %v1962 = vunpack.c.h.b16 %v1914
  %v1963 = vpack.c.b16 %v1931, %v1931
  %v1964 = vpack.c.b16 %v1932, %v1932
  %v1965 = vpack.c.b16 %v1933, %v1933
  %v1966 = vpack.c.b16 %v1934, %v1934
  %v1967 = vpack.c.b16 %v1935, %v1935
  %v1968 = vpack.c.b16 %v1936, %v1936
  %v1969 = vpack.c.b16 %v1937, %v1937
  %v1970 = vpack.c.b16 %v1938, %v1938
  %v1971 = vpack.c.b16 %v1939, %v1939
  %v1972 = vpack.c.b16 %v1940, %v1940
  %v1973 = vpack.c.b16 %v1941, %v1941
  %v1974 = vpack.c.b16 %v1942, %v1942
  %v1975 = vpack.c.b16 %v1943, %v1943
  %v1976 = vpack.c.b16 %v1944, %v1944
  %v1977 = vpack.c.b16 %v1945, %v1945
  %v1978 = vpack.c.b16 %v1946, %v1946
  %v1979 = vpack.c.b16 %v1947, %v1947
  %v1980 = vpack.c.b16 %v1948, %v1948
  %v1981 = vpack.c.b16 %v1949, %v1949
  %v1982 = vpack.c.b16 %v1950, %v1950
  %v1983 = vpack.c.b16 %v1951, %v1951
  %v1984 = vpack.c.b16 %v1952, %v1952
  %v1985 = vpack.c.b16 %v1953, %v1953
  %v1986 = vpack.c.b16 %v1954, %v1954
  %v1987 = vpack.c.b16 %v1955, %v1955
  %v1988 = vpack.c.b16 %v1956, %v1956
  %v1989 = vpack.c.b16 %v1957, %v1957
  %v1990 = vpack.c.b16 %v1958, %v1958
  %v1991 = vpack.c.b16 %v1959, %v1959
  %v1992 = vpack.c.b16 %v1960, %v1960
  %v1993 = vpack.c.b16 %v1961, %v1961
  %v1994 = vpack.c.b16 %v1962, %v1962
  %vm2027 = vcmask 257024
  %2028 = vst.msk [vmem:[%s3] sm:$0xf] %vm2027, %v1963
  %2029 = vst.msk [vmem:[%s3 + $0x4] sm:$0xf] %vm2027, %v1964
  %2030 = vst.msk [vmem:[%s3 + $0x8] sm:$0xf] %vm2027, %v1965
  %2031 = vst.msk [vmem:[%s3 + $0xc] sm:$0xf] %vm2027, %v1966
  %2032 = vst.msk [vmem:[%s3 + $0x10] sm:$0xf] %vm2027, %v1967
  %2033 = vst.msk [vmem:[%s3 + $0x14] sm:$0xf] %vm2027, %v1968
  %2034 = vst.msk [vmem:[%s3 + $0x18] sm:$0xf] %vm2027, %v1969
  %2035 = vst.msk [vmem:[%s3 + $0x1c] sm:$0xf] %vm2027, %v1970
  %2036 = vst.msk [vmem:[%s3 + $0x20] sm:$0xf] %vm2027, %v1971
  %2037 = vst.msk [vmem:[%s3 + $0x24] sm:$0xf] %vm2027, %v1972
  %2038 = vst.msk [vmem:[%s3 + $0x28] sm:$0xf] %vm2027, %v1973
  %2039 = vst.msk [vmem:[%s3 + $0x2c] sm:$0xf] %vm2027, %v1974
  %2040 = vst.msk [vmem:[%s3 + $0x30] sm:$0xf] %vm2027, %v1975
  %2041 = vst.msk [vmem:[%s3 + $0x34] sm:$0xf] %vm2027, %v1976
  %2042 = vst.msk [vmem:[%s3 + $0x38] sm:$0xf] %vm2027, %v1977
  %2043 = vst.msk [vmem:[%s3 + $0x3c] sm:$0xf] %vm2027, %v1978
  %2044 = vst.msk [vmem:[%s3 + $0x40] sm:$0xf] %vm2027, %v1979
  %2045 = vst.msk [vmem:[%s3 + $0x44] sm:$0xf] %vm2027, %v1980
  %2046 = vst.msk [vmem:[%s3 + $0x48] sm:$0xf] %vm2027, %v1981
  %2047 = vst.msk [vmem:[%s3 + $0x4c] sm:$0xf] %vm2027, %v1982
  %2048 = vst.msk [vmem:[%s3 + $0x50] sm:$0xf] %vm2027, %v1983
  %2049 = vst.msk [vmem:[%s3 + $0x54] sm:$0xf] %vm2027, %v1984
  %2050 = vst.msk [vmem:[%s3 + $0x58] sm:$0xf] %vm2027, %v1985
  %2051 = vst.msk [vmem:[%s3 + $0x5c] sm:$0xf] %vm2027, %v1986
  %2052 = vst.msk [vmem:[%s3 + $0x60] sm:$0xf] %vm2027, %v1987
  %2053 = vst.msk [vmem:[%s3 + $0x64] sm:$0xf] %vm2027, %v1988
  %2054 = vst.msk [vmem:[%s3 + $0x68] sm:$0xf] %vm2027, %v1989
  %2055 = vst.msk [vmem:[%s3 + $0x6c] sm:$0xf] %vm2027, %v1990
  %2056 = vst.msk [vmem:[%s3 + $0x70] sm:$0xf] %vm2027, %v1991
  %2057 = vst.msk [vmem:[%s3 + $0x74] sm:$0xf] %vm2027, %v1992
  %2058 = vst.msk [vmem:[%s3 + $0x78] sm:$0xf] %vm2027, %v1993
  %vm2059 = vcmask 253952
  %2060 = vst.msk [vmem:[%s3 + $0x7c] sm:$0x1] %vm2059, %v1994
  // Predicated region
  $region14: #{seqpred_forward.11} parent=0 // pred_check
    _
  $region15: #{seqpred_forward.11} parent=0 // pred_check_branch
    %2062 = sbr.rel (0) target = $region17
  $region16: #{seqpred_forward.11} parent=0 // pred_region
    _
  $region17: #{seqpred_forward.11} parent=0 // pred_fallthru
    _
  // Predicated region
  $region18: #{seqpred_forward.11} parent=0 // pred_check
    _
  $region19: #{seqpred_forward.11} parent=0 // pred_check_branch
    %2064 = sbr.rel (0) target = $region21
  $region20: #{seqpred_forward.11} parent=0 // pred_region
    _
  $region21: #{seqpred_forward.11} parent=0 // pred_fallthru
    _

// kernel: seqpred_forward.13
$region0: #{seqpred_forward.13}
  #allocation0 [shape = 'u32[]', space=smem, size = 0x4, offset = 0x4, fixed_abs, tag = 'smem constant byte address 0x4 - core index']
  #allocation1 [shape = 'u32[144,128]{1,0:T(1,128)}', space=vmem, size = 0x12000, scoped, tag = 'internal scratch']
  %s0 = inlined_call_operand.vmem [shape: bf16[16,4000], index: 0, kind: input, shape index: {}]
  %s1 = inlined_call_operand.vmem [shape: bf16[4000,64], index: 1, kind: input, shape index: {}]
  %s2 = inlined_call_operand.vmem [shape: f32[1,64], index: 2, kind: input, shape index: {}]
  %s3 = inlined_call_operand.vmem [shape: bf16[64,64], index: 3, kind: input, shape index: {}]
  %s4 = inlined_call_operand.vmem [shape: f32[1,64], index: 4, kind: input, shape index: {}]
  %s5 = inlined_call_operand.vmem [shape: bf16[64,64], index: 5, kind: input, shape index: {}]
  %s6 = inlined_call_operand.vmem [shape: f32[1,64], index: 6, kind: input, shape index: {}]
  %s7 = inlined_call_operand.vmem [shape: bf16[64,64], index: 7, kind: input, shape index: {}]
  %s8 = inlined_call_operand.vmem [shape: f32[1,64], index: 8, kind: input, shape index: {}]
  %s9 = inlined_call_operand.vmem [shape: bf16[64,64], index: 9, kind: input, shape index: {}]
  %s10 = inlined_call_operand.vmem [shape: f32[1,64], index: 10, kind: input, shape index: {}]
  %s11 = inlined_call_operand.vmem [shape: bf16[64,20], index: 11, kind: input, shape index: {}]
  %s12 = inlined_call_operand.vmem [shape: f32[16,20], index: 12, kind: output, shape index: {}]
  %s13 = sld [smem:[#allocation0]]
  $region58: #{seqpred_forward.13} parent=0
    _
  %s15 = ssub.s32 1, %s13
  %s16 = scalar_select 0, %s15, %s13
  // Predicated region
  $region2: #{seqpred_forward.13} parent=0 // pred_check
    _
  $region3: #{seqpred_forward.13} parent=0 // pred_check_branch
    %18 = sbr.rel (0) target = $region5
  $region4: #{seqpred_forward.13} parent=0 // pred_region
    _
  $region5: #{seqpred_forward.13} parent=0 // pred_fallthru
    _
  // Predicated region
  $region6: #{seqpred_forward.13} parent=0 // pred_check
    _
  $region7: #{seqpred_forward.13} parent=0 // pred_check_branch
    %20 = sbr.rel (0) target = $region9
  $region8: #{seqpred_forward.13} parent=0 // pred_region
    _
  $region9: #{seqpred_forward.13} parent=0 // pred_fallthru
    _
  // Predicated region
  $region10: #{seqpred_forward.13} parent=0 // pred_check
    _
  $region11: #{seqpred_forward.13} parent=0 // pred_check_branch
    %22 = sbr.rel (0) target = $region13
  $region12: #{seqpred_forward.13} parent=0 // pred_region
    _
  $region13: #{seqpred_forward.13} parent=0 // pred_fallthru
    _
  // Predicated region
  $region14: #{seqpred_forward.13} parent=0 // pred_check
    _
  $region15: #{seqpred_forward.13} parent=0 // pred_check_branch
    %24 = sbr.rel (0) target = $region17
  $region16: #{seqpred_forward.13} parent=0 // pred_region
    _
  $region17: #{seqpred_forward.13} parent=0 // pred_fallthru
    _
  // Predicated region
  $region18: #{seqpred_forward.13} parent=0 // pred_check
    _
  $region19: #{seqpred_forward.13} parent=0 // pred_check_branch
    %26 = sbr.rel (0) target = $region21
  $region20: #{seqpred_forward.13} parent=0 // pred_region
    _
  $region21: #{seqpred_forward.13} parent=0 // pred_fallthru
    _
  // Predicated region
  $region22: #{seqpred_forward.13} parent=0 // pred_check
    _
  $region23: #{seqpred_forward.13} parent=0 // pred_check_branch
    %28 = sbr.rel (0) target = $region25
  $region24: #{seqpred_forward.13} parent=0 // pred_region
    _
  $region25: #{seqpred_forward.13} parent=0 // pred_fallthru
    _
  // Predicated region
  $region26: #{seqpred_forward.13} parent=0 // pred_check
    _
  $region27: #{seqpred_forward.13} parent=0 // pred_check_branch
    %30 = sbr.rel (0) target = $region29
  $region28: #{seqpred_forward.13} parent=0 // pred_region
    _
  $region29: #{seqpred_forward.13} parent=0 // pred_fallthru
    _
  // Predicated region
  $region30: #{seqpred_forward.13} parent=0 // pred_check
    _
  $region31: #{seqpred_forward.13} parent=0 // pred_check_branch
    %32 = sbr.rel (0) target = $region33
  $region32: #{seqpred_forward.13} parent=0 // pred_region
    _
  $region33: #{seqpred_forward.13} parent=0 // pred_fallthru
    _
  // Predicated region
  $region34: #{seqpred_forward.13} parent=0 // pred_check
    _
  $region35: #{seqpred_forward.13} parent=0 // pred_check_branch
    %34 = sbr.rel (0) target = $region37
  $region36: #{seqpred_forward.13} parent=0 // pred_region
    _
  $region37: #{seqpred_forward.13} parent=0 // pred_fallthru
    _
  // Predicated region
  $region38: #{seqpred_forward.13} parent=0 // pred_check
    _
  $region39: #{seqpred_forward.13} parent=0 // pred_check_branch
    %36 = sbr.rel (0) target = $region41
  $region40: #{seqpred_forward.13} parent=0 // pred_region
    _
  $region41: #{seqpred_forward.13} parent=0 // pred_fallthru
    _
  // Predicated region
  $region42: #{seqpred_forward.13} parent=0 // pred_check
    _
  $region43: #{seqpred_forward.13} parent=0 // pred_check_branch
    %38 = sbr.rel (0) target = $region45
  $region44: #{seqpred_forward.13} parent=0 // pred_region
    _
  $region45: #{seqpred_forward.13} parent=0 // pred_fallthru
    _
  // Predicated region
  $region46: #{seqpred_forward.13} parent=0 // pred_check
    _
  $region47: #{seqpred_forward.13} parent=0 // pred_check_branch
    %40 = sbr.rel (0) target = $region49
  $region48: #{seqpred_forward.13} parent=0 // pred_region
    _
  $region49: #{seqpred_forward.13} parent=0 // pred_fallthru
    _
  %v42 = vld [vmem:[%s0] sm:$0xff]
  %v43 = vld [vmem:[%s0 + $0x8] sm:$0xff]
  %v44 = vld [vmem:[%s0 + $0x10] sm:$0xff]
  %v45 = vld [vmem:[%s0 + $0x18] sm:$0xff]
  %v46 = vld [vmem:[%s0 + $0x20] sm:$0xff]
  %v47 = vld [vmem:[%s0 + $0x28] sm:$0xff]
  %v48 = vld [vmem:[%s0 + $0x30] sm:$0xff]
  %v49 = vld [vmem:[%s0 + $0x38] sm:$0xff]
  %v50 = vld [vmem:[%s0 + $0x40] sm:$0xff]
  %v51 = vld [vmem:[%s0 + $0x48] sm:$0xff]
  %v52 = vld [vmem:[%s0 + $0x50] sm:$0xff]
  %v53 = vld [vmem:[%s0 + $0x58] sm:$0xff]
  %v54 = vld [vmem:[%s0 + $0x60] sm:$0xff]
  %v55 = vld [vmem:[%s0 + $0x68] sm:$0xff]
  %v56 = vld [vmem:[%s0 + $0x70] sm:$0xff]
  %v57 = vld [vmem:[%s0 + $0x78] sm:$0xff]
  %v58 = vld [vmem:[%s0 + $0x80] sm:$0xff]
  %v59 = vld [vmem:[%s0 + $0x88] sm:$0xff]
  %v60 = vld [vmem:[%s0 + $0x90] sm:$0xff]
  %v61 = vld [vmem:[%s0 + $0x98] sm:$0xff]
  %v62 = vld [vmem:[%s0 + $0xa0] sm:$0xff]
  %v63 = vld [vmem:[%s0 + $0xa8] sm:$0xff]
  %v64 = vld [vmem:[%s0 + $0xb0] sm:$0xff]
  %v65 = vld [vmem:[%s0 + $0xb8] sm:$0xff]
  %v66 = vld [vmem:[%s0 + $0xc0] sm:$0xff]
  %v67 = vld [vmem:[%s0 + $0xc8] sm:$0xff]
  %v68 = vld [vmem:[%s0 + $0xd0] sm:$0xff]
  %v69 = vld [vmem:[%s0 + $0xd8] sm:$0xff]
  %v70 = vld [vmem:[%s0 + $0xe0] sm:$0xff]
  %v71 = vld [vmem:[%s0 + $0xe8] sm:$0xff]
  %v72 = vld [vmem:[%s0 + $0xf0] sm:$0xff]
  %v73 = vld [vmem:[%s0 + $0xf8] sm:$0xff]
  %v74 = vld [vmem:[%s1] sm:$0xf]
  %v75 = vld [vmem:[%s1 + $0x4] sm:$0xf]
  %v76 = vld [vmem:[%s1 + $0x8] sm:$0xf]
  %v77 = vld [vmem:[%s1 + $0xc] sm:$0xf]
  %v78 = vld [vmem:[%s1 + $0x10] sm:$0xf]
  %v79 = vld [vmem:[%s1 + $0x14] sm:$0xf]
  %v80 = vld [vmem:[%s1 + $0x18] sm:$0xf]
  %v81 = vld [vmem:[%s1 + $0x1c] sm:$0xf]
  %v82 = vld [vmem:[%s1 + $0x20] sm:$0xf]
  %v83 = vld [vmem:[%s1 + $0x24] sm:$0xf]
  %v84 = vld [vmem:[%s1 + $0x28] sm:$0xf]
  %v85 = vld [vmem:[%s1 + $0x2c] sm:$0xf]
  %v86 = vld [vmem:[%s1 + $0x30] sm:$0xf]
  %v87 = vld [vmem:[%s1 + $0x34] sm:$0xf]
  %v88 = vld [vmem:[%s1 + $0x38] sm:$0xf]
  %v89 = vld [vmem:[%s1 + $0x3c] sm:$0xf]
  %v90 = vld [vmem:[%s1 + $0x40] sm:$0xf]
  %v91 = vld [vmem:[%s1 + $0x44] sm:$0xf]
  %v92 = vld [vmem:[%s1 + $0x48] sm:$0xf]
  %v93 = vld [vmem:[%s1 + $0x4c] sm:$0xf]
  %v94 = vld [vmem:[%s1 + $0x50] sm:$0xf]
  %v95 = vld [vmem:[%s1 + $0x54] sm:$0xf]
  %v96 = vld [vmem:[%s1 + $0x58] sm:$0xf]
  %v97 = vld [vmem:[%s1 + $0x5c] sm:$0xf]
  %v98 = vld [vmem:[%s1 + $0x60] sm:$0xf]
  %v99 = vld [vmem:[%s1 + $0x64] sm:$0xf]
  %v100 = vld [vmem:[%s1 + $0x68] sm:$0xf]
  %v101 = vld [vmem:[%s1 + $0x6c] sm:$0xf]
  %v102 = vld [vmem:[%s1 + $0x70] sm:$0xf]
  %v103 = vld [vmem:[%s1 + $0x74] sm:$0xf]
  %v104 = vld [vmem:[%s1 + $0x78] sm:$0xf]
  %v105 = vld [vmem:[%s1 + $0x7c] sm:$0xf]
  %v106 = vld [vmem:[%s1 + $0x80] sm:$0xf]
  %v107 = vld [vmem:[%s1 + $0x84] sm:$0xf]
  %v108 = vld [vmem:[%s1 + $0x88] sm:$0xf]
  %v109 = vld [vmem:[%s1 + $0x8c] sm:$0xf]
  %v110 = vld [vmem:[%s1 + $0x90] sm:$0xf]
  %v111 = vld [vmem:[%s1 + $0x94] sm:$0xf]
  %v112 = vld [vmem:[%s1 + $0x98] sm:$0xf]
  %v113 = vld [vmem:[%s1 + $0x9c] sm:$0xf]
  %v114 = vld [vmem:[%s1 + $0xa0] sm:$0xf]
  %v115 = vld [vmem:[%s1 + $0xa4] sm:$0xf]
  %v116 = vld [vmem:[%s1 + $0xa8] sm:$0xf]
  %v117 = vld [vmem:[%s1 + $0xac] sm:$0xf]
  %v118 = vld [vmem:[%s1 + $0xb0] sm:$0xf]
  %v119 = vld [vmem:[%s1 + $0xb4] sm:$0xf]
  %v120 = vld [vmem:[%s1 + $0xb8] sm:$0xf]
  %v121 = vld [vmem:[%s1 + $0xbc] sm:$0xf]
  %v122 = vld [vmem:[%s1 + $0xc0] sm:$0xf]
  %v123 = vld [vmem:[%s1 + $0xc4] sm:$0xf]
  %v124 = vld [vmem:[%s1 + $0xc8] sm:$0xf]
  %v125 = vld [vmem:[%s1 + $0xcc] sm:$0xf]
  %v126 = vld [vmem:[%s1 + $0xd0] sm:$0xf]
  %v127 = vld [vmem:[%s1 + $0xd4] sm:$0xf]
  %v128 = vld [vmem:[%s1 + $0xd8] sm:$0xf]
  %v129 = vld [vmem:[%s1 + $0xdc] sm:$0xf]
  %v130 = vld [vmem:[%s1 + $0xe0] sm:$0xf]
  %v131 = vld [vmem:[%s1 + $0xe4] sm:$0xf]
  %v132 = vld [vmem:[%s1 + $0xe8] sm:$0xf]
  %v133 = vld [vmem:[%s1 + $0xec] sm:$0xf]
  %v134 = vld [vmem:[%s1 + $0xf0] sm:$0xf]
  %v135 = vld [vmem:[%s1 + $0xf4] sm:$0xf]
  %v136 = vld [vmem:[%s1 + $0xf8] sm:$0xf]
  %v137 = vld [vmem:[%s1 + $0xfc] sm:$0xf]
  %v138 = vld [vmem:[%s1 + $0x100] sm:$0xf]
  %v139 = vld [vmem:[%s1 + $0x104] sm:$0xf]
  %v140 = vld [vmem:[%s1 + $0x108] sm:$0xf]
  %v141 = vld [vmem:[%s1 + $0x10c] sm:$0xf]
  %v142 = vld [vmem:[%s1 + $0x110] sm:$0xf]
  %v143 = vld [vmem:[%s1 + $0x114] sm:$0xf]
  %v144 = vld [vmem:[%s1 + $0x118] sm:$0xf]
  %v145 = vld [vmem:[%s1 + $0x11c] sm:$0xf]
  %v146 = vld [vmem:[%s1 + $0x120] sm:$0xf]
  %v147 = vld [vmem:[%s1 + $0x124] sm:$0xf]
  %v148 = vld [vmem:[%s1 + $0x128] sm:$0xf]
  %v149 = vld [vmem:[%s1 + $0x12c] sm:$0xf]
  %v150 = vld [vmem:[%s1 + $0x130] sm:$0xf]
  %v151 = vld [vmem:[%s1 + $0x134] sm:$0xf]
  %v152 = vld [vmem:[%s1 + $0x138] sm:$0xf]
  %v153 = vld [vmem:[%s1 + $0x13c] sm:$0xf]
  %v154 = vld [vmem:[%s1 + $0x140] sm:$0xf]
  %v155 = vld [vmem:[%s1 + $0x144] sm:$0xf]
  %v156 = vld [vmem:[%s1 + $0x148] sm:$0xf]
  %v157 = vld [vmem:[%s1 + $0x14c] sm:$0xf]
  %v158 = vld [vmem:[%s1 + $0x150] sm:$0xf]
  %v159 = vld [vmem:[%s1 + $0x154] sm:$0xf]
  %v160 = vld [vmem:[%s1 + $0x158] sm:$0xf]
  %v161 = vld [vmem:[%s1 + $0x15c] sm:$0xf]
  %v162 = vld [vmem:[%s1 + $0x160] sm:$0xf]
  %v163 = vld [vmem:[%s1 + $0x164] sm:$0xf]
  %v164 = vld [vmem:[%s1 + $0x168] sm:$0xf]
  %v165 = vld [vmem:[%s1 + $0x16c] sm:$0xf]
  %v166 = vld [vmem:[%s1 + $0x170] sm:$0xf]
  %v167 = vld [vmem:[%s1 + $0x174] sm:$0xf]
  %v168 = vld [vmem:[%s1 + $0x178] sm:$0xf]
  %v169 = vld [vmem:[%s1 + $0x17c] sm:$0xf]
  %v170 = vld [vmem:[%s1 + $0x180] sm:$0xf]
  %v171 = vld [vmem:[%s1 + $0x184] sm:$0xf]
  %v172 = vld [vmem:[%s1 + $0x188] sm:$0xf]
  %v173 = vld [vmem:[%s1 + $0x18c] sm:$0xf]
  %v174 = vld [vmem:[%s1 + $0x190] sm:$0xf]
  %v175 = vld [vmem:[%s1 + $0x194] sm:$0xf]
  %v176 = vld [vmem:[%s1 + $0x198] sm:$0xf]
  %v177 = vld [vmem:[%s1 + $0x19c] sm:$0xf]
  %v178 = vld [vmem:[%s1 + $0x1a0] sm:$0xf]
  %v179 = vld [vmem:[%s1 + $0x1a4] sm:$0xf]
  %v180 = vld [vmem:[%s1 + $0x1a8] sm:$0xf]
  %v181 = vld [vmem:[%s1 + $0x1ac] sm:$0xf]
  %v182 = vld [vmem:[%s1 + $0x1b0] sm:$0xf]
  %v183 = vld [vmem:[%s1 + $0x1b4] sm:$0xf]
  %v184 = vld [vmem:[%s1 + $0x1b8] sm:$0xf]
  %v185 = vld [vmem:[%s1 + $0x1bc] sm:$0xf]
  %v186 = vld [vmem:[%s1 + $0x1c0] sm:$0xf]
  %v187 = vld [vmem:[%s1 + $0x1c4] sm:$0xf]
  %v188 = vld [vmem:[%s1 + $0x1c8] sm:$0xf]
  %v189 = vld [vmem:[%s1 + $0x1cc] sm:$0xf]
  %v190 = vld [vmem:[%s1 + $0x1d0] sm:$0xf]
  %v191 = vld [vmem:[%s1 + $0x1d4] sm:$0xf]
  %v192 = vld [vmem:[%s1 + $0x1d8] sm:$0xf]
  %v193 = vld [vmem:[%s1 + $0x1dc] sm:$0xf]
  %v194 = vld [vmem:[%s1 + $0x1e0] sm:$0xf]
  %v195 = vld [vmem:[%s1 + $0x1e4] sm:$0xf]
  %v196 = vld [vmem:[%s1 + $0x1e8] sm:$0xf]
  %v197 = vld [vmem:[%s1 + $0x1ec] sm:$0xf]
  %v198 = vld [vmem:[%s1 + $0x1f0] sm:$0xf]
  %v199 = vld [vmem:[%s1 + $0x1f4] sm:$0xf]
  %v200 = vld [vmem:[%s1 + $0x1f8] sm:$0xf]
  %v201 = vld [vmem:[%s1 + $0x1fc] sm:$0xf]
  %v202 = vld [vmem:[%s1 + $0x200] sm:$0xf]
  %v203 = vld [vmem:[%s1 + $0x204] sm:$0xf]
  %v204 = vld [vmem:[%s1 + $0x208] sm:$0xf]
  %v205 = vld [vmem:[%s1 + $0x20c] sm:$0xf]
  %v206 = vld [vmem:[%s1 + $0x210] sm:$0xf]
  %v207 = vld [vmem:[%s1 + $0x214] sm:$0xf]
  %v208 = vld [vmem:[%s1 + $0x218] sm:$0xf]
  %v209 = vld [vmem:[%s1 + $0x21c] sm:$0xf]
  %v210 = vld [vmem:[%s1 + $0x220] sm:$0xf]
  %v211 = vld [vmem:[%s1 + $0x224] sm:$0xf]
  %v212 = vld [vmem:[%s1 + $0x228] sm:$0xf]
  %v213 = vld [vmem:[%s1 + $0x22c] sm:$0xf]
  %v214 = vld [vmem:[%s1 + $0x230] sm:$0xf]
  %v215 = vld [vmem:[%s1 + $0x234] sm:$0xf]
  %v216 = vld [vmem:[%s1 + $0x238] sm:$0xf]
  %v217 = vld [vmem:[%s1 + $0x23c] sm:$0xf]
  %v218 = vld [vmem:[%s1 + $0x240] sm:$0xf]
  %v219 = vld [vmem:[%s1 + $0x244] sm:$0xf]
  %v220 = vld [vmem:[%s1 + $0x248] sm:$0xf]
  %v221 = vld [vmem:[%s1 + $0x24c] sm:$0xf]
  %v222 = vld [vmem:[%s1 + $0x250] sm:$0xf]
  %v223 = vld [vmem:[%s1 + $0x254] sm:$0xf]
  %v224 = vld [vmem:[%s1 + $0x258] sm:$0xf]
  %v225 = vld [vmem:[%s1 + $0x25c] sm:$0xf]
  %v226 = vld [vmem:[%s1 + $0x260] sm:$0xf]
  %v227 = vld [vmem:[%s1 + $0x264] sm:$0xf]
  %v228 = vld [vmem:[%s1 + $0x268] sm:$0xf]
  %v229 = vld [vmem:[%s1 + $0x26c] sm:$0xf]
  %v230 = vld [vmem:[%s1 + $0x270] sm:$0xf]
  %v231 = vld [vmem:[%s1 + $0x274] sm:$0xf]
  %v232 = vld [vmem:[%s1 + $0x278] sm:$0xf]
  %v233 = vld [vmem:[%s1 + $0x27c] sm:$0xf]
  %v234 = vld [vmem:[%s1 + $0x280] sm:$0xf]
  %v235 = vld [vmem:[%s1 + $0x284] sm:$0xf]
  %v236 = vld [vmem:[%s1 + $0x288] sm:$0xf]
  %v237 = vld [vmem:[%s1 + $0x28c] sm:$0xf]
  %v238 = vld [vmem:[%s1 + $0x290] sm:$0xf]
  %v239 = vld [vmem:[%s1 + $0x294] sm:$0xf]
  %v240 = vld [vmem:[%s1 + $0x298] sm:$0xf]
  %v241 = vld [vmem:[%s1 + $0x29c] sm:$0xf]
  %v242 = vld [vmem:[%s1 + $0x2a0] sm:$0xf]
  %v243 = vld [vmem:[%s1 + $0x2a4] sm:$0xf]
  %v244 = vld [vmem:[%s1 + $0x2a8] sm:$0xf]
  %v245 = vld [vmem:[%s1 + $0x2ac] sm:$0xf]
  %v246 = vld [vmem:[%s1 + $0x2b0] sm:$0xf]
  %v247 = vld [vmem:[%s1 + $0x2b4] sm:$0xf]
  %v248 = vld [vmem:[%s1 + $0x2b8] sm:$0xf]
  %v249 = vld [vmem:[%s1 + $0x2bc] sm:$0xf]
  %v250 = vld [vmem:[%s1 + $0x2c0] sm:$0xf]
  %v251 = vld [vmem:[%s1 + $0x2c4] sm:$0xf]
  %v252 = vld [vmem:[%s1 + $0x2c8] sm:$0xf]
  %v253 = vld [vmem:[%s1 + $0x2cc] sm:$0xf]
  %v254 = vld [vmem:[%s1 + $0x2d0] sm:$0xf]
  %v255 = vld [vmem:[%s1 + $0x2d4] sm:$0xf]
  %v256 = vld [vmem:[%s1 + $0x2d8] sm:$0xf]
  %v257 = vld [vmem:[%s1 + $0x2dc] sm:$0xf]
  %v258 = vld [vmem:[%s1 + $0x2e0] sm:$0xf]
  %v259 = vld [vmem:[%s1 + $0x2e4] sm:$0xf]
  %v260 = vld [vmem:[%s1 + $0x2e8] sm:$0xf]
  %v261 = vld [vmem:[%s1 + $0x2ec] sm:$0xf]
  %v262 = vld [vmem:[%s1 + $0x2f0] sm:$0xf]
  %v263 = vld [vmem:[%s1 + $0x2f4] sm:$0xf]
  %v264 = vld [vmem:[%s1 + $0x2f8] sm:$0xf]
  %v265 = vld [vmem:[%s1 + $0x2fc] sm:$0xf]
  %v266 = vld [vmem:[%s1 + $0x300] sm:$0xf]
  %v267 = vld [vmem:[%s1 + $0x304] sm:$0xf]
  %v268 = vld [vmem:[%s1 + $0x308] sm:$0xf]
  %v269 = vld [vmem:[%s1 + $0x30c] sm:$0xf]
  %v270 = vld [vmem:[%s1 + $0x310] sm:$0xf]
  %v271 = vld [vmem:[%s1 + $0x314] sm:$0xf]
  %v272 = vld [vmem:[%s1 + $0x318] sm:$0xf]
  %v273 = vld [vmem:[%s1 + $0x31c] sm:$0xf]
  %v274 = vld [vmem:[%s1 + $0x320] sm:$0xf]
  %v275 = vld [vmem:[%s1 + $0x324] sm:$0xf]
  %v276 = vld [vmem:[%s1 + $0x328] sm:$0xf]
  %v277 = vld [vmem:[%s1 + $0x32c] sm:$0xf]
  %v278 = vld [vmem:[%s1 + $0x330] sm:$0xf]
  %v279 = vld [vmem:[%s1 + $0x334] sm:$0xf]
  %v280 = vld [vmem:[%s1 + $0x338] sm:$0xf]
  %v281 = vld [vmem:[%s1 + $0x33c] sm:$0xf]
  %v282 = vld [vmem:[%s1 + $0x340] sm:$0xf]
  %v283 = vld [vmem:[%s1 + $0x344] sm:$0xf]
  %v284 = vld [vmem:[%s1 + $0x348] sm:$0xf]
  %v285 = vld [vmem:[%s1 + $0x34c] sm:$0xf]
  %v286 = vld [vmem:[%s1 + $0x350] sm:$0xf]
  %v287 = vld [vmem:[%s1 + $0x354] sm:$0xf]
  %v288 = vld [vmem:[%s1 + $0x358] sm:$0xf]
  %v289 = vld [vmem:[%s1 + $0x35c] sm:$0xf]
  %v290 = vld [vmem:[%s1 + $0x360] sm:$0xf]
  %v291 = vld [vmem:[%s1 + $0x364] sm:$0xf]
  %v292 = vld [vmem:[%s1 + $0x368] sm:$0xf]
  %v293 = vld [vmem:[%s1 + $0x36c] sm:$0xf]
  %v294 = vld [vmem:[%s1 + $0x370] sm:$0xf]
  %v295 = vld [vmem:[%s1 + $0x374] sm:$0xf]
  %v296 = vld [vmem:[%s1 + $0x378] sm:$0xf]
  %v297 = vld [vmem:[%s1 + $0x37c] sm:$0xf]
  %v298 = vld [vmem:[%s1 + $0x380] sm:$0xf]
  %v299 = vld [vmem:[%s1 + $0x384] sm:$0xf]
  %v300 = vld [vmem:[%s1 + $0x388] sm:$0xf]
  %v301 = vld [vmem:[%s1 + $0x38c] sm:$0xf]
  %v302 = vld [vmem:[%s1 + $0x390] sm:$0xf]
  %v303 = vld [vmem:[%s1 + $0x394] sm:$0xf]
  %v304 = vld [vmem:[%s1 + $0x398] sm:$0xf]
  %v305 = vld [vmem:[%s1 + $0x39c] sm:$0xf]
  %v306 = vld [vmem:[%s1 + $0x3a0] sm:$0xf]
  %v307 = vld [vmem:[%s1 + $0x3a4] sm:$0xf]
  %v308 = vld [vmem:[%s1 + $0x3a8] sm:$0xf]
  %v309 = vld [vmem:[%s1 + $0x3ac] sm:$0xf]
  %v310 = vld [vmem:[%s1 + $0x3b0] sm:$0xf]
  %v311 = vld [vmem:[%s1 + $0x3b4] sm:$0xf]
  %v312 = vld [vmem:[%s1 + $0x3b8] sm:$0xf]
  %v313 = vld [vmem:[%s1 + $0x3bc] sm:$0xf]
  %v314 = vld [vmem:[%s1 + $0x3c0] sm:$0xf]
  %v315 = vld [vmem:[%s1 + $0x3c4] sm:$0xf]
  %v316 = vld [vmem:[%s1 + $0x3c8] sm:$0xf]
  %v317 = vld [vmem:[%s1 + $0x3cc] sm:$0xf]
  %v318 = vld [vmem:[%s1 + $0x3d0] sm:$0xf]
  %v319 = vld [vmem:[%s1 + $0x3d4] sm:$0xf]
  %v320 = vld [vmem:[%s1 + $0x3d8] sm:$0xf]
  %v321 = vld [vmem:[%s1 + $0x3dc] sm:$0xf]
  %v322 = vld [vmem:[%s1 + $0x3e0] sm:$0xf]
  %v323 = vld [vmem:[%s1 + $0x3e4] sm:$0xf]
  %v324 = vld [vmem:[%s1 + $0x3e8] sm:$0xf]
  %v325 = vld [vmem:[%s1 + $0x3ec] sm:$0xf]
  %v326 = vld [vmem:[%s1 + $0x3f0] sm:$0xf]
  %v327 = vld [vmem:[%s1 + $0x3f4] sm:$0xf]
  %v328 = vld [vmem:[%s1 + $0x3f8] sm:$0xf]
  %v329 = vld [vmem:[%s1 + $0x3fc] sm:$0xf]
  %v330 = vld [vmem:[%s1 + $0x400] sm:$0xf]
  %v331 = vld [vmem:[%s1 + $0x404] sm:$0xf]
  %v332 = vld [vmem:[%s1 + $0x408] sm:$0xf]
  %v333 = vld [vmem:[%s1 + $0x40c] sm:$0xf]
  %v334 = vld [vmem:[%s1 + $0x410] sm:$0xf]
  %v335 = vld [vmem:[%s1 + $0x414] sm:$0xf]
  %v336 = vld [vmem:[%s1 + $0x418] sm:$0xf]
  %v337 = vld [vmem:[%s1 + $0x41c] sm:$0xf]
  %v338 = vld [vmem:[%s1 + $0x420] sm:$0xf]
  %v339 = vld [vmem:[%s1 + $0x424] sm:$0xf]
  %v340 = vld [vmem:[%s1 + $0x428] sm:$0xf]
  %v341 = vld [vmem:[%s1 + $0x42c] sm:$0xf]
  %v342 = vld [vmem:[%s1 + $0x430] sm:$0xf]
  %v343 = vld [vmem:[%s1 + $0x434] sm:$0xf]
  %v344 = vld [vmem:[%s1 + $0x438] sm:$0xf]
  %v345 = vld [vmem:[%s1 + $0x43c] sm:$0xf]
  %v346 = vld [vmem:[%s1 + $0x440] sm:$0xf]
  %v347 = vld [vmem:[%s1 + $0x444] sm:$0xf]
  %v348 = vld [vmem:[%s1 + $0x448] sm:$0xf]
  %v349 = vld [vmem:[%s1 + $0x44c] sm:$0xf]
  %v350 = vld [vmem:[%s1 + $0x450] sm:$0xf]
  %v351 = vld [vmem:[%s1 + $0x454] sm:$0xf]
  %v352 = vld [vmem:[%s1 + $0x458] sm:$0xf]
  %v353 = vld [vmem:[%s1 + $0x45c] sm:$0xf]
  %v354 = vld [vmem:[%s1 + $0x460] sm:$0xf]
  %v355 = vld [vmem:[%s1 + $0x464] sm:$0xf]
  %v356 = vld [vmem:[%s1 + $0x468] sm:$0xf]
  %v357 = vld [vmem:[%s1 + $0x46c] sm:$0xf]
  %v358 = vld [vmem:[%s1 + $0x470] sm:$0xf]
  %v359 = vld [vmem:[%s1 + $0x474] sm:$0xf]
  %v360 = vld [vmem:[%s1 + $0x478] sm:$0xf]
  %v361 = vld [vmem:[%s1 + $0x47c] sm:$0xf]
  %v362 = vld [vmem:[%s1 + $0x480] sm:$0xf]
  %v363 = vld [vmem:[%s1 + $0x484] sm:$0xf]
  %v364 = vld [vmem:[%s1 + $0x488] sm:$0xf]
  %v365 = vld [vmem:[%s1 + $0x48c] sm:$0xf]
  %v366 = vld [vmem:[%s1 + $0x490] sm:$0xf]
  %v367 = vld [vmem:[%s1 + $0x494] sm:$0xf]
  %v368 = vld [vmem:[%s1 + $0x498] sm:$0xf]
  %v369 = vld [vmem:[%s1 + $0x49c] sm:$0xf]
  %v370 = vld [vmem:[%s1 + $0x4a0] sm:$0xf]
  %v371 = vld [vmem:[%s1 + $0x4a4] sm:$0xf]
  %v372 = vld [vmem:[%s1 + $0x4a8] sm:$0xf]
  %v373 = vld [vmem:[%s1 + $0x4ac] sm:$0xf]
  %v374 = vld [vmem:[%s1 + $0x4b0] sm:$0xf]
  %v375 = vld [vmem:[%s1 + $0x4b4] sm:$0xf]
  %v376 = vld [vmem:[%s1 + $0x4b8] sm:$0xf]
  %v377 = vld [vmem:[%s1 + $0x4bc] sm:$0xf]
  %v378 = vld [vmem:[%s1 + $0x4c0] sm:$0xf]
  %v379 = vld [vmem:[%s1 + $0x4c4] sm:$0xf]
  %v380 = vld [vmem:[%s1 + $0x4c8] sm:$0xf]
  %v381 = vld [vmem:[%s1 + $0x4cc] sm:$0xf]
  %v382 = vld [vmem:[%s1 + $0x4d0] sm:$0xf]
  %v383 = vld [vmem:[%s1 + $0x4d4] sm:$0xf]
  %v384 = vld [vmem:[%s1 + $0x4d8] sm:$0xf]
  %v385 = vld [vmem:[%s1 + $0x4dc] sm:$0xf]
  %v386 = vld [vmem:[%s1 + $0x4e0] sm:$0xf]
  %v387 = vld [vmem:[%s1 + $0x4e4] sm:$0xf]
  %v388 = vld [vmem:[%s1 + $0x4e8] sm:$0xf]
  %v389 = vld [vmem:[%s1 + $0x4ec] sm:$0xf]
  %v390 = vld [vmem:[%s1 + $0x4f0] sm:$0xf]
  %v391 = vld [vmem:[%s1 + $0x4f4] sm:$0xf]
  %v392 = vld [vmem:[%s1 + $0x4f8] sm:$0xf]
  %v393 = vld [vmem:[%s1 + $0x4fc] sm:$0xf]
  %v394 = vld [vmem:[%s1 + $0x500] sm:$0xf]
  %v395 = vld [vmem:[%s1 + $0x504] sm:$0xf]
  %v396 = vld [vmem:[%s1 + $0x508] sm:$0xf]
  %v397 = vld [vmem:[%s1 + $0x50c] sm:$0xf]
  %v398 = vld [vmem:[%s1 + $0x510] sm:$0xf]
  %v399 = vld [vmem:[%s1 + $0x514] sm:$0xf]
  %v400 = vld [vmem:[%s1 + $0x518] sm:$0xf]
  %v401 = vld [vmem:[%s1 + $0x51c] sm:$0xf]
  %v402 = vld [vmem:[%s1 + $0x520] sm:$0xf]
  %v403 = vld [vmem:[%s1 + $0x524] sm:$0xf]
  %v404 = vld [vmem:[%s1 + $0x528] sm:$0xf]
  %v405 = vld [vmem:[%s1 + $0x52c] sm:$0xf]
  %v406 = vld [vmem:[%s1 + $0x530] sm:$0xf]
  %v407 = vld [vmem:[%s1 + $0x534] sm:$0xf]
  %v408 = vld [vmem:[%s1 + $0x538] sm:$0xf]
  %v409 = vld [vmem:[%s1 + $0x53c] sm:$0xf]
  %v410 = vld [vmem:[%s1 + $0x540] sm:$0xf]
  %v411 = vld [vmem:[%s1 + $0x544] sm:$0xf]
  %v412 = vld [vmem:[%s1 + $0x548] sm:$0xf]
  %v413 = vld [vmem:[%s1 + $0x54c] sm:$0xf]
  %v414 = vld [vmem:[%s1 + $0x550] sm:$0xf]
  %v415 = vld [vmem:[%s1 + $0x554] sm:$0xf]
  %v416 = vld [vmem:[%s1 + $0x558] sm:$0xf]
  %v417 = vld [vmem:[%s1 + $0x55c] sm:$0xf]
  %v418 = vld [vmem:[%s1 + $0x560] sm:$0xf]
  %v419 = vld [vmem:[%s1 + $0x564] sm:$0xf]
  %v420 = vld [vmem:[%s1 + $0x568] sm:$0xf]
  %v421 = vld [vmem:[%s1 + $0x56c] sm:$0xf]
  %v422 = vld [vmem:[%s1 + $0x570] sm:$0xf]
  %v423 = vld [vmem:[%s1 + $0x574] sm:$0xf]
  %v424 = vld [vmem:[%s1 + $0x578] sm:$0xf]
  %v425 = vld [vmem:[%s1 + $0x57c] sm:$0xf]
  %v426 = vld [vmem:[%s1 + $0x580] sm:$0xf]
  %v427 = vld [vmem:[%s1 + $0x584] sm:$0xf]
  %v428 = vld [vmem:[%s1 + $0x588] sm:$0xf]
  %v429 = vld [vmem:[%s1 + $0x58c] sm:$0xf]
  %v430 = vld [vmem:[%s1 + $0x590] sm:$0xf]
  %v431 = vld [vmem:[%s1 + $0x594] sm:$0xf]
  %v432 = vld [vmem:[%s1 + $0x598] sm:$0xf]
  %v433 = vld [vmem:[%s1 + $0x59c] sm:$0xf]
  %v434 = vld [vmem:[%s1 + $0x5a0] sm:$0xf]
  %v435 = vld [vmem:[%s1 + $0x5a4] sm:$0xf]
  %v436 = vld [vmem:[%s1 + $0x5a8] sm:$0xf]
  %v437 = vld [vmem:[%s1 + $0x5ac] sm:$0xf]
  %v438 = vld [vmem:[%s1 + $0x5b0] sm:$0xf]
  %v439 = vld [vmem:[%s1 + $0x5b4] sm:$0xf]
  %v440 = vld [vmem:[%s1 + $0x5b8] sm:$0xf]
  %v441 = vld [vmem:[%s1 + $0x5bc] sm:$0xf]
  %v442 = vld [vmem:[%s1 + $0x5c0] sm:$0xf]
  %v443 = vld [vmem:[%s1 + $0x5c4] sm:$0xf]
  %v444 = vld [vmem:[%s1 + $0x5c8] sm:$0xf]
  %v445 = vld [vmem:[%s1 + $0x5cc] sm:$0xf]
  %v446 = vld [vmem:[%s1 + $0x5d0] sm:$0xf]
  %v447 = vld [vmem:[%s1 + $0x5d4] sm:$0xf]
  %v448 = vld [vmem:[%s1 + $0x5d8] sm:$0xf]
  %v449 = vld [vmem:[%s1 + $0x5dc] sm:$0xf]
  %v450 = vld [vmem:[%s1 + $0x5e0] sm:$0xf]
  %v451 = vld [vmem:[%s1 + $0x5e4] sm:$0xf]
  %v452 = vld [vmem:[%s1 + $0x5e8] sm:$0xf]
  %v453 = vld [vmem:[%s1 + $0x5ec] sm:$0xf]
  %v454 = vld [vmem:[%s1 + $0x5f0] sm:$0xf]
  %v455 = vld [vmem:[%s1 + $0x5f4] sm:$0xf]
  %v456 = vld [vmem:[%s1 + $0x5f8] sm:$0xf]
  %v457 = vld [vmem:[%s1 + $0x5fc] sm:$0xf]
  %v458 = vld [vmem:[%s1 + $0x600] sm:$0xf]
  %v459 = vld [vmem:[%s1 + $0x604] sm:$0xf]
  %v460 = vld [vmem:[%s1 + $0x608] sm:$0xf]
  %v461 = vld [vmem:[%s1 + $0x60c] sm:$0xf]
  %v462 = vld [vmem:[%s1 + $0x610] sm:$0xf]
  %v463 = vld [vmem:[%s1 + $0x614] sm:$0xf]
  %v464 = vld [vmem:[%s1 + $0x618] sm:$0xf]
  %v465 = vld [vmem:[%s1 + $0x61c] sm:$0xf]
  %v466 = vld [vmem:[%s1 + $0x620] sm:$0xf]
  %v467 = vld [vmem:[%s1 + $0x624] sm:$0xf]
  %v468 = vld [vmem:[%s1 + $0x628] sm:$0xf]
  %v469 = vld [vmem:[%s1 + $0x62c] sm:$0xf]
  %v470 = vld [vmem:[%s1 + $0x630] sm:$0xf]
  %v471 = vld [vmem:[%s1 + $0x634] sm:$0xf]
  %v472 = vld [vmem:[%s1 + $0x638] sm:$0xf]
  %v473 = vld [vmem:[%s1 + $0x63c] sm:$0xf]
  %v474 = vld [vmem:[%s1 + $0x640] sm:$0xf]
  %v475 = vld [vmem:[%s1 + $0x644] sm:$0xf]
  %v476 = vld [vmem:[%s1 + $0x648] sm:$0xf]
  %v477 = vld [vmem:[%s1 + $0x64c] sm:$0xf]
  %v478 = vld [vmem:[%s1 + $0x650] sm:$0xf]
  %v479 = vld [vmem:[%s1 + $0x654] sm:$0xf]
  %v480 = vld [vmem:[%s1 + $0x658] sm:$0xf]
  %v481 = vld [vmem:[%s1 + $0x65c] sm:$0xf]
  %v482 = vld [vmem:[%s1 + $0x660] sm:$0xf]
  %v483 = vld [vmem:[%s1 + $0x664] sm:$0xf]
  %v484 = vld [vmem:[%s1 + $0x668] sm:$0xf]
  %v485 = vld [vmem:[%s1 + $0x66c] sm:$0xf]
  %v486 = vld [vmem:[%s1 + $0x670] sm:$0xf]
  %v487 = vld [vmem:[%s1 + $0x674] sm:$0xf]
  %v488 = vld [vmem:[%s1 + $0x678] sm:$0xf]
  %v489 = vld [vmem:[%s1 + $0x67c] sm:$0xf]
  %v490 = vld [vmem:[%s1 + $0x680] sm:$0xf]
  %v491 = vld [vmem:[%s1 + $0x684] sm:$0xf]
  %v492 = vld [vmem:[%s1 + $0x688] sm:$0xf]
  %v493 = vld [vmem:[%s1 + $0x68c] sm:$0xf]
  %v494 = vld [vmem:[%s1 + $0x690] sm:$0xf]
  %v495 = vld [vmem:[%s1 + $0x694] sm:$0xf]
  %v496 = vld [vmem:[%s1 + $0x698] sm:$0xf]
  %v497 = vld [vmem:[%s1 + $0x69c] sm:$0xf]
  %v498 = vld [vmem:[%s1 + $0x6a0] sm:$0xf]
  %v499 = vld [vmem:[%s1 + $0x6a4] sm:$0xf]
  %v500 = vld [vmem:[%s1 + $0x6a8] sm:$0xf]
  %v501 = vld [vmem:[%s1 + $0x6ac] sm:$0xf]
  %v502 = vld [vmem:[%s1 + $0x6b0] sm:$0xf]
  %v503 = vld [vmem:[%s1 + $0x6b4] sm:$0xf]
  %v504 = vld [vmem:[%s1 + $0x6b8] sm:$0xf]
  %v505 = vld [vmem:[%s1 + $0x6bc] sm:$0xf]
  %v506 = vld [vmem:[%s1 + $0x6c0] sm:$0xf]
  %v507 = vld [vmem:[%s1 + $0x6c4] sm:$0xf]
  %v508 = vld [vmem:[%s1 + $0x6c8] sm:$0xf]
  %v509 = vld [vmem:[%s1 + $0x6cc] sm:$0xf]
  %v510 = vld [vmem:[%s1 + $0x6d0] sm:$0xf]
  %v511 = vld [vmem:[%s1 + $0x6d4] sm:$0xf]
  %v512 = vld [vmem:[%s1 + $0x6d8] sm:$0xf]
  %v513 = vld [vmem:[%s1 + $0x6dc] sm:$0xf]
  %v514 = vld [vmem:[%s1 + $0x6e0] sm:$0xf]
  %v515 = vld [vmem:[%s1 + $0x6e4] sm:$0xf]
  %v516 = vld [vmem:[%s1 + $0x6e8] sm:$0xf]
  %v517 = vld [vmem:[%s1 + $0x6ec] sm:$0xf]
  %v518 = vld [vmem:[%s1 + $0x6f0] sm:$0xf]
  %v519 = vld [vmem:[%s1 + $0x6f4] sm:$0xf]
  %v520 = vld [vmem:[%s1 + $0x6f8] sm:$0xf]
  %v521 = vld [vmem:[%s1 + $0x6fc] sm:$0xf]
  %v522 = vld [vmem:[%s1 + $0x700] sm:$0xf]
  %v523 = vld [vmem:[%s1 + $0x704] sm:$0xf]
  %v524 = vld [vmem:[%s1 + $0x708] sm:$0xf]
  %v525 = vld [vmem:[%s1 + $0x70c] sm:$0xf]
  %v526 = vld [vmem:[%s1 + $0x710] sm:$0xf]
  %v527 = vld [vmem:[%s1 + $0x714] sm:$0xf]
  %v528 = vld [vmem:[%s1 + $0x718] sm:$0xf]
  %v529 = vld [vmem:[%s1 + $0x71c] sm:$0xf]
  %v530 = vld [vmem:[%s1 + $0x720] sm:$0xf]
  %v531 = vld [vmem:[%s1 + $0x724] sm:$0xf]
  %v532 = vld [vmem:[%s1 + $0x728] sm:$0xf]
  %v533 = vld [vmem:[%s1 + $0x72c] sm:$0xf]
  %v534 = vld [vmem:[%s1 + $0x730] sm:$0xf]
  %v535 = vld [vmem:[%s1 + $0x734] sm:$0xf]
  %v536 = vld [vmem:[%s1 + $0x738] sm:$0xf]
  %v537 = vld [vmem:[%s1 + $0x73c] sm:$0xf]
  %v538 = vld [vmem:[%s1 + $0x740] sm:$0xf]
  %v539 = vld [vmem:[%s1 + $0x744] sm:$0xf]
  %v540 = vld [vmem:[%s1 + $0x748] sm:$0xf]
  %v541 = vld [vmem:[%s1 + $0x74c] sm:$0xf]
  %v542 = vld [vmem:[%s1 + $0x750] sm:$0xf]
  %v543 = vld [vmem:[%s1 + $0x754] sm:$0xf]
  %v544 = vld [vmem:[%s1 + $0x758] sm:$0xf]
  %v545 = vld [vmem:[%s1 + $0x75c] sm:$0xf]
  %v546 = vld [vmem:[%s1 + $0x760] sm:$0xf]
  %v547 = vld [vmem:[%s1 + $0x764] sm:$0xf]
  %v548 = vld [vmem:[%s1 + $0x768] sm:$0xf]
  %v549 = vld [vmem:[%s1 + $0x76c] sm:$0xf]
  %v550 = vld [vmem:[%s1 + $0x770] sm:$0xf]
  %v551 = vld [vmem:[%s1 + $0x774] sm:$0xf]
  %v552 = vld [vmem:[%s1 + $0x778] sm:$0xf]
  %v553 = vld [vmem:[%s1 + $0x77c] sm:$0xf]
  %v554 = vld [vmem:[%s1 + $0x780] sm:$0xf]
  %v555 = vld [vmem:[%s1 + $0x784] sm:$0xf]
  %v556 = vld [vmem:[%s1 + $0x788] sm:$0xf]
  %v557 = vld [vmem:[%s1 + $0x78c] sm:$0xf]
  %v558 = vld [vmem:[%s1 + $0x790] sm:$0xf]
  %v559 = vld [vmem:[%s1 + $0x794] sm:$0xf]
  %v560 = vld [vmem:[%s1 + $0x798] sm:$0xf]
  %v561 = vld [vmem:[%s1 + $0x79c] sm:$0xf]
  %v562 = vld [vmem:[%s1 + $0x7a0] sm:$0xf]
  %v563 = vld [vmem:[%s1 + $0x7a4] sm:$0xf]
  %v564 = vld [vmem:[%s1 + $0x7a8] sm:$0xf]
  %v565 = vld [vmem:[%s1 + $0x7ac] sm:$0xf]
  %v566 = vld [vmem:[%s1 + $0x7b0] sm:$0xf]
  %v567 = vld [vmem:[%s1 + $0x7b4] sm:$0xf]
  %v568 = vld [vmem:[%s1 + $0x7b8] sm:$0xf]
  %v569 = vld [vmem:[%s1 + $0x7bc] sm:$0xf]
  %v570 = vld [vmem:[%s1 + $0x7c0] sm:$0xf]
  %v571 = vld [vmem:[%s1 + $0x7c4] sm:$0xf]
  %v572 = vld [vmem:[%s1 + $0x7c8] sm:$0xf]
  %v573 = vld [vmem:[%s1 + $0x7cc] sm:$0xf]
  %v574 = vld [vmem:[%s2] sm:$0x1]
  %v576 = vlaneseq
  %v577 = vshrl.u32 %v576, 7
  %v578 = vsub.s32 0, %v577
  %v579 = vrot.slane %v574, %v578
  %v613 = vunpack.c.l.b16 %v42
  %v614 = vunpack.c.h.b16 %v42
  %v615 = vunpack.c.l.b16 %v43
  %v616 = vunpack.c.h.b16 %v43
  %v617 = vunpack.c.l.b16 %v44
  %v618 = vunpack.c.h.b16 %v44
  %v619 = vunpack.c.l.b16 %v45
  %v620 = vunpack.c.h.b16 %v45
  %v621 = vunpack.c.l.b16 %v46
  %v622 = vunpack.c.h.b16 %v46
  %v623 = vunpack.c.l.b16 %v47
  %v624 = vunpack.c.h.b16 %v47
  %v625 = vunpack.c.l.b16 %v48
  %v626 = vunpack.c.h.b16 %v48
  %v627 = vunpack.c.l.b16 %v49
  %v628 = vunpack.c.h.b16 %v49
  %v629 = vunpack.c.l.b16 %v50
  %v630 = vunpack.c.h.b16 %v50
  %v631 = vunpack.c.l.b16 %v51
  %v632 = vunpack.c.h.b16 %v51
  %v633 = vunpack.c.l.b16 %v52
  %v634 = vunpack.c.h.b16 %v52
  %v635 = vunpack.c.l.b16 %v53
  %v636 = vunpack.c.h.b16 %v53
  %v637 = vunpack.c.l.b16 %v54
  %v638 = vunpack.c.h.b16 %v54
  %v639 = vunpack.c.l.b16 %v55
  %v640 = vunpack.c.h.b16 %v55
  %v641 = vunpack.c.l.b16 %v56
  %v642 = vunpack.c.h.b16 %v56
  %v643 = vunpack.c.l.b16 %v57
  %v644 = vunpack.c.h.b16 %v57
  %v645 = vunpack.c.l.b16 %v58
  %v646 = vunpack.c.h.b16 %v58
  %v647 = vunpack.c.l.b16 %v59
  %v648 = vunpack.c.h.b16 %v59
  %v649 = vunpack.c.l.b16 %v60
  %v650 = vunpack.c.h.b16 %v60
  %v651 = vunpack.c.l.b16 %v61
  %v652 = vunpack.c.h.b16 %v61
  %v653 = vunpack.c.l.b16 %v62
  %v654 = vunpack.c.h.b16 %v62
  %v655 = vunpack.c.l.b16 %v63
  %v656 = vunpack.c.h.b16 %v63
  %v657 = vunpack.c.l.b16 %v64
  %v658 = vunpack.c.h.b16 %v64
  %v659 = vunpack.c.l.b16 %v65
  %v660 = vunpack.c.h.b16 %v65
  %v661 = vunpack.c.l.b16 %v66
  %v662 = vunpack.c.h.b16 %v66
  %v663 = vunpack.c.l.b16 %v67
  %v664 = vunpack.c.h.b16 %v67
  %v665 = vunpack.c.l.b16 %v68
  %v666 = vunpack.c.h.b16 %v68
  %v667 = vunpack.c.l.b16 %v69
  %v668 = vunpack.c.h.b16 %v69
  %v669 = vunpack.c.l.b16 %v70
  %v670 = vunpack.c.h.b16 %v70
  %v671 = vunpack.c.l.b16 %v71
  %v672 = vunpack.c.h.b16 %v71
  %v673 = vunpack.c.l.b16 %v72
  %v674 = vunpack.c.h.b16 %v72
  %v675 = vunpack.c.l.b16 %v73
  %v676 = vunpack.c.h.b16 %v73
  %v677 = vpack.c.b16 %v645, %v613
  %v678 = vpack.c.b16 %v646, %v614
  %v679 = vpack.c.b16 %v647, %v615
  %v680 = vpack.c.b16 %v648, %v616
  %v681 = vpack.c.b16 %v649, %v617
  %v682 = vpack.c.b16 %v650, %v618
  %v683 = vpack.c.b16 %v651, %v619
  %v684 = vpack.c.b16 %v652, %v620
  %v685 = vpack.c.b16 %v653, %v621
  %v686 = vpack.c.b16 %v654, %v622
  %v687 = vpack.c.b16 %v655, %v623
  %v688 = vpack.c.b16 %v656, %v624
  %v689 = vpack.c.b16 %v657, %v625
  %v690 = vpack.c.b16 %v658, %v626
  %v691 = vpack.c.b16 %v659, %v627
  %v692 = vpack.c.b16 %v660, %v628
  %v693 = vpack.c.b16 %v661, %v629
  %v694 = vpack.c.b16 %v662, %v630
  %v695 = vpack.c.b16 %v663, %v631
  %v696 = vpack.c.b16 %v664, %v632
  %v697 = vpack.c.b16 %v665, %v633
  %v698 = vpack.c.b16 %v666, %v634
  %v699 = vpack.c.b16 %v667, %v635
  %v700 = vpack.c.b16 %v668, %v636
  %v701 = vpack.c.b16 %v669, %v637
  %v702 = vpack.c.b16 %v670, %v638
  %v703 = vpack.c.b16 %v671, %v639
  %v704 = vpack.c.b16 %v672, %v640
  %v705 = vpack.c.b16 %v673, %v641
  %v706 = vpack.c.b16 %v674, %v642
  %v707 = vpack.c.b16 %v675, %v643
  %v708 = vpack.c.b16 %v676, %v644
  %v1240 = vunpack.c.l.b16 %v74
  %v1241 = vunpack.c.l.b16 %v75
  %v1242 = vunpack.c.l.b16 %v76
  %v1243 = vunpack.c.l.b16 %v77
  %v1244 = vunpack.c.l.b16 %v78
  %v1245 = vunpack.c.l.b16 %v79
  %v1246 = vunpack.c.l.b16 %v80
  %v1247 = vunpack.c.l.b16 %v81
  %v1248 = vunpack.c.l.b16 %v82
  %v1249 = vunpack.c.l.b16 %v83
  %v1250 = vunpack.c.l.b16 %v84
  %v1251 = vunpack.c.l.b16 %v85
  %v1252 = vunpack.c.l.b16 %v86
  %v1253 = vunpack.c.l.b16 %v87
  %v1254 = vunpack.c.l.b16 %v88
  %v1255 = vunpack.c.l.b16 %v89
  %v1256 = vunpack.c.l.b16 %v90
  %v1257 = vunpack.c.l.b16 %v91
  %v1258 = vunpack.c.l.b16 %v92
  %v1259 = vunpack.c.l.b16 %v93
  %v1260 = vunpack.c.l.b16 %v94
  %v1261 = vunpack.c.l.b16 %v95
  %v1262 = vunpack.c.l.b16 %v96
  %v1263 = vunpack.c.l.b16 %v97
  %v1264 = vunpack.c.l.b16 %v98
  %v1265 = vunpack.c.l.b16 %v99
  %v1266 = vunpack.c.l.b16 %v100
  %v1267 = vunpack.c.l.b16 %v101
  %v1268 = vunpack.c.l.b16 %v102
  %v1269 = vunpack.c.l.b16 %v103
  %v1270 = vunpack.c.l.b16 %v104
  %v1271 = vunpack.c.l.b16 %v105
  %v1272 = vunpack.c.l.b16 %v106
  %v1273 = vunpack.c.l.b16 %v107
  %v1274 = vunpack.c.l.b16 %v108
  %v1275 = vunpack.c.l.b16 %v109
  %v1276 = vunpack.c.l.b16 %v110
  %v1277 = vunpack.c.l.b16 %v111
  %v1278 = vunpack.c.l.b16 %v112
  %v1279 = vunpack.c.l.b16 %v113
  %v1280 = vunpack.c.l.b16 %v114
  %v1281 = vunpack.c.l.b16 %v115
  %v1282 = vunpack.c.l.b16 %v116
  %v1283 = vunpack.c.l.b16 %v117
  %v1284 = vunpack.c.l.b16 %v118
  %v1285 = vunpack.c.l.b16 %v119
  %v1286 = vunpack.c.l.b16 %v120
  %v1287 = vunpack.c.l.b16 %v121
  %v1288 = vunpack.c.l.b16 %v122
  %v1289 = vunpack.c.l.b16 %v123
  %v1290 = vunpack.c.l.b16 %v124
  %v1291 = vunpack.c.l.b16 %v125
  %v1292 = vunpack.c.l.b16 %v126
  %v1293 = vunpack.c.l.b16 %v127
  %v1294 = vunpack.c.l.b16 %v128
  %v1295 = vunpack.c.l.b16 %v129
  %v1296 = vunpack.c.l.b16 %v130
  %v1297 = vunpack.c.l.b16 %v131
  %v1298 = vunpack.c.l.b16 %v132
  %v1299 = vunpack.c.l.b16 %v133
  %v1300 = vunpack.c.l.b16 %v134
  %v1301 = vunpack.c.l.b16 %v135
  %v1302 = vunpack.c.l.b16 %v136
  %v1303 = vunpack.c.l.b16 %v137
  %v1304 = vunpack.c.l.b16 %v138
  %v1305 = vunpack.c.l.b16 %v139
  %v1306 = vunpack.c.l.b16 %v140
  %v1307 = vunpack.c.l.b16 %v141
  %v1308 = vunpack.c.l.b16 %v142
  %v1309 = vunpack.c.l.b16 %v143
  %v1310 = vunpack.c.l.b16 %v144
  %v1311 = vunpack.c.l.b16 %v145
  %v1312 = vunpack.c.l.b16 %v146
  %v1313 = vunpack.c.l.b16 %v147
  %v1314 = vunpack.c.l.b16 %v148
  %v1315 = vunpack.c.l.b16 %v149
  %v1316 = vunpack.c.l.b16 %v150
  %v1317 = vunpack.c.l.b16 %v151
  %v1318 = vunpack.c.l.b16 %v152
  %v1319 = vunpack.c.l.b16 %v153
  %v1320 = vunpack.c.l.b16 %v154
  %v1321 = vunpack.c.l.b16 %v155
  %v1322 = vunpack.c.l.b16 %v156
  %v1323 = vunpack.c.l.b16 %v157
  %v1324 = vunpack.c.l.b16 %v158
  %v1325 = vunpack.c.l.b16 %v159
  %v1326 = vunpack.c.l.b16 %v160
  %v1327 = vunpack.c.l.b16 %v161
  %v1328 = vunpack.c.l.b16 %v162
  %v1329 = vunpack.c.l.b16 %v163
  %v1330 = vunpack.c.l.b16 %v164
  %v1331 = vunpack.c.l.b16 %v165
  %v1332 = vunpack.c.l.b16 %v166
  %v1333 = vunpack.c.l.b16 %v167
  %v1334 = vunpack.c.l.b16 %v168
  %v1335 = vunpack.c.l.b16 %v169
  %v1336 = vunpack.c.l.b16 %v170
  %v1337 = vunpack.c.l.b16 %v171
  %v1338 = vunpack.c.l.b16 %v172
  %v1339 = vunpack.c.l.b16 %v173
  %v1340 = vunpack.c.l.b16 %v174
  %v1341 = vunpack.c.l.b16 %v175
  %v1342 = vunpack.c.l.b16 %v176
  %v1343 = vunpack.c.l.b16 %v177
  %v1344 = vunpack.c.l.b16 %v178
  %v1345 = vunpack.c.l.b16 %v179
  %v1346 = vunpack.c.l.b16 %v180
  %v1347 = vunpack.c.l.b16 %v181
  %v1348 = vunpack.c.l.b16 %v182
  %v1349 = vunpack.c.l.b16 %v183
  %v1350 = vunpack.c.l.b16 %v184
  %v1351 = vunpack.c.l.b16 %v185
  %v1352 = vunpack.c.l.b16 %v186
  %v1353 = vunpack.c.l.b16 %v187
  %v1354 = vunpack.c.l.b16 %v188
  %v1355 = vunpack.c.l.b16 %v189
  %v1356 = vunpack.c.l.b16 %v190
  %v1357 = vunpack.c.l.b16 %v191
  %v1358 = vunpack.c.l.b16 %v192
  %v1359 = vunpack.c.l.b16 %v193
  %v1360 = vunpack.c.l.b16 %v194
  %v1361 = vunpack.c.l.b16 %v195
  %v1362 = vunpack.c.l.b16 %v196
  %v1363 = vunpack.c.l.b16 %v197
  %v1364 = vunpack.c.l.b16 %v198
  %v1365 = vunpack.c.l.b16 %v199
  %v1366 = vunpack.c.l.b16 %v200
  %v1367 = vunpack.c.l.b16 %v201
  %v1368 = vunpack.c.l.b16 %v202
  %v1369 = vunpack.c.l.b16 %v203
  %v1370 = vunpack.c.l.b16 %v204
  %v1371 = vunpack.c.l.b16 %v205
  %v1372 = vunpack.c.l.b16 %v206
  %v1373 = vunpack.c.l.b16 %v207
  %v1374 = vunpack.c.l.b16 %v208
  %v1375 = vunpack.c.l.b16 %v209
  %v1376 = vunpack.c.l.b16 %v210
  %v1377 = vunpack.c.l.b16 %v211
  %v1378 = vunpack.c.l.b16 %v212
  %v1379 = vunpack.c.l.b16 %v213
  %v1380 = vunpack.c.l.b16 %v214
  %v1381 = vunpack.c.l.b16 %v215
  %v1382 = vunpack.c.l.b16 %v216
  %v1383 = vunpack.c.l.b16 %v217
  %v1384 = vunpack.c.l.b16 %v218
  %v1385 = vunpack.c.l.b16 %v219
  %v1386 = vunpack.c.l.b16 %v220
  %v1387 = vunpack.c.l.b16 %v221
  %v1388 = vunpack.c.l.b16 %v222
  %v1389 = vunpack.c.l.b16 %v223
  %v1390 = vunpack.c.l.b16 %v224
  %v1391 = vunpack.c.l.b16 %v225
  %v1392 = vunpack.c.l.b16 %v226
  %v1393 = vunpack.c.l.b16 %v227
  %v1394 = vunpack.c.l.b16 %v228
  %v1395 = vunpack.c.l.b16 %v229
  %v1396 = vunpack.c.l.b16 %v230
  %v1397 = vunpack.c.l.b16 %v231
  %v1398 = vunpack.c.l.b16 %v232
  %v1399 = vunpack.c.l.b16 %v233
  %v1400 = vunpack.c.l.b16 %v234
  %v1401 = vunpack.c.l.b16 %v235
  %v1402 = vunpack.c.l.b16 %v236
  %v1403 = vunpack.c.l.b16 %v237
  %v1404 = vunpack.c.l.b16 %v238
  %v1405 = vunpack.c.l.b16 %v239
  %v1406 = vunpack.c.l.b16 %v240
  %v1407 = vunpack.c.l.b16 %v241
  %v1408 = vunpack.c.l.b16 %v242
  %v1409 = vunpack.c.l.b16 %v243
  %v1410 = vunpack.c.l.b16 %v244
  %v1411 = vunpack.c.l.b16 %v245
  %v1412 = vunpack.c.l.b16 %v246
  %v1413 = vunpack.c.l.b16 %v247
  %v1414 = vunpack.c.l.b16 %v248
  %v1415 = vunpack.c.l.b16 %v249
  %v1416 = vunpack.c.l.b16 %v250
  %v1417 = vunpack.c.l.b16 %v251
  %v1418 = vunpack.c.l.b16 %v252
  %v1419 = vunpack.c.l.b16 %v253
  %v1420 = vunpack.c.l.b16 %v254
  %v1421 = vunpack.c.l.b16 %v255
  %v1422 = vunpack.c.l.b16 %v256
  %v1423 = vunpack.c.l.b16 %v257
  %v1424 = vunpack.c.l.b16 %v258
  %v1425 = vunpack.c.l.b16 %v259
  %v1426 = vunpack.c.l.b16 %v260
  %v1427 = vunpack.c.l.b16 %v261
  %v1428 = vunpack.c.l.b16 %v262
  %v1429 = vunpack.c.l.b16 %v263
  %v1430 = vunpack.c.l.b16 %v264
  %v1431 = vunpack.c.l.b16 %v265
  %v1432 = vunpack.c.l.b16 %v266
  %v1433 = vunpack.c.l.b16 %v267
  %v1434 = vunpack.c.l.b16 %v268
  %v1435 = vunpack.c.l.b16 %v269
  %v1436 = vunpack.c.l.b16 %v270
  %v1437 = vunpack.c.l.b16 %v271
  %v1438 = vunpack.c.l.b16 %v272
  %v1439 = vunpack.c.l.b16 %v273
  %v1440 = vunpack.c.l.b16 %v274
  %v1441 = vunpack.c.l.b16 %v275
  %v1442 = vunpack.c.l.b16 %v276
  %v1443 = vunpack.c.l.b16 %v277
  %v1444 = vunpack.c.l.b16 %v278
  %v1445 = vunpack.c.l.b16 %v279
  %v1446 = vunpack.c.l.b16 %v280
  %v1447 = vunpack.c.l.b16 %v281
  %v1448 = vunpack.c.l.b16 %v282
  %v1449 = vunpack.c.l.b16 %v283
  %v1450 = vunpack.c.l.b16 %v284
  %v1451 = vunpack.c.l.b16 %v285
  %v1452 = vunpack.c.l.b16 %v286
  %v1453 = vunpack.c.l.b16 %v287
  %v1454 = vunpack.c.l.b16 %v288
  %v1455 = vunpack.c.l.b16 %v289
  %v1456 = vunpack.c.l.b16 %v290
  %v1457 = vunpack.c.l.b16 %v291
  %v1458 = vunpack.c.l.b16 %v292
  %v1459 = vunpack.c.l.b16 %v293
  %v1460 = vunpack.c.l.b16 %v294
  %v1461 = vunpack.c.l.b16 %v295
  %v1462 = vunpack.c.l.b16 %v296
  %v1463 = vunpack.c.l.b16 %v297
  %v1464 = vunpack.c.l.b16 %v298
  %v1465 = vunpack.c.l.b16 %v299
  %v1466 = vunpack.c.l.b16 %v300
  %v1467 = vunpack.c.l.b16 %v301
  %v1468 = vunpack.c.l.b16 %v302
  %v1469 = vunpack.c.l.b16 %v303
  %v1470 = vunpack.c.l.b16 %v304
  %v1471 = vunpack.c.l.b16 %v305
  %v1472 = vunpack.c.l.b16 %v306
  %v1473 = vunpack.c.l.b16 %v307
  %v1474 = vunpack.c.l.b16 %v308
  %v1475 = vunpack.c.l.b16 %v309
  %v1476 = vunpack.c.l.b16 %v310
  %v1477 = vunpack.c.l.b16 %v311
  %v1478 = vunpack.c.l.b16 %v312
  %v1479 = vunpack.c.l.b16 %v313
  %v1480 = vunpack.c.l.b16 %v314
  %v1481 = vunpack.c.l.b16 %v315
  %v1482 = vunpack.c.l.b16 %v316
  %v1483 = vunpack.c.l.b16 %v317
  %v1484 = vunpack.c.l.b16 %v318
  %v1485 = vunpack.c.l.b16 %v319
  %v1486 = vunpack.c.l.b16 %v320
  %v1487 = vunpack.c.l.b16 %v321
  %v1488 = vunpack.c.l.b16 %v322
  %v1489 = vunpack.c.l.b16 %v323
  %v1490 = vunpack.c.l.b16 %v324
  %v1491 = vunpack.c.l.b16 %v325
  %v1492 = vunpack.c.l.b16 %v326
  %v1493 = vunpack.c.l.b16 %v327
  %v1494 = vunpack.c.l.b16 %v328
  %v1495 = vunpack.c.l.b16 %v329
  %v1496 = vunpack.c.l.b16 %v330
  %v1497 = vunpack.c.l.b16 %v331
  %v1498 = vunpack.c.l.b16 %v332
  %v1499 = vunpack.c.l.b16 %v333
  %v1500 = vunpack.c.l.b16 %v334
  %v1501 = vunpack.c.l.b16 %v335
  %v1502 = vunpack.c.l.b16 %v336
  %v1503 = vunpack.c.l.b16 %v337
  %v1504 = vunpack.c.l.b16 %v338
  %v1505 = vunpack.c.l.b16 %v339
  %v1506 = vunpack.c.l.b16 %v340
  %v1507 = vunpack.c.l.b16 %v341
  %v1508 = vunpack.c.l.b16 %v342
  %v1509 = vunpack.c.l.b16 %v343
  %v1510 = vunpack.c.l.b16 %v344
  %v1511 = vunpack.c.l.b16 %v345
  %v1512 = vunpack.c.l.b16 %v346
  %v1513 = vunpack.c.l.b16 %v347
  %v1514 = vunpack.c.l.b16 %v348
  %v1515 = vunpack.c.l.b16 %v349
  %v1516 = vunpack.c.l.b16 %v350
  %v1517 = vunpack.c.l.b16 %v351
  %v1518 = vunpack.c.l.b16 %v352
  %v1519 = vunpack.c.l.b16 %v353
  %v1520 = vunpack.c.l.b16 %v354
  %v1521 = vunpack.c.l.b16 %v355
  %v1522 = vunpack.c.l.b16 %v356
  %v1523 = vunpack.c.l.b16 %v357
  %v1524 = vunpack.c.l.b16 %v358
  %v1525 = vunpack.c.l.b16 %v359
  %v1526 = vunpack.c.l.b16 %v360
  %v1527 = vunpack.c.l.b16 %v361
  %v1528 = vunpack.c.l.b16 %v362
  %v1529 = vunpack.c.l.b16 %v363
  %v1530 = vunpack.c.l.b16 %v364
  %v1531 = vunpack.c.l.b16 %v365
  %v1532 = vunpack.c.l.b16 %v366
  %v1533 = vunpack.c.l.b16 %v367
  %v1534 = vunpack.c.l.b16 %v368
  %v1535 = vunpack.c.l.b16 %v369
  %v1536 = vunpack.c.l.b16 %v370
  %v1537 = vunpack.c.l.b16 %v371
  %v1538 = vunpack.c.l.b16 %v372
  %v1539 = vunpack.c.l.b16 %v373
  %v1540 = vunpack.c.l.b16 %v374
  %v1541 = vunpack.c.l.b16 %v375
  %v1542 = vunpack.c.l.b16 %v376
  %v1543 = vunpack.c.l.b16 %v377
  %v1544 = vunpack.c.l.b16 %v378
  %v1545 = vunpack.c.l.b16 %v379
  %v1546 = vunpack.c.l.b16 %v380
  %v1547 = vunpack.c.l.b16 %v381
  %v1548 = vunpack.c.l.b16 %v382
  %v1549 = vunpack.c.l.b16 %v383
  %v1550 = vunpack.c.l.b16 %v384
  %v1551 = vunpack.c.l.b16 %v385
  %v1552 = vunpack.c.l.b16 %v386
  %v1553 = vunpack.c.l.b16 %v387
  %v1554 = vunpack.c.l.b16 %v388
  %v1555 = vunpack.c.l.b16 %v389
  %v1556 = vunpack.c.l.b16 %v390
  %v1557 = vunpack.c.l.b16 %v391
  %v1558 = vunpack.c.l.b16 %v392
  %v1559 = vunpack.c.l.b16 %v393
  %v1560 = vunpack.c.l.b16 %v394
  %v1561 = vunpack.c.l.b16 %v395
  %v1562 = vunpack.c.l.b16 %v396
  %v1563 = vunpack.c.l.b16 %v397
  %v1564 = vunpack.c.l.b16 %v398
  %v1565 = vunpack.c.l.b16 %v399
  %v1566 = vunpack.c.l.b16 %v400
  %v1567 = vunpack.c.l.b16 %v401
  %v1568 = vunpack.c.l.b16 %v402
  %v1569 = vunpack.c.l.b16 %v403
  %v1570 = vunpack.c.l.b16 %v404
  %v1571 = vunpack.c.l.b16 %v405
  %v1572 = vunpack.c.l.b16 %v406
  %v1573 = vunpack.c.l.b16 %v407
  %v1574 = vunpack.c.l.b16 %v408
  %v1575 = vunpack.c.l.b16 %v409
  %v1576 = vunpack.c.l.b16 %v410
  %v1577 = vunpack.c.l.b16 %v411
  %v1578 = vunpack.c.l.b16 %v412
  %v1579 = vunpack.c.l.b16 %v413
  %v1580 = vunpack.c.l.b16 %v414
  %v1581 = vunpack.c.l.b16 %v415
  %v1582 = vunpack.c.l.b16 %v416
  %v1583 = vunpack.c.l.b16 %v417
  %v1584 = vunpack.c.l.b16 %v418
  %v1585 = vunpack.c.l.b16 %v419
  %v1586 = vunpack.c.l.b16 %v420
  %v1587 = vunpack.c.l.b16 %v421
  %v1588 = vunpack.c.l.b16 %v422
  %v1589 = vunpack.c.l.b16 %v423
  %v1590 = vunpack.c.l.b16 %v424
  %v1591 = vunpack.c.l.b16 %v425
  %v1592 = vunpack.c.l.b16 %v426
  %v1593 = vunpack.c.l.b16 %v427
  %v1594 = vunpack.c.l.b16 %v428
  %v1595 = vunpack.c.l.b16 %v429
  %v1596 = vunpack.c.l.b16 %v430
  %v1597 = vunpack.c.l.b16 %v431
  %v1598 = vunpack.c.l.b16 %v432
  %v1599 = vunpack.c.l.b16 %v433
  %v1600 = vunpack.c.l.b16 %v434
  %v1601 = vunpack.c.l.b16 %v435
  %v1602 = vunpack.c.l.b16 %v436
  %v1603 = vunpack.c.l.b16 %v437
  %v1604 = vunpack.c.l.b16 %v438
  %v1605 = vunpack.c.l.b16 %v439
  %v1606 = vunpack.c.l.b16 %v440
  %v1607 = vunpack.c.l.b16 %v441
  %v1608 = vunpack.c.l.b16 %v442
  %v1609 = vunpack.c.l.b16 %v443
  %v1610 = vunpack.c.l.b16 %v444
  %v1611 = vunpack.c.l.b16 %v445
  %v1612 = vunpack.c.l.b16 %v446
  %v1613 = vunpack.c.l.b16 %v447
  %v1614 = vunpack.c.l.b16 %v448
  %v1615 = vunpack.c.l.b16 %v449
  %v1616 = vunpack.c.l.b16 %v450
  %v1617 = vunpack.c.l.b16 %v451
  %v1618 = vunpack.c.l.b16 %v452
  %v1619 = vunpack.c.l.b16 %v453
  %v1620 = vunpack.c.l.b16 %v454
  %v1621 = vunpack.c.l.b16 %v455
  %v1622 = vunpack.c.l.b16 %v456
  %v1623 = vunpack.c.l.b16 %v457
  %v1624 = vunpack.c.l.b16 %v458
  %v1625 = vunpack.c.l.b16 %v459
  %v1626 = vunpack.c.l.b16 %v460
  %v1627 = vunpack.c.l.b16 %v461
  %v1628 = vunpack.c.l.b16 %v462
  %v1629 = vunpack.c.l.b16 %v463
  %v1630 = vunpack.c.l.b16 %v464
  %v1631 = vunpack.c.l.b16 %v465
  %v1632 = vunpack.c.l.b16 %v466
  %v1633 = vunpack.c.l.b16 %v467
  %v1634 = vunpack.c.l.b16 %v468
  %v1635 = vunpack.c.l.b16 %v469
  %v1636 = vunpack.c.l.b16 %v470
  %v1637 = vunpack.c.l.b16 %v471
  %v1638 = vunpack.c.l.b16 %v472
  %v1639 = vunpack.c.l.b16 %v473
  %v1640 = vunpack.c.l.b16 %v474
  %v1641 = vunpack.c.l.b16 %v475
  %v1642 = vunpack.c.l.b16 %v476
  %v1643 = vunpack.c.l.b16 %v477
  %v1644 = vunpack.c.l.b16 %v478
  %v1645 = vunpack.c.l.b16 %v479
  %v1646 = vunpack.c.l.b16 %v480
  %v1647 = vunpack.c.l.b16 %v481
  %v1648 = vunpack.c.l.b16 %v482
  %v1649 = vunpack.c.l.b16 %v483
  %v1650 = vunpack.c.l.b16 %v484
  %v1651 = vunpack.c.l.b16 %v485
  %v1652 = vunpack.c.l.b16 %v486
  %v1653 = vunpack.c.l.b16 %v487
  %v1654 = vunpack.c.l.b16 %v488
  %v1655 = vunpack.c.l.b16 %v489
  %v1656 = vunpack.c.l.b16 %v490
  %v1657 = vunpack.c.l.b16 %v491
  %v1658 = vunpack.c.l.b16 %v492
  %v1659 = vunpack.c.l.b16 %v493
  %v1660 = vunpack.c.l.b16 %v494
  %v1661 = vunpack.c.l.b16 %v495
  %v1662 = vunpack.c.l.b16 %v496
  %v1663 = vunpack.c.l.b16 %v497
  %v1664 = vunpack.c.l.b16 %v498
  %v1665 = vunpack.c.l.b16 %v499
  %v1666 = vunpack.c.l.b16 %v500
  %v1667 = vunpack.c.l.b16 %v501
  %v1668 = vunpack.c.l.b16 %v502
  %v1669 = vunpack.c.l.b16 %v503
  %v1670 = vunpack.c.l.b16 %v504
  %v1671 = vunpack.c.l.b16 %v505
  %v1672 = vunpack.c.l.b16 %v506
  %v1673 = vunpack.c.l.b16 %v507
  %v1674 = vunpack.c.l.b16 %v508
  %v1675 = vunpack.c.l.b16 %v509
  %v1676 = vunpack.c.l.b16 %v510
  %v1677 = vunpack.c.l.b16 %v511
  %v1678 = vunpack.c.l.b16 %v512
  %v1679 = vunpack.c.l.b16 %v513
  %v1680 = vunpack.c.l.b16 %v514
  %v1681 = vunpack.c.l.b16 %v515
  %v1682 = vunpack.c.l.b16 %v516
  %v1683 = vunpack.c.l.b16 %v517
  %v1684 = vunpack.c.l.b16 %v518
  %v1685 = vunpack.c.l.b16 %v519
  %v1686 = vunpack.c.l.b16 %v520
  %v1687 = vunpack.c.l.b16 %v521
  %v1688 = vunpack.c.l.b16 %v522
  %v1689 = vunpack.c.l.b16 %v523
  %v1690 = vunpack.c.l.b16 %v524
  %v1691 = vunpack.c.l.b16 %v525
  %v1692 = vunpack.c.l.b16 %v526
  %v1693 = vunpack.c.l.b16 %v527
  %v1694 = vunpack.c.l.b16 %v528
  %v1695 = vunpack.c.l.b16 %v529
  %v1696 = vunpack.c.l.b16 %v530
  %v1697 = vunpack.c.l.b16 %v531
  %v1698 = vunpack.c.l.b16 %v532
  %v1699 = vunpack.c.l.b16 %v533
  %v1700 = vunpack.c.l.b16 %v534
  %v1701 = vunpack.c.l.b16 %v535
  %v1702 = vunpack.c.l.b16 %v536
  %v1703 = vunpack.c.l.b16 %v537
  %v1704 = vunpack.c.l.b16 %v538
  %v1705 = vunpack.c.l.b16 %v539
  %v1706 = vunpack.c.l.b16 %v540
  %v1707 = vunpack.c.l.b16 %v541
  %v1708 = vunpack.c.l.b16 %v542
  %v1709 = vunpack.c.l.b16 %v543
  %v1710 = vunpack.c.l.b16 %v544
  %v1711 = vunpack.c.l.b16 %v545
  %v1712 = vunpack.c.l.b16 %v546
  %v1713 = vunpack.c.l.b16 %v547
  %v1714 = vunpack.c.l.b16 %v548
  %v1715 = vunpack.c.l.b16 %v549
  %v1716 = vunpack.c.l.b16 %v550
  %v1717 = vunpack.c.l.b16 %v551
  %v1718 = vunpack.c.l.b16 %v552
  %v1719 = vunpack.c.l.b16 %v553
  %v1720 = vunpack.c.l.b16 %v554
  %v1721 = vunpack.c.l.b16 %v555
  %v1722 = vunpack.c.l.b16 %v556
  %v1723 = vunpack.c.l.b16 %v557
  %v1724 = vunpack.c.l.b16 %v558
  %v1725 = vunpack.c.l.b16 %v559
  %v1726 = vunpack.c.l.b16 %v560
  %v1727 = vunpack.c.l.b16 %v561
  %v1728 = vunpack.c.l.b16 %v562
  %v1729 = vunpack.c.l.b16 %v563
  %v1730 = vunpack.c.l.b16 %v564
  %v1731 = vunpack.c.l.b16 %v565
  %v1732 = vunpack.c.l.b16 %v566
  %v1733 = vunpack.c.l.b16 %v567
  %v1734 = vunpack.c.l.b16 %v568
  %v1735 = vunpack.c.l.b16 %v569
  %v1736 = vunpack.c.l.b16 %v570
  %v1737 = vunpack.c.l.b16 %v571
  %v1738 = vunpack.c.l.b16 %v572
  %v1739 = vunpack.c.l.b16 %v573
  %v1740 = vpack.c.b16 %v1241, %v1240
  %v1741 = vpack.c.b16 %v1243, %v1242
  %v1742 = vpack.c.b16 %v1245, %v1244
  %v1743 = vpack.c.b16 %v1247, %v1246
  %v1744 = vpack.c.b16 %v1249, %v1248
  %v1745 = vpack.c.b16 %v1251, %v1250
  %v1746 = vpack.c.b16 %v1253, %v1252
  %v1747 = vpack.c.b16 %v1255, %v1254
  %v1748 = vpack.c.b16 %v1257, %v1256
  %v1749 = vpack.c.b16 %v1259, %v1258
  %v1750 = vpack.c.b16 %v1261, %v1260
  %v1751 = vpack.c.b16 %v1263, %v1262
  %v1752 = vpack.c.b16 %v1265, %v1264
  %v1753 = vpack.c.b16 %v1267, %v1266
  %v1754 = vpack.c.b16 %v1269, %v1268
  %v1755 = vpack.c.b16 %v1271, %v1270
  %v1756 = vpack.c.b16 %v1273, %v1272
  %v1757 = vpack.c.b16 %v1275, %v1274
  %v1758 = vpack.c.b16 %v1277, %v1276
  %v1759 = vpack.c.b16 %v1279, %v1278
  %v1760 = vpack.c.b16 %v1281, %v1280
  %v1761 = vpack.c.b16 %v1283, %v1282
  %v1762 = vpack.c.b16 %v1285, %v1284
  %v1763 = vpack.c.b16 %v1287, %v1286
  %v1764 = vpack.c.b16 %v1289, %v1288
  %v1765 = vpack.c.b16 %v1291, %v1290
  %v1766 = vpack.c.b16 %v1293, %v1292
  %v1767 = vpack.c.b16 %v1295, %v1294
  %v1768 = vpack.c.b16 %v1297, %v1296
  %v1769 = vpack.c.b16 %v1299, %v1298
  %v1770 = vpack.c.b16 %v1301, %v1300
  %v1771 = vpack.c.b16 %v1303, %v1302
  %v1772 = vpack.c.b16 %v1305, %v1304
  %v1773 = vpack.c.b16 %v1307, %v1306
  %v1774 = vpack.c.b16 %v1309, %v1308
  %v1775 = vpack.c.b16 %v1311, %v1310
  %v1776 = vpack.c.b16 %v1313, %v1312
  %v1777 = vpack.c.b16 %v1315, %v1314
  %v1778 = vpack.c.b16 %v1317, %v1316
  %v1779 = vpack.c.b16 %v1319, %v1318
  %v1780 = vpack.c.b16 %v1321, %v1320
  %v1781 = vpack.c.b16 %v1323, %v1322
  %v1782 = vpack.c.b16 %v1325, %v1324
  %v1783 = vpack.c.b16 %v1327, %v1326
  %v1784 = vpack.c.b16 %v1329, %v1328
  %v1785 = vpack.c.b16 %v1331, %v1330
  %v1786 = vpack.c.b16 %v1333, %v1332
  %v1787 = vpack.c.b16 %v1335, %v1334
  %v1788 = vpack.c.b16 %v1337, %v1336
  %v1789 = vpack.c.b16 %v1339, %v1338
  %v1790 = vpack.c.b16 %v1341, %v1340
  %v1791 = vpack.c.b16 %v1343, %v1342
  %v1792 = vpack.c.b16 %v1345, %v1344
  %v1793 = vpack.c.b16 %v1347, %v1346
  %v1794 = vpack.c.b16 %v1349, %v1348
  %v1795 = vpack.c.b16 %v1351, %v1350
  %v1796 = vpack.c.b16 %v1353, %v1352
  %v1797 = vpack.c.b16 %v1355, %v1354
  %v1798 = vpack.c.b16 %v1357, %v1356
  %v1799 = vpack.c.b16 %v1359, %v1358
  %v1800 = vpack.c.b16 %v1361, %v1360
  %v1801 = vpack.c.b16 %v1363, %v1362
  %v1802 = vpack.c.b16 %v1365, %v1364
  %v1803 = vpack.c.b16 %v1367, %v1366
  %v1804 = vpack.c.b16 %v1369, %v1368
  %v1805 = vpack.c.b16 %v1371, %v1370
  %v1806 = vpack.c.b16 %v1373, %v1372
  %v1807 = vpack.c.b16 %v1375, %v1374
  %v1808 = vpack.c.b16 %v1377, %v1376
  %v1809 = vpack.c.b16 %v1379, %v1378
  %v1810 = vpack.c.b16 %v1381, %v1380
  %v1811 = vpack.c.b16 %v1383, %v1382
  %v1812 = vpack.c.b16 %v1385, %v1384
  %v1813 = vpack.c.b16 %v1387, %v1386
  %v1814 = vpack.c.b16 %v1389, %v1388
  %v1815 = vpack.c.b16 %v1391, %v1390
  %v1816 = vpack.c.b16 %v1393, %v1392
  %v1817 = vpack.c.b16 %v1395, %v1394
  %v1818 = vpack.c.b16 %v1397, %v1396
  %v1819 = vpack.c.b16 %v1399, %v1398
  %v1820 = vpack.c.b16 %v1401, %v1400
  %v1821 = vpack.c.b16 %v1403, %v1402
  %v1822 = vpack.c.b16 %v1405, %v1404
  %v1823 = vpack.c.b16 %v1407, %v1406
  %v1824 = vpack.c.b16 %v1409, %v1408
  %v1825 = vpack.c.b16 %v1411, %v1410
  %v1826 = vpack.c.b16 %v1413, %v1412
  %v1827 = vpack.c.b16 %v1415, %v1414
  %v1828 = vpack.c.b16 %v1417, %v1416
  %v1829 = vpack.c.b16 %v1419, %v1418
  %v1830 = vpack.c.b16 %v1421, %v1420
  %v1831 = vpack.c.b16 %v1423, %v1422
  %v1832 = vpack.c.b16 %v1425, %v1424
  %v1833 = vpack.c.b16 %v1427, %v1426
  %v1834 = vpack.c.b16 %v1429, %v1428
  %v1835 = vpack.c.b16 %v1431, %v1430
  %v1836 = vpack.c.b16 %v1433, %v1432
  %v1837 = vpack.c.b16 %v1435, %v1434
  %v1838 = vpack.c.b16 %v1437, %v1436
  %v1839 = vpack.c.b16 %v1439, %v1438
  %v1840 = vpack.c.b16 %v1441, %v1440
  %v1841 = vpack.c.b16 %v1443, %v1442
  %v1842 = vpack.c.b16 %v1445, %v1444
  %v1843 = vpack.c.b16 %v1447, %v1446
  %v1844 = vpack.c.b16 %v1449, %v1448
  %v1845 = vpack.c.b16 %v1451, %v1450
  %v1846 = vpack.c.b16 %v1453, %v1452
  %v1847 = vpack.c.b16 %v1455, %v1454
  %v1848 = vpack.c.b16 %v1457, %v1456
  %v1849 = vpack.c.b16 %v1459, %v1458
  %v1850 = vpack.c.b16 %v1461, %v1460
  %v1851 = vpack.c.b16 %v1463, %v1462
  %v1852 = vpack.c.b16 %v1465, %v1464
  %v1853 = vpack.c.b16 %v1467, %v1466
  %v1854 = vpack.c.b16 %v1469, %v1468
  %v1855 = vpack.c.b16 %v1471, %v1470
  %v1856 = vpack.c.b16 %v1473, %v1472
  %v1857 = vpack.c.b16 %v1475, %v1474
  %v1858 = vpack.c.b16 %v1477, %v1476
  %v1859 = vpack.c.b16 %v1479, %v1478
  %v1860 = vpack.c.b16 %v1481, %v1480
  %v1861 = vpack.c.b16 %v1483, %v1482
  %v1862 = vpack.c.b16 %v1485, %v1484
  %v1863 = vpack.c.b16 %v1487, %v1486
  %v1864 = vpack.c.b16 %v1489, %v1488
  %v1865 = vpack.c.b16 %v1491, %v1490
  %v1866 = vpack.c.b16 %v1493, %v1492
  %v1867 = vpack.c.b16 %v1495, %v1494
  %v1868 = vpack.c.b16 %v1497, %v1496
  %v1869 = vpack.c.b16 %v1499, %v1498
  %v1870 = vpack.c.b16 %v1501, %v1500
  %v1871 = vpack.c.b16 %v1503, %v1502
  %v1872 = vpack.c.b16 %v1505, %v1504
  %v1873 = vpack.c.b16 %v1507, %v1506
  %v1874 = vpack.c.b16 %v1509, %v1508
  %v1875 = vpack.c.b16 %v1511, %v1510
  %v1876 = vpack.c.b16 %v1513, %v1512
  %v1877 = vpack.c.b16 %v1515, %v1514
  %v1878 = vpack.c.b16 %v1517, %v1516
  %v1879 = vpack.c.b16 %v1519, %v1518
  %v1880 = vpack.c.b16 %v1521, %v1520
  %v1881 = vpack.c.b16 %v1523, %v1522
  %v1882 = vpack.c.b16 %v1525, %v1524
  %v1883 = vpack.c.b16 %v1527, %v1526
  %v1884 = vpack.c.b16 %v1529, %v1528
  %v1885 = vpack.c.b16 %v1531, %v1530
  %v1886 = vpack.c.b16 %v1533, %v1532
  %v1887 = vpack.c.b16 %v1535, %v1534
  %v1888 = vpack.c.b16 %v1537, %v1536
  %v1889 = vpack.c.b16 %v1539, %v1538
  %v1890 = vpack.c.b16 %v1541, %v1540
  %v1891 = vpack.c.b16 %v1543, %v1542
  %v1892 = vpack.c.b16 %v1545, %v1544
  %v1893 = vpack.c.b16 %v1547, %v1546
  %v1894 = vpack.c.b16 %v1549, %v1548
  %v1895 = vpack.c.b16 %v1551, %v1550
  %v1896 = vpack.c.b16 %v1553, %v1552
  %v1897 = vpack.c.b16 %v1555, %v1554
  %v1898 = vpack.c.b16 %v1557, %v1556
  %v1899 = vpack.c.b16 %v1559, %v1558
  %v1900 = vpack.c.b16 %v1561, %v1560
  %v1901 = vpack.c.b16 %v1563, %v1562
  %v1902 = vpack.c.b16 %v1565, %v1564
  %v1903 = vpack.c.b16 %v1567, %v1566
  %v1904 = vpack.c.b16 %v1569, %v1568
  %v1905 = vpack.c.b16 %v1571, %v1570
  %v1906 = vpack.c.b16 %v1573, %v1572
  %v1907 = vpack.c.b16 %v1575, %v1574
  %v1908 = vpack.c.b16 %v1577, %v1576
  %v1909 = vpack.c.b16 %v1579, %v1578
  %v1910 = vpack.c.b16 %v1581, %v1580
  %v1911 = vpack.c.b16 %v1583, %v1582
  %v1912 = vpack.c.b16 %v1585, %v1584
  %v1913 = vpack.c.b16 %v1587, %v1586
  %v1914 = vpack.c.b16 %v1589, %v1588
  %v1915 = vpack.c.b16 %v1591, %v1590
  %v1916 = vpack.c.b16 %v1593, %v1592
  %v1917 = vpack.c.b16 %v1595, %v1594
  %v1918 = vpack.c.b16 %v1597, %v1596
  %v1919 = vpack.c.b16 %v1599, %v1598
  %v1920 = vpack.c.b16 %v1601, %v1600
  %v1921 = vpack.c.b16 %v1603, %v1602
  %v1922 = vpack.c.b16 %v1605, %v1604
  %v1923 = vpack.c.b16 %v1607, %v1606
  %v1924 = vpack.c.b16 %v1609, %v1608
  %v1925 = vpack.c.b16 %v1611, %v1610
  %v1926 = vpack.c.b16 %v1613, %v1612
  %v1927 = vpack.c.b16 %v1615, %v1614
  %v1928 = vpack.c.b16 %v1617, %v1616
  %v1929 = vpack.c.b16 %v1619, %v1618
  %v1930 = vpack.c.b16 %v1621, %v1620
  %v1931 = vpack.c.b16 %v1623, %v1622
  %v1932 = vpack.c.b16 %v1625, %v1624
  %v1933 = vpack.c.b16 %v1627, %v1626
  %v1934 = vpack.c.b16 %v1629, %v1628
  %v1935 = vpack.c.b16 %v1631, %v1630
  %v1936 = vpack.c.b16 %v1633, %v1632
  %v1937 = vpack.c.b16 %v1635, %v1634
  %v1938 = vpack.c.b16 %v1637, %v1636
  %v1939 = vpack.c.b16 %v1639, %v1638
  %v1940 = vpack.c.b16 %v1641, %v1640
  %v1941 = vpack.c.b16 %v1643, %v1642
  %v1942 = vpack.c.b16 %v1645, %v1644
  %v1943 = vpack.c.b16 %v1647, %v1646
  %v1944 = vpack.c.b16 %v1649, %v1648
  %v1945 = vpack.c.b16 %v1651, %v1650
  %v1946 = vpack.c.b16 %v1653, %v1652
  %v1947 = vpack.c.b16 %v1655, %v1654
  %v1948 = vpack.c.b16 %v1657, %v1656
  %v1949 = vpack.c.b16 %v1659, %v1658
  %v1950 = vpack.c.b16 %v1661, %v1660
  %v1951 = vpack.c.b16 %v1663, %v1662
  %v1952 = vpack.c.b16 %v1665, %v1664
  %v1953 = vpack.c.b16 %v1667, %v1666
  %v1954 = vpack.c.b16 %v1669, %v1668
  %v1955 = vpack.c.b16 %v1671, %v1670
  %v1956 = vpack.c.b16 %v1673, %v1672
  %v1957 = vpack.c.b16 %v1675, %v1674
  %v1958 = vpack.c.b16 %v1677, %v1676
  %v1959 = vpack.c.b16 %v1679, %v1678
  %v1960 = vpack.c.b16 %v1681, %v1680
  %v1961 = vpack.c.b16 %v1683, %v1682
  %v1962 = vpack.c.b16 %v1685, %v1684
  %v1963 = vpack.c.b16 %v1687, %v1686
  %v1964 = vpack.c.b16 %v1689, %v1688
  %v1965 = vpack.c.b16 %v1691, %v1690
  %v1966 = vpack.c.b16 %v1693, %v1692
  %v1967 = vpack.c.b16 %v1695, %v1694
  %v1968 = vpack.c.b16 %v1697, %v1696
  %v1969 = vpack.c.b16 %v1699, %v1698
  %v1970 = vpack.c.b16 %v1701, %v1700
  %v1971 = vpack.c.b16 %v1703, %v1702
  %v1972 = vpack.c.b16 %v1705, %v1704
  %v1973 = vpack.c.b16 %v1707, %v1706
  %v1974 = vpack.c.b16 %v1709, %v1708
  %v1975 = vpack.c.b16 %v1711, %v1710
  %v1976 = vpack.c.b16 %v1713, %v1712
  %v1977 = vpack.c.b16 %v1715, %v1714
  %v1978 = vpack.c.b16 %v1717, %v1716
  %v1979 = vpack.c.b16 %v1719, %v1718
  %v1980 = vpack.c.b16 %v1721, %v1720
  %v1981 = vpack.c.b16 %v1723, %v1722
  %v1982 = vpack.c.b16 %v1725, %v1724
  %v1983 = vpack.c.b16 %v1727, %v1726
  %v1984 = vpack.c.b16 %v1729, %v1728
  %v1985 = vpack.c.b16 %v1731, %v1730
  %v1986 = vpack.c.b16 %v1733, %v1732
  %v1987 = vpack.c.b16 %v1735, %v1734
  %v1988 = vpack.c.b16 %v1737, %v1736
  %v1989 = vpack.c.b16 %v1739, %v1738
  %vm2240 = vcmask 261120
  %v2242 = vsel %vm2240, %v708, 0
  %2244 = vmatprep.subr.bf16.mxu0 0
  %2245 = vmatpush1.bf16.msra.mxu0 %v1740
  %2246 = vmatprep.subr.bf16.mxu0 0
  %2247 = vmatpush1.bf16.msra.mxu0 %v1741
  %2248 = vmatprep.subr.bf16.mxu0 0
  %2249 = vmatpush1.bf16.msra.mxu0 %v1742
  %2250 = vmatprep.subr.bf16.mxu0 0
  %2251 = vmatpush1.bf16.msra.mxu0 %v1743
  %2252 = vmatprep.subr.bf16.mxu0 0
  %2253 = vmatpush1.bf16.msra.mxu0 %v1744
  %2254 = vmatprep.subr.bf16.mxu0 0
  %2255 = vmatpush1.bf16.msra.mxu0 %v1745
  %2256 = vmatprep.subr.bf16.mxu0 0
  %2257 = vmatpush1.bf16.msra.mxu0 %v1746
  %2258 = vmatprep.subr.bf16.mxu0 0
  %2259 = vmatpush1.bf16.msra.mxu0 %v1747
  %2260 = vmatprep.subr.bf16.mxu0 0
  %2261 = vmatpush1.bf16.msra.mxu0 %v1748
  %2262 = vmatprep.subr.bf16.mxu0 0
  %2263 = vmatpush1.bf16.msra.mxu0 %v1749
  %2264 = vmatprep.subr.bf16.mxu0 0
  %2265 = vmatpush1.bf16.msra.mxu0 %v1750
  %2266 = vmatprep.subr.bf16.mxu0 0
  %2267 = vmatpush1.bf16.msra.mxu0 %v1751
  %2268 = vmatprep.subr.bf16.mxu0 0
  %2269 = vmatpush1.bf16.msra.mxu0 %v1752
  %2270 = vmatprep.subr.bf16.mxu0 0
  %2271 = vmatpush1.bf16.msra.mxu0 %v1753
  %2272 = vmatprep.subr.bf16.mxu0 0
  %2273 = vmatpush1.bf16.msra.mxu0 %v1754
  %2274 = vmatprep.subr.bf16.mxu0 0
  %2275 = vmatpush1.bf16.msra.mxu0 %v1755
  %2276 = vmatprep.mubr.bf16.mxu0 %v678
  %2277 = vmatmul.mubr.bf16.gmra.mrb[0].mxu0 %v677
  %v2278 = vpop.f32.mrb[0].mxu0
  %v2279 = vadd.f32 %v579, %v2278
  %v2280 = vpop.f32.mrb[0].mxu0
  %v2281 = vpop.f32.mrb[0].mxu0
  %v2282 = vadd.f32 %v579, %v2281
  %v2283 = vpop.f32.mrb[0].mxu0
  %2284 = vdwg.mxu0
  %2285 = vmatprep.subr.bf16.mxu0 0
  %2286 = vmatpush1.bf16.msra.mxu0 %v1756
  %2287 = vmatprep.subr.bf16.mxu0 0
  %2288 = vmatpush1.bf16.msra.mxu0 %v1757
  %2289 = vmatprep.subr.bf16.mxu0 0
  %2290 = vmatpush1.bf16.msra.mxu0 %v1758
  %2291 = vmatprep.subr.bf16.mxu0 0
  %2292 = vmatpush1.bf16.msra.mxu0 %v1759
  %2293 = vmatprep.subr.bf16.mxu0 0
  %2294 = vmatpush1.bf16.msra.mxu0 %v1760
  %2295 = vmatprep.subr.bf16.mxu0 0
  %2296 = vmatpush1.bf16.msra.mxu0 %v1761
  %2297 = vmatprep.subr.bf16.mxu0 0
  %2298 = vmatpush1.bf16.msra.mxu0 %v1762
  %2299 = vmatprep.subr.bf16.mxu0 0
  %2300 = vmatpush1.bf16.msra.mxu0 %v1763
  %2301 = vmatprep.subr.bf16.mxu0 0
  %2302 = vmatpush1.bf16.msra.mxu0 %v1764
  %2303 = vmatprep.subr.bf16.mxu0 0
  %2304 = vmatpush1.bf16.msra.mxu0 %v1765
  %2305 = vmatprep.subr.bf16.mxu0 0
  %2306 = vmatpush1.bf16.msra.mxu0 %v1766
  %2307 = vmatprep.subr.bf16.mxu0 0
  %2308 = vmatpush1.bf16.msra.mxu0 %v1767
  %2309 = vmatprep.subr.bf16.mxu0 0
  %2310 = vmatpush1.bf16.msra.mxu0 %v1768
  %2311 = vmatprep.subr.bf16.mxu0 0
  %2312 = vmatpush1.bf16.msra.mxu0 %v1769
  %2313 = vmatprep.subr.bf16.mxu0 0
  %2314 = vmatpush1.bf16.msra.mxu0 %v1770
  %2315 = vmatprep.subr.bf16.mxu0 0
  %2316 = vmatpush1.bf16.msra.mxu0 %v1771
  %2317 = vmatprep.mubr.bf16.mxu0 %v680
  %2318 = vmatmul.mubr.bf16.gmra.mrb[0].mxu0 %v679
  %v2319 = vpop.f32.mrb[0].mxu0
  %v2320 = vadd.f32 %v2279, %v2319
  %v2321 = vpop.f32.mrb[0].mxu0
  %v2322 = vpop.f32.mrb[0].mxu0
  %v2323 = vadd.f32 %v2282, %v2322
  %v2324 = vpop.f32.mrb[0].mxu0
  %2325 = vdwg.mxu0
  %2326 = vmatprep.subr.bf16.mxu0 0
  %2327 = vmatpush1.bf16.msra.mxu0 %v1772
  %2328 = vmatprep.subr.bf16.mxu0 0
  %2329 = vmatpush1.bf16.msra.mxu0 %v1773
  %2330 = vmatprep.subr.bf16.mxu0 0
  %2331 = vmatpush1.bf16.msra.mxu0 %v1774
  %2332 = vmatprep.subr.bf16.mxu0 0
  %2333 = vmatpush1.bf16.msra.mxu0 %v1775
  %2334 = vmatprep.subr.bf16.mxu0 0
  %2335 = vmatpush1.bf16.msra.mxu0 %v1776
  %2336 = vmatprep.subr.bf16.mxu0 0
  %2337 = vmatpush1.bf16.msra.mxu0 %v1777
  %2338 = vmatprep.subr.bf16.mxu0 0
  %2339 = vmatpush1.bf16.msra.mxu0 %v1778
  %2340 = vmatprep.subr.bf16.mxu0 0
  %2341 = vmatpush1.bf16.msra.mxu0 %v1779
  %2342 = vmatprep.subr.bf16.mxu0 0
  %2343 = vmatpush1.bf16.msra.mxu0 %v1780
  %2344 = vmatprep.subr.bf16.mxu0 0
  %2345 = vmatpush1.bf16.msra.mxu0 %v1781
  %2346 = vmatprep.subr.bf16.mxu0 0
  %2347 = vmatpush1.bf16.msra.mxu0 %v1782
  %2348 = vmatprep.subr.bf16.mxu0 0
  %2349 = vmatpush1.bf16.msra.mxu0 %v1783
  %2350 = vmatprep.subr.bf16.mxu0 0
  %2351 = vmatpush1.bf16.msra.mxu0 %v1784
  %2352 = vmatprep.subr.bf16.mxu0 0
  %2353 = vmatpush1.bf16.msra.mxu0 %v1785
  %2354 = vmatprep.subr.bf16.mxu0 0
  %2355 = vmatpush1.bf16.msra.mxu0 %v1786
  %2356 = vmatprep.subr.bf16.mxu0 0
  %2357 = vmatpush1.bf16.msra.mxu0 %v1787
  %2358 = vmatprep.mubr.bf16.mxu0 %v682
  %2359 = vmatmul.mubr.bf16.gmra.mrb[0].mxu0 %v681
  %v2360 = vpop.f32.mrb[0].mxu0
  %v2361 = vadd.f32 %v2320, %v2360
  %v2362 = vpop.f32.mrb[0].mxu0
  %v2363 = vpop.f32.mrb[0].mxu0
  %v2364 = vadd.f32 %v2323, %v2363
  %v2365 = vpop.f32.mrb[0].mxu0
  %2366 = vdwg.mxu0
  %2367 = vmatprep.subr.bf16.mxu0 0
  %2368 = vmatpush1.bf16.msra.mxu0 %v1788
  %2369 = vmatprep.subr.bf16.mxu0 0
  %2370 = vmatpush1.bf16.msra.mxu0 %v1789
  %2371 = vmatprep.subr.bf16.mxu0 0
  %2372 = vmatpush1.bf16.msra.mxu0 %v1790
  %2373 = vmatprep.subr.bf16.mxu0 0
  %2374 = vmatpush1.bf16.msra.mxu0 %v1791
  %2375 = vmatprep.subr.bf16.mxu0 0
  %2376 = vmatpush1.bf16.msra.mxu0 %v1792
  %2377 = vmatprep.subr.bf16.mxu0 0
  %2378 = vmatpush1.bf16.msra.mxu0 %v1793
  %2379 = vmatprep.subr.bf16.mxu0 0
  %2380 = vmatpush1.bf16.msra.mxu0 %v1794
  %2381 = vmatprep.subr.bf16.mxu0 0
  %2382 = vmatpush1.bf16.msra.mxu0 %v1795
  %2383 = vmatprep.subr.bf16.mxu0 0
  %2384 = vmatpush1.bf16.msra.mxu0 %v1796
  %2385 = vmatprep.subr.bf16.mxu0 0
  %2386 = vmatpush1.bf16.msra.mxu0 %v1797
  %2387 = vmatprep.subr.bf16.mxu0 0
  %2388 = vmatpush1.bf16.msra.mxu0 %v1798
  %2389 = vmatprep.subr.bf16.mxu0 0
  %2390 = vmatpush1.bf16.msra.mxu0 %v1799
  %2391 = vmatprep.subr.bf16.mxu0 0
  %2392 = vmatpush1.bf16.msra.mxu0 %v1800
  %2393 = vmatprep.subr.bf16.mxu0 0
  %2394 = vmatpush1.bf16.msra.mxu0 %v1801
  %2395 = vmatprep.subr.bf16.mxu0 0
  %2396 = vmatpush1.bf16.msra.mxu0 %v1802
  %2397 = vmatprep.subr.bf16.mxu0 0
  %2398 = vmatpush1.bf16.msra.mxu0 %v1803
  %2399 = vmatprep.mubr.bf16.mxu0 %v684
  %2400 = vmatmul.mubr.bf16.gmra.mrb[0].mxu0 %v683
  %v2401 = vpop.f32.mrb[0].mxu0
  %v2402 = vadd.f32 %v2361, %v2401
  %v2403 = vpop.f32.mrb[0].mxu0
  %v2404 = vpop.f32.mrb[0].mxu0
  %v2405 = vadd.f32 %v2364, %v2404
  %v2406 = vpop.f32.mrb[0].mxu0
  %2407 = vdwg.mxu0
  %2408 = vmatprep.subr.bf16.mxu0 0
  %2409 = vmatpush1.bf16.msra.mxu0 %v1804
  %2410 = vmatprep.subr.bf16.mxu0 0
  %2411 = vmatpush1.bf16.msra.mxu0 %v1805
  %2412 = vmatprep.subr.bf16.mxu0 0
  %2413 = vmatpush1.bf16.msra.mxu0 %v1806
  %2414 = vmatprep.subr.bf16.mxu0 0
  %2415 = vmatpush1.bf16.msra.mxu0 %v1807
  %2416 = vmatprep.subr.bf16.mxu0 0
  %2417 = vmatpush1.bf16.msra.mxu0 %v1808
  %2418 = vmatprep.subr.bf16.mxu0 0
  %2419 = vmatpush1.bf16.msra.mxu0 %v1809
  %2420 = vmatprep.subr.bf16.mxu0 0
  %2421 = vmatpush1.bf16.msra.mxu0 %v1810
  %2422 = vmatprep.subr.bf16.mxu0 0
  %2423 = vmatpush1.bf16.msra.mxu0 %v1811
  %2424 = vmatprep.subr.bf16.mxu0 0
  %2425 = vmatpush1.bf16.msra.mxu0 %v1812
  %2426 = vmatprep.subr.bf16.mxu0 0
  %2427 = vmatpush1.bf16.msra.mxu0 %v1813
  %2428 = vmatprep.subr.bf16.mxu0 0
  %2429 = vmatpush1.bf16.msra.mxu0 %v1814
  %2430 = vmatprep.subr.bf16.mxu0 0
  %2431 = vmatpush1.bf16.msra.mxu0 %v1815
  %2432 = vmatprep.subr.bf16.mxu0 0
  %2433 = vmatpush1.bf16.msra.mxu0 %v1816
  %2434 = vmatprep.subr.bf16.mxu0 0
  %2435 = vmatpush1.bf16.msra.mxu0 %v1817
  %2436 = vmatprep.subr.bf16.mxu0 0
  %2437 = vmatpush1.bf16.msra.mxu0 %v1818
  %2438 = vmatprep.subr.bf16.mxu0 0
  %2439 = vmatpush1.bf16.msra.mxu0 %v1819
  %2440 = vmatprep.mubr.bf16.mxu0 %v686
  %2441 = vmatmul.mubr.bf16.gmra.mrb[0].mxu0 %v685
  %v2442 = vpop.f32.mrb[0].mxu0
  %v2443 = vadd.f32 %v2402, %v2442
  %v2444 = vpop.f32.mrb[0].mxu0
  %v2445 = vpop.f32.mrb[0].mxu0
  %v2446 = vadd.f32 %v2405, %v2445
  %v2447 = vpop.f32.mrb[0].mxu0
  %2448 = vdwg.mxu0
  %2449 = vmatprep.subr.bf16.mxu0 0
  %2450 = vmatpush1.bf16.msra.mxu0 %v1820
  %2451 = vmatprep.subr.bf16.mxu0 0
  %2452 = vmatpush1.bf16.msra.mxu0 %v1821
  %2453 = vmatprep.subr.bf16.mxu0 0
  %2454 = vmatpush1.bf16.msra.mxu0 %v1822
  %2455 = vmatprep.subr.bf16.mxu0 0
  %2456 = vmatpush1.bf16.msra.mxu0 %v1823
  %2457 = vmatprep.subr.bf16.mxu0 0
  %2458 = vmatpush1.bf16.msra.mxu0 %v1824
  %2459 = vmatprep.subr.bf16.mxu0 0
  %2460 = vmatpush1.bf16.msra.mxu0 %v1825
  %2461 = vmatprep.subr.bf16.mxu0 0
  %2462 = vmatpush1.bf16.msra.mxu0 %v1826
  %2463 = vmatprep.subr.bf16.mxu0 0
  %2464 = vmatpush1.bf16.msra.mxu0 %v1827
  %2465 = vmatprep.subr.bf16.mxu0 0
  %2466 = vmatpush1.bf16.msra.mxu0 %v1828
  %2467 = vmatprep.subr.bf16.mxu0 0
  %2468 = vmatpush1.bf16.msra.mxu0 %v1829
  %2469 = vmatprep.subr.bf16.mxu0 0
  %2470 = vmatpush1.bf16.msra.mxu0 %v1830
  %2471 = vmatprep.subr.bf16.mxu0 0
  %2472 = vmatpush1.bf16.msra.mxu0 %v1831
  %2473 = vmatprep.subr.bf16.mxu0 0
  %2474 = vmatpush1.bf16.msra.mxu0 %v1832
  %2475 = vmatprep.subr.bf16.mxu0 0
  %2476 = vmatpush1.bf16.msra.mxu0 %v1833
  %2477 = vmatprep.subr.bf16.mxu0 0
  %2478 = vmatpush1.bf16.msra.mxu0 %v1834
  %2479 = vmatprep.subr.bf16.mxu0 0
  %2480 = vmatpush1.bf16.msra.mxu0 %v1835
  %2481 = vmatprep.mubr.bf16.mxu0 %v688
  %2482 = vmatmul.mubr.bf16.gmra.mrb[0].mxu0 %v687
  %v2483 = vpop.f32.mrb[0].mxu0
  %v2484 = vadd.f32 %v2443, %v2483
  %v2485 = vpop.f32.mrb[0].mxu0
  %v2486 = vpop.f32.mrb[0].mxu0
  %v2487 = vadd.f32 %v2446, %v2486
  %v2488 = vpop.f32.mrb[0].mxu0
  %2489 = vdwg.mxu0
  %2490 = vmatprep.subr.bf16.mxu0 0
  %2491 = vmatpush1.bf16.msra.mxu0 %v1836
  %2492 = vmatprep.subr.bf16.mxu0 0
  %2493 = vmatpush1.bf16.msra.mxu0 %v1837
  %2494 = vmatprep.subr.bf16.mxu0 0
  %2495 = vmatpush1.bf16.msra.mxu0 %v1838
  %2496 = vmatprep.subr.bf16.mxu0 0
  %2497 = vmatpush1.bf16.msra.mxu0 %v1839
  %2498 = vmatprep.subr.bf16.mxu0 0
  %2499 = vmatpush1.bf16.msra.mxu0 %v1840
  %2500 = vmatprep.subr.bf16.mxu0 0
  %2501 = vmatpush1.bf16.msra.mxu0 %v1841
  %2502 = vmatprep.subr.bf16.mxu0 0
  %2503 = vmatpush1.bf16.msra.mxu0 %v1842
  %2504 = vmatprep.subr.bf16.mxu0 0
  %2505 = vmatpush1.bf16.msra.mxu0 %v1843
  %2506 = vmatprep.subr.bf16.mxu0 0
  %2507 = vmatpush1.bf16.msra.mxu0 %v1844
  %2508 = vmatprep.subr.bf16.mxu0 0
  %2509 = vmatpush1.bf16.msra.mxu0 %v1845
  %2510 = vmatprep.subr.bf16.mxu0 0
  %2511 = vmatpush1.bf16.msra.mxu0 %v1846
  %2512 = vmatprep.subr.bf16.mxu0 0
  %2513 = vmatpush1.bf16.msra.mxu0 %v1847
  %2514 = vmatprep.subr.bf16.mxu0 0
  %2515 = vmatpush1.bf16.msra.mxu0 %v1848
  %2516 = vmatprep.subr.bf16.mxu0 0
  %2517 = vmatpush1.bf16.msra.mxu0 %v1849
  %2518 = vmatprep.subr.bf16.mxu0 0
  %2519 = vmatpush1.bf16.msra.mxu0 %v1850
  %2520 = vmatprep.subr.bf16.mxu0 0
  %2521 = vmatpush1.bf16.msra.mxu0 %v1851
  %2522 = vmatprep.mubr.bf16.mxu0 %v690
  %2523 = vmatmul.mubr.bf16.gmra.mrb[0].mxu0 %v689
  %v2524 = vpop.f32.mrb[0].mxu0
  %v2525 = vadd.f32 %v2484, %v2524
  %v2526 = vpop.f32.mrb[0].mxu0
  %v2527 = vpop.f32.mrb[0].mxu0
  %v2528 = vadd.f32 %v2487, %v2527
  %v2529 = vpop.f32.mrb[0].mxu0
  %2530 = vdwg.mxu0
  %2531 = vmatprep.subr.bf16.mxu0 0
  %2532 = vmatpush1.bf16.msra.mxu0 %v1852
  %2533 = vmatprep.subr.bf16.mxu0 0
  %2534 = vmatpush1.bf16.msra.mxu0 %v1853
  %2535 = vmatprep.subr.bf16.mxu0 0
  %2536 = vmatpush1.bf16.msra.mxu0 %v1854
  %2537 = vmatprep.subr.bf16.mxu0 0
  %2538 = vmatpush1.bf16.msra.mxu0 %v1855
  %2539 = vmatprep.subr.bf16.mxu0 0
  %2540 = vmatpush1.bf16.msra.mxu0 %v1856
  %2541 = vmatprep.subr.bf16.mxu0 0
  %2542 = vmatpush1.bf16.msra.mxu0 %v1857
  %2543 = vmatprep.subr.bf16.mxu0 0
  %2544 = vmatpush1.bf16.msra.mxu0 %v1858
  %2545 = vmatprep.subr.bf16.mxu0 0
  %2546 = vmatpush1.bf16.msra.mxu0 %v1859
  %2547 = vmatprep.subr.bf16.mxu0 0
  %2548 = vmatpush1.bf16.msra.mxu0 %v1860
  %2549 = vmatprep.subr.bf16.mxu0 0
  %2550 = vmatpush1.bf16.msra.mxu0 %v1861
  %2551 = vmatprep.subr.bf16.mxu0 0
  %2552 = vmatpush1.bf16.msra.mxu0 %v1862
  %2553 = vmatprep.subr.bf16.mxu0 0
  %2554 = vmatpush1.bf16.msra.mxu0 %v1863
  %2555 = vmatprep.subr.bf16.mxu0 0
  %2556 = vmatpush1.bf16.msra.mxu0 %v1864
  %2557 = vmatprep.subr.bf16.mxu0 0
  %2558 = vmatpush1.bf16.msra.mxu0 %v1865
  %2559 = vmatprep.subr.bf16.mxu0 0
  %2560 = vmatpush1.bf16.msra.mxu0 %v1866
  %2561 = vmatprep.subr.bf16.mxu0 0
  %2562 = vmatpush1.bf16.msra.mxu0 %v1867
  %2563 = vmatprep.mubr.bf16.mxu0 %v692
  %2564 = vmatmul.mubr.bf16.gmra.mrb[0].mxu0 %v691
  %v2565 = vpop.f32.mrb[0].mxu0
  %v2566 = vadd.f32 %v2525, %v2565
  %v2567 = vpop.f32.mrb[0].mxu0
  %v2568 = vpop.f32.mrb[0].mxu0
  %v2569 = vadd.f32 %v2528, %v2568
  %v2570 = vpop.f32.mrb[0].mxu0
  %2571 = vdwg.mxu0
  %2572 = vmatprep.subr.bf16.mxu0 0
  %2573 = vmatpush1.bf16.msra.mxu0 %v1868
  %2574 = vmatprep.subr.bf16.mxu0 0
  %2575 = vmatpush1.bf16.msra.mxu0 %v1869
  %2576 = vmatprep.subr.bf16.mxu0 0
  %2577 = vmatpush1.bf16.msra.mxu0 %v1870
  %2578 = vmatprep.subr.bf16.mxu0 0
  %2579 = vmatpush1.bf16.msra.mxu0 %v1871
  %2580 = vmatprep.subr.bf16.mxu0 0
  %2581 = vmatpush1.bf16.msra.mxu0 %v1872
  %2582 = vmatprep.subr.bf16.mxu0 0
  %2583 = vmatpush1.bf16.msra.mxu0 %v1873
  %2584 = vmatprep.subr.bf16.mxu0 0
  %2585 = vmatpush1.bf16.msra.mxu0 %v1874
  %2586 = vmatprep.subr.bf16.mxu0 0
  %2587 = vmatpush1.bf16.msra.mxu0 %v1875
  %2588 = vmatprep.subr.bf16.mxu0 0
  %2589 = vmatpush1.bf16.msra.mxu0 %v1876
  %2590 = vmatprep.subr.bf16.mxu0 0
  %2591 = vmatpush1.bf16.msra.mxu0 %v1877
  %2592 = vmatprep.subr.bf16.mxu0 0
  %2593 = vmatpush1.bf16.msra.mxu0 %v1878
  %2594 = vmatprep.subr.bf16.mxu0 0
  %2595 = vmatpush1.bf16.msra.mxu0 %v1879
  %2596 = vmatprep.subr.bf16.mxu0 0
  %2597 = vmatpush1.bf16.msra.mxu0 %v1880
  %2598 = vmatprep.subr.bf16.mxu0 0
  %2599 = vmatpush1.bf16.msra.mxu0 %v1881
  %2600 = vmatprep.subr.bf16.mxu0 0
  %2601 = vmatpush1.bf16.msra.mxu0 %v1882
  %2602 = vmatprep.subr.bf16.mxu0 0
  %2603 = vmatpush1.bf16.msra.mxu0 %v1883
  %2604 = vmatprep.mubr.bf16.mxu0 %v694
  %2605 = vmatmul.mubr.bf16.gmra.mrb[0].mxu0 %v693
  %v2606 = vpop.f32.mrb[0].mxu0
  %v2607 = vadd.f32 %v2566, %v2606
  %v2608 = vpop.f32.mrb[0].mxu0
  %v2609 = vpop.f32.mrb[0].mxu0
  %v2610 = vadd.f32 %v2569, %v2609
  %v2611 = vpop.f32.mrb[0].mxu0
  %2612 = vdwg.mxu0
  %2613 = vmatprep.subr.bf16.mxu0 0
  %2614 = vmatpush1.bf16.msra.mxu0 %v1884
  %2615 = vmatprep.subr.bf16.mxu0 0
  %2616 = vmatpush1.bf16.msra.mxu0 %v1885
  %2617 = vmatprep.subr.bf16.mxu0 0
  %2618 = vmatpush1.bf16.msra.mxu0 %v1886
  %2619 = vmatprep.subr.bf16.mxu0 0
  %2620 = vmatpush1.bf16.msra.mxu0 %v1887
  %2621 = vmatprep.subr.bf16.mxu0 0
  %2622 = vmatpush1.bf16.msra.mxu0 %v1888
  %2623 = vmatprep.subr.bf16.mxu0 0
  %2624 = vmatpush1.bf16.msra.mxu0 %v1889
  %2625 = vmatprep.subr.bf16.mxu0 0
  %2626 = vmatpush1.bf16.msra.mxu0 %v1890
  %2627 = vmatprep.subr.bf16.mxu0 0
  %2628 = vmatpush1.bf16.msra.mxu0 %v1891
  %2629 = vmatprep.subr.bf16.mxu0 0
  %2630 = vmatpush1.bf16.msra.mxu0 %v1892
  %2631 = vmatprep.subr.bf16.mxu0 0
  %2632 = vmatpush1.bf16.msra.mxu0 %v1893
  %2633 = vmatprep.subr.bf16.mxu0 0
  %2634 = vmatpush1.bf16.msra.mxu0 %v1894
  %2635 = vmatprep.subr.bf16.mxu0 0
  %2636 = vmatpush1.bf16.msra.mxu0 %v1895
  %2637 = vmatprep.subr.bf16.mxu0 0
  %2638 = vmatpush1.bf16.msra.mxu0 %v1896
  %2639 = vmatprep.subr.bf16.mxu0 0
  %2640 = vmatpush1.bf16.msra.mxu0 %v1897
  %2641 = vmatprep.subr.bf16.mxu0 0
  %2642 = vmatpush1.bf16.msra.mxu0 %v1898
  %2643 = vmatprep.subr.bf16.mxu0 0
  %2644 = vmatpush1.bf16.msra.mxu0 %v1899
  %2645 = vmatprep.mubr.bf16.mxu0 %v696
  %2646 = vmatmul.mubr.bf16.gmra.mrb[0].mxu0 %v695
  %v2647 = vpop.f32.mrb[0].mxu0
  %v2648 = vadd.f32 %v2607, %v2647
  %v2649 = vpop.f32.mrb[0].mxu0
  %v2650 = vpop.f32.mrb[0].mxu0
  %v2651 = vadd.f32 %v2610, %v2650
  %v2652 = vpop.f32.mrb[0].mxu0
  %2653 = vdwg.mxu0
  %2654 = vmatprep.subr.bf16.mxu0 0
  %2655 = vmatpush1.bf16.msra.mxu0 %v1900
  %2656 = vmatprep.subr.bf16.mxu0 0
  %2657 = vmatpush1.bf16.msra.mxu0 %v1901
  %2658 = vmatprep.subr.bf16.mxu0 0
  %2659 = vmatpush1.bf16.msra.mxu0 %v1902
  %2660 = vmatprep.subr.bf16.mxu0 0
  %2661 = vmatpush1.bf16.msra.mxu0 %v1903
  %2662 = vmatprep.subr.bf16.mxu0 0
  %2663 = vmatpush1.bf16.msra.mxu0 %v1904
  %2664 = vmatprep.subr.bf16.mxu0 0
  %2665 = vmatpush1.bf16.msra.mxu0 %v1905
  %2666 = vmatprep.subr.bf16.mxu0 0
  %2667 = vmatpush1.bf16.msra.mxu0 %v1906
  %2668 = vmatprep.subr.bf16.mxu0 0
  %2669 = vmatpush1.bf16.msra.mxu0 %v1907
  %2670 = vmatprep.subr.bf16.mxu0 0
  %2671 = vmatpush1.bf16.msra.mxu0 %v1908
  %2672 = vmatprep.subr.bf16.mxu0 0
  %2673 = vmatpush1.bf16.msra.mxu0 %v1909
  %2674 = vmatprep.subr.bf16.mxu0 0
  %2675 = vmatpush1.bf16.msra.mxu0 %v1910
  %2676 = vmatprep.subr.bf16.mxu0 0
  %2677 = vmatpush1.bf16.msra.mxu0 %v1911
  %2678 = vmatprep.subr.bf16.mxu0 0
  %2679 = vmatpush1.bf16.msra.mxu0 %v1912
  %2680 = vmatprep.subr.bf16.mxu0 0
  %2681 = vmatpush1.bf16.msra.mxu0 %v1913
  %2682 = vmatprep.subr.bf16.mxu0 0
  %2683 = vmatpush1.bf16.msra.mxu0 %v1914
  %2684 = vmatprep.subr.bf16.mxu0 0
  %2685 = vmatpush1.bf16.msra.mxu0 %v1915
  %2686 = vmatprep.mubr.bf16.mxu0 %v698
  %2687 = vmatmul.mubr.bf16.gmra.mrb[0].mxu0 %v697
  %v2688 = vpop.f32.mrb[0].mxu0
  %v2689 = vadd.f32 %v2648, %v2688
  %v2690 = vpop.f32.mrb[0].mxu0
  %v2691 = vpop.f32.mrb[0].mxu0
  %v2692 = vadd.f32 %v2651, %v2691
  %v2693 = vpop.f32.mrb[0].mxu0
  %2694 = vdwg.mxu0
  %2695 = vmatprep.subr.bf16.mxu0 0
  %2696 = vmatpush1.bf16.msra.mxu0 %v1916
  %2697 = vmatprep.subr.bf16.mxu0 0
  %2698 = vmatpush1.bf16.msra.mxu0 %v1917
  %2699 = vmatprep.subr.bf16.mxu0 0
  %2700 = vmatpush1.bf16.msra.mxu0 %v1918
  %2701 = vmatprep.subr.bf16.mxu0 0
  %2702 = vmatpush1.bf16.msra.mxu0 %v1919
  %2703 = vmatprep.subr.bf16.mxu0 0
  %2704 = vmatpush1.bf16.msra.mxu0 %v1920
  %2705 = vmatprep.subr.bf16.mxu0 0
  %2706 = vmatpush1.bf16.msra.mxu0 %v1921
  %2707 = vmatprep.subr.bf16.mxu0 0
  %2708 = vmatpush1.bf16.msra.mxu0 %v1922
  %2709 = vmatprep.subr.bf16.mxu0 0
  %2710 = vmatpush1.bf16.msra.mxu0 %v1923
  %2711 = vmatprep.subr.bf16.mxu0 0
  %2712 = vmatpush1.bf16.msra.mxu0 %v1924
  %2713 = vmatprep.subr.bf16.mxu0 0
  %2714 = vmatpush1.bf16.msra.mxu0 %v1925
  %2715 = vmatprep.subr.bf16.mxu0 0
  %2716 = vmatpush1.bf16.msra.mxu0 %v1926
  %2717 = vmatprep.subr.bf16.mxu0 0
  %2718 = vmatpush1.bf16.msra.mxu0 %v1927
  %2719 = vmatprep.subr.bf16.mxu0 0
  %2720 = vmatpush1.bf16.msra.mxu0 %v1928
  %2721 = vmatprep.subr.bf16.mxu0 0
  %2722 = vmatpush1.bf16.msra.mxu0 %v1929
  %2723 = vmatprep.subr.bf16.mxu0 0
  %2724 = vmatpush1.bf16.msra.mxu0 %v1930
  %2725 = vmatprep.subr.bf16.mxu0 0
  %2726 = vmatpush1.bf16.msra.mxu0 %v1931
  %2727 = vmatprep.mubr.bf16.mxu0 %v700
  %2728 = vmatmul.mubr.bf16.gmra.mrb[0].mxu0 %v699
  %v2729 = vpop.f32.mrb[0].mxu0
  %v2730 = vadd.f32 %v2689, %v2729
  %v2731 = vpop.f32.mrb[0].mxu0
  %v2732 = vpop.f32.mrb[0].mxu0
  %v2733 = vadd.f32 %v2692, %v2732
  %v2734 = vpop.f32.mrb[0].mxu0
  %2735 = vdwg.mxu0
  %2736 = vmatprep.subr.bf16.mxu0 0
  %2737 = vmatpush1.bf16.msra.mxu0 %v1932
  %2738 = vmatprep.subr.bf16.mxu0 0
  %2739 = vmatpush1.bf16.msra.mxu0 %v1933
  %2740 = vmatprep.subr.bf16.mxu0 0
  %2741 = vmatpush1.bf16.msra.mxu0 %v1934
  %2742 = vmatprep.subr.bf16.mxu0 0
  %2743 = vmatpush1.bf16.msra.mxu0 %v1935
  %2744 = vmatprep.subr.bf16.mxu0 0
  %2745 = vmatpush1.bf16.msra.mxu0 %v1936
  %2746 = vmatprep.subr.bf16.mxu0 0
  %2747 = vmatpush1.bf16.msra.mxu0 %v1937
  %2748 = vmatprep.subr.bf16.mxu0 0
  %2749 = vmatpush1.bf16.msra.mxu0 %v1938
  %2750 = vmatprep.subr.bf16.mxu0 0
  %2751 = vmatpush1.bf16.msra.mxu0 %v1939
  %2752 = vmatprep.subr.bf16.mxu0 0
  %2753 = vmatpush1.bf16.msra.mxu0 %v1940
  %2754 = vmatprep.subr.bf16.mxu0 0
  %2755 = vmatpush1.bf16.msra.mxu0 %v1941
  %2756 = vmatprep.subr.bf16.mxu0 0
  %2757 = vmatpush1.bf16.msra.mxu0 %v1942
  %2758 = vmatprep.subr.bf16.mxu0 0
  %2759 = vmatpush1.bf16.msra.mxu0 %v1943
  %2760 = vmatprep.subr.bf16.mxu0 0
  %2761 = vmatpush1.bf16.msra.mxu0 %v1944
  %2762 = vmatprep.subr.bf16.mxu0 0
  %2763 = vmatpush1.bf16.msra.mxu0 %v1945
  %2764 = vmatprep.subr.bf16.mxu0 0
  %2765 = vmatpush1.bf16.msra.mxu0 %v1946
  %2766 = vmatprep.subr.bf16.mxu0 0
  %2767 = vmatpush1.bf16.msra.mxu0 %v1947
  %2768 = vmatprep.mubr.bf16.mxu0 %v702
  %2769 = vmatmul.mubr.bf16.gmra.mrb[0].mxu0 %v701
  %v2770 = vpop.f32.mrb[0].mxu0
  %v2771 = vadd.f32 %v2730, %v2770
  %v2772 = vpop.f32.mrb[0].mxu0
  %v2773 = vpop.f32.mrb[0].mxu0
  %v2774 = vadd.f32 %v2733, %v2773
  %v2775 = vpop.f32.mrb[0].mxu0
  %2776 = vdwg.mxu0
  %2777 = vmatprep.subr.bf16.mxu0 0
  %2778 = vmatpush1.bf16.msra.mxu0 %v1948
  %2779 = vmatprep.subr.bf16.mxu0 0
  %2780 = vmatpush1.bf16.msra.mxu0 %v1949
  %2781 = vmatprep.subr.bf16.mxu0 0
  %2782 = vmatpush1.bf16.msra.mxu0 %v1950
  %2783 = vmatprep.subr.bf16.mxu0 0
  %2784 = vmatpush1.bf16.msra.mxu0 %v1951
  %2785 = vmatprep.subr.bf16.mxu0 0
  %2786 = vmatpush1.bf16.msra.mxu0 %v1952
  %2787 = vmatprep.subr.bf16.mxu0 0
  %2788 = vmatpush1.bf16.msra.mxu0 %v1953
  %2789 = vmatprep.subr.bf16.mxu0 0
  %2790 = vmatpush1.bf16.msra.mxu0 %v1954
  %2791 = vmatprep.subr.bf16.mxu0 0
  %2792 = vmatpush1.bf16.msra.mxu0 %v1955
  %2793 = vmatprep.subr.bf16.mxu0 0
  %2794 = vmatpush1.bf16.msra.mxu0 %v1956
  %2795 = vmatprep.subr.bf16.mxu0 0
  %2796 = vmatpush1.bf16.msra.mxu0 %v1957
  %2797 = vmatprep.subr.bf16.mxu0 0
  %2798 = vmatpush1.bf16.msra.mxu0 %v1958
  %2799 = vmatprep.subr.bf16.mxu0 0
  %2800 = vmatpush1.bf16.msra.mxu0 %v1959
  %2801 = vmatprep.subr.bf16.mxu0 0
  %2802 = vmatpush1.bf16.msra.mxu0 %v1960
  %2803 = vmatprep.subr.bf16.mxu0 0
  %2804 = vmatpush1.bf16.msra.mxu0 %v1961
  %2805 = vmatprep.subr.bf16.mxu0 0
  %2806 = vmatpush1.bf16.msra.mxu0 %v1962
  %2807 = vmatprep.subr.bf16.mxu0 0
  %2808 = vmatpush1.bf16.msra.mxu0 %v1963
  %2809 = vmatprep.mubr.bf16.mxu0 %v704
  %2810 = vmatmul.mubr.bf16.gmra.mrb[0].mxu0 %v703
  %v2811 = vpop.f32.mrb[0].mxu0
  %v2812 = vadd.f32 %v2771, %v2811
  %v2813 = vpop.f32.mrb[0].mxu0
  %v2814 = vpop.f32.mrb[0].mxu0
  %v2815 = vadd.f32 %v2774, %v2814
  %v2816 = vpop.f32.mrb[0].mxu0
  %2817 = vdwg.mxu0
  %2818 = vmatprep.subr.bf16.mxu0 0
  %2819 = vmatpush1.bf16.msra.mxu0 %v1964
  %2820 = vmatprep.subr.bf16.mxu0 0
  %2821 = vmatpush1.bf16.msra.mxu0 %v1965
  %2822 = vmatprep.subr.bf16.mxu0 0
  %2823 = vmatpush1.bf16.msra.mxu0 %v1966
  %2824 = vmatprep.subr.bf16.mxu0 0
  %2825 = vmatpush1.bf16.msra.mxu0 %v1967
  %2826 = vmatprep.subr.bf16.mxu0 0
  %2827 = vmatpush1.bf16.msra.mxu0 %v1968
  %2828 = vmatprep.subr.bf16.mxu0 0
  %2829 = vmatpush1.bf16.msra.mxu0 %v1969
  %2830 = vmatprep.subr.bf16.mxu0 0
  %2831 = vmatpush1.bf16.msra.mxu0 %v1970
  %2832 = vmatprep.subr.bf16.mxu0 0
  %2833 = vmatpush1.bf16.msra.mxu0 %v1971
  %2834 = vmatprep.subr.bf16.mxu0 0
  %2835 = vmatpush1.bf16.msra.mxu0 %v1972
  %2836 = vmatprep.subr.bf16.mxu0 0
  %2837 = vmatpush1.bf16.msra.mxu0 %v1973
  %2838 = vmatprep.subr.bf16.mxu0 0
  %2839 = vmatpush1.bf16.msra.mxu0 %v1974
  %2840 = vmatprep.subr.bf16.mxu0 0
  %2841 = vmatpush1.bf16.msra.mxu0 %v1975
  %2842 = vmatprep.subr.bf16.mxu0 0
  %2843 = vmatpush1.bf16.msra.mxu0 %v1976
  %2844 = vmatprep.subr.bf16.mxu0 0
  %2845 = vmatpush1.bf16.msra.mxu0 %v1977
  %2846 = vmatprep.subr.bf16.mxu0 0
  %2847 = vmatpush1.bf16.msra.mxu0 %v1978
  %2848 = vmatprep.subr.bf16.mxu0 0
  %2849 = vmatpush1.bf16.msra.mxu0 %v1979
  %2850 = vmatprep.mubr.bf16.mxu0 %v706
  %2851 = vmatmul.mubr.bf16.gmra.mrb[0].mxu0 %v705
  %v2852 = vpop.f32.mrb[0].mxu0
  %v2853 = vadd.f32 %v2812, %v2852
  %v2854 = vpop.f32.mrb[0].mxu0
  %v2855 = vpop.f32.mrb[0].mxu0
  %v2856 = vadd.f32 %v2815, %v2855
  %v2857 = vpop.f32.mrb[0].mxu0
  %2858 = vdwg.mxu0
  %2859 = vmatprep.subr.bf16.mxu0 0
  %2860 = vmatpush1.bf16.msra.mxu0 %v1980
  %2861 = vmatprep.subr.bf16.mxu0 0
  %2862 = vmatpush1.bf16.msra.mxu0 %v1981
  %2863 = vmatprep.subr.bf16.mxu0 0
  %2864 = vmatpush1.bf16.msra.mxu0 %v1982
  %2865 = vmatprep.subr.bf16.mxu0 0
  %2866 = vmatpush1.bf16.msra.mxu0 %v1983
  %2867 = vmatprep.subr.bf16.mxu0 0
  %2868 = vmatpush1.bf16.msra.mxu0 %v1984
  %2869 = vmatprep.subr.bf16.mxu0 0
  %2870 = vmatpush1.bf16.msra.mxu0 %v1985
  %2871 = vmatprep.subr.bf16.mxu0 0
  %2872 = vmatpush1.bf16.msra.mxu0 %v1986
  %2873 = vmatprep.subr.bf16.mxu0 0
  %2874 = vmatpush1.bf16.msra.mxu0 %v1987
  %2875 = vmatprep.subr.bf16.mxu0 0
  %2876 = vmatpush1.bf16.msra.mxu0 %v1988
  %2877 = vmatprep.subr.bf16.mxu0 0
  %2878 = vmatpush1.bf16.msra.mxu0 %v1989
  %2879 = vmatprep.subr.bf16.mxu0 0
  %2880 = vmatpush1.bf16.msra.mxu0 0
  %2881 = vmatprep.subr.bf16.mxu0 0
  %2882 = vmatpush1.bf16.msra.mxu0 0
  %2883 = vmatprep.subr.bf16.mxu0 0
  %2884 = vmatpush1.bf16.msra.mxu0 0
  %2885 = vmatprep.subr.bf16.mxu0 0
  %2886 = vmatpush1.bf16.msra.mxu0 0
  %2887 = vmatprep.subr.bf16.mxu0 0
  %2888 = vmatpush1.bf16.msra.mxu0 0
  %2889 = vmatprep.subr.bf16.mxu0 0
  %2890 = vmatpush1.bf16.msra.mxu0 0
  %2891 = vmatprep.mubr.bf16.mxu0 %v2242
  %2892 = vmatmul.mubr.bf16.gmra.mrb[0].mxu0 %v707
  %v2893 = vpop.f32.mrb[0].mxu0
  %v2894 = vadd.f32 %v2853, %v2893
  %v2895 = vpop.f32.mrb[0].mxu0
  %v2896 = vpop.f32.mrb[0].mxu0
  %v2897 = vadd.f32 %v2856, %v2896
  %v2898 = vpop.f32.mrb[0].mxu0
  %2899 = vdwg.mxu0
  %v2900 = vmul.f32 %v2894, 0.2
  %v2901 = vmul.f32 %v2897, 0.2
  %v2902 = vmax.f32 %v2894, %v2900
  %v2903 = vmax.f32 %v2897, %v2901
  %v2904 = vpack.c.bf16 %v2903, %v2902
  %v2905 = vld [vmem:[%s3] sm:$0xf]
  %v2906 = vld [vmem:[%s3 + $0x4] sm:$0xf]
  %v2907 = vld [vmem:[%s3 + $0x8] sm:$0xf]
  %v2908 = vld [vmem:[%s3 + $0xc] sm:$0xf]
  %v2909 = vld [vmem:[%s3 + $0x10] sm:$0xf]
  %v2910 = vld [vmem:[%s3 + $0x14] sm:$0xf]
  %v2911 = vld [vmem:[%s3 + $0x18] sm:$0xf]
  %v2912 = vld [vmem:[%s3 + $0x1c] sm:$0xf]
  %v2913 = vld [vmem:[%s4] sm:$0x1]
  %v2915 = vlaneseq
  %v2916 = vshrl.u32 %v2915, 7
  %v2917 = vsub.s32 0, %v2916
  %v2918 = vrot.slane %v2913, %v2917
  %v2928 = vunpack.c.l.b16 %v2905
  %v2929 = vunpack.c.l.b16 %v2906
  %v2930 = vunpack.c.l.b16 %v2907
  %v2931 = vunpack.c.l.b16 %v2908
  %v2932 = vunpack.c.l.b16 %v2909
  %v2933 = vunpack.c.l.b16 %v2910
  %v2934 = vunpack.c.l.b16 %v2911
  %v2935 = vunpack.c.l.b16 %v2912
  %v2936 = vpack.c.b16 %v2929, %v2928
  %v2937 = vpack.c.b16 %v2931, %v2930
  %v2938 = vpack.c.b16 %v2933, %v2932
  %v2939 = vpack.c.b16 %v2935, %v2934
  %vm2944 = vcmask 523264
  %v2946 = vsel %vm2944, %v2904, 0
  %2948 = vmatprep.subr.bf16.mxu0 0
  %2949 = vmatpush1.bf16.msra.mxu0 %v2936
  %2950 = vmatprep.subr.bf16.mxu0 0
  %2951 = vmatpush1.bf16.msra.mxu0 %v2937
  %2952 = vmatprep.subr.bf16.mxu0 0
  %2953 = vmatpush1.bf16.msra.mxu0 %v2938
  %2954 = vmatprep.subr.bf16.mxu0 0
  %2955 = vmatpush1.bf16.msra.mxu0 %v2939
  %2956 = vmatprep.subr.bf16.mxu0 0
  %2957 = vmatpush1.bf16.msra.mxu0 0
  %2958 = vmatprep.subr.bf16.mxu0 0
  %2959 = vmatpush1.bf16.msra.mxu0 0
  %2960 = vmatprep.subr.bf16.mxu0 0
  %2961 = vmatpush1.bf16.msra.mxu0 0
  %2962 = vmatprep.subr.bf16.mxu0 0
  %2963 = vmatpush1.bf16.msra.mxu0 0
  %2964 = vmatprep.subr.bf16.mxu0 0
  %2965 = vmatpush1.bf16.msra.mxu0 0
  %2966 = vmatprep.subr.bf16.mxu0 0
  %2967 = vmatpush1.bf16.msra.mxu0 0
  %2968 = vmatprep.subr.bf16.mxu0 0
  %2969 = vmatpush1.bf16.msra.mxu0 0
  %2970 = vmatprep.subr.bf16.mxu0 0
  %2971 = vmatpush1.bf16.msra.mxu0 0
  %2972 = vmatprep.subr.bf16.mxu0 0
  %2973 = vmatpush1.bf16.msra.mxu0 0
  %2974 = vmatprep.subr.bf16.mxu0 0
  %2975 = vmatpush1.bf16.msra.mxu0 0
  %2976 = vmatprep.subr.bf16.mxu0 0
  %2977 = vmatpush1.bf16.msra.mxu0 0
  %2978 = vmatprep.subr.bf16.mxu0 0
  %2979 = vmatpush1.bf16.msra.mxu0 0
  %2980 = vmatprep.mubr.bf16.mxu0 0
  %2981 = vmatmul.mubr.bf16.gmra.mrb[0].mxu0 %v2946
  %v2982 = vpop.f32.mrb[0].mxu0
  %v2983 = vadd.f32 %v2918, %v2982
  %v2984 = vpop.f32.mrb[0].mxu0
  %v2985 = vpop.f32.mrb[0].mxu0
  %v2986 = vadd.f32 %v2918, %v2985
  %v2987 = vpop.f32.mrb[0].mxu0
  %2988 = vdwg.mxu0
  %v2989 = vmul.f32 %v2983, 0.2
  %v2990 = vmul.f32 %v2986, 0.2
  %v2991 = vmax.f32 %v2983, %v2989
  %v2992 = vmax.f32 %v2986, %v2990
  %v2993 = vpack.c.bf16 %v2992, %v2991
  %v2994 = vld [vmem:[%s5] sm:$0xf]
  %v2995 = vld [vmem:[%s5 + $0x4] sm:$0xf]
  %v2996 = vld [vmem:[%s5 + $0x8] sm:$0xf]
  %v2997 = vld [vmem:[%s5 + $0xc] sm:$0xf]
  %v2998 = vld [vmem:[%s5 + $0x10] sm:$0xf]
  %v2999 = vld [vmem:[%s5 + $0x14] sm:$0xf]
  %v3000 = vld [vmem:[%s5 + $0x18] sm:$0xf]
  %v3001 = vld [vmem:[%s5 + $0x1c] sm:$0xf]
  %v3002 = vld [vmem:[%s6] sm:$0x1]
  %v3004 = vlaneseq
  %v3005 = vshrl.u32 %v3004, 7
  %v3006 = vsub.s32 0, %v3005
  %v3007 = vrot.slane %v3002, %v3006
  %v3017 = vunpack.c.l.b16 %v2994
  %v3018 = vunpack.c.l.b16 %v2995
  %v3019 = vunpack.c.l.b16 %v2996
  %v3020 = vunpack.c.l.b16 %v2997
  %v3021 = vunpack.c.l.b16 %v2998
  %v3022 = vunpack.c.l.b16 %v2999
  %v3023 = vunpack.c.l.b16 %v3000
  %v3024 = vunpack.c.l.b16 %v3001
  %v3025 = vpack.c.b16 %v3018, %v3017
  %v3026 = vpack.c.b16 %v3020, %v3019
  %v3027 = vpack.c.b16 %v3022, %v3021
  %v3028 = vpack.c.b16 %v3024, %v3023
  %v3034 = vsel %vm2944, %v2993, 0
  %3036 = vmatprep.subr.bf16.mxu0 0
  %3037 = vmatpush1.bf16.msra.mxu0 %v3025
  %3038 = vmatprep.subr.bf16.mxu0 0
  %3039 = vmatpush1.bf16.msra.mxu0 %v3026
  %3040 = vmatprep.subr.bf16.mxu0 0
  %3041 = vmatpush1.bf16.msra.mxu0 %v3027
  %3042 = vmatprep.subr.bf16.mxu0 0
  %3043 = vmatpush1.bf16.msra.mxu0 %v3028
  %3044 = vmatprep.subr.bf16.mxu0 0
  %3045 = vmatpush1.bf16.msra.mxu0 0
  %3046 = vmatprep.subr.bf16.mxu0 0
  %3047 = vmatpush1.bf16.msra.mxu0 0
  %3048 = vmatprep.subr.bf16.mxu0 0
  %3049 = vmatpush1.bf16.msra.mxu0 0
  %3050 = vmatprep.subr.bf16.mxu0 0
  %3051 = vmatpush1.bf16.msra.mxu0 0
  %3052 = vmatprep.subr.bf16.mxu0 0
  %3053 = vmatpush1.bf16.msra.mxu0 0
  %3054 = vmatprep.subr.bf16.mxu0 0
  %3055 = vmatpush1.bf16.msra.mxu0 0
  %3056 = vmatprep.subr.bf16.mxu0 0
  %3057 = vmatpush1.bf16.msra.mxu0 0
  %3058 = vmatprep.subr.bf16.mxu0 0
  %3059 = vmatpush1.bf16.msra.mxu0 0
  %3060 = vmatprep.subr.bf16.mxu0 0
  %3061 = vmatpush1.bf16.msra.mxu0 0
  %3062 = vmatprep.subr.bf16.mxu0 0
  %3063 = vmatpush1.bf16.msra.mxu0 0
  %3064 = vmatprep.subr.bf16.mxu0 0
  %3065 = vmatpush1.bf16.msra.mxu0 0
  %3066 = vmatprep.subr.bf16.mxu0 0
  %3067 = vmatpush1.bf16.msra.mxu0 0
  %3068 = vmatprep.mubr.bf16.mxu0 0
  %3069 = vmatmul.mubr.bf16.gmra.mrb[0].mxu0 %v3034
  %v3070 = vpop.f32.mrb[0].mxu0
  %v3071 = vadd.f32 %v3007, %v3070
  %v3072 = vpop.f32.mrb[0].mxu0
  %v3073 = vpop.f32.mrb[0].mxu0
  %v3074 = vadd.f32 %v3007, %v3073
  %v3075 = vpop.f32.mrb[0].mxu0
  %3076 = vdwg.mxu0
  %v3077 = vmul.f32 %v3071, 0.2
  %v3078 = vmul.f32 %v3074, 0.2
  %v3079 = vmax.f32 %v3071, %v3077
  %v3080 = vmax.f32 %v3074, %v3078
  %v3081 = vpack.c.bf16 %v3080, %v3079
  %v3082 = vld [vmem:[%s7] sm:$0xf]
  %v3083 = vld [vmem:[%s7 + $0x4] sm:$0xf]
  %v3084 = vld [vmem:[%s7 + $0x8] sm:$0xf]
  %v3085 = vld [vmem:[%s7 + $0xc] sm:$0xf]
  %v3086 = vld [vmem:[%s7 + $0x10] sm:$0xf]
  %v3087 = vld [vmem:[%s7 + $0x14] sm:$0xf]
  %v3088 = vld [vmem:[%s7 + $0x18] sm:$0xf]
  %v3089 = vld [vmem:[%s7 + $0x1c] sm:$0xf]
  %v3090 = vld [vmem:[%s8] sm:$0x1]
  %v3092 = vlaneseq
  %v3093 = vshrl.u32 %v3092, 7
  %v3094 = vsub.s32 0, %v3093
  %v3095 = vrot.slane %v3090, %v3094
  %v3105 = vunpack.c.l.b16 %v3082
  %v3106 = vunpack.c.l.b16 %v3083
  %v3107 = vunpack.c.l.b16 %v3084
  %v3108 = vunpack.c.l.b16 %v3085
  %v3109 = vunpack.c.l.b16 %v3086
  %v3110 = vunpack.c.l.b16 %v3087
  %v3111 = vunpack.c.l.b16 %v3088
  %v3112 = vunpack.c.l.b16 %v3089
  %v3113 = vpack.c.b16 %v3106, %v3105
  %v3114 = vpack.c.b16 %v3108, %v3107
  %v3115 = vpack.c.b16 %v3110, %v3109
  %v3116 = vpack.c.b16 %v3112, %v3111
  %v3122 = vsel %vm2944, %v3081, 0
  %3124 = vmatprep.subr.bf16.mxu0 0
  %3125 = vmatpush1.bf16.msra.mxu0 %v3113
  %3126 = vmatprep.subr.bf16.mxu0 0
  %3127 = vmatpush1.bf16.msra.mxu0 %v3114
  %3128 = vmatprep.subr.bf16.mxu0 0
  %3129 = vmatpush1.bf16.msra.mxu0 %v3115
  %3130 = vmatprep.subr.bf16.mxu0 0
  %3131 = vmatpush1.bf16.msra.mxu0 %v3116
  %3132 = vmatprep.subr.bf16.mxu0 0
  %3133 = vmatpush1.bf16.msra.mxu0 0
  %3134 = vmatprep.subr.bf16.mxu0 0
  %3135 = vmatpush1.bf16.msra.mxu0 0
  %3136 = vmatprep.subr.bf16.mxu0 0
  %3137 = vmatpush1.bf16.msra.mxu0 0
  %3138 = vmatprep.subr.bf16.mxu0 0
  %3139 = vmatpush1.bf16.msra.mxu0 0
  %3140 = vmatprep.subr.bf16.mxu0 0
  %3141 = vmatpush1.bf16.msra.mxu0 0
  %3142 = vmatprep.subr.bf16.mxu0 0
  %3143 = vmatpush1.bf16.msra.mxu0 0
  %3144 = vmatprep.subr.bf16.mxu0 0
  %3145 = vmatpush1.bf16.msra.mxu0 0
  %3146 = vmatprep.subr.bf16.mxu0 0
  %3147 = vmatpush1.bf16.msra.mxu0 0
  %3148 = vmatprep.subr.bf16.mxu0 0
  %3149 = vmatpush1.bf16.msra.mxu0 0
  %3150 = vmatprep.subr.bf16.mxu0 0
  %3151 = vmatpush1.bf16.msra.mxu0 0
  %3152 = vmatprep.subr.bf16.mxu0 0
  %3153 = vmatpush1.bf16.msra.mxu0 0
  %3154 = vmatprep.subr.bf16.mxu0 0
  %3155 = vmatpush1.bf16.msra.mxu0 0
  %3156 = vmatprep.mubr.bf16.mxu0 0
  %3157 = vmatmul.mubr.bf16.gmra.mrb[0].mxu0 %v3122
  %v3158 = vpop.f32.mrb[0].mxu0
  %v3159 = vadd.f32 %v3095, %v3158
  %v3160 = vpop.f32.mrb[0].mxu0
  %v3161 = vpop.f32.mrb[0].mxu0
  %v3162 = vadd.f32 %v3095, %v3161
  %v3163 = vpop.f32.mrb[0].mxu0
  %3164 = vdwg.mxu0
  %v3165 = vmul.f32 %v3159, 0.2
  %v3166 = vmul.f32 %v3162, 0.2
  %v3167 = vmax.f32 %v3159, %v3165
  %v3168 = vmax.f32 %v3162, %v3166
  %v3169 = vpack.c.bf16 %v3168, %v3167
  %v3170 = vld [vmem:[%s9] sm:$0xf]
  %v3171 = vld [vmem:[%s9 + $0x4] sm:$0xf]
  %v3172 = vld [vmem:[%s9 + $0x8] sm:$0xf]
  %v3173 = vld [vmem:[%s9 + $0xc] sm:$0xf]
  %v3174 = vld [vmem:[%s9 + $0x10] sm:$0xf]
  %v3175 = vld [vmem:[%s9 + $0x14] sm:$0xf]
  %v3176 = vld [vmem:[%s9 + $0x18] sm:$0xf]
  %v3177 = vld [vmem:[%s9 + $0x1c] sm:$0xf]
  %v3178 = vld [vmem:[%s10] sm:$0x1]
  %v3180 = vlaneseq
  %v3181 = vshrl.u32 %v3180, 7
  %v3182 = vsub.s32 0, %v3181
  %v3183 = vrot.slane %v3178, %v3182
  %v3193 = vunpack.c.l.b16 %v3170
  %v3194 = vunpack.c.l.b16 %v3171
  %v3195 = vunpack.c.l.b16 %v3172
  %v3196 = vunpack.c.l.b16 %v3173
  %v3197 = vunpack.c.l.b16 %v3174
  %v3198 = vunpack.c.l.b16 %v3175
  %v3199 = vunpack.c.l.b16 %v3176
  %v3200 = vunpack.c.l.b16 %v3177
  %v3201 = vpack.c.b16 %v3194, %v3193
  %v3202 = vpack.c.b16 %v3196, %v3195
  %v3203 = vpack.c.b16 %v3198, %v3197
  %v3204 = vpack.c.b16 %v3200, %v3199
  %v3210 = vsel %vm2944, %v3169, 0
  %3212 = vmatprep.subr.bf16.mxu0 0
  %3213 = vmatpush1.bf16.msra.mxu0 %v3201
  %3214 = vmatprep.subr.bf16.mxu0 0
  %3215 = vmatpush1.bf16.msra.mxu0 %v3202
  %3216 = vmatprep.subr.bf16.mxu0 0
  %3217 = vmatpush1.bf16.msra.mxu0 %v3203
  %3218 = vmatprep.subr.bf16.mxu0 0
  %3219 = vmatpush1.bf16.msra.mxu0 %v3204
  %3220 = vmatprep.subr.bf16.mxu0 0
  %3221 = vmatpush1.bf16.msra.mxu0 0
  %3222 = vmatprep.subr.bf16.mxu0 0
  %3223 = vmatpush1.bf16.msra.mxu0 0
  %3224 = vmatprep.subr.bf16.mxu0 0
  %3225 = vmatpush1.bf16.msra.mxu0 0
  %3226 = vmatprep.subr.bf16.mxu0 0
  %3227 = vmatpush1.bf16.msra.mxu0 0
  %3228 = vmatprep.subr.bf16.mxu0 0
  %3229 = vmatpush1.bf16.msra.mxu0 0
  %3230 = vmatprep.subr.bf16.mxu0 0
  %3231 = vmatpush1.bf16.msra.mxu0 0
  %3232 = vmatprep.subr.bf16.mxu0 0
  %3233 = vmatpush1.bf16.msra.mxu0 0
  %3234 = vmatprep.subr.bf16.mxu0 0
  %3235 = vmatpush1.bf16.msra.mxu0 0
  %3236 = vmatprep.subr.bf16.mxu0 0
  %3237 = vmatpush1.bf16.msra.mxu0 0
  %3238 = vmatprep.subr.bf16.mxu0 0
  %3239 = vmatpush1.bf16.msra.mxu0 0
  %3240 = vmatprep.subr.bf16.mxu0 0
  %3241 = vmatpush1.bf16.msra.mxu0 0
  %3242 = vmatprep.subr.bf16.mxu0 0
  %3243 = vmatpush1.bf16.msra.mxu0 0
  %3244 = vmatprep.mubr.bf16.mxu0 0
  %3245 = vmatmul.mubr.bf16.gmra.mrb[0].mxu0 %v3210
  %v3246 = vpop.f32.mrb[0].mxu0
  %v3247 = vadd.f32 %v3183, %v3246
  %v3248 = vpop.f32.mrb[0].mxu0
  %v3249 = vpop.f32.mrb[0].mxu0
  %v3250 = vadd.f32 %v3183, %v3249
  %v3251 = vpop.f32.mrb[0].mxu0
  %3252 = vdwg.mxu0
  %v3253 = vmul.f32 %v3247, 0.2
  %v3254 = vmul.f32 %v3250, 0.2
  %v3255 = vmax.f32 %v3247, %v3253
  %v3256 = vmax.f32 %v3250, %v3254
  %v3257 = vpack.c.bf16 %v3256, %v3255
  %v3258 = vld [vmem:[%s11] sm:$0xf]
  %v3259 = vld [vmem:[%s11 + $0x4] sm:$0xf]
  %v3260 = vld [vmem:[%s11 + $0x8] sm:$0xf]
  %v3261 = vld [vmem:[%s11 + $0xc] sm:$0xf]
  %v3262 = vld [vmem:[%s11 + $0x10] sm:$0xf]
  %v3263 = vld [vmem:[%s11 + $0x14] sm:$0xf]
  %v3264 = vld [vmem:[%s11 + $0x18] sm:$0xf]
  %v3265 = vld [vmem:[%s11 + $0x1c] sm:$0xf]
  %v3274 = vunpack.c.l.b16 %v3258
  %v3275 = vunpack.c.l.b16 %v3259
  %v3276 = vunpack.c.l.b16 %v3260
  %v3277 = vunpack.c.l.b16 %v3261
  %v3278 = vunpack.c.l.b16 %v3262
  %v3279 = vunpack.c.l.b16 %v3263
  %v3280 = vunpack.c.l.b16 %v3264
  %v3281 = vunpack.c.l.b16 %v3265
  %v3282 = vpack.c.b16 %v3275, %v3274
  %v3283 = vpack.c.b16 %v3277, %v3276
  %v3284 = vpack.c.b16 %v3279, %v3278
  %v3285 = vpack.c.b16 %v3281, %v3280
  %v3291 = vsel %vm2944, %v3257, 0
  %3293 = vmatprep.subr.bf16.mxu0 0
  %3294 = vmatpush1.bf16.msra.mxu0 %v3282
  %3295 = vmatprep.subr.bf16.mxu0 0
  %3296 = vmatpush1.bf16.msra.mxu0 %v3283
  %3297 = vmatprep.subr.bf16.mxu0 0
  %3298 = vmatpush1.bf16.msra.mxu0 %v3284
  %3299 = vmatprep.subr.bf16.mxu0 0
  %3300 = vmatpush1.bf16.msra.mxu0 %v3285
  %3301 = vmatprep.subr.bf16.mxu0 0
  %3302 = vmatpush1.bf16.msra.mxu0 0
  %3303 = vmatprep.subr.bf16.mxu0 0
  %3304 = vmatpush1.bf16.msra.mxu0 0
  %3305 = vmatprep.subr.bf16.mxu0 0
  %3306 = vmatpush1.bf16.msra.mxu0 0
  %3307 = vmatprep.subr.bf16.mxu0 0
  %3308 = vmatpush1.bf16.msra.mxu0 0
  %3309 = vmatprep.subr.bf16.mxu0 0
  %3310 = vmatpush1.bf16.msra.mxu0 0
  %3311 = vmatprep.subr.bf16.mxu0 0
  %3312 = vmatpush1.bf16.msra.mxu0 0
  %3313 = vmatprep.subr.bf16.mxu0 0
  %3314 = vmatpush1.bf16.msra.mxu0 0
  %3315 = vmatprep.subr.bf16.mxu0 0
  %3316 = vmatpush1.bf16.msra.mxu0 0
  %3317 = vmatprep.subr.bf16.mxu0 0
  %3318 = vmatpush1.bf16.msra.mxu0 0
  %3319 = vmatprep.subr.bf16.mxu0 0
  %3320 = vmatpush1.bf16.msra.mxu0 0
  %3321 = vmatprep.subr.bf16.mxu0 0
  %3322 = vmatpush1.bf16.msra.mxu0 0
  %3323 = vmatprep.subr.bf16.mxu0 0
  %3324 = vmatpush1.bf16.msra.mxu0 0
  %3325 = vmatprep.mubr.bf16.mxu0 0
  %3326 = vmatmul.mubr.bf16.gmra.mrb[0].mxu0 %v3291
  %v3327 = vpop.f32.mrb[0].mxu0
  %v3328 = vadd.f32 0.0, %v3327
  %v3329 = vpop.f32.mrb[0].mxu0
  %v3330 = vpop.f32.mrb[0].mxu0
  %v3331 = vadd.f32 0.0, %v3330
  %v3332 = vpop.f32.mrb[0].mxu0
  %3333 = vdwg.mxu0
  %vm3334 = vcmask 162816
  %3335 = vst.msk [vmem:[%s12] sm:$0xff] %vm3334, %v3328
  %3336 = vst.msk [vmem:[%s12 + $0x8] sm:$0xff] %vm3334, %v3331
  // Predicated region
  $region50: #{seqpred_forward.13} parent=0 // pred_check
    _
  $region51: #{seqpred_forward.13} parent=0 // pred_check_branch
    %3338 = sbr.rel (0) target = $region53
  $region52: #{seqpred_forward.13} parent=0 // pred_region
    _
  $region53: #{seqpred_forward.13} parent=0 // pred_fallthru
    _
  // Predicated region
  $region54: #{seqpred_forward.13} parent=0 // pred_check
    _
  $region55: #{seqpred_forward.13} parent=0 // pred_check_branch
    %3340 = sbr.rel (0) target = $region57
  $region56: #{seqpred_forward.13} parent=0 // pred_region
    _
  $region57: #{seqpred_forward.13} parent=0 // pred_fallthru
    _

</llo_original>
